<compile_context>
chip_gen: v7x
topology: tpu7x:2x2x1
jax: 0.10.0
libtpu: 0.0.40
codegen_flags: <defaults>
</compile_context>

<pallas_src>
from functools import partial

import jax
import jax.numpy as jnp
from jax.experimental import pallas as pl
from jax.experimental.pallas import tpu as pltpu

VMEM_SPEC = pl.BlockSpec(memory_space=pltpu.MemorySpace.VMEM)

_EGGC_KEYS = ("w_gate", "b_gate", "w_nbr", "b_nbr", "w_self", "b_self",
              "g_node", "bt_node", "g_edge", "bt_edge")


def _round_up(n, m):
    return ((n + m - 1) // m) * m


# --------------------------------------------------------------------------
# small in-kernel helpers (pure jnp, traced inside the Pallas bodies)
# --------------------------------------------------------------------------
def _silu(x):
    return x * jax.nn.sigmoid(x)


def _layernorm(h, gamma, beta, eps=1e-5):
    mu = jnp.mean(h, axis=-1, keepdims=True)
    var = jnp.mean((h - mu) ** 2, axis=-1, keepdims=True)
    return (h - mu) * jax.lax.rsqrt(var + eps) * gamma + beta


# --------------------------------------------------------------------------
# Pallas kernel 1: fused encoder  (3 x Linear+SiLU in one call)
# --------------------------------------------------------------------------
def _encoder_kernel(xa_ref, xb_ref, xg_ref,
                    wa_ref, ba_ref, wb_ref, bb_ref, wg_ref, bg_ref,
                    oa_ref, ob_ref, og_ref):
    oa_ref[...] = _silu(jnp.dot(xa_ref[...], wa_ref[...],
                                preferred_element_type=jnp.float32) + ba_ref[...])
    ob_ref[...] = _silu(jnp.dot(xb_ref[...], wb_ref[...],
                                preferred_element_type=jnp.float32) + bb_ref[...])
    og_ref[...] = _silu(jnp.dot(xg_ref[...], wg_ref[...],
                                preferred_element_type=jnp.float32) + bg_ref[...])


def encode(params, x_atm, x_bnd, x_ang):
    (wa, ba) = params["enc_atm"]
    (wb, bb) = params["enc_bnd"]
    (wg, bg) = params["enc_ang"]
    d = wa.shape[1]
    return pl.pallas_call(
        _encoder_kernel,
        out_shape=(jax.ShapeDtypeStruct((x_atm.shape[0], d), jnp.float32),
                   jax.ShapeDtypeStruct((x_bnd.shape[0], d), jnp.float32),
                   jax.ShapeDtypeStruct((x_ang.shape[0], d), jnp.float32)),
        in_specs=[VMEM_SPEC] * 9,
        out_specs=(VMEM_SPEC, VMEM_SPEC, VMEM_SPEC),
    )(x_atm, x_bnd, x_ang, wa, ba, wb, bb, wg, bg)


# --------------------------------------------------------------------------
# Pallas kernel 2: fused decoder MLP (Linear -> SiLU -> Linear), row-tiled
# --------------------------------------------------------------------------
def _decoder_kernel(h_ref, w1_ref, b1_ref, w2_ref, b2_ref, o_ref):
    h = _silu(jnp.dot(h_ref[...], w1_ref[...],
                      preferred_element_type=jnp.float32) + b1_ref[...])
    o_ref[...] = jnp.dot(h, w2_ref[...],
                         preferred_element_type=jnp.float32) + b2_ref[...]


def decode(params, h_atm, out_dim):
    w1, b1 = params["dec_1"]
    w2, b2 = params["dec_2"]          # lane-padded to 128 output columns
    n, d = h_atm.shape
    d_out_pad = w2.shape[1]
    row_tile = 128 if n >= 128 else _round_up(n, 8)
    n_pad = _round_up(n, row_tile)
    h = jnp.pad(h_atm, ((0, n_pad - n), (0, 0))) if n_pad != n else h_atm
    out = pl.pallas_call(
        _decoder_kernel,
        out_shape=jax.ShapeDtypeStruct((n_pad, d_out_pad), jnp.float32),
        grid=(n_pad // row_tile,),
        in_specs=[pl.BlockSpec((row_tile, d), lambda i: (i, 0)),
                  pl.BlockSpec((d, d), lambda i: (0, 0)),
                  pl.BlockSpec((1, d), lambda i: (0, 0)),
                  pl.BlockSpec((d, d_out_pad), lambda i: (0, 0)),
                  pl.BlockSpec((1, d_out_pad), lambda i: (0, 0))],
        out_specs=pl.BlockSpec((row_tile, d_out_pad), lambda i: (i, 0)),
        compiler_params=pltpu.CompilerParams(
            dimension_semantics=("parallel",)),
    )(h, w1, b1, w2, b2)
    return out[:n, :out_dim]


# --------------------------------------------------------------------------
# Pallas kernel 3: one fused ALIGNN layer
#   = EdgeGatedGraphConv on the line graph followed by EdgeGatedGraphConv on
#     the atom graph, bond features staying VMEM-resident in between.
# --------------------------------------------------------------------------
def _edge_gated_conv(x, e, src, dst, dst_t, p, dim):
    """EdgeGatedGraphConv on VMEM-resident values.

      e_new = [x_src | x_dst | e] @ W_gate + b_gate
      sigma = sigmoid(e_new)
      agg_i = sum_{j->i} sigma * (x_src @ W_nbr + b_nbr) / (sum_{j->i} sigma + eps)
      x_out = x + SiLU(LN(x @ W_self + b_self + agg))
      e_out = e + SiLU(LN(e_new))

    x: [N, D], e: [E, D], src/dst: [E, 1] int32, dst_t: [1, E] int32.
    """
    (w_gate, b_gate, w_nbr, b_nbr, w_self, b_self,
     g_node, bt_node, g_edge, bt_edge) = p
    n = x.shape[0]
    e_cnt = e.shape[0]

    # one-hot gather/scatter matrices built in-register from int32 indices
    # (only O(E) int32 comes from HBM; no [E, N] arrays are ever materialized
    #  outside the kernel)
    cols = jax.lax.broadcasted_iota(jnp.int32, (e_cnt, n), 1)
    oh_src = (src == cols).astype(jnp.float32)          # [E, N]
    oh_dst = (dst == cols).astype(jnp.float32)          # [E, N]
    rows = jax.lax.broadcasted_iota(jnp.int32, (n, e_cnt), 0)
    oh_dst_t = (dst_t == rows).astype(jnp.float32)      # [N, E] (no transpose op)

    # gather node features onto edges (MXU)
    x_src = jnp.dot(oh_src, x, preferred_element_type=jnp.float32)   # [E, D]
    x_dst = jnp.dot(oh_dst, x, preferred_element_type=jnp.float32)   # [E, D]

    # fused gate matmul: one [E, 3D] @ [3D, D] push instead of three [D, D]
    gate_in = jnp.concatenate([x_src, x_dst, e], axis=-1)
    e_new = jnp.dot(gate_in, w_gate, preferred_element_type=jnp.float32) + b_gate
    sigma = jax.nn.sigmoid(e_new)

    # gated neighbor messages; scatter-sum of [msg | sigma] in a single matmul
    msg = sigma * (jnp.dot(x_src, w_nbr, preferred_element_type=jnp.float32) + b_nbr)
    scat = jnp.dot(oh_dst_t, jnp.concatenate([msg, sigma], axis=-1),
                   preferred_element_type=jnp.float32)                # [N, 2D]
    num = scat[:, :dim]
    den = scat[:, dim:]
    agg = num * pl.reciprocal(den + 1e-6, approx=True)   # segment mean on EUP

    # node / edge updates: residual + LayerNorm + SiLU
    h = jnp.dot(x, w_self, preferred_element_type=jnp.float32) + b_self + agg
    x_out = x + _silu(_layernorm(h, g_node, bt_node))
    e_out = e + _silu(_layernorm(e_new, g_edge, bt_edge))
    return x_out, e_out


def _alignn_layer_kernel(*refs, dim):
    (h_atm_ref, h_bnd_ref, h_ang_ref,
     src_bnd_ref, dst_bnd_ref, dst_bnd_t_ref,
     src_ang_ref, dst_ang_ref, dst_ang_t_ref) = refs[:9]
    ang_p = tuple(r[...] for r in refs[9:19])
    bnd_p = tuple(r[...] for r in refs[19:29])
    o_atm_ref, o_bnd_ref, o_ang_ref = refs[29:32]

    h_atm = h_atm_ref[...]
    h_bnd = h_bnd_ref[...]
    h_ang = h_ang_ref[...]

    # line-graph conv: bonds are nodes, angles are edges
    h_bnd, h_ang = _edge_gated_conv(h_bnd, h_ang, src_ang_ref[...],
                                    dst_ang_ref[...], dst_ang_t_ref[...],
                                    ang_p, dim)
    # atom-graph conv: atoms are nodes, bonds are edges (consumes the updated
    # h_bnd without ever leaving VMEM)
    h_atm, h_bnd = _edge_gated_conv(h_atm, h_bnd, src_bnd_ref[...],
                                    dst_bnd_ref[...], dst_bnd_t_ref[...],
                                    bnd_p, dim)

    o_atm_ref[...] = h_atm
    o_bnd_ref[...] = h_bnd
    o_ang_ref[...] = h_ang


def alignn_layer(layer_params, h_atm, h_bnd, h_ang, idx):
    n_atm, d = h_atm.shape
    n_bnd = h_bnd.shape[0]
    n_ang = h_ang.shape[0]
    ang, bnd = layer_params["ang"], layer_params["bnd"]
    operands = [h_atm, h_bnd, h_ang,
                idx["src_bnd"], idx["dst_bnd"], idx["dst_bnd_t"],
                idx["src_ang"], idx["dst_ang"], idx["dst_ang_t"]]
    operands += [ang[k] for k in _EGGC_KEYS]
    operands += [bnd[k] for k in _EGGC_KEYS]
    return pl.pallas_call(
        partial(_alignn_layer_kernel, dim=d),
        out_shape=(jax.ShapeDtypeStruct((n_atm, d), jnp.float32),
                   jax.ShapeDtypeStruct((n_bnd, d), jnp.float32),
                   jax.ShapeDtypeStruct((n_ang, d), jnp.float32)),
        in_specs=[VMEM_SPEC] * len(operands),
        out_specs=(VMEM_SPEC, VMEM_SPEC, VMEM_SPEC),
        # reuse the feature buffers in HBM across all processor layers
        input_output_aliases={0: 0, 1: 1, 2: 2},
        compiler_params=pltpu.CompilerParams(
            vmem_limit_bytes=48 * 1024 * 1024),   # safe on v5e/v6e/v7x
    )(*operands)


# --------------------------------------------------------------------------
# parameter initialization (deterministic, in-script)
# --------------------------------------------------------------------------
def _init_linear(key, d_in, d_out, pad_out=None):
    scale = 1.0 / jnp.sqrt(jnp.float32(d_in))
    w = jax.random.normal(key, (d_in, d_out), jnp.float32) * scale
    b = jnp.zeros((1, d_out), jnp.float32)
    if pad_out is not None and pad_out > d_out:
        w = jnp.pad(w, ((0, 0), (0, pad_out - d_out)))
        b = jnp.pad(b, ((0, 0), (0, pad_out - d_out)))
    return w, b


def _init_eggc(key, d):
    ks = jax.random.split(key, 5)
    w_src, _ = _init_linear(ks[0], d, d)
    w_dst, _ = _init_linear(ks[1], d, d)
    w_e, _ = _init_linear(ks[2], d, d)
    w_nbr, b_nbr = _init_linear(ks[3], d, d)
    w_self, b_self = _init_linear(ks[4], d, d)
    return dict(
        w_gate=jnp.concatenate([w_src, w_dst, w_e], axis=0),   # stacked [3D, D]
        b_gate=jnp.zeros((1, d), jnp.float32),
        w_nbr=w_nbr, b_nbr=b_nbr, w_self=w_self, b_self=b_self,
        g_node=jnp.ones((1, d), jnp.float32), bt_node=jnp.zeros((1, d), jnp.float32),
        g_edge=jnp.ones((1, d), jnp.float32), bt_edge=jnp.zeros((1, d), jnp.float32),
    )


def init_alignn_params(key, f_atm, f_bnd, f_ang, dim, out_dim, num_layers,
                       out_pad=128):
    keys = jax.random.split(key, 5 + 2 * num_layers)
    params = {
        "enc_atm": _init_linear(keys[0], f_atm, dim),
        "enc_bnd": _init_linear(keys[1], f_bnd, dim),
        "enc_ang": _init_linear(keys[2], f_ang, dim),
        "dec_1": _init_linear(keys[3], dim, dim),
        # decoder head is lane-padded to `out_pad` columns; wrapper slices it
        "dec_2": _init_linear(keys[4], dim, out_dim, pad_out=out_pad),
        "layers": [],
    }
    for l in range(num_layers):
        params["layers"].append({
            "ang": _init_eggc(keys[5 + 2 * l], dim),   # conv on line graph
            "bnd": _init_eggc(keys[6 + 2 * l], dim),   # conv on atom graph
        })
    return params


# --------------------------------------------------------------------------
# ALIGNN forward (index layout prep in plain JAX, hot path in Pallas)
# --------------------------------------------------------------------------
def alignn_forward(params, x_atm, x_bnd, x_ang, edge_index_bnd, edge_index_ang,
                   out_dim):
    # edge_index[0] = source node index, edge_index[1] = destination node index
    idx = {
        "src_bnd": edge_index_bnd[0].astype(jnp.int32)[:, None],
        "dst_bnd": edge_index_bnd[1].astype(jnp.int32)[:, None],
        "dst_bnd_t": edge_index_bnd[1].astype(jnp.int32)[None, :],
        "src_ang": edge_index_ang[0].astype(jnp.int32)[:, None],
        "dst_ang": edge_index_ang[1].astype(jnp.int32)[:, None],
        "dst_ang_t": edge_index_ang[1].astype(jnp.int32)[None, :],
    }

    # --- encoder (1 fused kernel) ---
    h_atm, h_bnd, h_ang = encode(params, x_atm, x_bnd, x_ang)

    # --- processor: one fused kernel per ALIGNN layer ---
    for layer in params["layers"]:
        h_atm, h_bnd, h_ang = alignn_layer(layer, h_atm, h_bnd, h_ang, idx)

    # --- decoder MLP (1 fused, row-tiled kernel) ---
    return decode(params, h_atm, out_dim)


if __name__ == "__main__":
    # small synthetic problem sizes
    N_ATM, E_BND, E_ANG = 16, 48, 96        # atoms, bond edges, angle edges
    F_ATM, F_BND, F_ANG = 8, 16, 16         # raw feature widths
    DIM, OUT_DIM, NUM_LAYERS = 128, 3, 2    # hidden width (lane-dense), output, layers

    key = jax.random.PRNGKey(0)
    k1, k2, k3, k4, k5, k6 = jax.random.split(key, 6)

    x_atm = jax.random.normal(k1, (N_ATM, F_ATM), jnp.float32)
    x_bnd = jax.random.normal(k2, (E_BND, F_BND), jnp.float32)
    x_ang = jax.random.normal(k3, (E_ANG, F_ANG), jnp.float32)
    edge_index_bnd = jax.random.randint(k4, (2, E_BND), 0, N_ATM, jnp.int32)
    edge_index_ang = jax.random.randint(k5, (2, E_ANG), 0, E_BND, jnp.int32)

    params = init_alignn_params(k6, F_ATM, F_BND, F_ANG, DIM, OUT_DIM, NUM_LAYERS)

    fwd = jax.jit(partial(alignn_forward, out_dim=OUT_DIM))
    out = fwd(params, x_atm, x_bnd, x_ang, edge_index_bnd, edge_index_ang)
    jax.block_until_ready(out)
    assert out.shape == (N_ATM, OUT_DIM)
    assert bool(jnp.all(jnp.isfinite(out)))
    print("KERNEL_OK")
</pallas_src>

<mosaic_0001>
module attributes {stable_mosaic.version = 11 : i64} {
  func.func @_decoder_kernel(%arg0: i32, %arg1: memref<16x128xf32, #tpu.memory_space<vmem>>, %arg2: memref<128x128xf32, #tpu.memory_space<vmem>>, %arg3: memref<1x128xf32, #tpu.memory_space<vmem>>, %arg4: memref<128x128xf32, #tpu.memory_space<vmem>>, %arg5: memref<1x128xf32, #tpu.memory_space<vmem>>, %arg6: memref<16x128xf32, #tpu.memory_space<vmem>>) attributes {dimension_semantics = [#tpu.dimension_semantics<parallel>], iteration_bounds = array<i64: 1>, scalar_prefetch = 0 : i64, scratch_operands = 0 : i64, tpu.core_type = #tpu.core_type<tc>, window_params = [{transform_indices = @transform_0, window_bounds = array<i64: 16, 128>}, {pipeline_mode = #tpu.pipeline_mode<synchronous>, transform_indices = @transform_1, window_bounds = array<i64: 128, 128>}, {pipeline_mode = #tpu.pipeline_mode<synchronous>, transform_indices = @transform_2, window_bounds = array<i64: 1, 128>}, {pipeline_mode = #tpu.pipeline_mode<synchronous>, transform_indices = @transform_3, window_bounds = array<i64: 128, 128>}, {pipeline_mode = #tpu.pipeline_mode<synchronous>, transform_indices = @transform_4, window_bounds = array<i64: 1, 128>}, {transform_indices = @transform_5, window_bounds = array<i64: 16, 128>}]} {
    %c0 = arith.constant 0 : index
    %c0_0 = arith.constant 0 : index
    %0 = vector.load %arg1[%c0, %c0_0] : memref<16x128xf32, #tpu.memory_space<vmem>>, vector<16x128xf32>
    %c0_1 = arith.constant 0 : index
    %c0_2 = arith.constant 0 : index
    %1 = vector.load %arg2[%c0_1, %c0_2] : memref<128x128xf32, #tpu.memory_space<vmem>>, vector<128x128xf32>
    %cst = arith.constant dense<0.000000e+00> : vector<16x128xf32>
    %2 = tpu.matmul %0, %1, %cst {dimension_numbers = #tpu.dot_dimension_numbers<[1], [0], [0], [1], [0, 0, 1, 1], [], []>} : vector<16x128xf32>, vector<128x128xf32>, vector<16x128xf32> -> vector<16x128xf32>
    %c0_3 = arith.constant 0 : index
    %c0_4 = arith.constant 0 : index
    %3 = vector.load %arg3[%c0_3, %c0_4] : memref<1x128xf32, #tpu.memory_space<vmem>>, vector<1x128xf32>
    %4 = vector.broadcast %3 : vector<1x128xf32> to vector<16x128xf32>
    %5 = arith.addf %2, %4 : vector<16x128xf32>
    %6 = arith.negf %5 : vector<16x128xf32>
    %7 = math.exp %6 : vector<16x128xf32>
    %cst_5 = arith.constant 1.000000e+00 : f32
    %8 = vector.broadcast %cst_5 : f32 to vector<16x128xf32>
    %9 = arith.addf %8, %7 : vector<16x128xf32>
    %10 = arith.divf %8, %9 : vector<16x128xf32>
    %11 = arith.mulf %5, %10 : vector<16x128xf32>
    %c0_6 = arith.constant 0 : index
    %c0_7 = arith.constant 0 : index
    %12 = vector.load %arg4[%c0_6, %c0_7] : memref<128x128xf32, #tpu.memory_space<vmem>>, vector<128x128xf32>
    %cst_8 = arith.constant dense<0.000000e+00> : vector<16x128xf32>
    %13 = tpu.matmul %11, %12, %cst_8 {dimension_numbers = #tpu.dot_dimension_numbers<[1], [0], [0], [1], [0, 0, 1, 1], [], []>} : vector<16x128xf32>, vector<128x128xf32>, vector<16x128xf32> -> vector<16x128xf32>
    %c0_9 = arith.constant 0 : index
    %c0_10 = arith.constant 0 : index
    %14 = vector.load %arg5[%c0_9, %c0_10] : memref<1x128xf32, #tpu.memory_space<vmem>>, vector<1x128xf32>
    %15 = vector.broadcast %14 : vector<1x128xf32> to vector<16x128xf32>
    %16 = arith.addf %13, %15 : vector<16x128xf32>
    %c0_11 = arith.constant 0 : index
    %c0_12 = arith.constant 0 : index
    %17 = vector.load %arg6[%c0_11, %c0_12] : memref<16x128xf32, #tpu.memory_space<vmem>>, vector<16x128xf32>
    tpu.vector_store %arg6[%c0_11, %c0_12], %16 {strides = array<i32>} : memref<16x128xf32, #tpu.memory_space<vmem>>, vector<16x128xf32>,
    return
  }
  func.func @transform_0(%arg0: i32) -> (i32, i32) {
    %c0_i32 = arith.constant 0 : i32
    %c0_i32_0 = arith.constant 0 : i32
    return %arg0, %c0_i32 : i32, i32
  }
  func.func @transform_1(%arg0: i32) -> (i32, i32) {
    %c0_i32 = arith.constant 0 : i32
    %c0_i32_0 = arith.constant 0 : i32
    %c0_i32_1 = arith.constant 0 : i32
    return %c0_i32, %c0_i32_0 : i32, i32
  }
  func.func @transform_2(%arg0: i32) -> (i32, i32) {
    %c0_i32 = arith.constant 0 : i32
    %c0_i32_0 = arith.constant 0 : i32
    %c0_i32_1 = arith.constant 0 : i32
    return %c0_i32, %c0_i32_0 : i32, i32
  }
  func.func @transform_3(%arg0: i32) -> (i32, i32) {
    %c0_i32 = arith.constant 0 : i32
    %c0_i32_0 = arith.constant 0 : i32
    %c0_i32_1 = arith.constant 0 : i32
    return %c0_i32, %c0_i32_0 : i32, i32
  }
  func.func @transform_4(%arg0: i32) -> (i32, i32) {
    %c0_i32 = arith.constant 0 : i32
    %c0_i32_0 = arith.constant 0 : i32
    %c0_i32_1 = arith.constant 0 : i32
    return %c0_i32, %c0_i32_0 : i32, i32
  }
  func.func @transform_5(%arg0: i32) -> (i32, i32) {
    %c0_i32 = arith.constant 0 : i32
    %c0_i32_0 = arith.constant 0 : i32
    return %arg0, %c0_i32 : i32, i32
  }
}

module attributes {stable_mosaic.version = 11 : i64} {
  func.func @_alignn_layer_kernel(%arg0: memref<16x128xf32, #tpu.memory_space<vmem>>, %arg1: memref<48x128xf32, #tpu.memory_space<vmem>>, %arg2: memref<96x128xf32, #tpu.memory_space<vmem>>, %arg3: memref<48x1xi32, #tpu.memory_space<vmem>>, %arg4: memref<48x1xi32, #tpu.memory_space<vmem>>, %arg5: memref<1x48xi32, #tpu.memory_space<vmem>>, %arg6: memref<96x1xi32, #tpu.memory_space<vmem>>, %arg7: memref<96x1xi32, #tpu.memory_space<vmem>>, %arg8: memref<1x96xi32, #tpu.memory_space<vmem>>, %arg9: memref<384x128xf32, #tpu.memory_space<vmem>>, %arg10: memref<1x128xf32, #tpu.memory_space<vmem>>, %arg11: memref<128x128xf32, #tpu.memory_space<vmem>>, %arg12: memref<1x128xf32, #tpu.memory_space<vmem>>, %arg13: memref<128x128xf32, #tpu.memory_space<vmem>>, %arg14: memref<1x128xf32, #tpu.memory_space<vmem>>, %arg15: memref<1x128xf32, #tpu.memory_space<vmem>>, %arg16: memref<1x128xf32, #tpu.memory_space<vmem>>, %arg17: memref<1x128xf32, #tpu.memory_space<vmem>>, %arg18: memref<1x128xf32, #tpu.memory_space<vmem>>, %arg19: memref<384x128xf32, #tpu.memory_space<vmem>>, %arg20: memref<1x128xf32, #tpu.memory_space<vmem>>, %arg21: memref<128x128xf32, #tpu.memory_space<vmem>>, %arg22: memref<1x128xf32, #tpu.memory_space<vmem>>, %arg23: memref<128x128xf32, #tpu.memory_space<vmem>>, %arg24: memref<1x128xf32, #tpu.memory_space<vmem>>, %arg25: memref<1x128xf32, #tpu.memory_space<vmem>>, %arg26: memref<1x128xf32, #tpu.memory_space<vmem>>, %arg27: memref<1x128xf32, #tpu.memory_space<vmem>>, %arg28: memref<1x128xf32, #tpu.memory_space<vmem>>, %arg29: memref<16x128xf32, #tpu.memory_space<vmem>>, %arg30: memref<48x128xf32, #tpu.memory_space<vmem>>, %arg31: memref<96x128xf32, #tpu.memory_space<vmem>>) attributes {dimension_semantics = [], scalar_prefetch = 0 : i64, scratch_operands = 0 : i64, tpu.core_type = #tpu.core_type<tc>} {
    %c0 = arith.constant 0 : index
    %c0_0 = arith.constant 0 : index
    %0 = vector.load %arg9[%c0, %c0_0] : memref<384x128xf32, #tpu.memory_space<vmem>>, vector<384x128xf32>
    %c0_1 = arith.constant 0 : index
    %c0_2 = arith.constant 0 : index
    %1 = vector.load %arg10[%c0_1, %c0_2] : memref<1x128xf32, #tpu.memory_space<vmem>>, vector<1x128xf32>
    %c0_3 = arith.constant 0 : index
    %c0_4 = arith.constant 0 : index
    %2 = vector.load %arg11[%c0_3, %c0_4] : memref<128x128xf32, #tpu.memory_space<vmem>>, vector<128x128xf32>
    %c0_5 = arith.constant 0 : index
    %c0_6 = arith.constant 0 : index
    %3 = vector.load %arg12[%c0_5, %c0_6] : memref<1x128xf32, #tpu.memory_space<vmem>>, vector<1x128xf32>
    %c0_7 = arith.constant 0 : index
    %c0_8 = arith.constant 0 : index
    %4 = vector.load %arg13[%c0_7, %c0_8] : memref<128x128xf32, #tpu.memory_space<vmem>>, vector<128x128xf32>
    %c0_9 = arith.constant 0 : index
    %c0_10 = arith.constant 0 : index
    %5 = vector.load %arg14[%c0_9, %c0_10] : memref<1x128xf32, #tpu.memory_space<vmem>>, vector<1x128xf32>
    %c0_11 = arith.constant 0 : index
    %c0_12 = arith.constant 0 : index
    %6 = vector.load %arg15[%c0_11, %c0_12] : memref<1x128xf32, #tpu.memory_space<vmem>>, vector<1x128xf32>
    %c0_13 = arith.constant 0 : index
    %c0_14 = arith.constant 0 : index
    %7 = vector.load %arg16[%c0_13, %c0_14] : memref<1x128xf32, #tpu.memory_space<vmem>>, vector<1x128xf32>
    %c0_15 = arith.constant 0 : index
    %c0_16 = arith.constant 0 : index
    %8 = vector.load %arg17[%c0_15, %c0_16] : memref<1x128xf32, #tpu.memory_space<vmem>>, vector<1x128xf32>
    %c0_17 = arith.constant 0 : index
    %c0_18 = arith.constant 0 : index
    %9 = vector.load %arg18[%c0_17, %c0_18] : memref<1x128xf32, #tpu.memory_space<vmem>>, vector<1x128xf32>
    %c0_19 = arith.constant 0 : index
    %c0_20 = arith.constant 0 : index
    %10 = vector.load %arg19[%c0_19, %c0_20] : memref<384x128xf32, #tpu.memory_space<vmem>>, vector<384x128xf32>
    %c0_21 = arith.constant 0 : index
    %c0_22 = arith.constant 0 : index
    %11 = vector.load %arg20[%c0_21, %c0_22] : memref<1x128xf32, #tpu.memory_space<vmem>>, vector<1x128xf32>
    %c0_23 = arith.constant 0 : index
    %c0_24 = arith.constant 0 : index
    %12 = vector.load %arg21[%c0_23, %c0_24] : memref<128x128xf32, #tpu.memory_space<vmem>>, vector<128x128xf32>
    %c0_25 = arith.constant 0 : index
    %c0_26 = arith.constant 0 : index
    %13 = vector.load %arg22[%c0_25, %c0_26] : memref<1x128xf32, #tpu.memory_space<vmem>>, vector<1x128xf32>
    %c0_27 = arith.constant 0 : index
    %c0_28 = arith.constant 0 : index
    %14 = vector.load %arg23[%c0_27, %c0_28] : memref<128x128xf32, #tpu.memory_space<vmem>>, vector<128x128xf32>
    %c0_29 = arith.constant 0 : index
    %c0_30 = arith.constant 0 : index
    %15 = vector.load %arg24[%c0_29, %c0_30] : memref<1x128xf32, #tpu.memory_space<vmem>>, vector<1x128xf32>
    %c0_31 = arith.constant 0 : index
    %c0_32 = arith.constant 0 : index
    %16 = vector.load %arg25[%c0_31, %c0_32] : memref<1x128xf32, #tpu.memory_space<vmem>>, vector<1x128xf32>
    %c0_33 = arith.constant 0 : index
    %c0_34 = arith.constant 0 : index
    %17 = vector.load %arg26[%c0_33, %c0_34] : memref<1x128xf32, #tpu.memory_space<vmem>>, vector<1x128xf32>
    %c0_35 = arith.constant 0 : index
    %c0_36 = arith.constant 0 : index
    %18 = vector.load %arg27[%c0_35, %c0_36] : memref<1x128xf32, #tpu.memory_space<vmem>>, vector<1x128xf32>
    %c0_37 = arith.constant 0 : index
    %c0_38 = arith.constant 0 : index
    %19 = vector.load %arg28[%c0_37, %c0_38] : memref<1x128xf32, #tpu.memory_space<vmem>>, vector<1x128xf32>
    %c0_39 = arith.constant 0 : index
    %c0_40 = arith.constant 0 : index
    %20 = vector.load %arg0[%c0_39, %c0_40] : memref<16x128xf32, #tpu.memory_space<vmem>>, vector<16x128xf32>
    %c0_41 = arith.constant 0 : index
    %c0_42 = arith.constant 0 : index
    %21 = vector.load %arg1[%c0_41, %c0_42] : memref<48x128xf32, #tpu.memory_space<vmem>>, vector<48x128xf32>
    %c0_43 = arith.constant 0 : index
    %c0_44 = arith.constant 0 : index
    %22 = vector.load %arg2[%c0_43, %c0_44] : memref<96x128xf32, #tpu.memory_space<vmem>>, vector<96x128xf32>
    %c0_45 = arith.constant 0 : index
    %c0_46 = arith.constant 0 : index
    %23 = vector.load %arg6[%c0_45, %c0_46] : memref<96x1xi32, #tpu.memory_space<vmem>>, vector<96x1xi32>
    %c0_47 = arith.constant 0 : index
    %c0_48 = arith.constant 0 : index
    %24 = vector.load %arg7[%c0_47, %c0_48] : memref<96x1xi32, #tpu.memory_space<vmem>>, vector<96x1xi32>
    %c0_49 = arith.constant 0 : index
    %c0_50 = arith.constant 0 : index
    %25 = vector.load %arg8[%c0_49, %c0_50] : memref<1x96xi32, #tpu.memory_space<vmem>>, vector<1x96xi32>
    %26 = tpu.iota {dimensions = array<i32: 1>} : vector<96x48xi32>
    %27 = vector.broadcast %23 : vector<96x1xi32> to vector<96x48xi32>
    %28 = arith.cmpi eq, %27, %26 : vector<96x48xi32>
    %29 = arith.extui %28 : vector<96x48xi1> to vector<96x48xi32>
    %30 = arith.sitofp %29 : vector<96x48xi32> to vector<96x48xf32>
    %31 = vector.broadcast %24 : vector<96x1xi32> to vector<96x48xi32>
    %32 = arith.cmpi eq, %31, %26 : vector<96x48xi32>
    %33 = arith.extui %32 : vector<96x48xi1> to vector<96x48xi32>
    %34 = arith.sitofp %33 : vector<96x48xi32> to vector<96x48xf32>
    %35 = tpu.iota {dimensions = array<i32: 0>} : vector<48x96xi32>
    %36 = vector.broadcast %25 : vector<1x96xi32> to vector<48x96xi32>
    %37 = arith.cmpi eq, %36, %35 : vector<48x96xi32>
    %38 = arith.extui %37 : vector<48x96xi1> to vector<48x96xi32>
    %39 = arith.sitofp %38 : vector<48x96xi32> to vector<48x96xf32>
    %cst = arith.constant dense<0.000000e+00> : vector<96x128xf32>
    %40 = tpu.matmul %30, %21, %cst {dimension_numbers = #tpu.dot_dimension_numbers<[1], [0], [0], [1], [0, 0, 1, 1], [], []>} : vector<96x48xf32>, vector<48x128xf32>, vector<96x128xf32> -> vector<96x128xf32>
    %cst_51 = arith.constant dense<0.000000e+00> : vector<96x128xf32>
    %41 = tpu.matmul %34, %21, %cst_51 {dimension_numbers = #tpu.dot_dimension_numbers<[1], [0], [0], [1], [0, 0, 1, 1], [], []>} : vector<96x48xf32>, vector<48x128xf32>, vector<96x128xf32> -> vector<96x128xf32>
    %42 = tpu.concatenate %40, %41, %22 in 1 : vector<96x128xf32>, vector<96x128xf32>, vector<96x128xf32> -> vector<96x384xf32>
    %cst_52 = arith.constant dense<0.000000e+00> : vector<96x128xf32>
    %43 = tpu.matmul %42, %0, %cst_52 {dimension_numbers = #tpu.dot_dimension_numbers<[1], [0], [0], [1], [0, 0, 1, 1], [], []>} : vector<96x384xf32>, vector<384x128xf32>, vector<96x128xf32> -> vector<96x128xf32>
    %44 = vector.broadcast %1 : vector<1x128xf32> to vector<96x128xf32>
    %45 = arith.addf %43, %44 : vector<96x128xf32>
    %46 = arith.negf %45 : vector<96x128xf32>
    %47 = math.exp %46 : vector<96x128xf32>
    %cst_53 = arith.constant 1.000000e+00 : f32
    %48 = vector.broadcast %cst_53 : f32 to vector<96x128xf32>
    %49 = arith.addf %48, %47 : vector<96x128xf32>
    %50 = arith.divf %48, %49 : vector<96x128xf32>
    %cst_54 = arith.constant dense<0.000000e+00> : vector<96x128xf32>
    %51 = tpu.matmul %40, %2, %cst_54 {dimension_numbers = #tpu.dot_dimension_numbers<[1], [0], [0], [1], [0, 0, 1, 1], [], []>} : vector<96x128xf32>, vector<128x128xf32>, vector<96x128xf32> -> vector<96x128xf32>
    %52 = vector.broadcast %3 : vector<1x128xf32> to vector<96x128xf32>
    %53 = arith.addf %51, %52 : vector<96x128xf32>
    %54 = arith.mulf %50, %53 : vector<96x128xf32>
    %55 = tpu.concatenate %54, %50 in 1 : vector<96x128xf32>, vector<96x128xf32> -> vector<96x256xf32>
    %cst_55 = arith.constant dense<0.000000e+00> : vector<48x256xf32>
    %56 = tpu.matmul %39, %55, %cst_55 {dimension_numbers = #tpu.dot_dimension_numbers<[1], [0], [0], [1], [0, 0, 1, 1], [], []>} : vector<48x96xf32>, vector<96x256xf32>, vector<48x256xf32> -> vector<48x256xf32>
    %57 = vector.extract_strided_slice %56 {offsets = [0, 0], sizes = [48, 128], strides = [1, 1]} : vector<48x256xf32> to vector<48x128xf32>
    %58 = vector.extract_strided_slice %56 {offsets = [0, 128], sizes = [48, 128], strides = [1, 1]} : vector<48x256xf32> to vector<48x128xf32>
    %cst_56 = arith.constant 9.99999997E-7 : f32
    %59 = vector.broadcast %cst_56 : f32 to vector<48x128xf32>
    %60 = arith.addf %58, %59 : vector<48x128xf32>
    %61 = tpu.reciprocal %60 {approx = true} : vector<48x128xf32> -> vector<48x128xf32>
    %62 = arith.mulf %57, %61 : vector<48x128xf32>
    %cst_57 = arith.constant dense<0.000000e+00> : vector<48x128xf32>
    %63 = tpu.matmul %21, %4, %cst_57 {dimension_numbers = #tpu.dot_dimension_numbers<[1], [0], [0], [1], [0, 0, 1, 1], [], []>} : vector<48x128xf32>, vector<128x128xf32>, vector<48x128xf32> -> vector<48x128xf32>
    %64 = vector.broadcast %5 : vector<1x128xf32> to vector<48x128xf32>
    %65 = arith.addf %63, %64 : vector<48x128xf32>
    %66 = arith.addf %65, %62 : vector<48x128xf32>
    %cst_58 = arith.constant dense<0.000000e+00> : vector<48xf32>
    %67 = vector.multi_reduction <add>, %66, %cst_58 [1] : vector<48x128xf32> to vector<48xf32>
    %68 = vector.shape_cast %67 : vector<48xf32> to vector<48x1xf32>
    %cst_59 = arith.constant 1.280000e+02 : f32
    %69 = vector.broadcast %cst_59 : f32 to vector<48x1xf32>
    %70 = arith.divf %68, %69 : vector<48x1xf32>
    %71 = vector.broadcast %70 : vector<48x1xf32> to vector<48x128xf32>
    %72 = arith.subf %66, %71 : vector<48x128xf32>
    %73 = arith.mulf %72, %72 : vector<48x128xf32>
    %cst_60 = arith.constant dense<0.000000e+00> : vector<48xf32>
    %74 = vector.multi_reduction <add>, %73, %cst_60 [1] : vector<48x128xf32> to vector<48xf32>
    %75 = vector.shape_cast %74 : vector<48xf32> to vector<48x1xf32>
    %cst_61 = arith.constant 1.280000e+02 : f32
    %76 = vector.broadcast %cst_61 : f32 to vector<48x1xf32>
    %77 = arith.divf %75, %76 : vector<48x1xf32>
    %78 = vector.broadcast %70 : vector<48x1xf32> to vector<48x128xf32>
    %79 = arith.subf %66, %78 : vector<48x128xf32>
    %cst_62 = arith.constant 9.99999974E-6 : f32
    %80 = vector.broadcast %cst_62 : f32 to vector<48x1xf32>
    %81 = arith.addf %77, %80 : vector<48x1xf32>
    %82 = math.rsqrt %81 : vector<48x1xf32>
    %83 = vector.broadcast %82 : vector<48x1xf32> to vector<48x128xf32>
    %84 = arith.mulf %79, %83 : vector<48x128xf32>
    %85 = vector.broadcast %6 : vector<1x128xf32> to vector<48x128xf32>
    %86 = arith.mulf %84, %85 : vector<48x128xf32>
    %87 = vector.broadcast %7 : vector<1x128xf32> to vector<48x128xf32>
    %88 = arith.addf %86, %87 : vector<48x128xf32>
    %89 = arith.negf %88 : vector<48x128xf32>
    %90 = math.exp %89 : vector<48x128xf32>
    %cst_63 = arith.constant 1.000000e+00 : f32
    %91 = vector.broadcast %cst_63 : f32 to vector<48x128xf32>
    %92 = arith.addf %91, %90 : vector<48x128xf32>
    %93 = arith.divf %91, %92 : vector<48x128xf32>
    %94 = arith.mulf %88, %93 : vector<48x128xf32>
    %95 = arith.addf %21, %94 : vector<48x128xf32>
    %cst_64 = arith.constant dense<0.000000e+00> : vector<96xf32>
    %96 = vector.multi_reduction <add>, %45, %cst_64 [1] : vector<96x128xf32> to vector<96xf32>
    %97 = vector.shape_cast %96 : vector<96xf32> to vector<96x1xf32>
    %cst_65 = arith.constant 1.280000e+02 : f32
    %98 = vector.broadcast %cst_65 : f32 to vector<96x1xf32>
    %99 = arith.divf %97, %98 : vector<96x1xf32>
    %100 = vector.broadcast %99 : vector<96x1xf32> to vector<96x128xf32>
    %101 = arith.subf %45, %100 : vector<96x128xf32>
    %102 = arith.mulf %101, %101 : vector<96x128xf32>
    %cst_66 = arith.constant dense<0.000000e+00> : vector<96xf32>
    %103 = vector.multi_reduction <add>, %102, %cst_66 [1] : vector<96x128xf32> to vector<96xf32>
    %104 = vector.shape_cast %103 : vector<96xf32> to vector<96x1xf32>
    %cst_67 = arith.constant 1.280000e+02 : f32
    %105 = vector.broadcast %cst_67 : f32 to vector<96x1xf32>
    %106 = arith.divf %104, %105 : vector<96x1xf32>
    %107 = vector.broadcast %99 : vector<96x1xf32> to vector<96x128xf32>
    %108 = arith.subf %45, %107 : vector<96x128xf32>
    %cst_68 = arith.constant 9.99999974E-6 : f32
    %109 = vector.broadcast %cst_68 : f32 to vector<96x1xf32>
    %110 = arith.addf %106, %109 : vector<96x1xf32>
    %111 = math.rsqrt %110 : vector<96x1xf32>
    %112 = vector.broadcast %111 : vector<96x1xf32> to vector<96x128xf32>
    %113 = arith.mulf %108, %112 : vector<96x128xf32>
    %114 = vector.broadcast %8 : vector<1x128xf32> to vector<96x128xf32>
    %115 = arith.mulf %113, %114 : vector<96x128xf32>
    %116 = vector.broadcast %9 : vector<1x128xf32> to vector<96x128xf32>
    %117 = arith.addf %115, %116 : vector<96x128xf32>
    %118 = arith.negf %117 : vector<96x128xf32>
    %119 = math.exp %118 : vector<96x128xf32>
    %cst_69 = arith.constant 1.000000e+00 : f32
    %120 = vector.broadcast %cst_69 : f32 to vector<96x128xf32>
    %121 = arith.addf %120, %119 : vector<96x128xf32>
    %122 = arith.divf %120, %121 : vector<96x128xf32>
    %123 = arith.mulf %117, %122 : vector<96x128xf32>
    %124 = arith.addf %22, %123 : vector<96x128xf32>
    %c0_70 = arith.constant 0 : index
    %c0_71 = arith.constant 0 : index
    %125 = vector.load %arg3[%c0_70, %c0_71] : memref<48x1xi32, #tpu.memory_space<vmem>>, vector<48x1xi32>
    %c0_72 = arith.constant 0 : index
    %c0_73 = arith.constant 0 : index
    %126 = vector.load %arg4[%c0_72, %c0_73] : memref<48x1xi32, #tpu.memory_space<vmem>>, vector<48x1xi32>
    %c0_74 = arith.constant 0 : index
    %c0_75 = arith.constant 0 : index
    %127 = vector.load %arg5[%c0_74, %c0_75] : memref<1x48xi32, #tpu.memory_space<vmem>>, vector<1x48xi32>
    %128 = tpu.iota {dimensions = array<i32: 1>} : vector<48x16xi32>
    %129 = vector.broadcast %125 : vector<48x1xi32> to vector<48x16xi32>
    %130 = arith.cmpi eq, %129, %128 : vector<48x16xi32>
    %131 = arith.extui %130 : vector<48x16xi1> to vector<48x16xi32>
    %132 = arith.sitofp %131 : vector<48x16xi32> to vector<48x16xf32>
    %133 = vector.broadcast %126 : vector<48x1xi32> to vector<48x16xi32>
    %134 = arith.cmpi eq, %133, %128 : vector<48x16xi32>
    %135 = arith.extui %134 : vector<48x16xi1> to vector<48x16xi32>
    %136 = arith.sitofp %135 : vector<48x16xi32> to vector<48x16xf32>
    %137 = tpu.iota {dimensions = array<i32: 0>} : vector<16x48xi32>
    %138 = vector.broadcast %127 : vector<1x48xi32> to vector<16x48xi32>
    %139 = arith.cmpi eq, %138, %137 : vector<16x48xi32>
    %140 = arith.extui %139 : vector<16x48xi1> to vector<16x48xi32>
    %141 = arith.sitofp %140 : vector<16x48xi32> to vector<16x48xf32>
    %cst_76 = arith.constant dense<0.000000e+00> : vector<48x128xf32>
    %142 = tpu.matmul %132, %20, %cst_76 {dimension_numbers = #tpu.dot_dimension_numbers<[1], [0], [0], [1], [0, 0, 1, 1], [], []>} : vector<48x16xf32>, vector<16x128xf32>, vector<48x128xf32> -> vector<48x128xf32>
    %cst_77 = arith.constant dense<0.000000e+00> : vector<48x128xf32>
    %143 = tpu.matmul %136, %20, %cst_77 {dimension_numbers = #tpu.dot_dimension_numbers<[1], [0], [0], [1], [0, 0, 1, 1], [], []>} : vector<48x16xf32>, vector<16x128xf32>, vector<48x128xf32> -> vector<48x128xf32>
    %144 = tpu.concatenate %142, %143, %95 in 1 : vector<48x128xf32>, vector<48x128xf32>, vector<48x128xf32> -> vector<48x384xf32>
    %cst_78 = arith.constant dense<0.000000e+00> : vector<48x128xf32>
    %145 = tpu.matmul %144, %10, %cst_78 {dimension_numbers = #tpu.dot_dimension_numbers<[1], [0], [0], [1], [0, 0, 1, 1], [], []>} : vector<48x384xf32>, vector<384x128xf32>, vector<48x128xf32> -> vector<48x128xf32>
    %146 = vector.broadcast %11 : vector<1x128xf32> to vector<48x128xf32>
    %147 = arith.addf %145, %146 : vector<48x128xf32>
    %148 = arith.negf %147 : vector<48x128xf32>
    %149 = math.exp %148 : vector<48x128xf32>
    %cst_79 = arith.constant 1.000000e+00 : f32
    %150 = vector.broadcast %cst_79 : f32 to vector<48x128xf32>
    %151 = arith.addf %150, %149 : vector<48x128xf32>
    %152 = arith.divf %150, %151 : vector<48x128xf32>
    %cst_80 = arith.constant dense<0.000000e+00> : vector<48x128xf32>
    %153 = tpu.matmul %142, %12, %cst_80 {dimension_numbers = #tpu.dot_dimension_numbers<[1], [0], [0], [1], [0, 0, 1, 1], [], []>} : vector<48x128xf32>, vector<128x128xf32>, vector<48x128xf32> -> vector<48x128xf32>
    %154 = vector.broadcast %13 : vector<1x128xf32> to vector<48x128xf32>
    %155 = arith.addf %153, %154 : vector<48x128xf32>
    %156 = arith.mulf %152, %155 : vector<48x128xf32>
    %157 = tpu.concatenate %156, %152 in 1 : vector<48x128xf32>, vector<48x128xf32> -> vector<48x256xf32>
    %cst_81 = arith.constant dense<0.000000e+00> : vector<16x256xf32>
    %158 = tpu.matmul %141, %157, %cst_81 {dimension_numbers = #tpu.dot_dimension_numbers<[1], [0], [0], [1], [0, 0, 1, 1], [], []>} : vector<16x48xf32>, vector<48x256xf32>, vector<16x256xf32> -> vector<16x256xf32>
    %159 = vector.extract_strided_slice %158 {offsets = [0, 0], sizes = [16, 128], strides = [1, 1]} : vector<16x256xf32> to vector<16x128xf32>
    %160 = vector.extract_strided_slice %158 {offsets = [0, 128], sizes = [16, 128], strides = [1, 1]} : vector<16x256xf32> to vector<16x128xf32>
    %cst_82 = arith.constant 9.99999997E-7 : f32
    %161 = vector.broadcast %cst_82 : f32 to vector<16x128xf32>
    %162 = arith.addf %160, %161 : vector<16x128xf32>
    %163 = tpu.reciprocal %162 {approx = true} : vector<16x128xf32> -> vector<16x128xf32>
    %164 = arith.mulf %159, %163 : vector<16x128xf32>
    %cst_83 = arith.constant dense<0.000000e+00> : vector<16x128xf32>
    %165 = tpu.matmul %20, %14, %cst_83 {dimension_numbers = #tpu.dot_dimension_numbers<[1], [0], [0], [1], [0, 0, 1, 1], [], []>} : vector<16x128xf32>, vector<128x128xf32>, vector<16x128xf32> -> vector<16x128xf32>
    %166 = vector.broadcast %15 : vector<1x128xf32> to vector<16x128xf32>
    %167 = arith.addf %165, %166 : vector<16x128xf32>
    %168 = arith.addf %167, %164 : vector<16x128xf32>
    %cst_84 = arith.constant dense<0.000000e+00> : vector<16xf32>
    %169 = vector.multi_reduction <add>, %168, %cst_84 [1] : vector<16x128xf32> to vector<16xf32>
    %170 = vector.shape_cast %169 : vector<16xf32> to vector<16x1xf32>
    %cst_85 = arith.constant 1.280000e+02 : f32
    %171 = vector.broadcast %cst_85 : f32 to vector<16x1xf32>
    %172 = arith.divf %170, %171 : vector<16x1xf32>
    %173 = vector.broadcast %172 : vector<16x1xf32> to vector<16x128xf32>
    %174 = arith.subf %168, %173 : vector<16x128xf32>
    %175 = arith.mulf %174, %174 : vector<16x128xf32>
    %cst_86 = arith.constant dense<0.000000e+00> : vector<16xf32>
    %176 = vector.multi_reduction <add>, %175, %cst_86 [1] : vector<16x128xf32> to vector<16xf32>
    %177 = vector.shape_cast %176 : vector<16xf32> to vector<16x1xf32>
    %cst_87 = arith.constant 1.280000e+02 : f32
    %178 = vector.broadcast %cst_87 : f32 to vector<16x1xf32>
    %179 = arith.divf %177, %178 : vector<16x1xf32>
    %180 = vector.broadcast %172 : vector<16x1xf32> to vector<16x128xf32>
    %181 = arith.subf %168, %180 : vector<16x128xf32>
    %cst_88 = arith.constant 9.99999974E-6 : f32
    %182 = vector.broadcast %cst_88 : f32 to vector<16x1xf32>
    %183 = arith.addf %179, %182 : vector<16x1xf32>
    %184 = math.rsqrt %183 : vector<16x1xf32>
    %185 = vector.broadcast %184 : vector<16x1xf32> to vector<16x128xf32>
    %186 = arith.mulf %181, %185 : vector<16x128xf32>
    %187 = vector.broadcast %16 : vector<1x128xf32> to vector<16x128xf32>
    %188 = arith.mulf %186, %187 : vector<16x128xf32>
    %189 = vector.broadcast %17 : vector<1x128xf32> to vector<16x128xf32>
    %190 = arith.addf %188, %189 : vector<16x128xf32>
    %191 = arith.negf %190 : vector<16x128xf32>
    %192 = math.exp %191 : vector<16x128xf32>
    %cst_89 = arith.constant 1.000000e+00 : f32
    %193 = vector.broadcast %cst_89 : f32 to vector<16x128xf32>
    %194 = arith.addf %193, %192 : vector<16x128xf32>
    %195 = arith.divf %193, %194 : vector<16x128xf32>
    %196 = arith.mulf %190, %195 : vector<16x128xf32>
    %197 = arith.addf %20, %196 : vector<16x128xf32>
    %cst_90 = arith.constant dense<0.000000e+00> : vector<48xf32>
    %198 = vector.multi_reduction <add>, %147, %cst_90 [1] : vector<48x128xf32> to vector<48xf32>
    %199 = vector.shape_cast %198 : vector<48xf32> to vector<48x1xf32>
    %cst_91 = arith.constant 1.280000e+02 : f32
    %200 = vector.broadcast %cst_91 : f32 to vector<48x1xf32>
    %201 = arith.divf %199, %200 : vector<48x1xf32>
    %202 = vector.broadcast %201 : vector<48x1xf32> to vector<48x128xf32>
    %203 = arith.subf %147, %202 : vector<48x128xf32>
    %204 = arith.mulf %203, %203 : vector<48x128xf32>
    %cst_92 = arith.constant dense<0.000000e+00> : vector<48xf32>
    %205 = vector.multi_reduction <add>, %204, %cst_92 [1] : vector<48x128xf32> to vector<48xf32>
    %206 = vector.shape_cast %205 : vector<48xf32> to vector<48x1xf32>
    %cst_93 = arith.constant 1.280000e+02 : f32
    %207 = vector.broadcast %cst_93 : f32 to vector<48x1xf32>
    %208 = arith.divf %206, %207 : vector<48x1xf32>
    %209 = vector.broadcast %201 : vector<48x1xf32> to vector<48x128xf32>
    %210 = arith.subf %147, %209 : vector<48x128xf32>
    %cst_94 = arith.constant 9.99999974E-6 : f32
    %211 = vector.broadcast %cst_94 : f32 to vector<48x1xf32>
    %212 = arith.addf %208, %211 : vector<48x1xf32>
    %213 = math.rsqrt %212 : vector<48x1xf32>
    %214 = vector.broadcast %213 : vector<48x1xf32> to vector<48x128xf32>
    %215 = arith.mulf %210, %214 : vector<48x128xf32>
    %216 = vector.broadcast %18 : vector<1x128xf32> to vector<48x128xf32>
    %217 = arith.mulf %215, %216 : vector<48x128xf32>
    %218 = vector.broadcast %19 : vector<1x128xf32> to vector<48x128xf32>
    %219 = arith.addf %217, %218 : vector<48x128xf32>
    %220 = arith.negf %219 : vector<48x128xf32>
    %221 = math.exp %220 : vector<48x128xf32>
    %cst_95 = arith.constant 1.000000e+00 : f32
    %222 = vector.broadcast %cst_95 : f32 to vector<48x128xf32>
    %223 = arith.addf %222, %221 : vector<48x128xf32>
    %224 = arith.divf %222, %223 : vector<48x128xf32>
    %225 = arith.mulf %219, %224 : vector<48x128xf32>
    %226 = arith.addf %95, %225 : vector<48x128xf32>
    %c0_96 = arith.constant 0 : index
    %c0_97 = arith.constant 0 : index
    %227 = vector.load %arg29[%c0_96, %c0_97] : memref<16x128xf32, #tpu.memory_space<vmem>>, vector<16x128xf32>
    tpu.vector_store %arg29[%c0_96, %c0_97], %197 {strides = array<i32>} : memref<16x128xf32, #tpu.memory_space<vmem>>, vector<16x128xf32>,
    %c0_98 = arith.constant 0 : index
    %c0_99 = arith.constant 0 : index
    %228 = vector.load %arg30[%c0_98, %c0_99] : memref<48x128xf32, #tpu.memory_space<vmem>>, vector<48x128xf32>
    tpu.vector_store %arg30[%c0_98, %c0_99], %226 {strides = array<i32>} : memref<48x128xf32, #tpu.memory_space<vmem>>, vector<48x128xf32>,
    %c0_100 = arith.constant 0 : index
    %c0_101 = arith.constant 0 : index
    %229 = vector.load %arg31[%c0_100, %c0_101] : memref<96x128xf32, #tpu.memory_space<vmem>>, vector<96x128xf32>
    tpu.vector_store %arg31[%c0_100, %c0_101], %124 {strides = array<i32>} : memref<96x128xf32, #tpu.memory_space<vmem>>, vector<96x128xf32>,
    return
  }
}

module attributes {stable_mosaic.version = 11 : i64} {
  func.func @_encoder_kernel(%arg0: memref<16x8xf32, #tpu.memory_space<vmem>>, %arg1: memref<48x16xf32, #tpu.memory_space<vmem>>, %arg2: memref<96x16xf32, #tpu.memory_space<vmem>>, %arg3: memref<8x128xf32, #tpu.memory_space<vmem>>, %arg4: memref<1x128xf32, #tpu.memory_space<vmem>>, %arg5: memref<16x128xf32, #tpu.memory_space<vmem>>, %arg6: memref<1x128xf32, #tpu.memory_space<vmem>>, %arg7: memref<16x128xf32, #tpu.memory_space<vmem>>, %arg8: memref<1x128xf32, #tpu.memory_space<vmem>>, %arg9: memref<16x128xf32, #tpu.memory_space<vmem>>, %arg10: memref<48x128xf32, #tpu.memory_space<vmem>>, %arg11: memref<96x128xf32, #tpu.memory_space<vmem>>) attributes {dimension_semantics = [], scalar_prefetch = 0 : i64, scratch_operands = 0 : i64, tpu.core_type = #tpu.core_type<tc>} {
    %c0 = arith.constant 0 : index
    %c0_0 = arith.constant 0 : index
    %0 = vector.load %arg0[%c0, %c0_0] : memref<16x8xf32, #tpu.memory_space<vmem>>, vector<16x8xf32>
    %c0_1 = arith.constant 0 : index
    %c0_2 = arith.constant 0 : index
    %1 = vector.load %arg3[%c0_1, %c0_2] : memref<8x128xf32, #tpu.memory_space<vmem>>, vector<8x128xf32>
    %cst = arith.constant dense<0.000000e+00> : vector<16x128xf32>
    %2 = tpu.matmul %0, %1, %cst {dimension_numbers = #tpu.dot_dimension_numbers<[1], [0], [0], [1], [0, 0, 1, 1], [], []>} : vector<16x8xf32>, vector<8x128xf32>, vector<16x128xf32> -> vector<16x128xf32>
    %c0_3 = arith.constant 0 : index
    %c0_4 = arith.constant 0 : index
    %3 = vector.load %arg4[%c0_3, %c0_4] : memref<1x128xf32, #tpu.memory_space<vmem>>, vector<1x128xf32>
    %4 = vector.broadcast %3 : vector<1x128xf32> to vector<16x128xf32>
    %5 = arith.addf %2, %4 : vector<16x128xf32>
    %6 = arith.negf %5 : vector<16x128xf32>
    %7 = math.exp %6 : vector<16x128xf32>
    %cst_5 = arith.constant 1.000000e+00 : f32
    %8 = vector.broadcast %cst_5 : f32 to vector<16x128xf32>
    %9 = arith.addf %8, %7 : vector<16x128xf32>
    %10 = arith.divf %8, %9 : vector<16x128xf32>
    %11 = arith.mulf %5, %10 : vector<16x128xf32>
    %c0_6 = arith.constant 0 : index
    %c0_7 = arith.constant 0 : index
    %12 = vector.load %arg9[%c0_6, %c0_7] : memref<16x128xf32, #tpu.memory_space<vmem>>, vector<16x128xf32>
    tpu.vector_store %arg9[%c0_6, %c0_7], %11 {strides = array<i32>} : memref<16x128xf32, #tpu.memory_space<vmem>>, vector<16x128xf32>,
    %c0_8 = arith.constant 0 : index
    %c0_9 = arith.constant 0 : index
    %13 = vector.load %arg1[%c0_8, %c0_9] : memref<48x16xf32, #tpu.memory_space<vmem>>, vector<48x16xf32>
    %c0_10 = arith.constant 0 : index
    %c0_11 = arith.constant 0 : index
    %14 = vector.load %arg5[%c0_10, %c0_11] : memref<16x128xf32, #tpu.memory_space<vmem>>, vector<16x128xf32>
    %cst_12 = arith.constant dense<0.000000e+00> : vector<48x128xf32>
    %15 = tpu.matmul %13, %14, %cst_12 {dimension_numbers = #tpu.dot_dimension_numbers<[1], [0], [0], [1], [0, 0, 1, 1], [], []>} : vector<48x16xf32>, vector<16x128xf32>, vector<48x128xf32> -> vector<48x128xf32>
    %c0_13 = arith.constant 0 : index
    %c0_14 = arith.constant 0 : index
    %16 = vector.load %arg6[%c0_13, %c0_14] : memref<1x128xf32, #tpu.memory_space<vmem>>, vector<1x128xf32>
    %17 = vector.broadcast %16 : vector<1x128xf32> to vector<48x128xf32>
    %18 = arith.addf %15, %17 : vector<48x128xf32>
    %19 = arith.negf %18 : vector<48x128xf32>
    %20 = math.exp %19 : vector<48x128xf32>
    %cst_15 = arith.constant 1.000000e+00 : f32
    %21 = vector.broadcast %cst_15 : f32 to vector<48x128xf32>
    %22 = arith.addf %21, %20 : vector<48x128xf32>
    %23 = arith.divf %21, %22 : vector<48x128xf32>
    %24 = arith.mulf %18, %23 : vector<48x128xf32>
    %c0_16 = arith.constant 0 : index
    %c0_17 = arith.constant 0 : index
    %25 = vector.load %arg10[%c0_16, %c0_17] : memref<48x128xf32, #tpu.memory_space<vmem>>, vector<48x128xf32>
    tpu.vector_store %arg10[%c0_16, %c0_17], %24 {strides = array<i32>} : memref<48x128xf32, #tpu.memory_space<vmem>>, vector<48x128xf32>,
    %c0_18 = arith.constant 0 : index
    %c0_19 = arith.constant 0 : index
    %26 = vector.load %arg2[%c0_18, %c0_19] : memref<96x16xf32, #tpu.memory_space<vmem>>, vector<96x16xf32>
    %c0_20 = arith.constant 0 : index
    %c0_21 = arith.constant 0 : index
    %27 = vector.load %arg7[%c0_20, %c0_21] : memref<16x128xf32, #tpu.memory_space<vmem>>, vector<16x128xf32>
    %cst_22 = arith.constant dense<0.000000e+00> : vector<96x128xf32>
    %28 = tpu.matmul %26, %27, %cst_22 {dimension_numbers = #tpu.dot_dimension_numbers<[1], [0], [0], [1], [0, 0, 1, 1], [], []>} : vector<96x16xf32>, vector<16x128xf32>, vector<96x128xf32> -> vector<96x128xf32>
    %c0_23 = arith.constant 0 : index
    %c0_24 = arith.constant 0 : index
    %29 = vector.load %arg8[%c0_23, %c0_24] : memref<1x128xf32, #tpu.memory_space<vmem>>, vector<1x128xf32>
    %30 = vector.broadcast %29 : vector<1x128xf32> to vector<96x128xf32>
    %31 = arith.addf %28, %30 : vector<96x128xf32>
    %32 = arith.negf %31 : vector<96x128xf32>
    %33 = math.exp %32 : vector<96x128xf32>
    %cst_25 = arith.constant 1.000000e+00 : f32
    %34 = vector.broadcast %cst_25 : f32 to vector<96x128xf32>
    %35 = arith.addf %34, %33 : vector<96x128xf32>
    %36 = arith.divf %34, %35 : vector<96x128xf32>
    %37 = arith.mulf %31, %36 : vector<96x128xf32>
    %c0_26 = arith.constant 0 : index
    %c0_27 = arith.constant 0 : index
    %38 = vector.load %arg11[%c0_26, %c0_27] : memref<96x128xf32, #tpu.memory_space<vmem>>, vector<96x128xf32>
    tpu.vector_store %arg11[%c0_26, %c0_27], %37 {strides = array<i32>} : memref<96x128xf32, #tpu.memory_space<vmem>>, vector<96x128xf32>,
    return
  }
}

module attributes {stable_mosaic.version = 11 : i64} {
  func.func @_alignn_layer_kernel(%arg0: memref<16x128xf32, #tpu.memory_space<vmem>>, %arg1: memref<48x128xf32, #tpu.memory_space<vmem>>, %arg2: memref<96x128xf32, #tpu.memory_space<vmem>>, %arg3: memref<48x1xi32, #tpu.memory_space<vmem>>, %arg4: memref<48x1xi32, #tpu.memory_space<vmem>>, %arg5: memref<1x48xi32, #tpu.memory_space<vmem>>, %arg6: memref<96x1xi32, #tpu.memory_space<vmem>>, %arg7: memref<96x1xi32, #tpu.memory_space<vmem>>, %arg8: memref<1x96xi32, #tpu.memory_space<vmem>>, %arg9: memref<384x128xf32, #tpu.memory_space<vmem>>, %arg10: memref<1x128xf32, #tpu.memory_space<vmem>>, %arg11: memref<128x128xf32, #tpu.memory_space<vmem>>, %arg12: memref<1x128xf32, #tpu.memory_space<vmem>>, %arg13: memref<128x128xf32, #tpu.memory_space<vmem>>, %arg14: memref<1x128xf32, #tpu.memory_space<vmem>>, %arg15: memref<1x128xf32, #tpu.memory_space<vmem>>, %arg16: memref<1x128xf32, #tpu.memory_space<vmem>>, %arg17: memref<1x128xf32, #tpu.memory_space<vmem>>, %arg18: memref<1x128xf32, #tpu.memory_space<vmem>>, %arg19: memref<384x128xf32, #tpu.memory_space<vmem>>, %arg20: memref<1x128xf32, #tpu.memory_space<vmem>>, %arg21: memref<128x128xf32, #tpu.memory_space<vmem>>, %arg22: memref<1x128xf32, #tpu.memory_space<vmem>>, %arg23: memref<128x128xf32, #tpu.memory_space<vmem>>, %arg24: memref<1x128xf32, #tpu.memory_space<vmem>>, %arg25: memref<1x128xf32, #tpu.memory_space<vmem>>, %arg26: memref<1x128xf32, #tpu.memory_space<vmem>>, %arg27: memref<1x128xf32, #tpu.memory_space<vmem>>, %arg28: memref<1x128xf32, #tpu.memory_space<vmem>>, %arg29: memref<16x128xf32, #tpu.memory_space<vmem>>, %arg30: memref<48x128xf32, #tpu.memory_space<vmem>>, %arg31: memref<96x128xf32, #tpu.memory_space<vmem>>) attributes {dimension_semantics = [], scalar_prefetch = 0 : i64, scratch_operands = 0 : i64, tpu.core_type = #tpu.core_type<tc>} {
    %c0 = arith.constant 0 : index
    %c0_0 = arith.constant 0 : index
    %0 = vector.load %arg9[%c0, %c0_0] : memref<384x128xf32, #tpu.memory_space<vmem>>, vector<384x128xf32>
    %c0_1 = arith.constant 0 : index
    %c0_2 = arith.constant 0 : index
    %1 = vector.load %arg10[%c0_1, %c0_2] : memref<1x128xf32, #tpu.memory_space<vmem>>, vector<1x128xf32>
    %c0_3 = arith.constant 0 : index
    %c0_4 = arith.constant 0 : index
    %2 = vector.load %arg11[%c0_3, %c0_4] : memref<128x128xf32, #tpu.memory_space<vmem>>, vector<128x128xf32>
    %c0_5 = arith.constant 0 : index
    %c0_6 = arith.constant 0 : index
    %3 = vector.load %arg12[%c0_5, %c0_6] : memref<1x128xf32, #tpu.memory_space<vmem>>, vector<1x128xf32>
    %c0_7 = arith.constant 0 : index
    %c0_8 = arith.constant 0 : index
    %4 = vector.load %arg13[%c0_7, %c0_8] : memref<128x128xf32, #tpu.memory_space<vmem>>, vector<128x128xf32>
    %c0_9 = arith.constant 0 : index
    %c0_10 = arith.constant 0 : index
    %5 = vector.load %arg14[%c0_9, %c0_10] : memref<1x128xf32, #tpu.memory_space<vmem>>, vector<1x128xf32>
    %c0_11 = arith.constant 0 : index
    %c0_12 = arith.constant 0 : index
    %6 = vector.load %arg15[%c0_11, %c0_12] : memref<1x128xf32, #tpu.memory_space<vmem>>, vector<1x128xf32>
    %c0_13 = arith.constant 0 : index
    %c0_14 = arith.constant 0 : index
    %7 = vector.load %arg16[%c0_13, %c0_14] : memref<1x128xf32, #tpu.memory_space<vmem>>, vector<1x128xf32>
    %c0_15 = arith.constant 0 : index
    %c0_16 = arith.constant 0 : index
    %8 = vector.load %arg17[%c0_15, %c0_16] : memref<1x128xf32, #tpu.memory_space<vmem>>, vector<1x128xf32>
    %c0_17 = arith.constant 0 : index
    %c0_18 = arith.constant 0 : index
    %9 = vector.load %arg18[%c0_17, %c0_18] : memref<1x128xf32, #tpu.memory_space<vmem>>, vector<1x128xf32>
    %c0_19 = arith.constant 0 : index
    %c0_20 = arith.constant 0 : index
    %10 = vector.load %arg19[%c0_19, %c0_20] : memref<384x128xf32, #tpu.memory_space<vmem>>, vector<384x128xf32>
    %c0_21 = arith.constant 0 : index
    %c0_22 = arith.constant 0 : index
    %11 = vector.load %arg20[%c0_21, %c0_22] : memref<1x128xf32, #tpu.memory_space<vmem>>, vector<1x128xf32>
    %c0_23 = arith.constant 0 : index
    %c0_24 = arith.constant 0 : index
    %12 = vector.load %arg21[%c0_23, %c0_24] : memref<128x128xf32, #tpu.memory_space<vmem>>, vector<128x128xf32>
    %c0_25 = arith.constant 0 : index
    %c0_26 = arith.constant 0 : index
    %13 = vector.load %arg22[%c0_25, %c0_26] : memref<1x128xf32, #tpu.memory_space<vmem>>, vector<1x128xf32>
    %c0_27 = arith.constant 0 : index
    %c0_28 = arith.constant 0 : index
    %14 = vector.load %arg23[%c0_27, %c0_28] : memref<128x128xf32, #tpu.memory_space<vmem>>, vector<128x128xf32>
    %c0_29 = arith.constant 0 : index
    %c0_30 = arith.constant 0 : index
    %15 = vector.load %arg24[%c0_29, %c0_30] : memref<1x128xf32, #tpu.memory_space<vmem>>, vector<1x128xf32>
    %c0_31 = arith.constant 0 : index
    %c0_32 = arith.constant 0 : index
    %16 = vector.load %arg25[%c0_31, %c0_32] : memref<1x128xf32, #tpu.memory_space<vmem>>, vector<1x128xf32>
    %c0_33 = arith.constant 0 : index
    %c0_34 = arith.constant 0 : index
    %17 = vector.load %arg26[%c0_33, %c0_34] : memref<1x128xf32, #tpu.memory_space<vmem>>, vector<1x128xf32>
    %c0_35 = arith.constant 0 : index
    %c0_36 = arith.constant 0 : index
    %18 = vector.load %arg27[%c0_35, %c0_36] : memref<1x128xf32, #tpu.memory_space<vmem>>, vector<1x128xf32>
    %c0_37 = arith.constant 0 : index
    %c0_38 = arith.constant 0 : index
    %19 = vector.load %arg28[%c0_37, %c0_38] : memref<1x128xf32, #tpu.memory_space<vmem>>, vector<1x128xf32>
    %c0_39 = arith.constant 0 : index
    %c0_40 = arith.constant 0 : index
    %20 = vector.load %arg0[%c0_39, %c0_40] : memref<16x128xf32, #tpu.memory_space<vmem>>, vector<16x128xf32>
    %c0_41 = arith.constant 0 : index
    %c0_42 = arith.constant 0 : index
    %21 = vector.load %arg1[%c0_41, %c0_42] : memref<48x128xf32, #tpu.memory_space<vmem>>, vector<48x128xf32>
    %c0_43 = arith.constant 0 : index
    %c0_44 = arith.constant 0 : index
    %22 = vector.load %arg2[%c0_43, %c0_44] : memref<96x128xf32, #tpu.memory_space<vmem>>, vector<96x128xf32>
    %c0_45 = arith.constant 0 : index
    %c0_46 = arith.constant 0 : index
    %23 = vector.load %arg6[%c0_45, %c0_46] : memref<96x1xi32, #tpu.memory_space<vmem>>, vector<96x1xi32>
    %c0_47 = arith.constant 0 : index
    %c0_48 = arith.constant 0 : index
    %24 = vector.load %arg7[%c0_47, %c0_48] : memref<96x1xi32, #tpu.memory_space<vmem>>, vector<96x1xi32>
    %c0_49 = arith.constant 0 : index
    %c0_50 = arith.constant 0 : index
    %25 = vector.load %arg8[%c0_49, %c0_50] : memref<1x96xi32, #tpu.memory_space<vmem>>, vector<1x96xi32>
    %26 = tpu.iota {dimensions = array<i32: 1>} : vector<96x48xi32>
    %27 = vector.broadcast %23 : vector<96x1xi32> to vector<96x48xi32>
    %28 = arith.cmpi eq, %27, %26 : vector<96x48xi32>
    %29 = arith.extui %28 : vector<96x48xi1> to vector<96x48xi32>
    %30 = arith.sitofp %29 : vector<96x48xi32> to vector<96x48xf32>
    %31 = vector.broadcast %24 : vector<96x1xi32> to vector<96x48xi32>
    %32 = arith.cmpi eq, %31, %26 : vector<96x48xi32>
    %33 = arith.extui %32 : vector<96x48xi1> to vector<96x48xi32>
    %34 = arith.sitofp %33 : vector<96x48xi32> to vector<96x48xf32>
    %35 = tpu.iota {dimensions = array<i32: 0>} : vector<48x96xi32>
    %36 = vector.broadcast %25 : vector<1x96xi32> to vector<48x96xi32>
    %37 = arith.cmpi eq, %36, %35 : vector<48x96xi32>
    %38 = arith.extui %37 : vector<48x96xi1> to vector<48x96xi32>
    %39 = arith.sitofp %38 : vector<48x96xi32> to vector<48x96xf32>
    %cst = arith.constant dense<0.000000e+00> : vector<96x128xf32>
    %40 = tpu.matmul %30, %21, %cst {dimension_numbers = #tpu.dot_dimension_numbers<[1], [0], [0], [1], [0, 0, 1, 1], [], []>} : vector<96x48xf32>, vector<48x128xf32>, vector<96x128xf32> -> vector<96x128xf32>
    %cst_51 = arith.constant dense<0.000000e+00> : vector<96x128xf32>
    %41 = tpu.matmul %34, %21, %cst_51 {dimension_numbers = #tpu.dot_dimension_numbers<[1], [0], [0], [1], [0, 0, 1, 1], [], []>} : vector<96x48xf32>, vector<48x128xf32>, vector<96x128xf32> -> vector<96x128xf32>
    %42 = tpu.concatenate %40, %41, %22 in 1 : vector<96x128xf32>, vector<96x128xf32>, vector<96x128xf32> -> vector<96x384xf32>
    %cst_52 = arith.constant dense<0.000000e+00> : vector<96x128xf32>
    %43 = tpu.matmul %42, %0, %cst_52 {dimension_numbers = #tpu.dot_dimension_numbers<[1], [0], [0], [1], [0, 0, 1, 1], [], []>} : vector<96x384xf32>, vector<384x128xf32>, vector<96x128xf32> -> vector<96x128xf32>
    %44 = vector.broadcast %1 : vector<1x128xf32> to vector<96x128xf32>
    %45 = arith.addf %43, %44 : vector<96x128xf32>
    %46 = arith.negf %45 : vector<96x128xf32>
    %47 = math.exp %46 : vector<96x128xf32>
    %cst_53 = arith.constant 1.000000e+00 : f32
    %48 = vector.broadcast %cst_53 : f32 to vector<96x128xf32>
    %49 = arith.addf %48, %47 : vector<96x128xf32>
    %50 = arith.divf %48, %49 : vector<96x128xf32>
    %cst_54 = arith.constant dense<0.000000e+00> : vector<96x128xf32>
    %51 = tpu.matmul %40, %2, %cst_54 {dimension_numbers = #tpu.dot_dimension_numbers<[1], [0], [0], [1], [0, 0, 1, 1], [], []>} : vector<96x128xf32>, vector<128x128xf32>, vector<96x128xf32> -> vector<96x128xf32>
    %52 = vector.broadcast %3 : vector<1x128xf32> to vector<96x128xf32>
    %53 = arith.addf %51, %52 : vector<96x128xf32>
    %54 = arith.mulf %50, %53 : vector<96x128xf32>
    %55 = tpu.concatenate %54, %50 in 1 : vector<96x128xf32>, vector<96x128xf32> -> vector<96x256xf32>
    %cst_55 = arith.constant dense<0.000000e+00> : vector<48x256xf32>
    %56 = tpu.matmul %39, %55, %cst_55 {dimension_numbers = #tpu.dot_dimension_numbers<[1], [0], [0], [1], [0, 0, 1, 1], [], []>} : vector<48x96xf32>, vector<96x256xf32>, vector<48x256xf32> -> vector<48x256xf32>
    %57 = vector.extract_strided_slice %56 {offsets = [0, 0], sizes = [48, 128], strides = [1, 1]} : vector<48x256xf32> to vector<48x128xf32>
    %58 = vector.extract_strided_slice %56 {offsets = [0, 128], sizes = [48, 128], strides = [1, 1]} : vector<48x256xf32> to vector<48x128xf32>
    %cst_56 = arith.constant 9.99999997E-7 : f32
    %59 = vector.broadcast %cst_56 : f32 to vector<48x128xf32>
    %60 = arith.addf %58, %59 : vector<48x128xf32>
    %61 = tpu.reciprocal %60 {approx = true} : vector<48x128xf32> -> vector<48x128xf32>
    %62 = arith.mulf %57, %61 : vector<48x128xf32>
    %cst_57 = arith.constant dense<0.000000e+00> : vector<48x128xf32>
    %63 = tpu.matmul %21, %4, %cst_57 {dimension_numbers = #tpu.dot_dimension_numbers<[1], [0], [0], [1], [0, 0, 1, 1], [], []>} : vector<48x128xf32>, vector<128x128xf32>, vector<48x128xf32> -> vector<48x128xf32>
    %64 = vector.broadcast %5 : vector<1x128xf32> to vector<48x128xf32>
    %65 = arith.addf %63, %64 : vector<48x128xf32>
    %66 = arith.addf %65, %62 : vector<48x128xf32>
    %cst_58 = arith.constant dense<0.000000e+00> : vector<48xf32>
    %67 = vector.multi_reduction <add>, %66, %cst_58 [1] : vector<48x128xf32> to vector<48xf32>
    %68 = vector.shape_cast %67 : vector<48xf32> to vector<48x1xf32>
    %cst_59 = arith.constant 1.280000e+02 : f32
    %69 = vector.broadcast %cst_59 : f32 to vector<48x1xf32>
    %70 = arith.divf %68, %69 : vector<48x1xf32>
    %71 = vector.broadcast %70 : vector<48x1xf32> to vector<48x128xf32>
    %72 = arith.subf %66, %71 : vector<48x128xf32>
    %73 = arith.mulf %72, %72 : vector<48x128xf32>
    %cst_60 = arith.constant dense<0.000000e+00> : vector<48xf32>
    %74 = vector.multi_reduction <add>, %73, %cst_60 [1] : vector<48x128xf32> to vector<48xf32>
    %75 = vector.shape_cast %74 : vector<48xf32> to vector<48x1xf32>
    %cst_61 = arith.constant 1.280000e+02 : f32
    %76 = vector.broadcast %cst_61 : f32 to vector<48x1xf32>
    %77 = arith.divf %75, %76 : vector<48x1xf32>
    %78 = vector.broadcast %70 : vector<48x1xf32> to vector<48x128xf32>
    %79 = arith.subf %66, %78 : vector<48x128xf32>
    %cst_62 = arith.constant 9.99999974E-6 : f32
    %80 = vector.broadcast %cst_62 : f32 to vector<48x1xf32>
    %81 = arith.addf %77, %80 : vector<48x1xf32>
    %82 = math.rsqrt %81 : vector<48x1xf32>
    %83 = vector.broadcast %82 : vector<48x1xf32> to vector<48x128xf32>
    %84 = arith.mulf %79, %83 : vector<48x128xf32>
    %85 = vector.broadcast %6 : vector<1x128xf32> to vector<48x128xf32>
    %86 = arith.mulf %84, %85 : vector<48x128xf32>
    %87 = vector.broadcast %7 : vector<1x128xf32> to vector<48x128xf32>
    %88 = arith.addf %86, %87 : vector<48x128xf32>
    %89 = arith.negf %88 : vector<48x128xf32>
    %90 = math.exp %89 : vector<48x128xf32>
    %cst_63 = arith.constant 1.000000e+00 : f32
    %91 = vector.broadcast %cst_63 : f32 to vector<48x128xf32>
    %92 = arith.addf %91, %90 : vector<48x128xf32>
    %93 = arith.divf %91, %92 : vector<48x128xf32>
    %94 = arith.mulf %88, %93 : vector<48x128xf32>
    %95 = arith.addf %21, %94 : vector<48x128xf32>
    %cst_64 = arith.constant dense<0.000000e+00> : vector<96xf32>
    %96 = vector.multi_reduction <add>, %45, %cst_64 [1] : vector<96x128xf32> to vector<96xf32>
    %97 = vector.shape_cast %96 : vector<96xf32> to vector<96x1xf32>
    %cst_65 = arith.constant 1.280000e+02 : f32
    %98 = vector.broadcast %cst_65 : f32 to vector<96x1xf32>
    %99 = arith.divf %97, %98 : vector<96x1xf32>
    %100 = vector.broadcast %99 : vector<96x1xf32> to vector<96x128xf32>
    %101 = arith.subf %45, %100 : vector<96x128xf32>
    %102 = arith.mulf %101, %101 : vector<96x128xf32>
    %cst_66 = arith.constant dense<0.000000e+00> : vector<96xf32>
    %103 = vector.multi_reduction <add>, %102, %cst_66 [1] : vector<96x128xf32> to vector<96xf32>
    %104 = vector.shape_cast %103 : vector<96xf32> to vector<96x1xf32>
    %cst_67 = arith.constant 1.280000e+02 : f32
    %105 = vector.broadcast %cst_67 : f32 to vector<96x1xf32>
    %106 = arith.divf %104, %105 : vector<96x1xf32>
    %107 = vector.broadcast %99 : vector<96x1xf32> to vector<96x128xf32>
    %108 = arith.subf %45, %107 : vector<96x128xf32>
    %cst_68 = arith.constant 9.99999974E-6 : f32
    %109 = vector.broadcast %cst_68 : f32 to vector<96x1xf32>
    %110 = arith.addf %106, %109 : vector<96x1xf32>
    %111 = math.rsqrt %110 : vector<96x1xf32>
    %112 = vector.broadcast %111 : vector<96x1xf32> to vector<96x128xf32>
    %113 = arith.mulf %108, %112 : vector<96x128xf32>
    %114 = vector.broadcast %8 : vector<1x128xf32> to vector<96x128xf32>
    %115 = arith.mulf %113, %114 : vector<96x128xf32>
    %116 = vector.broadcast %9 : vector<1x128xf32> to vector<96x128xf32>
    %117 = arith.addf %115, %116 : vector<96x128xf32>
    %118 = arith.negf %117 : vector<96x128xf32>
    %119 = math.exp %118 : vector<96x128xf32>
    %cst_69 = arith.constant 1.000000e+00 : f32
    %120 = vector.broadcast %cst_69 : f32 to vector<96x128xf32>
    %121 = arith.addf %120, %119 : vector<96x128xf32>
    %122 = arith.divf %120, %121 : vector<96x128xf32>
    %123 = arith.mulf %117, %122 : vector<96x128xf32>
    %124 = arith.addf %22, %123 : vector<96x128xf32>
    %c0_70 = arith.constant 0 : index
    %c0_71 = arith.constant 0 : index
    %125 = vector.load %arg3[%c0_70, %c0_71] : memref<48x1xi32, #tpu.memory_space<vmem>>, vector<48x1xi32>
    %c0_72 = arith.constant 0 : index
    %c0_73 = arith.constant 0 : index
    %126 = vector.load %arg4[%c0_72, %c0_73] : memref<48x1xi32, #tpu.memory_space<vmem>>, vector<48x1xi32>
    %c0_74 = arith.constant 0 : index
    %c0_75 = arith.constant 0 : index
    %127 = vector.load %arg5[%c0_74, %c0_75] : memref<1x48xi32, #tpu.memory_space<vmem>>, vector<1x48xi32>
    %128 = tpu.iota {dimensions = array<i32: 1>} : vector<48x16xi32>
    %129 = vector.broadcast %125 : vector<48x1xi32> to vector<48x16xi32>
    %130 = arith.cmpi eq, %129, %128 : vector<48x16xi32>
    %131 = arith.extui %130 : vector<48x16xi1> to vector<48x16xi32>
    %132 = arith.sitofp %131 : vector<48x16xi32> to vector<48x16xf32>
    %133 = vector.broadcast %126 : vector<48x1xi32> to vector<48x16xi32>
    %134 = arith.cmpi eq, %133, %128 : vector<48x16xi32>
    %135 = arith.extui %134 : vector<48x16xi1> to vector<48x16xi32>
    %136 = arith.sitofp %135 : vector<48x16xi32> to vector<48x16xf32>
    %137 = tpu.iota {dimensions = array<i32: 0>} : vector<16x48xi32>
    %138 = vector.broadcast %127 : vector<1x48xi32> to vector<16x48xi32>
    %139 = arith.cmpi eq, %138, %137 : vector<16x48xi32>
    %140 = arith.extui %139 : vector<16x48xi1> to vector<16x48xi32>
    %141 = arith.sitofp %140 : vector<16x48xi32> to vector<16x48xf32>
    %cst_76 = arith.constant dense<0.000000e+00> : vector<48x128xf32>
    %142 = tpu.matmul %132, %20, %cst_76 {dimension_numbers = #tpu.dot_dimension_numbers<[1], [0], [0], [1], [0, 0, 1, 1], [], []>} : vector<48x16xf32>, vector<16x128xf32>, vector<48x128xf32> -> vector<48x128xf32>
    %cst_77 = arith.constant dense<0.000000e+00> : vector<48x128xf32>
    %143 = tpu.matmul %136, %20, %cst_77 {dimension_numbers = #tpu.dot_dimension_numbers<[1], [0], [0], [1], [0, 0, 1, 1], [], []>} : vector<48x16xf32>, vector<16x128xf32>, vector<48x128xf32> -> vector<48x128xf32>
    %144 = tpu.concatenate %142, %143, %95 in 1 : vector<48x128xf32>, vector<48x128xf32>, vector<48x128xf32> -> vector<48x384xf32>
    %cst_78 = arith.constant dense<0.000000e+00> : vector<48x128xf32>
    %145 = tpu.matmul %144, %10, %cst_78 {dimension_numbers = #tpu.dot_dimension_numbers<[1], [0], [0], [1], [0, 0, 1, 1], [], []>} : vector<48x384xf32>, vector<384x128xf32>, vector<48x128xf32> -> vector<48x128xf32>
    %146 = vector.broadcast %11 : vector<1x128xf32> to vector<48x128xf32>
    %147 = arith.addf %145, %146 : vector<48x128xf32>
    %148 = arith.negf %147 : vector<48x128xf32>
    %149 = math.exp %148 : vector<48x128xf32>
    %cst_79 = arith.constant 1.000000e+00 : f32
    %150 = vector.broadcast %cst_79 : f32 to vector<48x128xf32>
    %151 = arith.addf %150, %149 : vector<48x128xf32>
    %152 = arith.divf %150, %151 : vector<48x128xf32>
    %cst_80 = arith.constant dense<0.000000e+00> : vector<48x128xf32>
    %153 = tpu.matmul %142, %12, %cst_80 {dimension_numbers = #tpu.dot_dimension_numbers<[1], [0], [0], [1], [0, 0, 1, 1], [], []>} : vector<48x128xf32>, vector<128x128xf32>, vector<48x128xf32> -> vector<48x128xf32>
    %154 = vector.broadcast %13 : vector<1x128xf32> to vector<48x128xf32>
    %155 = arith.addf %153, %154 : vector<48x128xf32>
    %156 = arith.mulf %152, %155 : vector<48x128xf32>
    %157 = tpu.concatenate %156, %152 in 1 : vector<48x128xf32>, vector<48x128xf32> -> vector<48x256xf32>
    %cst_81 = arith.constant dense<0.000000e+00> : vector<16x256xf32>
    %158 = tpu.matmul %141, %157, %cst_81 {dimension_numbers = #tpu.dot_dimension_numbers<[1], [0], [0], [1], [0, 0, 1, 1], [], []>} : vector<16x48xf32>, vector<48x256xf32>, vector<16x256xf32> -> vector<16x256xf32>
    %159 = vector.extract_strided_slice %158 {offsets = [0, 0], sizes = [16, 128], strides = [1, 1]} : vector<16x256xf32> to vector<16x128xf32>
    %160 = vector.extract_strided_slice %158 {offsets = [0, 128], sizes = [16, 128], strides = [1, 1]} : vector<16x256xf32> to vector<16x128xf32>
    %cst_82 = arith.constant 9.99999997E-7 : f32
    %161 = vector.broadcast %cst_82 : f32 to vector<16x128xf32>
    %162 = arith.addf %160, %161 : vector<16x128xf32>
    %163 = tpu.reciprocal %162 {approx = true} : vector<16x128xf32> -> vector<16x128xf32>
    %164 = arith.mulf %159, %163 : vector<16x128xf32>
    %cst_83 = arith.constant dense<0.000000e+00> : vector<16x128xf32>
    %165 = tpu.matmul %20, %14, %cst_83 {dimension_numbers = #tpu.dot_dimension_numbers<[1], [0], [0], [1], [0, 0, 1, 1], [], []>} : vector<16x128xf32>, vector<128x128xf32>, vector<16x128xf32> -> vector<16x128xf32>
    %166 = vector.broadcast %15 : vector<1x128xf32> to vector<16x128xf32>
    %167 = arith.addf %165, %166 : vector<16x128xf32>
    %168 = arith.addf %167, %164 : vector<16x128xf32>
    %cst_84 = arith.constant dense<0.000000e+00> : vector<16xf32>
    %169 = vector.multi_reduction <add>, %168, %cst_84 [1] : vector<16x128xf32> to vector<16xf32>
    %170 = vector.shape_cast %169 : vector<16xf32> to vector<16x1xf32>
    %cst_85 = arith.constant 1.280000e+02 : f32
    %171 = vector.broadcast %cst_85 : f32 to vector<16x1xf32>
    %172 = arith.divf %170, %171 : vector<16x1xf32>
    %173 = vector.broadcast %172 : vector<16x1xf32> to vector<16x128xf32>
    %174 = arith.subf %168, %173 : vector<16x128xf32>
    %175 = arith.mulf %174, %174 : vector<16x128xf32>
    %cst_86 = arith.constant dense<0.000000e+00> : vector<16xf32>
    %176 = vector.multi_reduction <add>, %175, %cst_86 [1] : vector<16x128xf32> to vector<16xf32>
    %177 = vector.shape_cast %176 : vector<16xf32> to vector<16x1xf32>
    %cst_87 = arith.constant 1.280000e+02 : f32
    %178 = vector.broadcast %cst_87 : f32 to vector<16x1xf32>
    %179 = arith.divf %177, %178 : vector<16x1xf32>
    %180 = vector.broadcast %172 : vector<16x1xf32> to vector<16x128xf32>
    %181 = arith.subf %168, %180 : vector<16x128xf32>
    %cst_88 = arith.constant 9.99999974E-6 : f32
    %182 = vector.broadcast %cst_88 : f32 to vector<16x1xf32>
    %183 = arith.addf %179, %182 : vector<16x1xf32>
    %184 = math.rsqrt %183 : vector<16x1xf32>
    %185 = vector.broadcast %184 : vector<16x1xf32> to vector<16x128xf32>
    %186 = arith.mulf %181, %185 : vector<16x128xf32>
    %187 = vector.broadcast %16 : vector<1x128xf32> to vector<16x128xf32>
    %188 = arith.mulf %186, %187 : vector<16x128xf32>
    %189 = vector.broadcast %17 : vector<1x128xf32> to vector<16x128xf32>
    %190 = arith.addf %188, %189 : vector<16x128xf32>
    %191 = arith.negf %190 : vector<16x128xf32>
    %192 = math.exp %191 : vector<16x128xf32>
    %cst_89 = arith.constant 1.000000e+00 : f32
    %193 = vector.broadcast %cst_89 : f32 to vector<16x128xf32>
    %194 = arith.addf %193, %192 : vector<16x128xf32>
    %195 = arith.divf %193, %194 : vector<16x128xf32>
    %196 = arith.mulf %190, %195 : vector<16x128xf32>
    %197 = arith.addf %20, %196 : vector<16x128xf32>
    %cst_90 = arith.constant dense<0.000000e+00> : vector<48xf32>
    %198 = vector.multi_reduction <add>, %147, %cst_90 [1] : vector<48x128xf32> to vector<48xf32>
    %199 = vector.shape_cast %198 : vector<48xf32> to vector<48x1xf32>
    %cst_91 = arith.constant 1.280000e+02 : f32
    %200 = vector.broadcast %cst_91 : f32 to vector<48x1xf32>
    %201 = arith.divf %199, %200 : vector<48x1xf32>
    %202 = vector.broadcast %201 : vector<48x1xf32> to vector<48x128xf32>
    %203 = arith.subf %147, %202 : vector<48x128xf32>
    %204 = arith.mulf %203, %203 : vector<48x128xf32>
    %cst_92 = arith.constant dense<0.000000e+00> : vector<48xf32>
    %205 = vector.multi_reduction <add>, %204, %cst_92 [1] : vector<48x128xf32> to vector<48xf32>
    %206 = vector.shape_cast %205 : vector<48xf32> to vector<48x1xf32>
    %cst_93 = arith.constant 1.280000e+02 : f32
    %207 = vector.broadcast %cst_93 : f32 to vector<48x1xf32>
    %208 = arith.divf %206, %207 : vector<48x1xf32>
    %209 = vector.broadcast %201 : vector<48x1xf32> to vector<48x128xf32>
    %210 = arith.subf %147, %209 : vector<48x128xf32>
    %cst_94 = arith.constant 9.99999974E-6 : f32
    %211 = vector.broadcast %cst_94 : f32 to vector<48x1xf32>
    %212 = arith.addf %208, %211 : vector<48x1xf32>
    %213 = math.rsqrt %212 : vector<48x1xf32>
    %214 = vector.broadcast %213 : vector<48x1xf32> to vector<48x128xf32>
    %215 = arith.mulf %210, %214 : vector<48x128xf32>
    %216 = vector.broadcast %18 : vector<1x128xf32> to vector<48x128xf32>
    %217 = arith.mulf %215, %216 : vector<48x128xf32>
    %218 = vector.broadcast %19 : vector<1x128xf32> to vector<48x128xf32>
    %219 = arith.addf %217, %218 : vector<48x128xf32>
    %220 = arith.negf %219 : vector<48x128xf32>
    %221 = math.exp %220 : vector<48x128xf32>
    %cst_95 = arith.constant 1.000000e+00 : f32
    %222 = vector.broadcast %cst_95 : f32 to vector<48x128xf32>
    %223 = arith.addf %222, %221 : vector<48x128xf32>
    %224 = arith.divf %222, %223 : vector<48x128xf32>
    %225 = arith.mulf %219, %224 : vector<48x128xf32>
    %226 = arith.addf %95, %225 : vector<48x128xf32>
    %c0_96 = arith.constant 0 : index
    %c0_97 = arith.constant 0 : index
    %227 = vector.load %arg29[%c0_96, %c0_97] : memref<16x128xf32, #tpu.memory_space<vmem>>, vector<16x128xf32>
    tpu.vector_store %arg29[%c0_96, %c0_97], %197 {strides = array<i32>} : memref<16x128xf32, #tpu.memory_space<vmem>>, vector<16x128xf32>,
    %c0_98 = arith.constant 0 : index
    %c0_99 = arith.constant 0 : index
    %228 = vector.load %arg30[%c0_98, %c0_99] : memref<48x128xf32, #tpu.memory_space<vmem>>, vector<48x128xf32>
    tpu.vector_store %arg30[%c0_98, %c0_99], %226 {strides = array<i32>} : memref<48x128xf32, #tpu.memory_space<vmem>>, vector<48x128xf32>,
    %c0_100 = arith.constant 0 : index
    %c0_101 = arith.constant 0 : index
    %229 = vector.load %arg31[%c0_100, %c0_101] : memref<96x128xf32, #tpu.memory_space<vmem>>, vector<96x128xf32>
    tpu.vector_store %arg31[%c0_100, %c0_101], %124 {strides = array<i32>} : memref<96x128xf32, #tpu.memory_space<vmem>>, vector<96x128xf32>,
    return
  }
}

</mosaic_0001>

<llo_original>
// kernel: alignn_forward.7
$region0: #{alignn_forward.7}
  #allocation0 [shape = 'u32[]', space=smem, size = 0x4, offset = 0x4, fixed_abs, tag = 'smem constant byte address 0x4 - core index']
  #allocation1 [shape = 'u32[144,128]{1,0:T(1,128)}', space=vmem, size = 0x12000, scoped, tag = 'internal scratch']
  %s0 = inlined_call_operand.vmem [shape: f32[16,128], index: 0, kind: input, shape index: {}]
  %s1 = inlined_call_operand.vmem [shape: f32[128,128], index: 1, kind: input, shape index: {}]
  %s2 = inlined_call_operand.vmem [shape: f32[1,128], index: 2, kind: input, shape index: {}]
  %s3 = inlined_call_operand.vmem [shape: f32[128,128], index: 3, kind: input, shape index: {}]
  %s4 = inlined_call_operand.vmem [shape: f32[1,128], index: 4, kind: input, shape index: {}]
  %s5 = inlined_call_operand.vmem [shape: f32[16,128], index: 5, kind: output, shape index: {}]
  %s6 = sld [smem:[#allocation0]]
  $region30: #{alignn_forward.7} parent=0
    _
  %s8 = ssub.s32 1, %s6
  %s9 = scalar_select 0, %s8, %s6
  // Predicated region
  $region2: #{alignn_forward.7} parent=0 // pred_check
    _
  $region3: #{alignn_forward.7} parent=0 // pred_check_branch
    %11 = sbr.rel (0) target = $region5
  $region4: #{alignn_forward.7} parent=0 // pred_region
    _
  $region5: #{alignn_forward.7} parent=0 // pred_fallthru
    _
  // Predicated region
  $region6: #{alignn_forward.7} parent=0 // pred_check
    _
  $region7: #{alignn_forward.7} parent=0 // pred_check_branch
    %13 = sbr.rel (0) target = $region9
  $region8: #{alignn_forward.7} parent=0 // pred_region
    _
  $region9: #{alignn_forward.7} parent=0 // pred_fallthru
    _
  // Predicated region
  $region10: #{alignn_forward.7} parent=0 // pred_check
    _
  $region11: #{alignn_forward.7} parent=0 // pred_check_branch
    %15 = sbr.rel (0) target = $region13
  $region12: #{alignn_forward.7} parent=0 // pred_region
    _
  $region13: #{alignn_forward.7} parent=0 // pred_fallthru
    _
  // Predicated region
  $region14: #{alignn_forward.7} parent=0 // pred_check
    _
  $region15: #{alignn_forward.7} parent=0 // pred_check_branch
    %17 = sbr.rel (0) target = $region17
  $region16: #{alignn_forward.7} parent=0 // pred_region
    _
  $region17: #{alignn_forward.7} parent=0 // pred_fallthru
    _
  // Predicated region
  $region18: #{alignn_forward.7} parent=0 // pred_check
    _
  $region19: #{alignn_forward.7} parent=0 // pred_check_branch
    %19 = sbr.rel (0) target = $region21
  $region20: #{alignn_forward.7} parent=0 // pred_region
    _
  $region21: #{alignn_forward.7} parent=0 // pred_fallthru
    _
  %v20 = vld [vmem:[%s0] sm:$0xff]
  %v21 = vld [vmem:[%s0 + $0x8] sm:$0xff]
  %v22 = vld [vmem:[%s1] sm:$0xff]
  %v23 = vld [vmem:[%s1 + $0x8] sm:$0xff]
  %v24 = vld [vmem:[%s1 + $0x10] sm:$0xff]
  %v25 = vld [vmem:[%s1 + $0x18] sm:$0xff]
  %v26 = vld [vmem:[%s1 + $0x20] sm:$0xff]
  %v27 = vld [vmem:[%s1 + $0x28] sm:$0xff]
  %v28 = vld [vmem:[%s1 + $0x30] sm:$0xff]
  %v29 = vld [vmem:[%s1 + $0x38] sm:$0xff]
  %v30 = vld [vmem:[%s1 + $0x40] sm:$0xff]
  %v31 = vld [vmem:[%s1 + $0x48] sm:$0xff]
  %v32 = vld [vmem:[%s1 + $0x50] sm:$0xff]
  %v33 = vld [vmem:[%s1 + $0x58] sm:$0xff]
  %v34 = vld [vmem:[%s1 + $0x60] sm:$0xff]
  %v35 = vld [vmem:[%s1 + $0x68] sm:$0xff]
  %v36 = vld [vmem:[%s1 + $0x70] sm:$0xff]
  %v37 = vld [vmem:[%s1 + $0x78] sm:$0xff]
  %v38 = vld [vmem:[%s2] sm:$0x1]
  %v40 = vlaneseq
  %v41 = vshrl.u32 %v40, 7
  %v42 = vsub.s32 0, %v41
  %v43 = vrot.slane %v38, %v42
  %45 = vmatprep.subr.mxu0 0.0
  %46 = vmatpush1.msra.mxu0 %v22
  %47 = vmatprep.subr.mxu0 0.0
  %48 = vmatpush1.msra.mxu0 %v23
  %49 = vmatprep.subr.mxu0 0.0
  %50 = vmatpush1.msra.mxu0 %v24
  %51 = vmatprep.subr.mxu0 0.0
  %52 = vmatpush1.msra.mxu0 %v25
  %53 = vmatprep.subr.mxu0 0.0
  %54 = vmatpush1.msra.mxu0 %v26
  %55 = vmatprep.subr.mxu0 0.0
  %56 = vmatpush1.msra.mxu0 %v27
  %57 = vmatprep.subr.mxu0 0.0
  %58 = vmatpush1.msra.mxu0 %v28
  %59 = vmatprep.subr.mxu0 0.0
  %60 = vmatpush1.msra.mxu0 %v29
  %61 = vmatprep.subr.mxu0 0.0
  %62 = vmatpush1.msra.mxu0 %v30
  %63 = vmatprep.subr.mxu0 0.0
  %64 = vmatpush1.msra.mxu0 %v31
  %65 = vmatprep.subr.mxu0 0.0
  %66 = vmatpush1.msra.mxu0 %v32
  %67 = vmatprep.subr.mxu0 0.0
  %68 = vmatpush1.msra.mxu0 %v33
  %69 = vmatprep.subr.mxu0 0.0
  %70 = vmatpush1.msra.mxu0 %v34
  %71 = vmatprep.subr.mxu0 0.0
  %72 = vmatpush1.msra.mxu0 %v35
  %73 = vmatprep.subr.mxu0 0.0
  %74 = vmatpush1.msra.mxu0 %v36
  %75 = vmatprep.subr.mxu0 0.0
  %76 = vmatpush1.msra.mxu0 %v37
  %77 = vmatprep.subr.mxu0 0.0
  %78 = vmatpush1.msra.mxu0 0.0
  %79 = vmatprep.subr.mxu0 0.0
  %80 = vmatpush1.msra.mxu0 0.0
  %81 = vmatprep.subr.mxu0 0.0
  %82 = vmatpush1.msra.mxu0 0.0
  %83 = vmatprep.subr.mxu0 0.0
  %84 = vmatpush1.msra.mxu0 0.0
  %85 = vmatprep.subr.mxu0 0.0
  %86 = vmatpush1.msra.mxu0 0.0
  %87 = vmatprep.subr.mxu0 0.0
  %88 = vmatpush1.msra.mxu0 0.0
  %89 = vmatprep.subr.mxu0 0.0
  %90 = vmatpush1.msra.mxu0 0.0
  %91 = vmatprep.subr.mxu0 0.0
  %92 = vmatpush1.msra.mxu0 0.0
  %93 = vmatprep.subr.mxu0 0.0
  %94 = vmatpush1.msra.mxu0 0.0
  %95 = vmatprep.subr.mxu0 0.0
  %96 = vmatpush1.msra.mxu0 0.0
  %97 = vmatprep.subr.mxu0 0.0
  %98 = vmatpush1.msra.mxu0 0.0
  %99 = vmatprep.subr.mxu0 0.0
  %100 = vmatpush1.msra.mxu0 0.0
  %101 = vmatprep.subr.mxu0 0.0
  %102 = vmatpush1.msra.mxu0 0.0
  %103 = vmatprep.subr.mxu0 0.0
  %104 = vmatpush1.msra.mxu0 0.0
  %105 = vmatprep.subr.mxu0 0.0
  %106 = vmatpush1.msra.mxu0 0.0
  %107 = vmatprep.subr.mxu0 0.0
  %108 = vmatpush1.msra.mxu0 0.0
  %109 = vmatprep.mubr.f32.mxu0 0.0
  %110 = vmatmul.mubr.f32.gmra.mrb[0].mxu0 %v20
  %v111 = vpop.f32.mrb[0].mxu0
  %v112 = vadd.f32 %v43, %v111
  %v113 = vpop.f32.mrb[0].mxu0
  %114 = vmatprep.mubr.f32.mxu0 0.0
  %115 = vmatmul.mubr.f32.gmra.mrb[0].mxu0 %v21
  %v116 = vpop.f32.mrb[0].mxu0
  %v117 = vadd.f32 %v43, %v116
  %v118 = vpop.f32.mrb[0].mxu0
  %119 = vdwg.mxu0
  %v120 = vxor.u32 %v112, 2147483648
  %v121 = vxor.u32 %v117, 2147483648
  %v122 = vmul.f32 %v120, 1.442695
  %v123 = vpow.pop %v122
  %v124 = vmul.f32 %v121, 1.442695
  %v125 = vpow.pop %v124
  %v126 = vadd.f32 %v123, 1.0
  %v127 = vadd.f32 %v125, 1.0
  %v128 = vrcp.pop %v126
  %v129 = vmul.f32 1.0, %v128
  %v130 = vrcp.pop %v127
  %v131 = vmul.f32 1.0, %v130
  %v132 = vmul.f32 %v112, %v129
  %v133 = vmul.f32 %v117, %v131
  %v134 = vld [vmem:[%s3] sm:$0xff]
  %v135 = vld [vmem:[%s3 + $0x8] sm:$0xff]
  %v136 = vld [vmem:[%s3 + $0x10] sm:$0xff]
  %v137 = vld [vmem:[%s3 + $0x18] sm:$0xff]
  %v138 = vld [vmem:[%s3 + $0x20] sm:$0xff]
  %v139 = vld [vmem:[%s3 + $0x28] sm:$0xff]
  %v140 = vld [vmem:[%s3 + $0x30] sm:$0xff]
  %v141 = vld [vmem:[%s3 + $0x38] sm:$0xff]
  %v142 = vld [vmem:[%s3 + $0x40] sm:$0xff]
  %v143 = vld [vmem:[%s3 + $0x48] sm:$0xff]
  %v144 = vld [vmem:[%s3 + $0x50] sm:$0xff]
  %v145 = vld [vmem:[%s3 + $0x58] sm:$0xff]
  %v146 = vld [vmem:[%s3 + $0x60] sm:$0xff]
  %v147 = vld [vmem:[%s3 + $0x68] sm:$0xff]
  %v148 = vld [vmem:[%s3 + $0x70] sm:$0xff]
  %v149 = vld [vmem:[%s3 + $0x78] sm:$0xff]
  %v150 = vld [vmem:[%s4] sm:$0x1]
  %v152 = vlaneseq
  %v153 = vshrl.u32 %v152, 7
  %v154 = vsub.s32 0, %v153
  %v155 = vrot.slane %v150, %v154
  %157 = vmatprep.subr.mxu0 0.0
  %158 = vmatpush1.msra.mxu0 %v134
  %159 = vmatprep.subr.mxu0 0.0
  %160 = vmatpush1.msra.mxu0 %v135
  %161 = vmatprep.subr.mxu0 0.0
  %162 = vmatpush1.msra.mxu0 %v136
  %163 = vmatprep.subr.mxu0 0.0
  %164 = vmatpush1.msra.mxu0 %v137
  %165 = vmatprep.subr.mxu0 0.0
  %166 = vmatpush1.msra.mxu0 %v138
  %167 = vmatprep.subr.mxu0 0.0
  %168 = vmatpush1.msra.mxu0 %v139
  %169 = vmatprep.subr.mxu0 0.0
  %170 = vmatpush1.msra.mxu0 %v140
  %171 = vmatprep.subr.mxu0 0.0
  %172 = vmatpush1.msra.mxu0 %v141
  %173 = vmatprep.subr.mxu0 0.0
  %174 = vmatpush1.msra.mxu0 %v142
  %175 = vmatprep.subr.mxu0 0.0
  %176 = vmatpush1.msra.mxu0 %v143
  %177 = vmatprep.subr.mxu0 0.0
  %178 = vmatpush1.msra.mxu0 %v144
  %179 = vmatprep.subr.mxu0 0.0
  %180 = vmatpush1.msra.mxu0 %v145
  %181 = vmatprep.subr.mxu0 0.0
  %182 = vmatpush1.msra.mxu0 %v146
  %183 = vmatprep.subr.mxu0 0.0
  %184 = vmatpush1.msra.mxu0 %v147
  %185 = vmatprep.subr.mxu0 0.0
  %186 = vmatpush1.msra.mxu0 %v148
  %187 = vmatprep.subr.mxu0 0.0
  %188 = vmatpush1.msra.mxu0 %v149
  %189 = vmatprep.subr.mxu0 0.0
  %190 = vmatpush1.msra.mxu0 0.0
  %191 = vmatprep.subr.mxu0 0.0
  %192 = vmatpush1.msra.mxu0 0.0
  %193 = vmatprep.subr.mxu0 0.0
  %194 = vmatpush1.msra.mxu0 0.0
  %195 = vmatprep.subr.mxu0 0.0
  %196 = vmatpush1.msra.mxu0 0.0
  %197 = vmatprep.subr.mxu0 0.0
  %198 = vmatpush1.msra.mxu0 0.0
  %199 = vmatprep.subr.mxu0 0.0
  %200 = vmatpush1.msra.mxu0 0.0
  %201 = vmatprep.subr.mxu0 0.0
  %202 = vmatpush1.msra.mxu0 0.0
  %203 = vmatprep.subr.mxu0 0.0
  %204 = vmatpush1.msra.mxu0 0.0
  %205 = vmatprep.subr.mxu0 0.0
  %206 = vmatpush1.msra.mxu0 0.0
  %207 = vmatprep.subr.mxu0 0.0
  %208 = vmatpush1.msra.mxu0 0.0
  %209 = vmatprep.subr.mxu0 0.0
  %210 = vmatpush1.msra.mxu0 0.0
  %211 = vmatprep.subr.mxu0 0.0
  %212 = vmatpush1.msra.mxu0 0.0
  %213 = vmatprep.subr.mxu0 0.0
  %214 = vmatpush1.msra.mxu0 0.0
  %215 = vmatprep.subr.mxu0 0.0
  %216 = vmatpush1.msra.mxu0 0.0
  %217 = vmatprep.subr.mxu0 0.0
  %218 = vmatpush1.msra.mxu0 0.0
  %219 = vmatprep.subr.mxu0 0.0
  %220 = vmatpush1.msra.mxu0 0.0
  %221 = vmatprep.mubr.f32.mxu0 0.0
  %222 = vmatmul.mubr.f32.gmra.mrb[0].mxu0 %v132
  %v223 = vpop.f32.mrb[0].mxu0
  %v224 = vadd.f32 %v155, %v223
  %v225 = vpop.f32.mrb[0].mxu0
  %226 = vmatprep.mubr.f32.mxu0 0.0
  %227 = vmatmul.mubr.f32.gmra.mrb[0].mxu0 %v133
  %v228 = vpop.f32.mrb[0].mxu0
  %v229 = vadd.f32 %v155, %v228
  %v230 = vpop.f32.mrb[0].mxu0
  %231 = vdwg.mxu0
  %232 = vst [vmem:[%s5] sm:$0xff] %v224
  %233 = vst [vmem:[%s5 + $0x8] sm:$0xff] %v229
  // Predicated region
  $region22: #{alignn_forward.7} parent=0 // pred_check
    _
  $region23: #{alignn_forward.7} parent=0 // pred_check_branch
    %235 = sbr.rel (0) target = $region25
  $region24: #{alignn_forward.7} parent=0 // pred_region
    _
  $region25: #{alignn_forward.7} parent=0 // pred_fallthru
    _
  // Predicated region
  $region26: #{alignn_forward.7} parent=0 // pred_check
    _
  $region27: #{alignn_forward.7} parent=0 // pred_check_branch
    %237 = sbr.rel (0) target = $region29
  $region28: #{alignn_forward.7} parent=0 // pred_region
    _
  $region29: #{alignn_forward.7} parent=0 // pred_fallthru
    _

// kernel: alignn_forward.4
$region0: #{alignn_forward.4}
  #allocation0 [shape = 'u32[]', space=smem, size = 0x4, offset = 0x4, fixed_abs, tag = 'smem constant byte address 0x4 - core index']
  #allocation1 [shape = 'u32[144,128]{1,0:T(1,128)}', space=vmem, size = 0x12000, scoped, tag = 'internal scratch']
  %s0 = inlined_call_operand.vmem [shape: f32[16,8], index: 0, kind: input, shape index: {}]
  %s1 = inlined_call_operand.vmem [shape: f32[48,16], index: 1, kind: input, shape index: {}]
  %s2 = inlined_call_operand.vmem [shape: f32[96,16], index: 2, kind: input, shape index: {}]
  %s3 = inlined_call_operand.hbm [shape: f32[8,128], index: 3, kind: input, shape index: {}]
  %s4 = inlined_call_operand.hbm [shape: f32[1,128], index: 4, kind: input, shape index: {}]
  %s5 = inlined_call_operand.hbm [shape: f32[16,128], index: 5, kind: input, shape index: {}]
  %s6 = inlined_call_operand.hbm [shape: f32[1,128], index: 6, kind: input, shape index: {}]
  %s7 = inlined_call_operand.hbm [shape: f32[16,128], index: 7, kind: input, shape index: {}]
  %s8 = inlined_call_operand.hbm [shape: f32[1,128], index: 8, kind: input, shape index: {}]
  %s9 = inlined_call_operand.vmem [shape: f32[16,128], index: 9, kind: output, shape index: {0}]
  %s10 = inlined_call_operand.vmem [shape: f32[48,128], index: 10, kind: output, shape index: {1}]
  %s11 = inlined_call_operand.vmem [shape: f32[96,128], index: 11, kind: output, shape index: {2}]
  %12 = xla_tuple %s9, %s10, %s11
  %s13 = sld [smem:[#allocation0]]
  $region86: #{alignn_forward.4} parent=0
    _
  %s15 = ssub.s32 1, %s13
  %s16 = scalar_select 0, %s15, %s13
  $region1: #{alignn_forward.4} parent=0
    #allocation2 [shape = 'u8[4096]{0}', space=vmem, size = 0x1000, scoped, tag = 'input window, operand 3, single buffered']
    #allocation3 [shape = 's32[1]{0}', space=sflag, size = 0x4, scoped, tag = 'scoped memory for alignn_forward.4']
    #allocation4 [shape = 'u8[512]{0}', space=vmem, size = 0x400, scoped, tag = 'input window, operand 4, single buffered']
    #allocation5 [shape = 's32[1]{0}', space=sflag, size = 0x4, scoped, tag = 'scoped memory for alignn_forward.4']
    #allocation6 [shape = 'u8[8192]{0}', space=vmem, size = 0x2000, scoped, tag = 'input window, operand 5, single buffered']
    #allocation7 [shape = 'u8[512]{0}', space=vmem, size = 0x400, scoped, tag = 'input window, operand 6, single buffered']
    #allocation8 [shape = 's32[1]{0}', space=sflag, size = 0x4, scoped, tag = 'scoped memory for alignn_forward.4']
    #allocation9 [shape = 'u8[8192]{0}', space=vmem, size = 0x2000, scoped, tag = 'input window, operand 7, single buffered']
    #allocation10 [shape = 'u8[512]{0}', space=vmem, size = 0x400, scoped, tag = 'input window, operand 8, single buffered']
    #allocation11 [shape = 's32[1]{0}', space=sflag, size = 0x4, scoped, tag = 'scoped memory for alignn_forward.4']
    %17 = vsyncpa [#allocation3], 0
    %18 = vsyncpa [#allocation5], 0
    %19 = vsyncpa [#allocation8], 0
    %20 = vsyncpa [#allocation11], 0
    // Predicated region
    $region2: #{alignn_forward.4} parent=1 // pred_check
      _
    $region3: #{alignn_forward.4} parent=1 // pred_check_branch
      %22 = sbr.rel (0) target = $region5
    $region4: #{alignn_forward.4} parent=1 // pred_region
      _
    $region5: #{alignn_forward.4} parent=1 // pred_fallthru
      _
    // Predicated region
    $region6: #{alignn_forward.4} parent=1 // pred_check
      _
    $region7: #{alignn_forward.4} parent=1 // pred_check_branch
      %24 = sbr.rel (0) target = $region9
    $region8: #{alignn_forward.4} parent=1 // pred_region
      _
    $region9: #{alignn_forward.4} parent=1 // pred_fallthru
      _
    // Predicated region
    $region10: #{alignn_forward.4} parent=1 // pred_check
      _
    $region11: #{alignn_forward.4} parent=1 // pred_check_branch
      %26 = sbr.rel (0) target = $region13
    $region12: #{alignn_forward.4} parent=1 // pred_region
      _
    $region13: #{alignn_forward.4} parent=1 // pred_fallthru
      _
    // Predicated region
    $region14: #{alignn_forward.4} parent=1 // pred_check
      _
    $region15: #{alignn_forward.4} parent=1 // pred_check_branch
      %28 = sbr.rel (0) target = $region17
    $region16: #{alignn_forward.4} parent=1 // pred_region
      %s30 = ssub.s32 128, 128
      %31 = vsyncadd [#allocation3], %s30
      %s33 = sshll.u32 [#allocation2], 4
      %s34 = int_to_ptr.vmem [resolvable:$true] %s33
      %36 = dma.hbm_to_vmem [thread:$0]  %s3, 128, %s34, [#allocation3]
    $region17: #{alignn_forward.4} parent=1 // pred_fallthru
      _
    // Predicated region
    $region18: #{alignn_forward.4} parent=1 // pred_check
      _
    $region19: #{alignn_forward.4} parent=1 // pred_check_branch
      %38 = sbr.rel (0) target = $region21
    $region20: #{alignn_forward.4} parent=1 // pred_region
      %s40 = ssub.s32 16, 16
      %41 = vsyncadd [#allocation5], %s40
      %s43 = sshll.u32 [#allocation4], 4
      %s44 = int_to_ptr.vmem [resolvable:$true] %s43
      %46 = dma.hbm_to_vmem [thread:$0]  %s4, 16, %s44, [#allocation5]
    $region21: #{alignn_forward.4} parent=1 // pred_fallthru
      _
    // Predicated region
    $region22: #{alignn_forward.4} parent=1 // pred_check
      _
    $region23: #{alignn_forward.4} parent=1 // pred_check_branch
      %48 = sbr.rel (0) target = $region25
    $region24: #{alignn_forward.4} parent=1 // pred_region
      %s50 = ssub.s32 256, 256
      %51 = vsyncadd [#allocation5], %s50
      %s52 = sshll.u32 [#allocation6], 4
      %s53 = int_to_ptr.vmem [resolvable:$true] %s52
      %58 = dma.hbm_to_vmem [thread:$0]  %s5, 256, %s53, [#allocation5], 128, 128, 8
    $region25: #{alignn_forward.4} parent=1 // pred_fallthru
      _
    // Predicated region
    $region26: #{alignn_forward.4} parent=1 // pred_check
      _
    $region27: #{alignn_forward.4} parent=1 // pred_check_branch
      %60 = sbr.rel (0) target = $region29
    $region28: #{alignn_forward.4} parent=1 // pred_region
      %s62 = ssub.s32 16, 16
      %63 = vsyncadd [#allocation8], %s62
      %s65 = sshll.u32 [#allocation7], 4
      %s66 = int_to_ptr.vmem [resolvable:$true] %s65
      %68 = dma.hbm_to_vmem [thread:$0]  %s6, 16, %s66, [#allocation8]
    $region29: #{alignn_forward.4} parent=1 // pred_fallthru
      _
    // Predicated region
    $region30: #{alignn_forward.4} parent=1 // pred_check
      _
    $region31: #{alignn_forward.4} parent=1 // pred_check_branch
      %70 = sbr.rel (0) target = $region33
    $region32: #{alignn_forward.4} parent=1 // pred_region
      %s72 = ssub.s32 256, 256
      %73 = vsyncadd [#allocation8], %s72
      %s74 = sshll.u32 [#allocation9], 4
      %s75 = int_to_ptr.vmem [resolvable:$true] %s74
      %80 = dma.hbm_to_vmem [thread:$0]  %s7, 256, %s75, [#allocation8], 128, 128, 8
    $region33: #{alignn_forward.4} parent=1 // pred_fallthru
      _
    // Predicated region
    $region34: #{alignn_forward.4} parent=1 // pred_check
      _
    $region35: #{alignn_forward.4} parent=1 // pred_check_branch
      %82 = sbr.rel (0) target = $region37
    $region36: #{alignn_forward.4} parent=1 // pred_region
      %s84 = ssub.s32 16, 16
      %85 = vsyncadd [#allocation11], %s84
      %s87 = sshll.u32 [#allocation10], 4
      %s88 = int_to_ptr.vmem [resolvable:$true] %s87
      %90 = dma.hbm_to_vmem [thread:$0]  %s8, 16, %s88, [#allocation11]
    $region37: #{alignn_forward.4} parent=1 // pred_fallthru
      _
    // Predicated region
    $region38: #{alignn_forward.4} parent=1 // pred_check
      _
    $region39: #{alignn_forward.4} parent=1 // pred_check_branch
      %92 = sbr.rel (0) target = $region41
    $region40: #{alignn_forward.4} parent=1 // pred_region
      %93 = dma.done [#allocation3], 128
    $region41: #{alignn_forward.4} parent=1 // pred_fallthru
      _
    // Predicated region
    $region42: #{alignn_forward.4} parent=1 // pred_check
      _
    $region43: #{alignn_forward.4} parent=1 // pred_check_branch
      %95 = sbr.rel (0) target = $region45
    $region44: #{alignn_forward.4} parent=1 // pred_region
      %96 = dma.done [#allocation5], 16
    $region45: #{alignn_forward.4} parent=1 // pred_fallthru
      _
    // Predicated region
    $region46: #{alignn_forward.4} parent=1 // pred_check
      _
    $region47: #{alignn_forward.4} parent=1 // pred_check_branch
      %98 = sbr.rel (0) target = $region49
    $region48: #{alignn_forward.4} parent=1 // pred_region
      %99 = dma.done [#allocation5], 256
    $region49: #{alignn_forward.4} parent=1 // pred_fallthru
      _
    // Predicated region
    $region50: #{alignn_forward.4} parent=1 // pred_check
      _
    $region51: #{alignn_forward.4} parent=1 // pred_check_branch
      %101 = sbr.rel (0) target = $region53
    $region52: #{alignn_forward.4} parent=1 // pred_region
      %102 = dma.done [#allocation8], 16
    $region53: #{alignn_forward.4} parent=1 // pred_fallthru
      _
    // Predicated region
    $region54: #{alignn_forward.4} parent=1 // pred_check
      _
    $region55: #{alignn_forward.4} parent=1 // pred_check_branch
      %104 = sbr.rel (0) target = $region57
    $region56: #{alignn_forward.4} parent=1 // pred_region
      %105 = dma.done [#allocation8], 256
    $region57: #{alignn_forward.4} parent=1 // pred_fallthru
      _
    // Predicated region
    $region58: #{alignn_forward.4} parent=1 // pred_check
      _
    $region59: #{alignn_forward.4} parent=1 // pred_check_branch
      %107 = sbr.rel (0) target = $region61
    $region60: #{alignn_forward.4} parent=1 // pred_region
      %108 = dma.done [#allocation11], 16
    $region61: #{alignn_forward.4} parent=1 // pred_fallthru
      _
    %v109 = vld [vmem:[%s0] sm:$0xff]
    %v110 = vld [vmem:[%s0 + $0x8] sm:$0xff]
    %v111 = vld [vmem:[#allocation2] sm:$0xff]
    %v112 = vld [vmem:[#allocation4] sm:$0x1]
    %v114 = vlaneseq
    %v115 = vshrl.u32 %v114, 7
    %v116 = vsub.s32 0, %v115
    %v117 = vrot.slane %v112, %v116
    %vm119 = vcmask 64512
    %v121 = vsel %vm119, %v109, 0
    %v124 = vsel %vm119, %v110, 0
    %126 = vmatprep.subr.mxu0 0.0
    %127 = vmatpush1.msra.mxu0 %v111
    %128 = vmatprep.subr.mxu0 0.0
    %129 = vmatpush1.msra.mxu0 0.0
    %130 = vmatprep.subr.mxu0 0.0
    %131 = vmatpush1.msra.mxu0 0.0
    %132 = vmatprep.subr.mxu0 0.0
    %133 = vmatpush1.msra.mxu0 0.0
    %134 = vmatprep.subr.mxu0 0.0
    %135 = vmatpush1.msra.mxu0 0.0
    %136 = vmatprep.subr.mxu0 0.0
    %137 = vmatpush1.msra.mxu0 0.0
    %138 = vmatprep.subr.mxu0 0.0
    %139 = vmatpush1.msra.mxu0 0.0
    %140 = vmatprep.subr.mxu0 0.0
    %141 = vmatpush1.msra.mxu0 0.0
    %142 = vmatprep.subr.mxu0 0.0
    %143 = vmatpush1.msra.mxu0 0.0
    %144 = vmatprep.subr.mxu0 0.0
    %145 = vmatpush1.msra.mxu0 0.0
    %146 = vmatprep.subr.mxu0 0.0
    %147 = vmatpush1.msra.mxu0 0.0
    %148 = vmatprep.subr.mxu0 0.0
    %149 = vmatpush1.msra.mxu0 0.0
    %150 = vmatprep.subr.mxu0 0.0
    %151 = vmatpush1.msra.mxu0 0.0
    %152 = vmatprep.subr.mxu0 0.0
    %153 = vmatpush1.msra.mxu0 0.0
    %154 = vmatprep.subr.mxu0 0.0
    %155 = vmatpush1.msra.mxu0 0.0
    %156 = vmatprep.subr.mxu0 0.0
    %157 = vmatpush1.msra.mxu0 0.0
    %158 = vmatprep.subr.mxu0 0.0
    %159 = vmatpush1.msra.mxu0 0.0
    %160 = vmatprep.subr.mxu0 0.0
    %161 = vmatpush1.msra.mxu0 0.0
    %162 = vmatprep.subr.mxu0 0.0
    %163 = vmatpush1.msra.mxu0 0.0
    %164 = vmatprep.subr.mxu0 0.0
    %165 = vmatpush1.msra.mxu0 0.0
    %166 = vmatprep.subr.mxu0 0.0
    %167 = vmatpush1.msra.mxu0 0.0
    %168 = vmatprep.subr.mxu0 0.0
    %169 = vmatpush1.msra.mxu0 0.0
    %170 = vmatprep.subr.mxu0 0.0
    %171 = vmatpush1.msra.mxu0 0.0
    %172 = vmatprep.subr.mxu0 0.0
    %173 = vmatpush1.msra.mxu0 0.0
    %174 = vmatprep.subr.mxu0 0.0
    %175 = vmatpush1.msra.mxu0 0.0
    %176 = vmatprep.subr.mxu0 0.0
    %177 = vmatpush1.msra.mxu0 0.0
    %178 = vmatprep.subr.mxu0 0.0
    %179 = vmatpush1.msra.mxu0 0.0
    %180 = vmatprep.subr.mxu0 0.0
    %181 = vmatpush1.msra.mxu0 0.0
    %182 = vmatprep.subr.mxu0 0.0
    %183 = vmatpush1.msra.mxu0 0.0
    %184 = vmatprep.subr.mxu0 0.0
    %185 = vmatpush1.msra.mxu0 0.0
    %186 = vmatprep.subr.mxu0 0.0
    %187 = vmatpush1.msra.mxu0 0.0
    %188 = vmatprep.subr.mxu0 0.0
    %189 = vmatpush1.msra.mxu0 0.0
    %190 = vmatprep.mubr.f32.mxu0 0.0
    %191 = vmatmul.mubr.f32.gmra.mrb[0].mxu0 %v121
    %v192 = vpop.f32.mrb[0].mxu0
    %v193 = vadd.f32 %v117, %v192
    %v194 = vpop.f32.mrb[0].mxu0
    %195 = vmatprep.mubr.f32.mxu0 0.0
    %196 = vmatmul.mubr.f32.gmra.mrb[0].mxu0 %v124
    %v197 = vpop.f32.mrb[0].mxu0
    %v198 = vadd.f32 %v117, %v197
    %v199 = vpop.f32.mrb[0].mxu0
    %200 = vdwg.mxu0
    %v201 = vxor.u32 %v193, 2147483648
    %v202 = vxor.u32 %v198, 2147483648
    %v203 = vmul.f32 %v201, 1.442695
    %v204 = vpow.pop %v203
    %v205 = vmul.f32 %v202, 1.442695
    %v206 = vpow.pop %v205
    %v207 = vadd.f32 %v204, 1.0
    %v208 = vadd.f32 %v206, 1.0
    %v209 = vrcp.pop %v207
    %v210 = vmul.f32 1.0, %v209
    %v211 = vrcp.pop %v208
    %v212 = vmul.f32 1.0, %v211
    %v213 = vmul.f32 %v193, %v210
    %v214 = vmul.f32 %v198, %v212
    %215 = vst [vmem:[%s9] sm:$0xff] %v213
    %216 = vst [vmem:[%s9 + $0x8] sm:$0xff] %v214
    %v217 = vld [vmem:[%s1] sm:$0xff]
    %v218 = vld [vmem:[%s1 + $0x8] sm:$0xff]
    %v219 = vld [vmem:[%s1 + $0x10] sm:$0xff]
    %v220 = vld [vmem:[%s1 + $0x18] sm:$0xff]
    %v221 = vld [vmem:[%s1 + $0x20] sm:$0xff]
    %v222 = vld [vmem:[%s1 + $0x28] sm:$0xff]
    %v223 = vld [vmem:[#allocation6] sm:$0xff]
    %v224 = vld [vmem:[#allocation6 + $0x8] sm:$0xff]
    %v225 = vld [vmem:[#allocation7] sm:$0x1]
    %v227 = vlaneseq
    %v228 = vshrl.u32 %v227, 7
    %v229 = vsub.s32 0, %v228
    %v230 = vrot.slane %v225, %v229
    %vm232 = vcmask 130048
    %v234 = vsel %vm232, %v217, 0
    %v237 = vsel %vm232, %v218, 0
    %v240 = vsel %vm232, %v219, 0
    %v243 = vsel %vm232, %v220, 0
    %v246 = vsel %vm232, %v221, 0
    %v249 = vsel %vm232, %v222, 0
    %251 = vmatprep.subr.mxu0 0.0
    %252 = vmatpush1.msra.mxu0 %v223
    %253 = vmatprep.subr.mxu0 0.0
    %254 = vmatpush1.msra.mxu0 %v224
    %255 = vmatprep.subr.mxu0 0.0
    %256 = vmatpush1.msra.mxu0 0.0
    %257 = vmatprep.subr.mxu0 0.0
    %258 = vmatpush1.msra.mxu0 0.0
    %259 = vmatprep.subr.mxu0 0.0
    %260 = vmatpush1.msra.mxu0 0.0
    %261 = vmatprep.subr.mxu0 0.0
    %262 = vmatpush1.msra.mxu0 0.0
    %263 = vmatprep.subr.mxu0 0.0
    %264 = vmatpush1.msra.mxu0 0.0
    %265 = vmatprep.subr.mxu0 0.0
    %266 = vmatpush1.msra.mxu0 0.0
    %267 = vmatprep.subr.mxu0 0.0
    %268 = vmatpush1.msra.mxu0 0.0
    %269 = vmatprep.subr.mxu0 0.0
    %270 = vmatpush1.msra.mxu0 0.0
    %271 = vmatprep.subr.mxu0 0.0
    %272 = vmatpush1.msra.mxu0 0.0
    %273 = vmatprep.subr.mxu0 0.0
    %274 = vmatpush1.msra.mxu0 0.0
    %275 = vmatprep.subr.mxu0 0.0
    %276 = vmatpush1.msra.mxu0 0.0
    %277 = vmatprep.subr.mxu0 0.0
    %278 = vmatpush1.msra.mxu0 0.0
    %279 = vmatprep.subr.mxu0 0.0
    %280 = vmatpush1.msra.mxu0 0.0
    %281 = vmatprep.subr.mxu0 0.0
    %282 = vmatpush1.msra.mxu0 0.0
    %283 = vmatprep.subr.mxu0 0.0
    %284 = vmatpush1.msra.mxu0 0.0
    %285 = vmatprep.subr.mxu0 0.0
    %286 = vmatpush1.msra.mxu0 0.0
    %287 = vmatprep.subr.mxu0 0.0
    %288 = vmatpush1.msra.mxu0 0.0
    %289 = vmatprep.subr.mxu0 0.0
    %290 = vmatpush1.msra.mxu0 0.0
    %291 = vmatprep.subr.mxu0 0.0
    %292 = vmatpush1.msra.mxu0 0.0
    %293 = vmatprep.subr.mxu0 0.0
    %294 = vmatpush1.msra.mxu0 0.0
    %295 = vmatprep.subr.mxu0 0.0
    %296 = vmatpush1.msra.mxu0 0.0
    %297 = vmatprep.subr.mxu0 0.0
    %298 = vmatpush1.msra.mxu0 0.0
    %299 = vmatprep.subr.mxu0 0.0
    %300 = vmatpush1.msra.mxu0 0.0
    %301 = vmatprep.subr.mxu0 0.0
    %302 = vmatpush1.msra.mxu0 0.0
    %303 = vmatprep.subr.mxu0 0.0
    %304 = vmatpush1.msra.mxu0 0.0
    %305 = vmatprep.subr.mxu0 0.0
    %306 = vmatpush1.msra.mxu0 0.0
    %307 = vmatprep.subr.mxu0 0.0
    %308 = vmatpush1.msra.mxu0 0.0
    %309 = vmatprep.subr.mxu0 0.0
    %310 = vmatpush1.msra.mxu0 0.0
    %311 = vmatprep.subr.mxu0 0.0
    %312 = vmatpush1.msra.mxu0 0.0
    %313 = vmatprep.subr.mxu0 0.0
    %314 = vmatpush1.msra.mxu0 0.0
    %315 = vmatprep.mubr.f32.mxu0 0.0
    %316 = vmatmul.mubr.f32.gmra.mrb[0].mxu0 %v234
    %v317 = vpop.f32.mrb[0].mxu0
    %v318 = vadd.f32 %v230, %v317
    %v319 = vpop.f32.mrb[0].mxu0
    %320 = vmatprep.mubr.f32.mxu0 0.0
    %321 = vmatmul.mubr.f32.gmra.mrb[0].mxu0 %v237
    %v322 = vpop.f32.mrb[0].mxu0
    %v323 = vadd.f32 %v230, %v322
    %v324 = vpop.f32.mrb[0].mxu0
    %325 = vmatprep.mubr.f32.mxu0 0.0
    %326 = vmatmul.mubr.f32.gmra.mrb[0].mxu0 %v240
    %v327 = vpop.f32.mrb[0].mxu0
    %v328 = vadd.f32 %v230, %v327
    %v329 = vpop.f32.mrb[0].mxu0
    %330 = vmatprep.mubr.f32.mxu0 0.0
    %331 = vmatmul.mubr.f32.gmra.mrb[0].mxu0 %v243
    %v332 = vpop.f32.mrb[0].mxu0
    %v333 = vadd.f32 %v230, %v332
    %v334 = vpop.f32.mrb[0].mxu0
    %335 = vmatprep.mubr.f32.mxu0 0.0
    %336 = vmatmul.mubr.f32.gmra.mrb[0].mxu0 %v246
    %v337 = vpop.f32.mrb[0].mxu0
    %v338 = vadd.f32 %v230, %v337
    %v339 = vpop.f32.mrb[0].mxu0
    %340 = vmatprep.mubr.f32.mxu0 0.0
    %341 = vmatmul.mubr.f32.gmra.mrb[0].mxu0 %v249
    %v342 = vpop.f32.mrb[0].mxu0
    %v343 = vadd.f32 %v230, %v342
    %v344 = vpop.f32.mrb[0].mxu0
    %345 = vdwg.mxu0
    %v346 = vxor.u32 %v318, 2147483648
    %v347 = vxor.u32 %v323, 2147483648
    %v348 = vxor.u32 %v328, 2147483648
    %v349 = vxor.u32 %v333, 2147483648
    %v350 = vxor.u32 %v338, 2147483648
    %v351 = vxor.u32 %v343, 2147483648
    %v352 = vmul.f32 %v346, 1.442695
    %v353 = vpow.pop %v352
    %v354 = vmul.f32 %v347, 1.442695
    %v355 = vpow.pop %v354
    %v356 = vmul.f32 %v348, 1.442695
    %v357 = vpow.pop %v356
    %v358 = vmul.f32 %v349, 1.442695
    %v359 = vpow.pop %v358
    %v360 = vmul.f32 %v350, 1.442695
    %v361 = vpow.pop %v360
    %v362 = vmul.f32 %v351, 1.442695
    %v363 = vpow.pop %v362
    %v364 = vadd.f32 %v353, 1.0
    %v365 = vadd.f32 %v355, 1.0
    %v366 = vadd.f32 %v357, 1.0
    %v367 = vadd.f32 %v359, 1.0
    %v368 = vadd.f32 %v361, 1.0
    %v369 = vadd.f32 %v363, 1.0
    %v370 = vrcp.pop %v364
    %v371 = vmul.f32 1.0, %v370
    %v372 = vrcp.pop %v365
    %v373 = vmul.f32 1.0, %v372
    %v374 = vrcp.pop %v366
    %v375 = vmul.f32 1.0, %v374
    %v376 = vrcp.pop %v367
    %v377 = vmul.f32 1.0, %v376
    %v378 = vrcp.pop %v368
    %v379 = vmul.f32 1.0, %v378
    %v380 = vrcp.pop %v369
    %v381 = vmul.f32 1.0, %v380
    %v382 = vmul.f32 %v318, %v371
    %v383 = vmul.f32 %v323, %v373
    %v384 = vmul.f32 %v328, %v375
    %v385 = vmul.f32 %v333, %v377
    %v386 = vmul.f32 %v338, %v379
    %v387 = vmul.f32 %v343, %v381
    %388 = vst [vmem:[%s10] sm:$0xff] %v382
    %389 = vst [vmem:[%s10 + $0x8] sm:$0xff] %v383
    %390 = vst [vmem:[%s10 + $0x10] sm:$0xff] %v384
    %391 = vst [vmem:[%s10 + $0x18] sm:$0xff] %v385
    %392 = vst [vmem:[%s10 + $0x20] sm:$0xff] %v386
    %393 = vst [vmem:[%s10 + $0x28] sm:$0xff] %v387
    %v394 = vld [vmem:[%s2] sm:$0xff]
    %v395 = vld [vmem:[%s2 + $0x8] sm:$0xff]
    %v396 = vld [vmem:[%s2 + $0x10] sm:$0xff]
    %v397 = vld [vmem:[%s2 + $0x18] sm:$0xff]
    %v398 = vld [vmem:[%s2 + $0x20] sm:$0xff]
    %v399 = vld [vmem:[%s2 + $0x28] sm:$0xff]
    %v400 = vld [vmem:[%s2 + $0x30] sm:$0xff]
    %v401 = vld [vmem:[%s2 + $0x38] sm:$0xff]
    %v402 = vld [vmem:[%s2 + $0x40] sm:$0xff]
    %v403 = vld [vmem:[%s2 + $0x48] sm:$0xff]
    %v404 = vld [vmem:[%s2 + $0x50] sm:$0xff]
    %v405 = vld [vmem:[%s2 + $0x58] sm:$0xff]
    %v406 = vld [vmem:[#allocation9] sm:$0xff]
    %v407 = vld [vmem:[#allocation9 + $0x8] sm:$0xff]
    %v408 = vld [vmem:[#allocation10] sm:$0x1]
    %v410 = vlaneseq
    %v411 = vshrl.u32 %v410, 7
    %v412 = vsub.s32 0, %v411
    %v413 = vrot.slane %v408, %v412
    %v416 = vsel %vm232, %v394, 0
    %v419 = vsel %vm232, %v395, 0
    %v422 = vsel %vm232, %v396, 0
    %v425 = vsel %vm232, %v397, 0
    %v428 = vsel %vm232, %v398, 0
    %v431 = vsel %vm232, %v399, 0
    %v434 = vsel %vm232, %v400, 0
    %v437 = vsel %vm232, %v401, 0
    %v440 = vsel %vm232, %v402, 0
    %v443 = vsel %vm232, %v403, 0
    %v446 = vsel %vm232, %v404, 0
    %v449 = vsel %vm232, %v405, 0
    %451 = vmatprep.subr.mxu0 0.0
    %452 = vmatpush1.msra.mxu0 %v406
    %453 = vmatprep.subr.mxu0 0.0
    %454 = vmatpush1.msra.mxu0 %v407
    %455 = vmatprep.subr.mxu0 0.0
    %456 = vmatpush1.msra.mxu0 0.0
    %457 = vmatprep.subr.mxu0 0.0
    %458 = vmatpush1.msra.mxu0 0.0
    %459 = vmatprep.subr.mxu0 0.0
    %460 = vmatpush1.msra.mxu0 0.0
    %461 = vmatprep.subr.mxu0 0.0
    %462 = vmatpush1.msra.mxu0 0.0
    %463 = vmatprep.subr.mxu0 0.0
    %464 = vmatpush1.msra.mxu0 0.0
    %465 = vmatprep.subr.mxu0 0.0
    %466 = vmatpush1.msra.mxu0 0.0
    %467 = vmatprep.subr.mxu0 0.0
    %468 = vmatpush1.msra.mxu0 0.0
    %469 = vmatprep.subr.mxu0 0.0
    %470 = vmatpush1.msra.mxu0 0.0
    %471 = vmatprep.subr.mxu0 0.0
    %472 = vmatpush1.msra.mxu0 0.0
    %473 = vmatprep.subr.mxu0 0.0
    %474 = vmatpush1.msra.mxu0 0.0
    %475 = vmatprep.subr.mxu0 0.0
    %476 = vmatpush1.msra.mxu0 0.0
    %477 = vmatprep.subr.mxu0 0.0
    %478 = vmatpush1.msra.mxu0 0.0
    %479 = vmatprep.subr.mxu0 0.0
    %480 = vmatpush1.msra.mxu0 0.0
    %481 = vmatprep.subr.mxu0 0.0
    %482 = vmatpush1.msra.mxu0 0.0
    %483 = vmatprep.subr.mxu0 0.0
    %484 = vmatpush1.msra.mxu0 0.0
    %485 = vmatprep.subr.mxu0 0.0
    %486 = vmatpush1.msra.mxu0 0.0
    %487 = vmatprep.subr.mxu0 0.0
    %488 = vmatpush1.msra.mxu0 0.0
    %489 = vmatprep.subr.mxu0 0.0
    %490 = vmatpush1.msra.mxu0 0.0
    %491 = vmatprep.subr.mxu0 0.0
    %492 = vmatpush1.msra.mxu0 0.0
    %493 = vmatprep.subr.mxu0 0.0
    %494 = vmatpush1.msra.mxu0 0.0
    %495 = vmatprep.subr.mxu0 0.0
    %496 = vmatpush1.msra.mxu0 0.0
    %497 = vmatprep.subr.mxu0 0.0
    %498 = vmatpush1.msra.mxu0 0.0
    %499 = vmatprep.subr.mxu0 0.0
    %500 = vmatpush1.msra.mxu0 0.0
    %501 = vmatprep.subr.mxu0 0.0
    %502 = vmatpush1.msra.mxu0 0.0
    %503 = vmatprep.subr.mxu0 0.0
    %504 = vmatpush1.msra.mxu0 0.0
    %505 = vmatprep.subr.mxu0 0.0
    %506 = vmatpush1.msra.mxu0 0.0
    %507 = vmatprep.subr.mxu0 0.0
    %508 = vmatpush1.msra.mxu0 0.0
    %509 = vmatprep.subr.mxu0 0.0
    %510 = vmatpush1.msra.mxu0 0.0
    %511 = vmatprep.subr.mxu0 0.0
    %512 = vmatpush1.msra.mxu0 0.0
    %513 = vmatprep.subr.mxu0 0.0
    %514 = vmatpush1.msra.mxu0 0.0
    %515 = vmatprep.mubr.f32.mxu0 0.0
    %516 = vmatmul.mubr.f32.gmra.mrb[0].mxu0 %v416
    %v517 = vpop.f32.mrb[0].mxu0
    %v518 = vadd.f32 %v413, %v517
    %v519 = vpop.f32.mrb[0].mxu0
    %520 = vmatprep.mubr.f32.mxu0 0.0
    %521 = vmatmul.mubr.f32.gmra.mrb[0].mxu0 %v419
    %v522 = vpop.f32.mrb[0].mxu0
    %v523 = vadd.f32 %v413, %v522
    %v524 = vpop.f32.mrb[0].mxu0
    %525 = vmatprep.mubr.f32.mxu0 0.0
    %526 = vmatmul.mubr.f32.gmra.mrb[0].mxu0 %v422
    %v527 = vpop.f32.mrb[0].mxu0
    %v528 = vadd.f32 %v413, %v527
    %v529 = vpop.f32.mrb[0].mxu0
    %530 = vmatprep.mubr.f32.mxu0 0.0
    %531 = vmatmul.mubr.f32.gmra.mrb[0].mxu0 %v425
    %v532 = vpop.f32.mrb[0].mxu0
    %v533 = vadd.f32 %v413, %v532
    %v534 = vpop.f32.mrb[0].mxu0
    %535 = vmatprep.mubr.f32.mxu0 0.0
    %536 = vmatmul.mubr.f32.gmra.mrb[0].mxu0 %v428
    %v537 = vpop.f32.mrb[0].mxu0
    %v538 = vadd.f32 %v413, %v537
    %v539 = vpop.f32.mrb[0].mxu0
    %540 = vmatprep.mubr.f32.mxu0 0.0
    %541 = vmatmul.mubr.f32.gmra.mrb[0].mxu0 %v431
    %v542 = vpop.f32.mrb[0].mxu0
    %v543 = vadd.f32 %v413, %v542
    %v544 = vpop.f32.mrb[0].mxu0
    %545 = vmatprep.mubr.f32.mxu0 0.0
    %546 = vmatmul.mubr.f32.gmra.mrb[0].mxu0 %v434
    %v547 = vpop.f32.mrb[0].mxu0
    %v548 = vadd.f32 %v413, %v547
    %v549 = vpop.f32.mrb[0].mxu0
    %550 = vmatprep.mubr.f32.mxu0 0.0
    %551 = vmatmul.mubr.f32.gmra.mrb[0].mxu0 %v437
    %v552 = vpop.f32.mrb[0].mxu0
    %v553 = vadd.f32 %v413, %v552
    %v554 = vpop.f32.mrb[0].mxu0
    %555 = vmatprep.mubr.f32.mxu0 0.0
    %556 = vmatmul.mubr.f32.gmra.mrb[0].mxu0 %v440
    %v557 = vpop.f32.mrb[0].mxu0
    %v558 = vadd.f32 %v413, %v557
    %v559 = vpop.f32.mrb[0].mxu0
    %560 = vmatprep.mubr.f32.mxu0 0.0
    %561 = vmatmul.mubr.f32.gmra.mrb[0].mxu0 %v443
    %v562 = vpop.f32.mrb[0].mxu0
    %v563 = vadd.f32 %v413, %v562
    %v564 = vpop.f32.mrb[0].mxu0
    %565 = vmatprep.mubr.f32.mxu0 0.0
    %566 = vmatmul.mubr.f32.gmra.mrb[0].mxu0 %v446
    %v567 = vpop.f32.mrb[0].mxu0
    %v568 = vadd.f32 %v413, %v567
    %v569 = vpop.f32.mrb[0].mxu0
    %570 = vmatprep.mubr.f32.mxu0 0.0
    %571 = vmatmul.mubr.f32.gmra.mrb[0].mxu0 %v449
    %v572 = vpop.f32.mrb[0].mxu0
    %v573 = vadd.f32 %v413, %v572
    %v574 = vpop.f32.mrb[0].mxu0
    %575 = vdwg.mxu0
    %v576 = vxor.u32 %v518, 2147483648
    %v577 = vxor.u32 %v523, 2147483648
    %v578 = vxor.u32 %v528, 2147483648
    %v579 = vxor.u32 %v533, 2147483648
    %v580 = vxor.u32 %v538, 2147483648
    %v581 = vxor.u32 %v543, 2147483648
    %v582 = vxor.u32 %v548, 2147483648
    %v583 = vxor.u32 %v553, 2147483648
    %v584 = vxor.u32 %v558, 2147483648
    %v585 = vxor.u32 %v563, 2147483648
    %v586 = vxor.u32 %v568, 2147483648
    %v587 = vxor.u32 %v573, 2147483648
    %v588 = vmul.f32 %v576, 1.442695
    %v589 = vpow.pop %v588
    %v590 = vmul.f32 %v577, 1.442695
    %v591 = vpow.pop %v590
    %v592 = vmul.f32 %v578, 1.442695
    %v593 = vpow.pop %v592
    %v594 = vmul.f32 %v579, 1.442695
    %v595 = vpow.pop %v594
    %v596 = vmul.f32 %v580, 1.442695
    %v597 = vpow.pop %v596
    %v598 = vmul.f32 %v581, 1.442695
    %v599 = vpow.pop %v598
    %v600 = vmul.f32 %v582, 1.442695
    %v601 = vpow.pop %v600
    %v602 = vmul.f32 %v583, 1.442695
    %v603 = vpow.pop %v602
    %v604 = vmul.f32 %v584, 1.442695
    %v605 = vpow.pop %v604
    %v606 = vmul.f32 %v585, 1.442695
    %v607 = vpow.pop %v606
    %v608 = vmul.f32 %v586, 1.442695
    %v609 = vpow.pop %v608
    %v610 = vmul.f32 %v587, 1.442695
    %v611 = vpow.pop %v610
    %v612 = vadd.f32 %v589, 1.0
    %v613 = vadd.f32 %v591, 1.0
    %v614 = vadd.f32 %v593, 1.0
    %v615 = vadd.f32 %v595, 1.0
    %v616 = vadd.f32 %v597, 1.0
    %v617 = vadd.f32 %v599, 1.0
    %v618 = vadd.f32 %v601, 1.0
    %v619 = vadd.f32 %v603, 1.0
    %v620 = vadd.f32 %v605, 1.0
    %v621 = vadd.f32 %v607, 1.0
    %v622 = vadd.f32 %v609, 1.0
    %v623 = vadd.f32 %v611, 1.0
    %v624 = vrcp.pop %v612
    %v625 = vmul.f32 1.0, %v624
    %v626 = vrcp.pop %v613
    %v627 = vmul.f32 1.0, %v626
    %v628 = vrcp.pop %v614
    %v629 = vmul.f32 1.0, %v628
    %v630 = vrcp.pop %v615
    %v631 = vmul.f32 1.0, %v630
    %v632 = vrcp.pop %v616
    %v633 = vmul.f32 1.0, %v632
    %v634 = vrcp.pop %v617
    %v635 = vmul.f32 1.0, %v634
    %v636 = vrcp.pop %v618
    %v637 = vmul.f32 1.0, %v636
    %v638 = vrcp.pop %v619
    %v639 = vmul.f32 1.0, %v638
    %v640 = vrcp.pop %v620
    %v641 = vmul.f32 1.0, %v640
    %v642 = vrcp.pop %v621
    %v643 = vmul.f32 1.0, %v642
    %v644 = vrcp.pop %v622
    %v645 = vmul.f32 1.0, %v644
    %v646 = vrcp.pop %v623
    %v647 = vmul.f32 1.0, %v646
    %v648 = vmul.f32 %v518, %v625
    %v649 = vmul.f32 %v523, %v627
    %v650 = vmul.f32 %v528, %v629
    %v651 = vmul.f32 %v533, %v631
    %v652 = vmul.f32 %v538, %v633
    %v653 = vmul.f32 %v543, %v635
    %v654 = vmul.f32 %v548, %v637
    %v655 = vmul.f32 %v553, %v639
    %v656 = vmul.f32 %v558, %v641
    %v657 = vmul.f32 %v563, %v643
    %v658 = vmul.f32 %v568, %v645
    %v659 = vmul.f32 %v573, %v647
    %660 = vst [vmem:[%s11] sm:$0xff] %v648
    %661 = vst [vmem:[%s11 + $0x8] sm:$0xff] %v649
    %662 = vst [vmem:[%s11 + $0x10] sm:$0xff] %v650
    %663 = vst [vmem:[%s11 + $0x18] sm:$0xff] %v651
    %664 = vst [vmem:[%s11 + $0x20] sm:$0xff] %v652
    %665 = vst [vmem:[%s11 + $0x28] sm:$0xff] %v653
    %666 = vst [vmem:[%s11 + $0x30] sm:$0xff] %v654
    %667 = vst [vmem:[%s11 + $0x38] sm:$0xff] %v655
    %668 = vst [vmem:[%s11 + $0x40] sm:$0xff] %v656
    %669 = vst [vmem:[%s11 + $0x48] sm:$0xff] %v657
    %670 = vst [vmem:[%s11 + $0x50] sm:$0xff] %v658
    %671 = vst [vmem:[%s11 + $0x58] sm:$0xff] %v659
    // Predicated region
    $region62: #{alignn_forward.4} parent=1 // pred_check
      _
    $region63: #{alignn_forward.4} parent=1 // pred_check_branch
      %673 = sbr.rel (0) target = $region65
    $region64: #{alignn_forward.4} parent=1 // pred_region
      _
    $region65: #{alignn_forward.4} parent=1 // pred_fallthru
      _
    // Predicated region
    $region66: #{alignn_forward.4} parent=1 // pred_check
      _
    $region67: #{alignn_forward.4} parent=1 // pred_check_branch
      %675 = sbr.rel (0) target = $region69
    $region68: #{alignn_forward.4} parent=1 // pred_region
      _
    $region69: #{alignn_forward.4} parent=1 // pred_fallthru
      _
    // Predicated region
    $region70: #{alignn_forward.4} parent=1 // pred_check
      _
    $region71: #{alignn_forward.4} parent=1 // pred_check_branch
      %677 = sbr.rel (0) target = $region73
    $region72: #{alignn_forward.4} parent=1 // pred_region
      _
    $region73: #{alignn_forward.4} parent=1 // pred_fallthru
      _
    // Predicated region
    $region74: #{alignn_forward.4} parent=1 // pred_check
      _
    $region75: #{alignn_forward.4} parent=1 // pred_check_branch
      %679 = sbr.rel (0) target = $region77
    $region76: #{alignn_forward.4} parent=1 // pred_region
      _
    $region77: #{alignn_forward.4} parent=1 // pred_fallthru
      _
    // Predicated region
    $region78: #{alignn_forward.4} parent=1 // pred_check
      _
    $region79: #{alignn_forward.4} parent=1 // pred_check_branch
      %681 = sbr.rel (0) target = $region81
    $region80: #{alignn_forward.4} parent=1 // pred_region
      _
    $region81: #{alignn_forward.4} parent=1 // pred_fallthru
      _
    // Predicated region
    $region82: #{alignn_forward.4} parent=1 // pred_check
      _
    $region83: #{alignn_forward.4} parent=1 // pred_check_branch
      %683 = sbr.rel (0) target = $region85
    $region84: #{alignn_forward.4} parent=1 // pred_region
      _
    $region85: #{alignn_forward.4} parent=1 // pred_fallthru
      _
    %684 = vsyncpa [#allocation3], 1
    %685 = vsyncpa [#allocation5], 1
    %686 = vsyncpa [#allocation8], 1
    %687 = vsyncpa [#allocation11], 1

// kernel: alignn_forward.6
$region0: #{alignn_forward.6}
  #allocation0 [shape = 'u32[]', space=smem, size = 0x4, offset = 0x4, fixed_abs, tag = 'smem constant byte address 0x4 - core index']
  #allocation1 [shape = 'u32[144,128]{1,0:T(1,128)}', space=vmem, size = 0x12000, scoped, tag = 'internal scratch']
  %s0 = inlined_call_operand.smem [shape: u32[32], index: -1, kind: input, shape index: {}]
  %s1 = sld [smem:[%s0]]
  %s2 = scalar_lea.smem %s0, 1
  %s3 = sld [smem:[%s2]]
  %s4 = scalar_lea.smem %s0, 2
  %s5 = sld [smem:[%s4]]
  %s6 = scalar_lea.smem %s0, 3
  %s7 = sld [smem:[%s6]]
  %s8 = scalar_lea.smem %s0, 4
  %s9 = sld [smem:[%s8]]
  %s10 = scalar_lea.smem %s0, 5
  %s11 = sld [smem:[%s10]]
  %s12 = scalar_lea.smem %s0, 6
  %s13 = sld [smem:[%s12]]
  %s14 = scalar_lea.smem %s0, 7
  %s15 = sld [smem:[%s14]]
  %s16 = scalar_lea.smem %s0, 8
  %s17 = sld [smem:[%s16]]
  %s18 = scalar_lea.smem %s0, 9
  %s19 = sld [smem:[%s18]]
  %s20 = scalar_lea.smem %s0, 10
  %s21 = sld [smem:[%s20]]
  %s22 = scalar_lea.smem %s0, 11
  %s23 = sld [smem:[%s22]]
  %s24 = scalar_lea.smem %s0, 12
  %s25 = sld [smem:[%s24]]
  %s26 = scalar_lea.smem %s0, 13
  %s27 = sld [smem:[%s26]]
  %s28 = scalar_lea.smem %s0, 14
  %s29 = sld [smem:[%s28]]
  %s30 = scalar_lea.smem %s0, 15
  %s31 = sld [smem:[%s30]]
  %s32 = scalar_lea.smem %s0, 16
  %s33 = sld [smem:[%s32]]
  %s34 = scalar_lea.smem %s0, 17
  %s35 = sld [smem:[%s34]]
  %s36 = scalar_lea.smem %s0, 18
  %s37 = sld [smem:[%s36]]
  %s38 = scalar_lea.smem %s0, 19
  %s39 = sld [smem:[%s38]]
  %s40 = scalar_lea.smem %s0, 20
  %s41 = sld [smem:[%s40]]
  %s42 = scalar_lea.smem %s0, 21
  %s43 = sld [smem:[%s42]]
  %s44 = scalar_lea.smem %s0, 22
  %s45 = sld [smem:[%s44]]
  %s46 = scalar_lea.smem %s0, 23
  %s47 = sld [smem:[%s46]]
  %s48 = scalar_lea.smem %s0, 24
  %s49 = sld [smem:[%s48]]
  %s50 = scalar_lea.smem %s0, 25
  %s51 = sld [smem:[%s50]]
  %s52 = scalar_lea.smem %s0, 26
  %s53 = sld [smem:[%s52]]
  %s54 = scalar_lea.smem %s0, 27
  %s55 = sld [smem:[%s54]]
  %s56 = scalar_lea.smem %s0, 28
  %s57 = sld [smem:[%s56]]
  %s58 = scalar_lea.smem %s0, 29
  %s59 = sld [smem:[%s58]]
  %s60 = scalar_lea.smem %s0, 30
  %s61 = sld [smem:[%s60]]
  %s62 = scalar_lea.smem %s0, 31
  %s63 = sld [smem:[%s62]]
  %64 = xla_tuple %s59, %s61, %s63
  %s65 = sld [smem:[#allocation0]]
  $region142: #{alignn_forward.6} parent=0
    _
  %s67 = ssub.s32 1, %s65
  %s68 = scalar_select 0, %s67, %s65
  // Predicated region
  $region2: #{alignn_forward.6} parent=0 // pred_check
    _
  $region3: #{alignn_forward.6} parent=0 // pred_check_branch
    %70 = sbr.rel (0) target = $region5
  $region4: #{alignn_forward.6} parent=0 // pred_region
    _
  $region5: #{alignn_forward.6} parent=0 // pred_fallthru
    _
  // Predicated region
  $region6: #{alignn_forward.6} parent=0 // pred_check
    _
  $region7: #{alignn_forward.6} parent=0 // pred_check_branch
    %72 = sbr.rel (0) target = $region9
  $region8: #{alignn_forward.6} parent=0 // pred_region
    _
  $region9: #{alignn_forward.6} parent=0 // pred_fallthru
    _
  // Predicated region
  $region10: #{alignn_forward.6} parent=0 // pred_check
    _
  $region11: #{alignn_forward.6} parent=0 // pred_check_branch
    %74 = sbr.rel (0) target = $region13
  $region12: #{alignn_forward.6} parent=0 // pred_region
    _
  $region13: #{alignn_forward.6} parent=0 // pred_fallthru
    _
  // Predicated region
  $region14: #{alignn_forward.6} parent=0 // pred_check
    _
  $region15: #{alignn_forward.6} parent=0 // pred_check_branch
    %76 = sbr.rel (0) target = $region17
  $region16: #{alignn_forward.6} parent=0 // pred_region
    _
  $region17: #{alignn_forward.6} parent=0 // pred_fallthru
    _
  // Predicated region
  $region18: #{alignn_forward.6} parent=0 // pred_check
    _
  $region19: #{alignn_forward.6} parent=0 // pred_check_branch
    %78 = sbr.rel (0) target = $region21
  $region20: #{alignn_forward.6} parent=0 // pred_region
    _
  $region21: #{alignn_forward.6} parent=0 // pred_fallthru
    _
  // Predicated region
  $region22: #{alignn_forward.6} parent=0 // pred_check
    _
  $region23: #{alignn_forward.6} parent=0 // pred_check_branch
    %80 = sbr.rel (0) target = $region25
  $region24: #{alignn_forward.6} parent=0 // pred_region
    _
  $region25: #{alignn_forward.6} parent=0 // pred_fallthru
    _
  // Predicated region
  $region26: #{alignn_forward.6} parent=0 // pred_check
    _
  $region27: #{alignn_forward.6} parent=0 // pred_check_branch
    %82 = sbr.rel (0) target = $region29
  $region28: #{alignn_forward.6} parent=0 // pred_region
    _
  $region29: #{alignn_forward.6} parent=0 // pred_fallthru
    _
  // Predicated region
  $region30: #{alignn_forward.6} parent=0 // pred_check
    _
  $region31: #{alignn_forward.6} parent=0 // pred_check_branch
    %84 = sbr.rel (0) target = $region33
  $region32: #{alignn_forward.6} parent=0 // pred_region
    _
  $region33: #{alignn_forward.6} parent=0 // pred_fallthru
    _
  // Predicated region
  $region34: #{alignn_forward.6} parent=0 // pred_check
    _
  $region35: #{alignn_forward.6} parent=0 // pred_check_branch
    %86 = sbr.rel (0) target = $region37
  $region36: #{alignn_forward.6} parent=0 // pred_region
    _
  $region37: #{alignn_forward.6} parent=0 // pred_fallthru
    _
  // Predicated region
  $region38: #{alignn_forward.6} parent=0 // pred_check
    _
  $region39: #{alignn_forward.6} parent=0 // pred_check_branch
    %88 = sbr.rel (0) target = $region41
  $region40: #{alignn_forward.6} parent=0 // pred_region
    _
  $region41: #{alignn_forward.6} parent=0 // pred_fallthru
    _
  // Predicated region
  $region42: #{alignn_forward.6} parent=0 // pred_check
    _
  $region43: #{alignn_forward.6} parent=0 // pred_check_branch
    %90 = sbr.rel (0) target = $region45
  $region44: #{alignn_forward.6} parent=0 // pred_region
    _
  $region45: #{alignn_forward.6} parent=0 // pred_fallthru
    _
  // Predicated region
  $region46: #{alignn_forward.6} parent=0 // pred_check
    _
  $region47: #{alignn_forward.6} parent=0 // pred_check_branch
    %92 = sbr.rel (0) target = $region49
  $region48: #{alignn_forward.6} parent=0 // pred_region
    _
  $region49: #{alignn_forward.6} parent=0 // pred_fallthru
    _
  // Predicated region
  $region50: #{alignn_forward.6} parent=0 // pred_check
    _
  $region51: #{alignn_forward.6} parent=0 // pred_check_branch
    %94 = sbr.rel (0) target = $region53
  $region52: #{alignn_forward.6} parent=0 // pred_region
    _
  $region53: #{alignn_forward.6} parent=0 // pred_fallthru
    _
  // Predicated region
  $region54: #{alignn_forward.6} parent=0 // pred_check
    _
  $region55: #{alignn_forward.6} parent=0 // pred_check_branch
    %96 = sbr.rel (0) target = $region57
  $region56: #{alignn_forward.6} parent=0 // pred_region
    _
  $region57: #{alignn_forward.6} parent=0 // pred_fallthru
    _
  // Predicated region
  $region58: #{alignn_forward.6} parent=0 // pred_check
    _
  $region59: #{alignn_forward.6} parent=0 // pred_check_branch
    %98 = sbr.rel (0) target = $region61
  $region60: #{alignn_forward.6} parent=0 // pred_region
    _
  $region61: #{alignn_forward.6} parent=0 // pred_fallthru
    _
  // Predicated region
  $region62: #{alignn_forward.6} parent=0 // pred_check
    _
  $region63: #{alignn_forward.6} parent=0 // pred_check_branch
    %100 = sbr.rel (0) target = $region65
  $region64: #{alignn_forward.6} parent=0 // pred_region
    _
  $region65: #{alignn_forward.6} parent=0 // pred_fallthru
    _
  // Predicated region
  $region66: #{alignn_forward.6} parent=0 // pred_check
    _
  $region67: #{alignn_forward.6} parent=0 // pred_check_branch
    %102 = sbr.rel (0) target = $region69
  $region68: #{alignn_forward.6} parent=0 // pred_region
    _
  $region69: #{alignn_forward.6} parent=0 // pred_fallthru
    _
  // Predicated region
  $region70: #{alignn_forward.6} parent=0 // pred_check
    _
  $region71: #{alignn_forward.6} parent=0 // pred_check_branch
    %104 = sbr.rel (0) target = $region73
  $region72: #{alignn_forward.6} parent=0 // pred_region
    _
  $region73: #{alignn_forward.6} parent=0 // pred_fallthru
    _
  // Predicated region
  $region74: #{alignn_forward.6} parent=0 // pred_check
    _
  $region75: #{alignn_forward.6} parent=0 // pred_check_branch
    %106 = sbr.rel (0) target = $region77
  $region76: #{alignn_forward.6} parent=0 // pred_region
    _
  $region77: #{alignn_forward.6} parent=0 // pred_fallthru
    _
  // Predicated region
  $region78: #{alignn_forward.6} parent=0 // pred_check
    _
  $region79: #{alignn_forward.6} parent=0 // pred_check_branch
    %108 = sbr.rel (0) target = $region81
  $region80: #{alignn_forward.6} parent=0 // pred_region
    _
  $region81: #{alignn_forward.6} parent=0 // pred_fallthru
    _
  // Predicated region
  $region82: #{alignn_forward.6} parent=0 // pred_check
    _
  $region83: #{alignn_forward.6} parent=0 // pred_check_branch
    %110 = sbr.rel (0) target = $region85
  $region84: #{alignn_forward.6} parent=0 // pred_region
    _
  $region85: #{alignn_forward.6} parent=0 // pred_fallthru
    _
  // Predicated region
  $region86: #{alignn_forward.6} parent=0 // pred_check
    _
  $region87: #{alignn_forward.6} parent=0 // pred_check_branch
    %112 = sbr.rel (0) target = $region89
  $region88: #{alignn_forward.6} parent=0 // pred_region
    _
  $region89: #{alignn_forward.6} parent=0 // pred_fallthru
    _
  // Predicated region
  $region90: #{alignn_forward.6} parent=0 // pred_check
    _
  $region91: #{alignn_forward.6} parent=0 // pred_check_branch
    %114 = sbr.rel (0) target = $region93
  $region92: #{alignn_forward.6} parent=0 // pred_region
    _
  $region93: #{alignn_forward.6} parent=0 // pred_fallthru
    _
  // Predicated region
  $region94: #{alignn_forward.6} parent=0 // pred_check
    _
  $region95: #{alignn_forward.6} parent=0 // pred_check_branch
    %116 = sbr.rel (0) target = $region97
  $region96: #{alignn_forward.6} parent=0 // pred_region
    _
  $region97: #{alignn_forward.6} parent=0 // pred_fallthru
    _
  // Predicated region
  $region98: #{alignn_forward.6} parent=0 // pred_check
    _
  $region99: #{alignn_forward.6} parent=0 // pred_check_branch
    %118 = sbr.rel (0) target = $region101
  $region100: #{alignn_forward.6} parent=0 // pred_region
    _
  $region101: #{alignn_forward.6} parent=0 // pred_fallthru
    _
  // Predicated region
  $region102: #{alignn_forward.6} parent=0 // pred_check
    _
  $region103: #{alignn_forward.6} parent=0 // pred_check_branch
    %120 = sbr.rel (0) target = $region105
  $region104: #{alignn_forward.6} parent=0 // pred_region
    _
  $region105: #{alignn_forward.6} parent=0 // pred_fallthru
    _
  // Predicated region
  $region106: #{alignn_forward.6} parent=0 // pred_check
    _
  $region107: #{alignn_forward.6} parent=0 // pred_check_branch
    %122 = sbr.rel (0) target = $region109
  $region108: #{alignn_forward.6} parent=0 // pred_region
    _
  $region109: #{alignn_forward.6} parent=0 // pred_fallthru
    _
  // Predicated region
  $region110: #{alignn_forward.6} parent=0 // pred_check
    _
  $region111: #{alignn_forward.6} parent=0 // pred_check_branch
    %124 = sbr.rel (0) target = $region113
  $region112: #{alignn_forward.6} parent=0 // pred_region
    _
  $region113: #{alignn_forward.6} parent=0 // pred_fallthru
    _
  // Predicated region
  $region114: #{alignn_forward.6} parent=0 // pred_check
    _
  $region115: #{alignn_forward.6} parent=0 // pred_check_branch
    %126 = sbr.rel (0) target = $region117
  $region116: #{alignn_forward.6} parent=0 // pred_region
    _
  $region117: #{alignn_forward.6} parent=0 // pred_fallthru
    _
  %v127 = vld [vmem:[%s19] sm:$0xff]
  %v128 = vld [vmem:[%s19 + $0x8] sm:$0xff]
  %v129 = vld [vmem:[%s19 + $0x10] sm:$0xff]
  %v130 = vld [vmem:[%s19 + $0x18] sm:$0xff]
  %v131 = vld [vmem:[%s19 + $0x20] sm:$0xff]
  %v132 = vld [vmem:[%s19 + $0x28] sm:$0xff]
  %v133 = vld [vmem:[%s19 + $0x30] sm:$0xff]
  %v134 = vld [vmem:[%s19 + $0x38] sm:$0xff]
  %v135 = vld [vmem:[%s19 + $0x40] sm:$0xff]
  %v136 = vld [vmem:[%s19 + $0x48] sm:$0xff]
  %v137 = vld [vmem:[%s19 + $0x50] sm:$0xff]
  %v138 = vld [vmem:[%s19 + $0x58] sm:$0xff]
  %v139 = vld [vmem:[%s19 + $0x60] sm:$0xff]
  %v140 = vld [vmem:[%s19 + $0x68] sm:$0xff]
  %v141 = vld [vmem:[%s19 + $0x70] sm:$0xff]
  %v142 = vld [vmem:[%s19 + $0x78] sm:$0xff]
  %v143 = vld [vmem:[%s19 + $0x80] sm:$0xff]
  %v144 = vld [vmem:[%s19 + $0x88] sm:$0xff]
  %v145 = vld [vmem:[%s19 + $0x90] sm:$0xff]
  %v146 = vld [vmem:[%s19 + $0x98] sm:$0xff]
  %v147 = vld [vmem:[%s19 + $0xa0] sm:$0xff]
  %v148 = vld [vmem:[%s19 + $0xa8] sm:$0xff]
  %v149 = vld [vmem:[%s19 + $0xb0] sm:$0xff]
  %v150 = vld [vmem:[%s19 + $0xb8] sm:$0xff]
  %v151 = vld [vmem:[%s19 + $0xc0] sm:$0xff]
  %v152 = vld [vmem:[%s19 + $0xc8] sm:$0xff]
  %v153 = vld [vmem:[%s19 + $0xd0] sm:$0xff]
  %v154 = vld [vmem:[%s19 + $0xd8] sm:$0xff]
  %v155 = vld [vmem:[%s19 + $0xe0] sm:$0xff]
  %v156 = vld [vmem:[%s19 + $0xe8] sm:$0xff]
  %v157 = vld [vmem:[%s19 + $0xf0] sm:$0xff]
  %v158 = vld [vmem:[%s19 + $0xf8] sm:$0xff]
  %v159 = vld [vmem:[%s19 + $0x100] sm:$0xff]
  %v160 = vld [vmem:[%s19 + $0x108] sm:$0xff]
  %v161 = vld [vmem:[%s19 + $0x110] sm:$0xff]
  %v162 = vld [vmem:[%s19 + $0x118] sm:$0xff]
  %v163 = vld [vmem:[%s19 + $0x120] sm:$0xff]
  %v164 = vld [vmem:[%s19 + $0x128] sm:$0xff]
  %v165 = vld [vmem:[%s19 + $0x130] sm:$0xff]
  %v166 = vld [vmem:[%s19 + $0x138] sm:$0xff]
  %v167 = vld [vmem:[%s19 + $0x140] sm:$0xff]
  %v168 = vld [vmem:[%s19 + $0x148] sm:$0xff]
  %v169 = vld [vmem:[%s19 + $0x150] sm:$0xff]
  %v170 = vld [vmem:[%s19 + $0x158] sm:$0xff]
  %v171 = vld [vmem:[%s19 + $0x160] sm:$0xff]
  %v172 = vld [vmem:[%s19 + $0x168] sm:$0xff]
  %v173 = vld [vmem:[%s19 + $0x170] sm:$0xff]
  %v174 = vld [vmem:[%s19 + $0x178] sm:$0xff]
  %v175 = vld [vmem:[%s21] sm:$0x1]
  %v176 = vld [vmem:[%s23] sm:$0xff]
  %v177 = vld [vmem:[%s23 + $0x8] sm:$0xff]
  %v178 = vld [vmem:[%s23 + $0x10] sm:$0xff]
  %v179 = vld [vmem:[%s23 + $0x18] sm:$0xff]
  %v180 = vld [vmem:[%s23 + $0x20] sm:$0xff]
  %v181 = vld [vmem:[%s23 + $0x28] sm:$0xff]
  %v182 = vld [vmem:[%s23 + $0x30] sm:$0xff]
  %v183 = vld [vmem:[%s23 + $0x38] sm:$0xff]
  %v184 = vld [vmem:[%s23 + $0x40] sm:$0xff]
  %v185 = vld [vmem:[%s23 + $0x48] sm:$0xff]
  %v186 = vld [vmem:[%s23 + $0x50] sm:$0xff]
  %v187 = vld [vmem:[%s23 + $0x58] sm:$0xff]
  %v188 = vld [vmem:[%s23 + $0x60] sm:$0xff]
  %v189 = vld [vmem:[%s23 + $0x68] sm:$0xff]
  %v190 = vld [vmem:[%s23 + $0x70] sm:$0xff]
  %v191 = vld [vmem:[%s23 + $0x78] sm:$0xff]
  %v192 = vld [vmem:[%s25] sm:$0x1]
  %v193 = vld [vmem:[%s27] sm:$0xff]
  %v194 = vld [vmem:[%s27 + $0x8] sm:$0xff]
  %v195 = vld [vmem:[%s27 + $0x10] sm:$0xff]
  %v196 = vld [vmem:[%s27 + $0x18] sm:$0xff]
  %v197 = vld [vmem:[%s27 + $0x20] sm:$0xff]
  %v198 = vld [vmem:[%s27 + $0x28] sm:$0xff]
  %v199 = vld [vmem:[%s27 + $0x30] sm:$0xff]
  %v200 = vld [vmem:[%s27 + $0x38] sm:$0xff]
  %v201 = vld [vmem:[%s27 + $0x40] sm:$0xff]
  %v202 = vld [vmem:[%s27 + $0x48] sm:$0xff]
  %v203 = vld [vmem:[%s27 + $0x50] sm:$0xff]
  %v204 = vld [vmem:[%s27 + $0x58] sm:$0xff]
  %v205 = vld [vmem:[%s27 + $0x60] sm:$0xff]
  %v206 = vld [vmem:[%s27 + $0x68] sm:$0xff]
  %v207 = vld [vmem:[%s27 + $0x70] sm:$0xff]
  %v208 = vld [vmem:[%s27 + $0x78] sm:$0xff]
  %v209 = vld [vmem:[%s29] sm:$0x1]
  %v210 = vld [vmem:[%s31] sm:$0x1]
  %v211 = vld [vmem:[%s33] sm:$0x1]
  %v212 = vld [vmem:[%s35] sm:$0x1]
  %v213 = vld [vmem:[%s37] sm:$0x1]
  %v214 = vld [vmem:[%s39] sm:$0xff]
  %v215 = vld [vmem:[%s39 + $0x8] sm:$0xff]
  %v216 = vld [vmem:[%s39 + $0x10] sm:$0xff]
  %v217 = vld [vmem:[%s39 + $0x18] sm:$0xff]
  %v218 = vld [vmem:[%s39 + $0x20] sm:$0xff]
  %v219 = vld [vmem:[%s39 + $0x28] sm:$0xff]
  %v220 = vld [vmem:[%s39 + $0x30] sm:$0xff]
  %v221 = vld [vmem:[%s39 + $0x38] sm:$0xff]
  %v222 = vld [vmem:[%s39 + $0x40] sm:$0xff]
  %v223 = vld [vmem:[%s39 + $0x48] sm:$0xff]
  %v224 = vld [vmem:[%s39 + $0x50] sm:$0xff]
  %v225 = vld [vmem:[%s39 + $0x58] sm:$0xff]
  %v226 = vld [vmem:[%s39 + $0x60] sm:$0xff]
  %v227 = vld [vmem:[%s39 + $0x68] sm:$0xff]
  %v228 = vld [vmem:[%s39 + $0x70] sm:$0xff]
  %v229 = vld [vmem:[%s39 + $0x78] sm:$0xff]
  %v230 = vld [vmem:[%s39 + $0x80] sm:$0xff]
  %v231 = vld [vmem:[%s39 + $0x88] sm:$0xff]
  %v232 = vld [vmem:[%s39 + $0x90] sm:$0xff]
  %v233 = vld [vmem:[%s39 + $0x98] sm:$0xff]
  %v234 = vld [vmem:[%s39 + $0xa0] sm:$0xff]
  %v235 = vld [vmem:[%s39 + $0xa8] sm:$0xff]
  %v236 = vld [vmem:[%s39 + $0xb0] sm:$0xff]
  %v237 = vld [vmem:[%s39 + $0xb8] sm:$0xff]
  %v238 = vld [vmem:[%s39 + $0xc0] sm:$0xff]
  %v239 = vld [vmem:[%s39 + $0xc8] sm:$0xff]
  %v240 = vld [vmem:[%s39 + $0xd0] sm:$0xff]
  %v241 = vld [vmem:[%s39 + $0xd8] sm:$0xff]
  %v242 = vld [vmem:[%s39 + $0xe0] sm:$0xff]
  %v243 = vld [vmem:[%s39 + $0xe8] sm:$0xff]
  %v244 = vld [vmem:[%s39 + $0xf0] sm:$0xff]
  %v245 = vld [vmem:[%s39 + $0xf8] sm:$0xff]
  %v246 = vld [vmem:[%s39 + $0x100] sm:$0xff]
  %v247 = vld [vmem:[%s39 + $0x108] sm:$0xff]
  %v248 = vld [vmem:[%s39 + $0x110] sm:$0xff]
  %v249 = vld [vmem:[%s39 + $0x118] sm:$0xff]
  %v250 = vld [vmem:[%s39 + $0x120] sm:$0xff]
  %v251 = vld [vmem:[%s39 + $0x128] sm:$0xff]
  %v252 = vld [vmem:[%s39 + $0x130] sm:$0xff]
  %v253 = vld [vmem:[%s39 + $0x138] sm:$0xff]
  %v254 = vld [vmem:[%s39 + $0x140] sm:$0xff]
  %v255 = vld [vmem:[%s39 + $0x148] sm:$0xff]
  %v256 = vld [vmem:[%s39 + $0x150] sm:$0xff]
  %v257 = vld [vmem:[%s39 + $0x158] sm:$0xff]
  %v258 = vld [vmem:[%s39 + $0x160] sm:$0xff]
  %v259 = vld [vmem:[%s39 + $0x168] sm:$0xff]
  %v260 = vld [vmem:[%s39 + $0x170] sm:$0xff]
  %v261 = vld [vmem:[%s39 + $0x178] sm:$0xff]
  %v262 = vld [vmem:[%s41] sm:$0x1]
  %v263 = vld [vmem:[%s43] sm:$0xff]
  %v264 = vld [vmem:[%s43 + $0x8] sm:$0xff]
  %v265 = vld [vmem:[%s43 + $0x10] sm:$0xff]
  %v266 = vld [vmem:[%s43 + $0x18] sm:$0xff]
  %v267 = vld [vmem:[%s43 + $0x20] sm:$0xff]
  %v268 = vld [vmem:[%s43 + $0x28] sm:$0xff]
  %v269 = vld [vmem:[%s43 + $0x30] sm:$0xff]
  %v270 = vld [vmem:[%s43 + $0x38] sm:$0xff]
  %v271 = vld [vmem:[%s43 + $0x40] sm:$0xff]
  %v272 = vld [vmem:[%s43 + $0x48] sm:$0xff]
  %v273 = vld [vmem:[%s43 + $0x50] sm:$0xff]
  %v274 = vld [vmem:[%s43 + $0x58] sm:$0xff]
  %v275 = vld [vmem:[%s43 + $0x60] sm:$0xff]
  %v276 = vld [vmem:[%s43 + $0x68] sm:$0xff]
  %v277 = vld [vmem:[%s43 + $0x70] sm:$0xff]
  %v278 = vld [vmem:[%s43 + $0x78] sm:$0xff]
  %v279 = vld [vmem:[%s45] sm:$0x1]
  %v280 = vld [vmem:[%s47] sm:$0xff]
  %v281 = vld [vmem:[%s47 + $0x8] sm:$0xff]
  %v282 = vld [vmem:[%s47 + $0x10] sm:$0xff]
  %v283 = vld [vmem:[%s47 + $0x18] sm:$0xff]
  %v284 = vld [vmem:[%s47 + $0x20] sm:$0xff]
  %v285 = vld [vmem:[%s47 + $0x28] sm:$0xff]
  %v286 = vld [vmem:[%s47 + $0x30] sm:$0xff]
  %v287 = vld [vmem:[%s47 + $0x38] sm:$0xff]
  %v288 = vld [vmem:[%s47 + $0x40] sm:$0xff]
  %v289 = vld [vmem:[%s47 + $0x48] sm:$0xff]
  %v290 = vld [vmem:[%s47 + $0x50] sm:$0xff]
  %v291 = vld [vmem:[%s47 + $0x58] sm:$0xff]
  %v292 = vld [vmem:[%s47 + $0x60] sm:$0xff]
  %v293 = vld [vmem:[%s47 + $0x68] sm:$0xff]
  %v294 = vld [vmem:[%s47 + $0x70] sm:$0xff]
  %v295 = vld [vmem:[%s47 + $0x78] sm:$0xff]
  %v296 = vld [vmem:[%s49] sm:$0x1]
  %v297 = vld [vmem:[%s51] sm:$0x1]
  %v298 = vld [vmem:[%s53] sm:$0x1]
  %v299 = vld [vmem:[%s55] sm:$0x1]
  %v300 = vld [vmem:[%s57] sm:$0x1]
  %v301 = vld [vmem:[%s1] sm:$0xff]
  %v302 = vld [vmem:[%s1 + $0x8] sm:$0xff]
  %v303 = vld [vmem:[%s3] sm:$0xff]
  %v304 = vld [vmem:[%s3 + $0x8] sm:$0xff]
  %v305 = vld [vmem:[%s3 + $0x10] sm:$0xff]
  %v306 = vld [vmem:[%s3 + $0x18] sm:$0xff]
  %v307 = vld [vmem:[%s3 + $0x20] sm:$0xff]
  %v308 = vld [vmem:[%s3 + $0x28] sm:$0xff]
  %v309 = vld [vmem:[%s5] sm:$0xff]
  %v310 = vld [vmem:[%s5 + $0x8] sm:$0xff]
  %v311 = vld [vmem:[%s5 + $0x10] sm:$0xff]
  %v312 = vld [vmem:[%s5 + $0x18] sm:$0xff]
  %v313 = vld [vmem:[%s5 + $0x20] sm:$0xff]
  %v314 = vld [vmem:[%s5 + $0x28] sm:$0xff]
  %v315 = vld [vmem:[%s5 + $0x30] sm:$0xff]
  %v316 = vld [vmem:[%s5 + $0x38] sm:$0xff]
  %v317 = vld [vmem:[%s5 + $0x40] sm:$0xff]
  %v318 = vld [vmem:[%s5 + $0x48] sm:$0xff]
  %v319 = vld [vmem:[%s5 + $0x50] sm:$0xff]
  %v320 = vld [vmem:[%s5 + $0x58] sm:$0xff]
  %v321 = vld [vmem:[%s13] sm:$0xff]
  %v322 = vld [vmem:[%s13 + $0x8] sm:$0xff]
  %v323 = vld [vmem:[%s13 + $0x10] sm:$0xff]
  %v324 = vld [vmem:[%s13 + $0x18] sm:$0xff]
  %v325 = vld [vmem:[%s13 + $0x20] sm:$0xff]
  %v326 = vld [vmem:[%s13 + $0x28] sm:$0xff]
  %v327 = vld [vmem:[%s13 + $0x30] sm:$0xff]
  %v328 = vld [vmem:[%s13 + $0x38] sm:$0xff]
  %v329 = vld [vmem:[%s13 + $0x40] sm:$0xff]
  %v330 = vld [vmem:[%s13 + $0x48] sm:$0xff]
  %v331 = vld [vmem:[%s13 + $0x50] sm:$0xff]
  %v332 = vld [vmem:[%s13 + $0x58] sm:$0xff]
  %v333 = vld [vmem:[%s15] sm:$0xff]
  %v334 = vld [vmem:[%s15 + $0x8] sm:$0xff]
  %v335 = vld [vmem:[%s15 + $0x10] sm:$0xff]
  %v336 = vld [vmem:[%s15 + $0x18] sm:$0xff]
  %v337 = vld [vmem:[%s15 + $0x20] sm:$0xff]
  %v338 = vld [vmem:[%s15 + $0x28] sm:$0xff]
  %v339 = vld [vmem:[%s15 + $0x30] sm:$0xff]
  %v340 = vld [vmem:[%s15 + $0x38] sm:$0xff]
  %v341 = vld [vmem:[%s15 + $0x40] sm:$0xff]
  %v342 = vld [vmem:[%s15 + $0x48] sm:$0xff]
  %v343 = vld [vmem:[%s15 + $0x50] sm:$0xff]
  %v344 = vld [vmem:[%s15 + $0x58] sm:$0xff]
  %v345 = vld [vmem:[%s17] sm:$0x1]
  %v346 = vlaneseq
  %v347 = vand.u32 %v346, 127
  %348 = vset.pattern.permute.xlu0 0
  %349 = vperm.xlu0 %348, %v321
  %v350 = vpop.permute.xlu0 %349
  %351 = vset.pattern.permute.xlu0 0
  %352 = vperm.xlu0 %351, %v322
  %v353 = vpop.permute.xlu0 %352
  %354 = vset.pattern.permute.xlu0 0
  %355 = vperm.xlu0 %354, %v323
  %v356 = vpop.permute.xlu0 %355
  %357 = vset.pattern.permute.xlu0 0
  %358 = vperm.xlu0 %357, %v324
  %v359 = vpop.permute.xlu0 %358
  %360 = vset.pattern.permute.xlu0 0
  %361 = vperm.xlu0 %360, %v325
  %v362 = vpop.permute.xlu0 %361
  %363 = vset.pattern.permute.xlu0 0
  %364 = vperm.xlu0 %363, %v326
  %v365 = vpop.permute.xlu0 %364
  %366 = vset.pattern.permute.xlu0 0
  %367 = vperm.xlu0 %366, %v327
  %v368 = vpop.permute.xlu0 %367
  %369 = vset.pattern.permute.xlu0 0
  %370 = vperm.xlu0 %369, %v328
  %v371 = vpop.permute.xlu0 %370
  %372 = vset.pattern.permute.xlu0 0
  %373 = vperm.xlu0 %372, %v329
  %v374 = vpop.permute.xlu0 %373
  %375 = vset.pattern.permute.xlu0 0
  %376 = vperm.xlu0 %375, %v330
  %v377 = vpop.permute.xlu0 %376
  %378 = vset.pattern.permute.xlu0 0
  %379 = vperm.xlu0 %378, %v331
  %v380 = vpop.permute.xlu0 %379
  %381 = vset.pattern.permute.xlu0 0
  %382 = vperm.xlu0 %381, %v332
  %v383 = vpop.permute.xlu0 %382
  %vm384 = vcmp.eq.s32.totalorder %v350, %v347
  %vm385 = vcmp.eq.s32.totalorder %v353, %v347
  %vm386 = vcmp.eq.s32.totalorder %v356, %v347
  %vm387 = vcmp.eq.s32.totalorder %v359, %v347
  %vm388 = vcmp.eq.s32.totalorder %v362, %v347
  %vm389 = vcmp.eq.s32.totalorder %v365, %v347
  %vm390 = vcmp.eq.s32.totalorder %v368, %v347
  %vm391 = vcmp.eq.s32.totalorder %v371, %v347
  %vm392 = vcmp.eq.s32.totalorder %v374, %v347
  %vm393 = vcmp.eq.s32.totalorder %v377, %v347
  %vm394 = vcmp.eq.s32.totalorder %v380, %v347
  %vm395 = vcmp.eq.s32.totalorder %v383, %v347
  %v396 = vsel %vm384, 1, 0
  %v397 = vsel %vm385, 1, 0
  %v398 = vsel %vm386, 1, 0
  %v399 = vsel %vm387, 1, 0
  %v400 = vsel %vm388, 1, 0
  %v401 = vsel %vm389, 1, 0
  %v402 = vsel %vm390, 1, 0
  %v403 = vsel %vm391, 1, 0
  %v404 = vsel %vm392, 1, 0
  %v405 = vsel %vm393, 1, 0
  %v406 = vsel %vm394, 1, 0
  %v407 = vsel %vm395, 1, 0
  %v408 = vcvt.s32.f32 %v396
  %v409 = vcvt.s32.f32 %v397
  %v410 = vcvt.s32.f32 %v398
  %v411 = vcvt.s32.f32 %v399
  %v412 = vcvt.s32.f32 %v400
  %v413 = vcvt.s32.f32 %v401
  %v414 = vcvt.s32.f32 %v402
  %v415 = vcvt.s32.f32 %v403
  %v416 = vcvt.s32.f32 %v404
  %v417 = vcvt.s32.f32 %v405
  %v418 = vcvt.s32.f32 %v406
  %v419 = vcvt.s32.f32 %v407
  %420 = vset.pattern.permute.xlu0 0
  %421 = vperm.xlu0 %420, %v333
  %v422 = vpop.permute.xlu0 %421
  %423 = vset.pattern.permute.xlu0 0
  %424 = vperm.xlu0 %423, %v334
  %v425 = vpop.permute.xlu0 %424
  %426 = vset.pattern.permute.xlu0 0
  %427 = vperm.xlu0 %426, %v335
  %v428 = vpop.permute.xlu0 %427
  %429 = vset.pattern.permute.xlu0 0
  %430 = vperm.xlu0 %429, %v336
  %v431 = vpop.permute.xlu0 %430
  %432 = vset.pattern.permute.xlu0 0
  %433 = vperm.xlu0 %432, %v337
  %v434 = vpop.permute.xlu0 %433
  %435 = vset.pattern.permute.xlu0 0
  %436 = vperm.xlu0 %435, %v338
  %v437 = vpop.permute.xlu0 %436
  %438 = vset.pattern.permute.xlu0 0
  %439 = vperm.xlu0 %438, %v339
  %v440 = vpop.permute.xlu0 %439
  %441 = vset.pattern.permute.xlu0 0
  %442 = vperm.xlu0 %441, %v340
  %v443 = vpop.permute.xlu0 %442
  %444 = vset.pattern.permute.xlu0 0
  %445 = vperm.xlu0 %444, %v341
  %v446 = vpop.permute.xlu0 %445
  %447 = vset.pattern.permute.xlu0 0
  %448 = vperm.xlu0 %447, %v342
  %v449 = vpop.permute.xlu0 %448
  %450 = vset.pattern.permute.xlu0 0
  %451 = vperm.xlu0 %450, %v343
  %v452 = vpop.permute.xlu0 %451
  %453 = vset.pattern.permute.xlu0 0
  %454 = vperm.xlu0 %453, %v344
  %v455 = vpop.permute.xlu0 %454
  %vm456 = vcmp.eq.s32.totalorder %v422, %v347
  %vm457 = vcmp.eq.s32.totalorder %v425, %v347
  %vm458 = vcmp.eq.s32.totalorder %v428, %v347
  %vm459 = vcmp.eq.s32.totalorder %v431, %v347
  %vm460 = vcmp.eq.s32.totalorder %v434, %v347
  %vm461 = vcmp.eq.s32.totalorder %v437, %v347
  %vm462 = vcmp.eq.s32.totalorder %v440, %v347
  %vm463 = vcmp.eq.s32.totalorder %v443, %v347
  %vm464 = vcmp.eq.s32.totalorder %v446, %v347
  %vm465 = vcmp.eq.s32.totalorder %v449, %v347
  %vm466 = vcmp.eq.s32.totalorder %v452, %v347
  %vm467 = vcmp.eq.s32.totalorder %v455, %v347
  %v468 = vsel %vm456, 1, 0
  %v469 = vsel %vm457, 1, 0
  %v470 = vsel %vm458, 1, 0
  %v471 = vsel %vm459, 1, 0
  %v472 = vsel %vm460, 1, 0
  %v473 = vsel %vm461, 1, 0
  %v474 = vsel %vm462, 1, 0
  %v475 = vsel %vm463, 1, 0
  %v476 = vsel %vm464, 1, 0
  %v477 = vsel %vm465, 1, 0
  %v478 = vsel %vm466, 1, 0
  %v479 = vsel %vm467, 1, 0
  %v480 = vcvt.s32.f32 %v468
  %v481 = vcvt.s32.f32 %v469
  %v482 = vcvt.s32.f32 %v470
  %v483 = vcvt.s32.f32 %v471
  %v484 = vcvt.s32.f32 %v472
  %v485 = vcvt.s32.f32 %v473
  %v486 = vcvt.s32.f32 %v474
  %v487 = vcvt.s32.f32 %v475
  %v488 = vcvt.s32.f32 %v476
  %v489 = vcvt.s32.f32 %v477
  %v490 = vcvt.s32.f32 %v478
  %v491 = vcvt.s32.f32 %v479
  %v492 = vlaneseq
  %v493 = vshrl.u32 %v492, 7
  %v494 = vadd.s32 %v493, 8
  %v495 = vadd.s32 %v493, 16
  %v496 = vadd.s32 %v493, 24
  %v497 = vadd.s32 %v493, 32
  %v498 = vadd.s32 %v493, 40
  %v499 = vlaneseq
  %v500 = vshrl.u32 %v499, 7
  %v501 = vsub.s32 0, %v500
  %v502 = vrot.slane %v345, %v501
  %vm503 = vcmp.eq.s32.totalorder %v502, %v493
  %vm504 = vcmp.eq.s32.totalorder %v502, %v494
  %vm505 = vcmp.eq.s32.totalorder %v502, %v495
  %vm506 = vcmp.eq.s32.totalorder %v502, %v496
  %vm507 = vcmp.eq.s32.totalorder %v502, %v497
  %vm508 = vcmp.eq.s32.totalorder %v502, %v498
  %v509 = vsel %vm503, 1, 0
  %v510 = vsel %vm504, 1, 0
  %v511 = vsel %vm505, 1, 0
  %v512 = vsel %vm506, 1, 0
  %v513 = vsel %vm507, 1, 0
  %v514 = vsel %vm508, 1, 0
  %v515 = vcvt.s32.f32 %v509
  %v516 = vcvt.s32.f32 %v510
  %v517 = vcvt.s32.f32 %v511
  %v518 = vcvt.s32.f32 %v512
  %v519 = vcvt.s32.f32 %v513
  %v520 = vcvt.s32.f32 %v514
  %vm521 = vcmask 392192
  %v523 = vsel %vm521, %v408, 0
  %v526 = vsel %vm521, %v409, 0
  %v529 = vsel %vm521, %v410, 0
  %v532 = vsel %vm521, %v411, 0
  %v535 = vsel %vm521, %v412, 0
  %v538 = vsel %vm521, %v413, 0
  %v541 = vsel %vm521, %v414, 0
  %v544 = vsel %vm521, %v415, 0
  %v547 = vsel %vm521, %v416, 0
  %v550 = vsel %vm521, %v417, 0
  %v553 = vsel %vm521, %v418, 0
  %v556 = vsel %vm521, %v419, 0
  %558 = vmatprep.subr.mxu0 0.0
  %559 = vmatpush1.msra.mxu0 %v303
  %560 = vmatprep.subr.mxu0 0.0
  %561 = vmatpush1.msra.mxu0 %v304
  %562 = vmatprep.subr.mxu0 0.0
  %563 = vmatpush1.msra.mxu0 %v305
  %564 = vmatprep.subr.mxu0 0.0
  %565 = vmatpush1.msra.mxu0 %v306
  %566 = vmatprep.subr.mxu0 0.0
  %567 = vmatpush1.msra.mxu0 %v307
  %568 = vmatprep.subr.mxu0 0.0
  %569 = vmatpush1.msra.mxu0 %v308
  %570 = vmatprep.subr.mxu0 0.0
  %571 = vmatpush1.msra.mxu0 0.0
  %572 = vmatprep.subr.mxu0 0.0
  %573 = vmatpush1.msra.mxu0 0.0
  %574 = vmatprep.subr.mxu0 0.0
  %575 = vmatpush1.msra.mxu0 0.0
  %576 = vmatprep.subr.mxu0 0.0
  %577 = vmatpush1.msra.mxu0 0.0
  %578 = vmatprep.subr.mxu0 0.0
  %579 = vmatpush1.msra.mxu0 0.0
  %580 = vmatprep.subr.mxu0 0.0
  %581 = vmatpush1.msra.mxu0 0.0
  %582 = vmatprep.subr.mxu0 0.0
  %583 = vmatpush1.msra.mxu0 0.0
  %584 = vmatprep.subr.mxu0 0.0
  %585 = vmatpush1.msra.mxu0 0.0
  %586 = vmatprep.subr.mxu0 0.0
  %587 = vmatpush1.msra.mxu0 0.0
  %588 = vmatprep.subr.mxu0 0.0
  %589 = vmatpush1.msra.mxu0 0.0
  %590 = vmatprep.subr.mxu0 0.0
  %591 = vmatpush1.msra.mxu0 0.0
  %592 = vmatprep.subr.mxu0 0.0
  %593 = vmatpush1.msra.mxu0 0.0
  %594 = vmatprep.subr.mxu0 0.0
  %595 = vmatpush1.msra.mxu0 0.0
  %596 = vmatprep.subr.mxu0 0.0
  %597 = vmatpush1.msra.mxu0 0.0
  %598 = vmatprep.subr.mxu0 0.0
  %599 = vmatpush1.msra.mxu0 0.0
  %600 = vmatprep.subr.mxu0 0.0
  %601 = vmatpush1.msra.mxu0 0.0
  %602 = vmatprep.subr.mxu0 0.0
  %603 = vmatpush1.msra.mxu0 0.0
  %604 = vmatprep.subr.mxu0 0.0
  %605 = vmatpush1.msra.mxu0 0.0
  %606 = vmatprep.subr.mxu0 0.0
  %607 = vmatpush1.msra.mxu0 0.0
  %608 = vmatprep.subr.mxu0 0.0
  %609 = vmatpush1.msra.mxu0 0.0
  %610 = vmatprep.subr.mxu0 0.0
  %611 = vmatpush1.msra.mxu0 0.0
  %612 = vmatprep.subr.mxu0 0.0
  %613 = vmatpush1.msra.mxu0 0.0
  %614 = vmatprep.subr.mxu0 0.0
  %615 = vmatpush1.msra.mxu0 0.0
  %616 = vmatprep.subr.mxu0 0.0
  %617 = vmatpush1.msra.mxu0 0.0
  %618 = vmatprep.subr.mxu0 0.0
  %619 = vmatpush1.msra.mxu0 0.0
  %620 = vmatprep.subr.mxu0 0.0
  %621 = vmatpush1.msra.mxu0 0.0
  %622 = vmatprep.mubr.f32.mxu0 0.0
  %623 = vmatmul.mubr.f32.gmra.mrb[0].mxu0 %v523
  %v624 = vpop.f32.mrb[0].mxu0
  %v625 = vadd.f32 0.0, %v624
  %v626 = vpop.f32.mrb[0].mxu0
  %627 = vmatprep.mubr.f32.mxu0 0.0
  %628 = vmatmul.mubr.f32.gmra.mrb[0].mxu0 %v526
  %v629 = vpop.f32.mrb[0].mxu0
  %v630 = vadd.f32 0.0, %v629
  %v631 = vpop.f32.mrb[0].mxu0
  %632 = vmatprep.mubr.f32.mxu0 0.0
  %633 = vmatmul.mubr.f32.gmra.mrb[0].mxu0 %v529
  %v634 = vpop.f32.mrb[0].mxu0
  %v635 = vadd.f32 0.0, %v634
  %v636 = vpop.f32.mrb[0].mxu0
  %637 = vmatprep.mubr.f32.mxu0 0.0
  %638 = vmatmul.mubr.f32.gmra.mrb[0].mxu0 %v532
  %v639 = vpop.f32.mrb[0].mxu0
  %v640 = vadd.f32 0.0, %v639
  %v641 = vpop.f32.mrb[0].mxu0
  %642 = vmatprep.mubr.f32.mxu0 0.0
  %643 = vmatmul.mubr.f32.gmra.mrb[0].mxu0 %v535
  %v644 = vpop.f32.mrb[0].mxu0
  %v645 = vadd.f32 0.0, %v644
  %v646 = vpop.f32.mrb[0].mxu0
  %647 = vmatprep.mubr.f32.mxu0 0.0
  %648 = vmatmul.mubr.f32.gmra.mrb[0].mxu0 %v538
  %v649 = vpop.f32.mrb[0].mxu0
  %v650 = vadd.f32 0.0, %v649
  %v651 = vpop.f32.mrb[0].mxu0
  %652 = vmatprep.mubr.f32.mxu0 0.0
  %653 = vmatmul.mubr.f32.gmra.mrb[0].mxu0 %v541
  %v654 = vpop.f32.mrb[0].mxu0
  %v655 = vadd.f32 0.0, %v654
  %v656 = vpop.f32.mrb[0].mxu0
  %657 = vmatprep.mubr.f32.mxu0 0.0
  %658 = vmatmul.mubr.f32.gmra.mrb[0].mxu0 %v544
  %v659 = vpop.f32.mrb[0].mxu0
  %v660 = vadd.f32 0.0, %v659
  %v661 = vpop.f32.mrb[0].mxu0
  %662 = vmatprep.mubr.f32.mxu0 0.0
  %663 = vmatmul.mubr.f32.gmra.mrb[0].mxu0 %v547
  %v664 = vpop.f32.mrb[0].mxu0
  %v665 = vadd.f32 0.0, %v664
  %v666 = vpop.f32.mrb[0].mxu0
  %667 = vmatprep.mubr.f32.mxu0 0.0
  %668 = vmatmul.mubr.f32.gmra.mrb[0].mxu0 %v550
  %v669 = vpop.f32.mrb[0].mxu0
  %v670 = vadd.f32 0.0, %v669
  %v671 = vpop.f32.mrb[0].mxu0
  %672 = vmatprep.mubr.f32.mxu0 0.0
  %673 = vmatmul.mubr.f32.gmra.mrb[0].mxu0 %v553
  %v674 = vpop.f32.mrb[0].mxu0
  %v675 = vadd.f32 0.0, %v674
  %v676 = vpop.f32.mrb[0].mxu0
  %677 = vmatprep.mubr.f32.mxu0 0.0
  %678 = vmatmul.mubr.f32.gmra.mrb[0].mxu0 %v556
  %v679 = vpop.f32.mrb[0].mxu0
  %v680 = vadd.f32 0.0, %v679
  %v681 = vpop.f32.mrb[0].mxu0
  %682 = vdwg.mxu0
  %v684 = vsel %vm521, %v480, 0
  %v687 = vsel %vm521, %v481, 0
  %v690 = vsel %vm521, %v482, 0
  %v693 = vsel %vm521, %v483, 0
  %v696 = vsel %vm521, %v484, 0
  %v699 = vsel %vm521, %v485, 0
  %v702 = vsel %vm521, %v486, 0
  %v705 = vsel %vm521, %v487, 0
  %v708 = vsel %vm521, %v488, 0
  %v711 = vsel %vm521, %v489, 0
  %v714 = vsel %vm521, %v490, 0
  %v717 = vsel %vm521, %v491, 0
  %719 = vmatprep.subr.mxu0 0.0
  %720 = vmatpush1.msra.mxu0 %v303
  %721 = vmatprep.subr.mxu0 0.0
  %722 = vmatpush1.msra.mxu0 %v304
  %723 = vmatprep.subr.mxu0 0.0
  %724 = vmatpush1.msra.mxu0 %v305
  %725 = vmatprep.subr.mxu0 0.0
  %726 = vmatpush1.msra.mxu0 %v306
  %727 = vmatprep.subr.mxu0 0.0
  %728 = vmatpush1.msra.mxu0 %v307
  %729 = vmatprep.subr.mxu0 0.0
  %730 = vmatpush1.msra.mxu0 %v308
  %731 = vmatprep.subr.mxu0 0.0
  %732 = vmatpush1.msra.mxu0 0.0
  %733 = vmatprep.subr.mxu0 0.0
  %734 = vmatpush1.msra.mxu0 0.0
  %735 = vmatprep.subr.mxu0 0.0
  %736 = vmatpush1.msra.mxu0 0.0
  %737 = vmatprep.subr.mxu0 0.0
  %738 = vmatpush1.msra.mxu0 0.0
  %739 = vmatprep.subr.mxu0 0.0
  %740 = vmatpush1.msra.mxu0 0.0
  %741 = vmatprep.subr.mxu0 0.0
  %742 = vmatpush1.msra.mxu0 0.0
  %743 = vmatprep.subr.mxu0 0.0
  %744 = vmatpush1.msra.mxu0 0.0
  %745 = vmatprep.subr.mxu0 0.0
  %746 = vmatpush1.msra.mxu0 0.0
  %747 = vmatprep.subr.mxu0 0.0
  %748 = vmatpush1.msra.mxu0 0.0
  %749 = vmatprep.subr.mxu0 0.0
  %750 = vmatpush1.msra.mxu0 0.0
  %751 = vmatprep.subr.mxu0 0.0
  %752 = vmatpush1.msra.mxu0 0.0
  %753 = vmatprep.subr.mxu0 0.0
  %754 = vmatpush1.msra.mxu0 0.0
  %755 = vmatprep.subr.mxu0 0.0
  %756 = vmatpush1.msra.mxu0 0.0
  %757 = vmatprep.subr.mxu0 0.0
  %758 = vmatpush1.msra.mxu0 0.0
  %759 = vmatprep.subr.mxu0 0.0
  %760 = vmatpush1.msra.mxu0 0.0
  %761 = vmatprep.subr.mxu0 0.0
  %762 = vmatpush1.msra.mxu0 0.0
  %763 = vmatprep.subr.mxu0 0.0
  %764 = vmatpush1.msra.mxu0 0.0
  %765 = vmatprep.subr.mxu0 0.0
  %766 = vmatpush1.msra.mxu0 0.0
  %767 = vmatprep.subr.mxu0 0.0
  %768 = vmatpush1.msra.mxu0 0.0
  %769 = vmatprep.subr.mxu0 0.0
  %770 = vmatpush1.msra.mxu0 0.0
  %771 = vmatprep.subr.mxu0 0.0
  %772 = vmatpush1.msra.mxu0 0.0
  %773 = vmatprep.subr.mxu0 0.0
  %774 = vmatpush1.msra.mxu0 0.0
  %775 = vmatprep.subr.mxu0 0.0
  %776 = vmatpush1.msra.mxu0 0.0
  %777 = vmatprep.subr.mxu0 0.0
  %778 = vmatpush1.msra.mxu0 0.0
  %779 = vmatprep.subr.mxu0 0.0
  %780 = vmatpush1.msra.mxu0 0.0
  %781 = vmatprep.subr.mxu0 0.0
  %782 = vmatpush1.msra.mxu0 0.0
  %783 = vmatprep.mubr.f32.mxu0 0.0
  %784 = vmatmul.mubr.f32.gmra.mrb[0].mxu0 %v684
  %v785 = vpop.f32.mrb[0].mxu0
  %v786 = vadd.f32 0.0, %v785
  %v787 = vpop.f32.mrb[0].mxu0
  %788 = vmatprep.mubr.f32.mxu0 0.0
  %789 = vmatmul.mubr.f32.gmra.mrb[0].mxu0 %v687
  %v790 = vpop.f32.mrb[0].mxu0
  %v791 = vadd.f32 0.0, %v790
  %v792 = vpop.f32.mrb[0].mxu0
  %793 = vmatprep.mubr.f32.mxu0 0.0
  %794 = vmatmul.mubr.f32.gmra.mrb[0].mxu0 %v690
  %v795 = vpop.f32.mrb[0].mxu0
  %v796 = vadd.f32 0.0, %v795
  %v797 = vpop.f32.mrb[0].mxu0
  %798 = vmatprep.mubr.f32.mxu0 0.0
  %799 = vmatmul.mubr.f32.gmra.mrb[0].mxu0 %v693
  %v800 = vpop.f32.mrb[0].mxu0
  %v801 = vadd.f32 0.0, %v800
  %v802 = vpop.f32.mrb[0].mxu0
  %803 = vmatprep.mubr.f32.mxu0 0.0
  %804 = vmatmul.mubr.f32.gmra.mrb[0].mxu0 %v696
  %v805 = vpop.f32.mrb[0].mxu0
  %v806 = vadd.f32 0.0, %v805
  %v807 = vpop.f32.mrb[0].mxu0
  %808 = vmatprep.mubr.f32.mxu0 0.0
  %809 = vmatmul.mubr.f32.gmra.mrb[0].mxu0 %v699
  %v810 = vpop.f32.mrb[0].mxu0
  %v811 = vadd.f32 0.0, %v810
  %v812 = vpop.f32.mrb[0].mxu0
  %813 = vmatprep.mubr.f32.mxu0 0.0
  %814 = vmatmul.mubr.f32.gmra.mrb[0].mxu0 %v702
  %v815 = vpop.f32.mrb[0].mxu0
  %v816 = vadd.f32 0.0, %v815
  %v817 = vpop.f32.mrb[0].mxu0
  %818 = vmatprep.mubr.f32.mxu0 0.0
  %819 = vmatmul.mubr.f32.gmra.mrb[0].mxu0 %v705
  %v820 = vpop.f32.mrb[0].mxu0
  %v821 = vadd.f32 0.0, %v820
  %v822 = vpop.f32.mrb[0].mxu0
  %823 = vmatprep.mubr.f32.mxu0 0.0
  %824 = vmatmul.mubr.f32.gmra.mrb[0].mxu0 %v708
  %v825 = vpop.f32.mrb[0].mxu0
  %v826 = vadd.f32 0.0, %v825
  %v827 = vpop.f32.mrb[0].mxu0
  %828 = vmatprep.mubr.f32.mxu0 0.0
  %829 = vmatmul.mubr.f32.gmra.mrb[0].mxu0 %v711
  %v830 = vpop.f32.mrb[0].mxu0
  %v831 = vadd.f32 0.0, %v830
  %v832 = vpop.f32.mrb[0].mxu0
  %833 = vmatprep.mubr.f32.mxu0 0.0
  %834 = vmatmul.mubr.f32.gmra.mrb[0].mxu0 %v714
  %v835 = vpop.f32.mrb[0].mxu0
  %v836 = vadd.f32 0.0, %v835
  %v837 = vpop.f32.mrb[0].mxu0
  %838 = vmatprep.mubr.f32.mxu0 0.0
  %839 = vmatmul.mubr.f32.gmra.mrb[0].mxu0 %v717
  %v840 = vpop.f32.mrb[0].mxu0
  %v841 = vadd.f32 0.0, %v840
  %v842 = vpop.f32.mrb[0].mxu0
  %843 = vdwg.mxu0
  %v845 = vlaneseq
  %v846 = vshrl.u32 %v845, 7
  %v847 = vsub.s32 0, %v846
  %v848 = vrot.slane %v175, %v847
  %850 = vmatprep.subr.mxu0 0.0
  %851 = vmatpush1.msra.mxu0 %v127
  %852 = vmatprep.subr.mxu0 0.0
  %853 = vmatpush1.msra.mxu0 %v128
  %854 = vmatprep.subr.mxu0 0.0
  %855 = vmatpush1.msra.mxu0 %v129
  %856 = vmatprep.subr.mxu0 0.0
  %857 = vmatpush1.msra.mxu0 %v130
  %858 = vmatprep.subr.mxu0 0.0
  %859 = vmatpush1.msra.mxu0 %v131
  %860 = vmatprep.subr.mxu0 0.0
  %861 = vmatpush1.msra.mxu0 %v132
  %862 = vmatprep.subr.mxu0 0.0
  %863 = vmatpush1.msra.mxu0 %v133
  %864 = vmatprep.subr.mxu0 0.0
  %865 = vmatpush1.msra.mxu0 %v134
  %866 = vmatprep.subr.mxu0 0.0
  %867 = vmatpush1.msra.mxu0 %v135
  %868 = vmatprep.subr.mxu0 0.0
  %869 = vmatpush1.msra.mxu0 %v136
  %870 = vmatprep.subr.mxu0 0.0
  %871 = vmatpush1.msra.mxu0 %v137
  %872 = vmatprep.subr.mxu0 0.0
  %873 = vmatpush1.msra.mxu0 %v138
  %874 = vmatprep.subr.mxu0 0.0
  %875 = vmatpush1.msra.mxu0 %v139
  %876 = vmatprep.subr.mxu0 0.0
  %877 = vmatpush1.msra.mxu0 %v140
  %878 = vmatprep.subr.mxu0 0.0
  %879 = vmatpush1.msra.mxu0 %v141
  %880 = vmatprep.subr.mxu0 0.0
  %881 = vmatpush1.msra.mxu0 %v142
  %882 = vmatprep.subr.mxu0 0.0
  %883 = vmatpush1.msra.mxu0 %v143
  %884 = vmatprep.subr.mxu0 0.0
  %885 = vmatpush1.msra.mxu0 %v144
  %886 = vmatprep.subr.mxu0 0.0
  %887 = vmatpush1.msra.mxu0 %v145
  %888 = vmatprep.subr.mxu0 0.0
  %889 = vmatpush1.msra.mxu0 %v146
  %890 = vmatprep.subr.mxu0 0.0
  %891 = vmatpush1.msra.mxu0 %v147
  %892 = vmatprep.subr.mxu0 0.0
  %893 = vmatpush1.msra.mxu0 %v148
  %894 = vmatprep.subr.mxu0 0.0
  %895 = vmatpush1.msra.mxu0 %v149
  %896 = vmatprep.subr.mxu0 0.0
  %897 = vmatpush1.msra.mxu0 %v150
  %898 = vmatprep.subr.mxu0 0.0
  %899 = vmatpush1.msra.mxu0 %v151
  %900 = vmatprep.subr.mxu0 0.0
  %901 = vmatpush1.msra.mxu0 %v152
  %902 = vmatprep.subr.mxu0 0.0
  %903 = vmatpush1.msra.mxu0 %v153
  %904 = vmatprep.subr.mxu0 0.0
  %905 = vmatpush1.msra.mxu0 %v154
  %906 = vmatprep.subr.mxu0 0.0
  %907 = vmatpush1.msra.mxu0 %v155
  %908 = vmatprep.subr.mxu0 0.0
  %909 = vmatpush1.msra.mxu0 %v156
  %910 = vmatprep.subr.mxu0 0.0
  %911 = vmatpush1.msra.mxu0 %v157
  %912 = vmatprep.subr.mxu0 0.0
  %913 = vmatpush1.msra.mxu0 %v158
  %914 = vmatprep.mubr.f32.mxu0 %v786
  %915 = vmatmul.mubr.f32.gmra.mrb[0].mxu0 %v625
  %v916 = vpop.f32.mrb[0].mxu0
  %v917 = vadd.f32 %v848, %v916
  %v918 = vpop.f32.mrb[0].mxu0
  %919 = vmatprep.mubr.f32.mxu0 %v791
  %920 = vmatmul.mubr.f32.gmra.mrb[0].mxu0 %v630
  %v921 = vpop.f32.mrb[0].mxu0
  %v922 = vadd.f32 %v848, %v921
  %v923 = vpop.f32.mrb[0].mxu0
  %924 = vmatprep.mubr.f32.mxu0 %v796
  %925 = vmatmul.mubr.f32.gmra.mrb[0].mxu0 %v635
  %v926 = vpop.f32.mrb[0].mxu0
  %v927 = vadd.f32 %v848, %v926
  %v928 = vpop.f32.mrb[0].mxu0
  %929 = vmatprep.mubr.f32.mxu0 %v801
  %930 = vmatmul.mubr.f32.gmra.mrb[0].mxu0 %v640
  %v931 = vpop.f32.mrb[0].mxu0
  %v932 = vadd.f32 %v848, %v931
  %v933 = vpop.f32.mrb[0].mxu0
  %934 = vmatprep.mubr.f32.mxu0 %v806
  %935 = vmatmul.mubr.f32.gmra.mrb[0].mxu0 %v645
  %v936 = vpop.f32.mrb[0].mxu0
  %v937 = vadd.f32 %v848, %v936
  %v938 = vpop.f32.mrb[0].mxu0
  %939 = vmatprep.mubr.f32.mxu0 %v811
  %940 = vmatmul.mubr.f32.gmra.mrb[0].mxu0 %v650
  %v941 = vpop.f32.mrb[0].mxu0
  %v942 = vadd.f32 %v848, %v941
  %v943 = vpop.f32.mrb[0].mxu0
  %944 = vmatprep.mubr.f32.mxu0 %v816
  %945 = vmatmul.mubr.f32.gmra.mrb[0].mxu0 %v655
  %v946 = vpop.f32.mrb[0].mxu0
  %v947 = vadd.f32 %v848, %v946
  %v948 = vpop.f32.mrb[0].mxu0
  %949 = vmatprep.mubr.f32.mxu0 %v821
  %950 = vmatmul.mubr.f32.gmra.mrb[0].mxu0 %v660
  %v951 = vpop.f32.mrb[0].mxu0
  %v952 = vadd.f32 %v848, %v951
  %v953 = vpop.f32.mrb[0].mxu0
  %954 = vmatprep.mubr.f32.mxu0 %v826
  %955 = vmatmul.mubr.f32.gmra.mrb[0].mxu0 %v665
  %v956 = vpop.f32.mrb[0].mxu0
  %v957 = vadd.f32 %v848, %v956
  %v958 = vpop.f32.mrb[0].mxu0
  %959 = vmatprep.mubr.f32.mxu0 %v831
  %960 = vmatmul.mubr.f32.gmra.mrb[0].mxu0 %v670
  %v961 = vpop.f32.mrb[0].mxu0
  %v962 = vadd.f32 %v848, %v961
  %v963 = vpop.f32.mrb[0].mxu0
  %964 = vmatprep.mubr.f32.mxu0 %v836
  %965 = vmatmul.mubr.f32.gmra.mrb[0].mxu0 %v675
  %v966 = vpop.f32.mrb[0].mxu0
  %v967 = vadd.f32 %v848, %v966
  %v968 = vpop.f32.mrb[0].mxu0
  %969 = vmatprep.mubr.f32.mxu0 %v841
  %970 = vmatmul.mubr.f32.gmra.mrb[0].mxu0 %v680
  %v971 = vpop.f32.mrb[0].mxu0
  %v972 = vadd.f32 %v848, %v971
  %v973 = vpop.f32.mrb[0].mxu0
  %974 = vdwg.mxu0
  %975 = vmatprep.subr.mxu0 0.0
  %976 = vmatpush1.msra.mxu0 %v159
  %977 = vmatprep.subr.mxu0 0.0
  %978 = vmatpush1.msra.mxu0 %v160
  %979 = vmatprep.subr.mxu0 0.0
  %980 = vmatpush1.msra.mxu0 %v161
  %981 = vmatprep.subr.mxu0 0.0
  %982 = vmatpush1.msra.mxu0 %v162
  %983 = vmatprep.subr.mxu0 0.0
  %984 = vmatpush1.msra.mxu0 %v163
  %985 = vmatprep.subr.mxu0 0.0
  %986 = vmatpush1.msra.mxu0 %v164
  %987 = vmatprep.subr.mxu0 0.0
  %988 = vmatpush1.msra.mxu0 %v165
  %989 = vmatprep.subr.mxu0 0.0
  %990 = vmatpush1.msra.mxu0 %v166
  %991 = vmatprep.subr.mxu0 0.0
  %992 = vmatpush1.msra.mxu0 %v167
  %993 = vmatprep.subr.mxu0 0.0
  %994 = vmatpush1.msra.mxu0 %v168
  %995 = vmatprep.subr.mxu0 0.0
  %996 = vmatpush1.msra.mxu0 %v169
  %997 = vmatprep.subr.mxu0 0.0
  %998 = vmatpush1.msra.mxu0 %v170
  %999 = vmatprep.subr.mxu0 0.0
  %1000 = vmatpush1.msra.mxu0 %v171
  %1001 = vmatprep.subr.mxu0 0.0
  %1002 = vmatpush1.msra.mxu0 %v172
  %1003 = vmatprep.subr.mxu0 0.0
  %1004 = vmatpush1.msra.mxu0 %v173
  %1005 = vmatprep.subr.mxu0 0.0
  %1006 = vmatpush1.msra.mxu0 %v174
  %1007 = vmatprep.subr.mxu0 0.0
  %1008 = vmatpush1.msra.mxu0 0.0
  %1009 = vmatprep.subr.mxu0 0.0
  %1010 = vmatpush1.msra.mxu0 0.0
  %1011 = vmatprep.subr.mxu0 0.0
  %1012 = vmatpush1.msra.mxu0 0.0
  %1013 = vmatprep.subr.mxu0 0.0
  %1014 = vmatpush1.msra.mxu0 0.0
  %1015 = vmatprep.subr.mxu0 0.0
  %1016 = vmatpush1.msra.mxu0 0.0
  %1017 = vmatprep.subr.mxu0 0.0
  %1018 = vmatpush1.msra.mxu0 0.0
  %1019 = vmatprep.subr.mxu0 0.0
  %1020 = vmatpush1.msra.mxu0 0.0
  %1021 = vmatprep.subr.mxu0 0.0
  %1022 = vmatpush1.msra.mxu0 0.0
  %1023 = vmatprep.subr.mxu0 0.0
  %1024 = vmatpush1.msra.mxu0 0.0
  %1025 = vmatprep.subr.mxu0 0.0
  %1026 = vmatpush1.msra.mxu0 0.0
  %1027 = vmatprep.subr.mxu0 0.0
  %1028 = vmatpush1.msra.mxu0 0.0
  %1029 = vmatprep.subr.mxu0 0.0
  %1030 = vmatpush1.msra.mxu0 0.0
  %1031 = vmatprep.subr.mxu0 0.0
  %1032 = vmatpush1.msra.mxu0 0.0
  %1033 = vmatprep.subr.mxu0 0.0
  %1034 = vmatpush1.msra.mxu0 0.0
  %1035 = vmatprep.subr.mxu0 0.0
  %1036 = vmatpush1.msra.mxu0 0.0
  %1037 = vmatprep.subr.mxu0 0.0
  %1038 = vmatpush1.msra.mxu0 0.0
  %1039 = vmatprep.mubr.f32.mxu0 0.0
  %1040 = vmatmul.mubr.f32.gmra.mrb[0].mxu0 %v309
  %v1041 = vpop.f32.mrb[0].mxu0
  %v1042 = vadd.f32 %v917, %v1041
  %v1043 = vpop.f32.mrb[0].mxu0
  %1044 = vmatprep.mubr.f32.mxu0 0.0
  %1045 = vmatmul.mubr.f32.gmra.mrb[0].mxu0 %v310
  %v1046 = vpop.f32.mrb[0].mxu0
  %v1047 = vadd.f32 %v922, %v1046
  %v1048 = vpop.f32.mrb[0].mxu0
  %1049 = vmatprep.mubr.f32.mxu0 0.0
  %1050 = vmatmul.mubr.f32.gmra.mrb[0].mxu0 %v311
  %v1051 = vpop.f32.mrb[0].mxu0
  %v1052 = vadd.f32 %v927, %v1051
  %v1053 = vpop.f32.mrb[0].mxu0
  %1054 = vmatprep.mubr.f32.mxu0 0.0
  %1055 = vmatmul.mubr.f32.gmra.mrb[0].mxu0 %v312
  %v1056 = vpop.f32.mrb[0].mxu0
  %v1057 = vadd.f32 %v932, %v1056
  %v1058 = vpop.f32.mrb[0].mxu0
  %1059 = vmatprep.mubr.f32.mxu0 0.0
  %1060 = vmatmul.mubr.f32.gmra.mrb[0].mxu0 %v313
  %v1061 = vpop.f32.mrb[0].mxu0
  %v1062 = vadd.f32 %v937, %v1061
  %v1063 = vpop.f32.mrb[0].mxu0
  %1064 = vmatprep.mubr.f32.mxu0 0.0
  %1065 = vmatmul.mubr.f32.gmra.mrb[0].mxu0 %v314
  %v1066 = vpop.f32.mrb[0].mxu0
  %v1067 = vadd.f32 %v942, %v1066
  %v1068 = vpop.f32.mrb[0].mxu0
  %1069 = vmatprep.mubr.f32.mxu0 0.0
  %1070 = vmatmul.mubr.f32.gmra.mrb[0].mxu0 %v315
  %v1071 = vpop.f32.mrb[0].mxu0
  %v1072 = vadd.f32 %v947, %v1071
  %v1073 = vpop.f32.mrb[0].mxu0
  %1074 = vmatprep.mubr.f32.mxu0 0.0
  %1075 = vmatmul.mubr.f32.gmra.mrb[0].mxu0 %v316
  %v1076 = vpop.f32.mrb[0].mxu0
  %v1077 = vadd.f32 %v952, %v1076
  %v1078 = vpop.f32.mrb[0].mxu0
  %1079 = vmatprep.mubr.f32.mxu0 0.0
  %1080 = vmatmul.mubr.f32.gmra.mrb[0].mxu0 %v317
  %v1081 = vpop.f32.mrb[0].mxu0
  %v1082 = vadd.f32 %v957, %v1081
  %v1083 = vpop.f32.mrb[0].mxu0
  %1084 = vmatprep.mubr.f32.mxu0 0.0
  %1085 = vmatmul.mubr.f32.gmra.mrb[0].mxu0 %v318
  %v1086 = vpop.f32.mrb[0].mxu0
  %v1087 = vadd.f32 %v962, %v1086
  %v1088 = vpop.f32.mrb[0].mxu0
  %1089 = vmatprep.mubr.f32.mxu0 0.0
  %1090 = vmatmul.mubr.f32.gmra.mrb[0].mxu0 %v319
  %v1091 = vpop.f32.mrb[0].mxu0
  %v1092 = vadd.f32 %v967, %v1091
  %v1093 = vpop.f32.mrb[0].mxu0
  %1094 = vmatprep.mubr.f32.mxu0 0.0
  %1095 = vmatmul.mubr.f32.gmra.mrb[0].mxu0 %v320
  %v1096 = vpop.f32.mrb[0].mxu0
  %v1097 = vadd.f32 %v972, %v1096
  %v1098 = vpop.f32.mrb[0].mxu0
  %1099 = vdwg.mxu0
  %v1100 = vxor.u32 %v1042, 2147483648
  %v1101 = vxor.u32 %v1047, 2147483648
  %v1102 = vxor.u32 %v1052, 2147483648
  %v1103 = vxor.u32 %v1057, 2147483648
  %v1104 = vxor.u32 %v1062, 2147483648
  %v1105 = vxor.u32 %v1067, 2147483648
  %v1106 = vxor.u32 %v1072, 2147483648
  %v1107 = vxor.u32 %v1077, 2147483648
  %v1108 = vxor.u32 %v1082, 2147483648
  %v1109 = vxor.u32 %v1087, 2147483648
  %v1110 = vxor.u32 %v1092, 2147483648
  %v1111 = vxor.u32 %v1097, 2147483648
  %v1112 = vmul.f32 %v1100, 1.442695
  %v1113 = vpow.pop %v1112
  %v1114 = vmul.f32 %v1101, 1.442695
  %v1115 = vpow.pop %v1114
  %v1116 = vmul.f32 %v1102, 1.442695
  %v1117 = vpow.pop %v1116
  %v1118 = vmul.f32 %v1103, 1.442695
  %v1119 = vpow.pop %v1118
  %v1120 = vmul.f32 %v1104, 1.442695
  %v1121 = vpow.pop %v1120
  %v1122 = vmul.f32 %v1105, 1.442695
  %v1123 = vpow.pop %v1122
  %v1124 = vmul.f32 %v1106, 1.442695
  %v1125 = vpow.pop %v1124
  %v1126 = vmul.f32 %v1107, 1.442695
  %v1127 = vpow.pop %v1126
  %v1128 = vmul.f32 %v1108, 1.442695
  %v1129 = vpow.pop %v1128
  %v1130 = vmul.f32 %v1109, 1.442695
  %v1131 = vpow.pop %v1130
  %v1132 = vmul.f32 %v1110, 1.442695
  %v1133 = vpow.pop %v1132
  %v1134 = vmul.f32 %v1111, 1.442695
  %v1135 = vpow.pop %v1134
  %v1136 = vadd.f32 %v1113, 1.0
  %v1137 = vadd.f32 %v1115, 1.0
  %v1138 = vadd.f32 %v1117, 1.0
  %v1139 = vadd.f32 %v1119, 1.0
  %v1140 = vadd.f32 %v1121, 1.0
  %v1141 = vadd.f32 %v1123, 1.0
  %v1142 = vadd.f32 %v1125, 1.0
  %v1143 = vadd.f32 %v1127, 1.0
  %v1144 = vadd.f32 %v1129, 1.0
  %v1145 = vadd.f32 %v1131, 1.0
  %v1146 = vadd.f32 %v1133, 1.0
  %v1147 = vadd.f32 %v1135, 1.0
  %v1148 = vrcp.pop %v1136
  %v1149 = vmul.f32 1.0, %v1148
  %v1150 = vrcp.pop %v1137
  %v1151 = vmul.f32 1.0, %v1150
  %v1152 = vrcp.pop %v1138
  %v1153 = vmul.f32 1.0, %v1152
  %v1154 = vrcp.pop %v1139
  %v1155 = vmul.f32 1.0, %v1154
  %v1156 = vrcp.pop %v1140
  %v1157 = vmul.f32 1.0, %v1156
  %v1158 = vrcp.pop %v1141
  %v1159 = vmul.f32 1.0, %v1158
  %v1160 = vrcp.pop %v1142
  %v1161 = vmul.f32 1.0, %v1160
  %v1162 = vrcp.pop %v1143
  %v1163 = vmul.f32 1.0, %v1162
  %v1164 = vrcp.pop %v1144
  %v1165 = vmul.f32 1.0, %v1164
  %v1166 = vrcp.pop %v1145
  %v1167 = vmul.f32 1.0, %v1166
  %v1168 = vrcp.pop %v1146
  %v1169 = vmul.f32 1.0, %v1168
  %v1170 = vrcp.pop %v1147
  %v1171 = vmul.f32 1.0, %v1170
  %v1173 = vlaneseq
  %v1174 = vshrl.u32 %v1173, 7
  %v1175 = vsub.s32 0, %v1174
  %v1176 = vrot.slane %v192, %v1175
  %1178 = vmatprep.subr.mxu0 0.0
  %1179 = vmatpush1.msra.mxu0 %v176
  %1180 = vmatprep.subr.mxu0 0.0
  %1181 = vmatpush1.msra.mxu0 %v177
  %1182 = vmatprep.subr.mxu0 0.0
  %1183 = vmatpush1.msra.mxu0 %v178
  %1184 = vmatprep.subr.mxu0 0.0
  %1185 = vmatpush1.msra.mxu0 %v179
  %1186 = vmatprep.subr.mxu0 0.0
  %1187 = vmatpush1.msra.mxu0 %v180
  %1188 = vmatprep.subr.mxu0 0.0
  %1189 = vmatpush1.msra.mxu0 %v181
  %1190 = vmatprep.subr.mxu0 0.0
  %1191 = vmatpush1.msra.mxu0 %v182
  %1192 = vmatprep.subr.mxu0 0.0
  %1193 = vmatpush1.msra.mxu0 %v183
  %1194 = vmatprep.subr.mxu0 0.0
  %1195 = vmatpush1.msra.mxu0 %v184
  %1196 = vmatprep.subr.mxu0 0.0
  %1197 = vmatpush1.msra.mxu0 %v185
  %1198 = vmatprep.subr.mxu0 0.0
  %1199 = vmatpush1.msra.mxu0 %v186
  %1200 = vmatprep.subr.mxu0 0.0
  %1201 = vmatpush1.msra.mxu0 %v187
  %1202 = vmatprep.subr.mxu0 0.0
  %1203 = vmatpush1.msra.mxu0 %v188
  %1204 = vmatprep.subr.mxu0 0.0
  %1205 = vmatpush1.msra.mxu0 %v189
  %1206 = vmatprep.subr.mxu0 0.0
  %1207 = vmatpush1.msra.mxu0 %v190
  %1208 = vmatprep.subr.mxu0 0.0
  %1209 = vmatpush1.msra.mxu0 %v191
  %1210 = vmatprep.subr.mxu0 0.0
  %1211 = vmatpush1.msra.mxu0 0.0
  %1212 = vmatprep.subr.mxu0 0.0
  %1213 = vmatpush1.msra.mxu0 0.0
  %1214 = vmatprep.subr.mxu0 0.0
  %1215 = vmatpush1.msra.mxu0 0.0
  %1216 = vmatprep.subr.mxu0 0.0
  %1217 = vmatpush1.msra.mxu0 0.0
  %1218 = vmatprep.subr.mxu0 0.0
  %1219 = vmatpush1.msra.mxu0 0.0
  %1220 = vmatprep.subr.mxu0 0.0
  %1221 = vmatpush1.msra.mxu0 0.0
  %1222 = vmatprep.subr.mxu0 0.0
  %1223 = vmatpush1.msra.mxu0 0.0
  %1224 = vmatprep.subr.mxu0 0.0
  %1225 = vmatpush1.msra.mxu0 0.0
  %1226 = vmatprep.subr.mxu0 0.0
  %1227 = vmatpush1.msra.mxu0 0.0
  %1228 = vmatprep.subr.mxu0 0.0
  %1229 = vmatpush1.msra.mxu0 0.0
  %1230 = vmatprep.subr.mxu0 0.0
  %1231 = vmatpush1.msra.mxu0 0.0
  %1232 = vmatprep.subr.mxu0 0.0
  %1233 = vmatpush1.msra.mxu0 0.0
  %1234 = vmatprep.subr.mxu0 0.0
  %1235 = vmatpush1.msra.mxu0 0.0
  %1236 = vmatprep.subr.mxu0 0.0
  %1237 = vmatpush1.msra.mxu0 0.0
  %1238 = vmatprep.subr.mxu0 0.0
  %1239 = vmatpush1.msra.mxu0 0.0
  %1240 = vmatprep.subr.mxu0 0.0
  %1241 = vmatpush1.msra.mxu0 0.0
  %1242 = vmatprep.mubr.f32.mxu0 0.0
  %1243 = vmatmul.mubr.f32.gmra.mrb[0].mxu0 %v625
  %v1244 = vpop.f32.mrb[0].mxu0
  %v1245 = vadd.f32 %v1176, %v1244
  %v1246 = vpop.f32.mrb[0].mxu0
  %1247 = vmatprep.mubr.f32.mxu0 0.0
  %1248 = vmatmul.mubr.f32.gmra.mrb[0].mxu0 %v630
  %v1249 = vpop.f32.mrb[0].mxu0
  %v1250 = vadd.f32 %v1176, %v1249
  %v1251 = vpop.f32.mrb[0].mxu0
  %1252 = vmatprep.mubr.f32.mxu0 0.0
  %1253 = vmatmul.mubr.f32.gmra.mrb[0].mxu0 %v635
  %v1254 = vpop.f32.mrb[0].mxu0
  %v1255 = vadd.f32 %v1176, %v1254
  %v1256 = vpop.f32.mrb[0].mxu0
  %1257 = vmatprep.mubr.f32.mxu0 0.0
  %1258 = vmatmul.mubr.f32.gmra.mrb[0].mxu0 %v640
  %v1259 = vpop.f32.mrb[0].mxu0
  %v1260 = vadd.f32 %v1176, %v1259
  %v1261 = vpop.f32.mrb[0].mxu0
  %1262 = vmatprep.mubr.f32.mxu0 0.0
  %1263 = vmatmul.mubr.f32.gmra.mrb[0].mxu0 %v645
  %v1264 = vpop.f32.mrb[0].mxu0
  %v1265 = vadd.f32 %v1176, %v1264
  %v1266 = vpop.f32.mrb[0].mxu0
  %1267 = vmatprep.mubr.f32.mxu0 0.0
  %1268 = vmatmul.mubr.f32.gmra.mrb[0].mxu0 %v650
  %v1269 = vpop.f32.mrb[0].mxu0
  %v1270 = vadd.f32 %v1176, %v1269
  %v1271 = vpop.f32.mrb[0].mxu0
  %1272 = vmatprep.mubr.f32.mxu0 0.0
  %1273 = vmatmul.mubr.f32.gmra.mrb[0].mxu0 %v655
  %v1274 = vpop.f32.mrb[0].mxu0
  %v1275 = vadd.f32 %v1176, %v1274
  %v1276 = vpop.f32.mrb[0].mxu0
  %1277 = vmatprep.mubr.f32.mxu0 0.0
  %1278 = vmatmul.mubr.f32.gmra.mrb[0].mxu0 %v660
  %v1279 = vpop.f32.mrb[0].mxu0
  %v1280 = vadd.f32 %v1176, %v1279
  %v1281 = vpop.f32.mrb[0].mxu0
  %1282 = vmatprep.mubr.f32.mxu0 0.0
  %1283 = vmatmul.mubr.f32.gmra.mrb[0].mxu0 %v665
  %v1284 = vpop.f32.mrb[0].mxu0
  %v1285 = vadd.f32 %v1176, %v1284
  %v1286 = vpop.f32.mrb[0].mxu0
  %1287 = vmatprep.mubr.f32.mxu0 0.0
  %1288 = vmatmul.mubr.f32.gmra.mrb[0].mxu0 %v670
  %v1289 = vpop.f32.mrb[0].mxu0
  %v1290 = vadd.f32 %v1176, %v1289
  %v1291 = vpop.f32.mrb[0].mxu0
  %1292 = vmatprep.mubr.f32.mxu0 0.0
  %1293 = vmatmul.mubr.f32.gmra.mrb[0].mxu0 %v675
  %v1294 = vpop.f32.mrb[0].mxu0
  %v1295 = vadd.f32 %v1176, %v1294
  %v1296 = vpop.f32.mrb[0].mxu0
  %1297 = vmatprep.mubr.f32.mxu0 0.0
  %1298 = vmatmul.mubr.f32.gmra.mrb[0].mxu0 %v680
  %v1299 = vpop.f32.mrb[0].mxu0
  %v1300 = vadd.f32 %v1176, %v1299
  %v1301 = vpop.f32.mrb[0].mxu0
  %1302 = vdwg.mxu0
  %v1303 = vmul.f32 %v1149, %v1245
  %v1304 = vmul.f32 %v1151, %v1250
  %v1305 = vmul.f32 %v1153, %v1255
  %v1306 = vmul.f32 %v1155, %v1260
  %v1307 = vmul.f32 %v1157, %v1265
  %v1308 = vmul.f32 %v1159, %v1270
  %v1309 = vmul.f32 %v1161, %v1275
  %v1310 = vmul.f32 %v1163, %v1280
  %v1311 = vmul.f32 %v1165, %v1285
  %v1312 = vmul.f32 %v1167, %v1290
  %v1313 = vmul.f32 %v1169, %v1295
  %v1314 = vmul.f32 %v1171, %v1300
  %vm1315 = vcmask 785408
  %v1317 = vsel %vm1315, %v515, 0
  %v1320 = vsel %vm1315, %v516, 0
  %v1323 = vsel %vm1315, %v517, 0
  %v1326 = vsel %vm1315, %v518, 0
  %v1329 = vsel %vm1315, %v519, 0
  %v1332 = vsel %vm1315, %v520, 0
  %1334 = vmatprep.subr.mxu0 %v1149
  %1335 = vmatpush1.msra.mxu0 %v1303
  %1336 = vmatprep.subr.mxu0 %v1151
  %1337 = vmatpush1.msra.mxu0 %v1304
  %1338 = vmatprep.subr.mxu0 %v1153
  %1339 = vmatpush1.msra.mxu0 %v1305
  %1340 = vmatprep.subr.mxu0 %v1155
  %1341 = vmatpush1.msra.mxu0 %v1306
  %1342 = vmatprep.subr.mxu0 %v1157
  %1343 = vmatpush1.msra.mxu0 %v1307
  %1344 = vmatprep.subr.mxu0 %v1159
  %1345 = vmatpush1.msra.mxu0 %v1308
  %1346 = vmatprep.subr.mxu0 %v1161
  %1347 = vmatpush1.msra.mxu0 %v1309
  %1348 = vmatprep.subr.mxu0 %v1163
  %1349 = vmatpush1.msra.mxu0 %v1310
  %1350 = vmatprep.subr.mxu0 %v1165
  %1351 = vmatpush1.msra.mxu0 %v1311
  %1352 = vmatprep.subr.mxu0 %v1167
  %1353 = vmatpush1.msra.mxu0 %v1312
  %1354 = vmatprep.subr.mxu0 %v1169
  %1355 = vmatpush1.msra.mxu0 %v1313
  %1356 = vmatprep.subr.mxu0 %v1171
  %1357 = vmatpush1.msra.mxu0 %v1314
  %1358 = vmatprep.subr.mxu0 0.0
  %1359 = vmatpush1.msra.mxu0 0.0
  %1360 = vmatprep.subr.mxu0 0.0
  %1361 = vmatpush1.msra.mxu0 0.0
  %1362 = vmatprep.subr.mxu0 0.0
  %1363 = vmatpush1.msra.mxu0 0.0
  %1364 = vmatprep.subr.mxu0 0.0
  %1365 = vmatpush1.msra.mxu0 0.0
  %1366 = vmatprep.subr.mxu0 0.0
  %1367 = vmatpush1.msra.mxu0 0.0
  %1368 = vmatprep.subr.mxu0 0.0
  %1369 = vmatpush1.msra.mxu0 0.0
  %1370 = vmatprep.subr.mxu0 0.0
  %1371 = vmatpush1.msra.mxu0 0.0
  %1372 = vmatprep.subr.mxu0 0.0
  %1373 = vmatpush1.msra.mxu0 0.0
  %1374 = vmatprep.subr.mxu0 0.0
  %1375 = vmatpush1.msra.mxu0 0.0
  %1376 = vmatprep.subr.mxu0 0.0
  %1377 = vmatpush1.msra.mxu0 0.0
  %1378 = vmatprep.subr.mxu0 0.0
  %1379 = vmatpush1.msra.mxu0 0.0
  %1380 = vmatprep.subr.mxu0 0.0
  %1381 = vmatpush1.msra.mxu0 0.0
  %1382 = vmatprep.subr.mxu0 0.0
  %1383 = vmatpush1.msra.mxu0 0.0
  %1384 = vmatprep.subr.mxu0 0.0
  %1385 = vmatpush1.msra.mxu0 0.0
  %1386 = vmatprep.subr.mxu0 0.0
  %1387 = vmatpush1.msra.mxu0 0.0
  %1388 = vmatprep.subr.mxu0 0.0
  %1389 = vmatpush1.msra.mxu0 0.0
  %1390 = vmatprep.subr.mxu0 0.0
  %1391 = vmatpush1.msra.mxu0 0.0
  %1392 = vmatprep.subr.mxu0 0.0
  %1393 = vmatpush1.msra.mxu0 0.0
  %1394 = vmatprep.subr.mxu0 0.0
  %1395 = vmatpush1.msra.mxu0 0.0
  %1396 = vmatprep.subr.mxu0 0.0
  %1397 = vmatpush1.msra.mxu0 0.0
  %1398 = vmatprep.mubr.f32.mxu0 0.0
  %1399 = vmatmul.mubr.f32.gmra.mrb[0].mxu0 %v1317
  %v1400 = vpop.f32.mrb[0].mxu0
  %v1401 = vadd.f32 0.0, %v1400
  %v1402 = vpop.f32.mrb[0].mxu0
  %v1403 = vadd.f32 0.0, %v1402
  %1404 = vmatprep.mubr.f32.mxu0 0.0
  %1405 = vmatmul.mubr.f32.gmra.mrb[0].mxu0 %v1320
  %v1406 = vpop.f32.mrb[0].mxu0
  %v1407 = vadd.f32 0.0, %v1406
  %v1408 = vpop.f32.mrb[0].mxu0
  %v1409 = vadd.f32 0.0, %v1408
  %1410 = vmatprep.mubr.f32.mxu0 0.0
  %1411 = vmatmul.mubr.f32.gmra.mrb[0].mxu0 %v1323
  %v1412 = vpop.f32.mrb[0].mxu0
  %v1413 = vadd.f32 0.0, %v1412
  %v1414 = vpop.f32.mrb[0].mxu0
  %v1415 = vadd.f32 0.0, %v1414
  %1416 = vmatprep.mubr.f32.mxu0 0.0
  %1417 = vmatmul.mubr.f32.gmra.mrb[0].mxu0 %v1326
  %v1418 = vpop.f32.mrb[0].mxu0
  %v1419 = vadd.f32 0.0, %v1418
  %v1420 = vpop.f32.mrb[0].mxu0
  %v1421 = vadd.f32 0.0, %v1420
  %1422 = vmatprep.mubr.f32.mxu0 0.0
  %1423 = vmatmul.mubr.f32.gmra.mrb[0].mxu0 %v1329
  %v1424 = vpop.f32.mrb[0].mxu0
  %v1425 = vadd.f32 0.0, %v1424
  %v1426 = vpop.f32.mrb[0].mxu0
  %v1427 = vadd.f32 0.0, %v1426
  %1428 = vmatprep.mubr.f32.mxu0 0.0
  %1429 = vmatmul.mubr.f32.gmra.mrb[0].mxu0 %v1332
  %v1430 = vpop.f32.mrb[0].mxu0
  %v1431 = vadd.f32 0.0, %v1430
  %v1432 = vpop.f32.mrb[0].mxu0
  %v1433 = vadd.f32 0.0, %v1432
  %1434 = vdwg.mxu0
  %v1435 = vadd.f32 %v1403, 1e-06
  %v1436 = vadd.f32 %v1409, 1e-06
  %v1437 = vadd.f32 %v1415, 1e-06
  %v1438 = vadd.f32 %v1421, 1e-06
  %v1439 = vadd.f32 %v1427, 1e-06
  %v1440 = vadd.f32 %v1433, 1e-06
  %v1441 = vrcp.pop %v1435
  %v1442 = vrcp.pop %v1436
  %v1443 = vrcp.pop %v1437
  %v1444 = vrcp.pop %v1438
  %v1445 = vrcp.pop %v1439
  %v1446 = vrcp.pop %v1440
  %v1447 = vmul.f32 %v1401, %v1441
  %v1448 = vmul.f32 %v1407, %v1442
  %v1449 = vmul.f32 %v1413, %v1443
  %v1450 = vmul.f32 %v1419, %v1444
  %v1451 = vmul.f32 %v1425, %v1445
  %v1452 = vmul.f32 %v1431, %v1446
  %v1454 = vlaneseq
  %v1455 = vshrl.u32 %v1454, 7
  %v1456 = vsub.s32 0, %v1455
  %v1457 = vrot.slane %v209, %v1456
  %1459 = vmatprep.subr.mxu0 0.0
  %1460 = vmatpush1.msra.mxu0 %v193
  %1461 = vmatprep.subr.mxu0 0.0
  %1462 = vmatpush1.msra.mxu0 %v194
  %1463 = vmatprep.subr.mxu0 0.0
  %1464 = vmatpush1.msra.mxu0 %v195
  %1465 = vmatprep.subr.mxu0 0.0
  %1466 = vmatpush1.msra.mxu0 %v196
  %1467 = vmatprep.subr.mxu0 0.0
  %1468 = vmatpush1.msra.mxu0 %v197
  %1469 = vmatprep.subr.mxu0 0.0
  %1470 = vmatpush1.msra.mxu0 %v198
  %1471 = vmatprep.subr.mxu0 0.0
  %1472 = vmatpush1.msra.mxu0 %v199
  %1473 = vmatprep.subr.mxu0 0.0
  %1474 = vmatpush1.msra.mxu0 %v200
  %1475 = vmatprep.subr.mxu0 0.0
  %1476 = vmatpush1.msra.mxu0 %v201
  %1477 = vmatprep.subr.mxu0 0.0
  %1478 = vmatpush1.msra.mxu0 %v202
  %1479 = vmatprep.subr.mxu0 0.0
  %1480 = vmatpush1.msra.mxu0 %v203
  %1481 = vmatprep.subr.mxu0 0.0
  %1482 = vmatpush1.msra.mxu0 %v204
  %1483 = vmatprep.subr.mxu0 0.0
  %1484 = vmatpush1.msra.mxu0 %v205
  %1485 = vmatprep.subr.mxu0 0.0
  %1486 = vmatpush1.msra.mxu0 %v206
  %1487 = vmatprep.subr.mxu0 0.0
  %1488 = vmatpush1.msra.mxu0 %v207
  %1489 = vmatprep.subr.mxu0 0.0
  %1490 = vmatpush1.msra.mxu0 %v208
  %1491 = vmatprep.subr.mxu0 0.0
  %1492 = vmatpush1.msra.mxu0 0.0
  %1493 = vmatprep.subr.mxu0 0.0
  %1494 = vmatpush1.msra.mxu0 0.0
  %1495 = vmatprep.subr.mxu0 0.0
  %1496 = vmatpush1.msra.mxu0 0.0
  %1497 = vmatprep.subr.mxu0 0.0
  %1498 = vmatpush1.msra.mxu0 0.0
  %1499 = vmatprep.subr.mxu0 0.0
  %1500 = vmatpush1.msra.mxu0 0.0
  %1501 = vmatprep.subr.mxu0 0.0
  %1502 = vmatpush1.msra.mxu0 0.0
  %1503 = vmatprep.subr.mxu0 0.0
  %1504 = vmatpush1.msra.mxu0 0.0
  %1505 = vmatprep.subr.mxu0 0.0
  %1506 = vmatpush1.msra.mxu0 0.0
  %1507 = vmatprep.subr.mxu0 0.0
  %1508 = vmatpush1.msra.mxu0 0.0
  %1509 = vmatprep.subr.mxu0 0.0
  %1510 = vmatpush1.msra.mxu0 0.0
  %1511 = vmatprep.subr.mxu0 0.0
  %1512 = vmatpush1.msra.mxu0 0.0
  %1513 = vmatprep.subr.mxu0 0.0
  %1514 = vmatpush1.msra.mxu0 0.0
  %1515 = vmatprep.subr.mxu0 0.0
  %1516 = vmatpush1.msra.mxu0 0.0
  %1517 = vmatprep.subr.mxu0 0.0
  %1518 = vmatpush1.msra.mxu0 0.0
  %1519 = vmatprep.subr.mxu0 0.0
  %1520 = vmatpush1.msra.mxu0 0.0
  %1521 = vmatprep.subr.mxu0 0.0
  %1522 = vmatpush1.msra.mxu0 0.0
  %1523 = vmatprep.mubr.f32.mxu0 0.0
  %1524 = vmatmul.mubr.f32.gmra.mrb[0].mxu0 %v303
  %v1525 = vpop.f32.mrb[0].mxu0
  %v1526 = vadd.f32 %v1457, %v1525
  %v1527 = vpop.f32.mrb[0].mxu0
  %1528 = vmatprep.mubr.f32.mxu0 0.0
  %1529 = vmatmul.mubr.f32.gmra.mrb[0].mxu0 %v304
  %v1530 = vpop.f32.mrb[0].mxu0
  %v1531 = vadd.f32 %v1457, %v1530
  %v1532 = vpop.f32.mrb[0].mxu0
  %1533 = vmatprep.mubr.f32.mxu0 0.0
  %1534 = vmatmul.mubr.f32.gmra.mrb[0].mxu0 %v305
  %v1535 = vpop.f32.mrb[0].mxu0
  %v1536 = vadd.f32 %v1457, %v1535
  %v1537 = vpop.f32.mrb[0].mxu0
  %1538 = vmatprep.mubr.f32.mxu0 0.0
  %1539 = vmatmul.mubr.f32.gmra.mrb[0].mxu0 %v306
  %v1540 = vpop.f32.mrb[0].mxu0
  %v1541 = vadd.f32 %v1457, %v1540
  %v1542 = vpop.f32.mrb[0].mxu0
  %1543 = vmatprep.mubr.f32.mxu0 0.0
  %1544 = vmatmul.mubr.f32.gmra.mrb[0].mxu0 %v307
  %v1545 = vpop.f32.mrb[0].mxu0
  %v1546 = vadd.f32 %v1457, %v1545
  %v1547 = vpop.f32.mrb[0].mxu0
  %1548 = vmatprep.mubr.f32.mxu0 0.0
  %1549 = vmatmul.mubr.f32.gmra.mrb[0].mxu0 %v308
  %v1550 = vpop.f32.mrb[0].mxu0
  %v1551 = vadd.f32 %v1457, %v1550
  %v1552 = vpop.f32.mrb[0].mxu0
  %1553 = vdwg.mxu0
  %v1554 = vadd.f32 %v1526, %v1447
  %v1555 = vadd.f32 %v1531, %v1448
  %v1556 = vadd.f32 %v1536, %v1449
  %v1557 = vadd.f32 %v1541, %v1450
  %v1558 = vadd.f32 %v1546, %v1451
  %v1559 = vadd.f32 %v1551, %v1452
  %1560 = vadd.xlane.f32.xlu0 %v1554
  %v1561 = vpop.xlane.xlu0 %1560
  %1562 = vadd.xlane.f32.xlu0 %v1555
  %v1563 = vpop.xlane.xlu0 %1562
  %1564 = vadd.xlane.f32.xlu0 %v1556
  %v1565 = vpop.xlane.xlu0 %1564
  %1566 = vadd.xlane.f32.xlu0 %v1557
  %v1567 = vpop.xlane.xlu0 %1566
  %1568 = vadd.xlane.f32.xlu0 %v1558
  %v1569 = vpop.xlane.xlu0 %1568
  %1570 = vadd.xlane.f32.xlu0 %v1559
  %v1571 = vpop.xlane.xlu0 %1570
  %v1572 = vrcp.pop 128.0
  %v1573 = vmul.f32 %v1561, %v1572
  %v1574 = vmul.f32 %v1563, %v1572
  %v1575 = vmul.f32 %v1565, %v1572
  %v1576 = vmul.f32 %v1567, %v1572
  %v1577 = vmul.f32 %v1569, %v1572
  %v1578 = vmul.f32 %v1571, %v1572
  %v1579 = vsub.f32 %v1554, %v1573
  %v1580 = vsub.f32 %v1555, %v1574
  %v1581 = vsub.f32 %v1556, %v1575
  %v1582 = vsub.f32 %v1557, %v1576
  %v1583 = vsub.f32 %v1558, %v1577
  %v1584 = vsub.f32 %v1559, %v1578
  %v1585 = vmul.f32 %v1579, %v1579
  %v1586 = vmul.f32 %v1580, %v1580
  %v1587 = vmul.f32 %v1581, %v1581
  %v1588 = vmul.f32 %v1582, %v1582
  %v1589 = vmul.f32 %v1583, %v1583
  %v1590 = vmul.f32 %v1584, %v1584
  %1591 = vadd.xlane.f32.xlu0 %v1585
  %v1592 = vpop.xlane.xlu0 %1591
  %1593 = vadd.xlane.f32.xlu0 %v1586
  %v1594 = vpop.xlane.xlu0 %1593
  %1595 = vadd.xlane.f32.xlu0 %v1587
  %v1596 = vpop.xlane.xlu0 %1595
  %1597 = vadd.xlane.f32.xlu0 %v1588
  %v1598 = vpop.xlane.xlu0 %1597
  %1599 = vadd.xlane.f32.xlu0 %v1589
  %v1600 = vpop.xlane.xlu0 %1599
  %1601 = vadd.xlane.f32.xlu0 %v1590
  %v1602 = vpop.xlane.xlu0 %1601
  %v1603 = vmul.f32 %v1592, %v1572
  %v1604 = vmul.f32 %v1594, %v1572
  %v1605 = vmul.f32 %v1596, %v1572
  %v1606 = vmul.f32 %v1598, %v1572
  %v1607 = vmul.f32 %v1600, %v1572
  %v1608 = vmul.f32 %v1602, %v1572
  %v1609 = vadd.f32 %v1603, 1e-05
  %v1610 = vadd.f32 %v1604, 1e-05
  %v1611 = vadd.f32 %v1605, 1e-05
  %v1612 = vadd.f32 %v1606, 1e-05
  %v1613 = vadd.f32 %v1607, 1e-05
  %v1614 = vadd.f32 %v1608, 1e-05
  %v1615 = vrsqrt.pop %v1609
  %v1616 = vrsqrt.pop %v1610
  %v1617 = vrsqrt.pop %v1611
  %v1618 = vrsqrt.pop %v1612
  %v1619 = vrsqrt.pop %v1613
  %v1620 = vrsqrt.pop %v1614
  %v1621 = vmul.f32 %v1579, %v1615
  %v1622 = vmul.f32 %v1580, %v1616
  %v1623 = vmul.f32 %v1581, %v1617
  %v1624 = vmul.f32 %v1582, %v1618
  %v1625 = vmul.f32 %v1583, %v1619
  %v1626 = vmul.f32 %v1584, %v1620
  %v1628 = vlaneseq
  %v1629 = vshrl.u32 %v1628, 7
  %v1630 = vsub.s32 0, %v1629
  %v1631 = vrot.slane %v210, %v1630
  %v1633 = vmul.f32 %v1621, %v1631
  %v1634 = vmul.f32 %v1622, %v1631
  %v1635 = vmul.f32 %v1623, %v1631
  %v1636 = vmul.f32 %v1624, %v1631
  %v1637 = vmul.f32 %v1625, %v1631
  %v1638 = vmul.f32 %v1626, %v1631
  %v1640 = vlaneseq
  %v1641 = vshrl.u32 %v1640, 7
  %v1642 = vsub.s32 0, %v1641
  %v1643 = vrot.slane %v211, %v1642
  %v1645 = vadd.f32 %v1633, %v1643
  %v1646 = vadd.f32 %v1634, %v1643
  %v1647 = vadd.f32 %v1635, %v1643
  %v1648 = vadd.f32 %v1636, %v1643
  %v1649 = vadd.f32 %v1637, %v1643
  %v1650 = vadd.f32 %v1638, %v1643
  %v1651 = vxor.u32 %v1645, 2147483648
  %v1652 = vxor.u32 %v1646, 2147483648
  %v1653 = vxor.u32 %v1647, 2147483648
  %v1654 = vxor.u32 %v1648, 2147483648
  %v1655 = vxor.u32 %v1649, 2147483648
  %v1656 = vxor.u32 %v1650, 2147483648
  %v1657 = vmul.f32 %v1651, 1.442695
  %v1658 = vpow.pop %v1657
  %v1659 = vmul.f32 %v1652, 1.442695
  %v1660 = vpow.pop %v1659
  %v1661 = vmul.f32 %v1653, 1.442695
  %v1662 = vpow.pop %v1661
  %v1663 = vmul.f32 %v1654, 1.442695
  %v1664 = vpow.pop %v1663
  %v1665 = vmul.f32 %v1655, 1.442695
  %v1666 = vpow.pop %v1665
  %v1667 = vmul.f32 %v1656, 1.442695
  %v1668 = vpow.pop %v1667
  %v1669 = vadd.f32 %v1658, 1.0
  %v1670 = vadd.f32 %v1660, 1.0
  %v1671 = vadd.f32 %v1662, 1.0
  %v1672 = vadd.f32 %v1664, 1.0
  %v1673 = vadd.f32 %v1666, 1.0
  %v1674 = vadd.f32 %v1668, 1.0
  %v1675 = vrcp.pop %v1669
  %v1676 = vmul.f32 1.0, %v1675
  %v1677 = vrcp.pop %v1670
  %v1678 = vmul.f32 1.0, %v1677
  %v1679 = vrcp.pop %v1671
  %v1680 = vmul.f32 1.0, %v1679
  %v1681 = vrcp.pop %v1672
  %v1682 = vmul.f32 1.0, %v1681
  %v1683 = vrcp.pop %v1673
  %v1684 = vmul.f32 1.0, %v1683
  %v1685 = vrcp.pop %v1674
  %v1686 = vmul.f32 1.0, %v1685
  %v1687 = vmul.f32 %v1645, %v1676
  %v1688 = vmul.f32 %v1646, %v1678
  %v1689 = vmul.f32 %v1647, %v1680
  %v1690 = vmul.f32 %v1648, %v1682
  %v1691 = vmul.f32 %v1649, %v1684
  %v1692 = vmul.f32 %v1650, %v1686
  %v1693 = vadd.f32 %v303, %v1687
  %v1694 = vadd.f32 %v304, %v1688
  %v1695 = vadd.f32 %v305, %v1689
  %v1696 = vadd.f32 %v306, %v1690
  %v1697 = vadd.f32 %v307, %v1691
  %v1698 = vadd.f32 %v308, %v1692
  %1699 = vadd.xlane.f32.xlu0 %v1042
  %v1700 = vpop.xlane.xlu0 %1699
  %1701 = vadd.xlane.f32.xlu0 %v1047
  %v1702 = vpop.xlane.xlu0 %1701
  %1703 = vadd.xlane.f32.xlu0 %v1052
  %v1704 = vpop.xlane.xlu0 %1703
  %1705 = vadd.xlane.f32.xlu0 %v1057
  %v1706 = vpop.xlane.xlu0 %1705
  %1707 = vadd.xlane.f32.xlu0 %v1062
  %v1708 = vpop.xlane.xlu0 %1707
  %1709 = vadd.xlane.f32.xlu0 %v1067
  %v1710 = vpop.xlane.xlu0 %1709
  %1711 = vadd.xlane.f32.xlu0 %v1072
  %v1712 = vpop.xlane.xlu0 %1711
  %1713 = vadd.xlane.f32.xlu0 %v1077
  %v1714 = vpop.xlane.xlu0 %1713
  %1715 = vadd.xlane.f32.xlu0 %v1082
  %v1716 = vpop.xlane.xlu0 %1715
  %1717 = vadd.xlane.f32.xlu0 %v1087
  %v1718 = vpop.xlane.xlu0 %1717
  %1719 = vadd.xlane.f32.xlu0 %v1092
  %v1720 = vpop.xlane.xlu0 %1719
  %1721 = vadd.xlane.f32.xlu0 %v1097
  %v1722 = vpop.xlane.xlu0 %1721
  %v1723 = vmul.f32 %v1700, %v1572
  %v1724 = vmul.f32 %v1702, %v1572
  %v1725 = vmul.f32 %v1704, %v1572
  %v1726 = vmul.f32 %v1706, %v1572
  %v1727 = vmul.f32 %v1708, %v1572
  %v1728 = vmul.f32 %v1710, %v1572
  %v1729 = vmul.f32 %v1712, %v1572
  %v1730 = vmul.f32 %v1714, %v1572
  %v1731 = vmul.f32 %v1716, %v1572
  %v1732 = vmul.f32 %v1718, %v1572
  %v1733 = vmul.f32 %v1720, %v1572
  %v1734 = vmul.f32 %v1722, %v1572
  %v1735 = vsub.f32 %v1042, %v1723
  %v1736 = vsub.f32 %v1047, %v1724
  %v1737 = vsub.f32 %v1052, %v1725
  %v1738 = vsub.f32 %v1057, %v1726
  %v1739 = vsub.f32 %v1062, %v1727
  %v1740 = vsub.f32 %v1067, %v1728
  %v1741 = vsub.f32 %v1072, %v1729
  %v1742 = vsub.f32 %v1077, %v1730
  %v1743 = vsub.f32 %v1082, %v1731
  %v1744 = vsub.f32 %v1087, %v1732
  %v1745 = vsub.f32 %v1092, %v1733
  %v1746 = vsub.f32 %v1097, %v1734
  %v1747 = vmul.f32 %v1735, %v1735
  %v1748 = vmul.f32 %v1736, %v1736
  %v1749 = vmul.f32 %v1737, %v1737
  %v1750 = vmul.f32 %v1738, %v1738
  %v1751 = vmul.f32 %v1739, %v1739
  %v1752 = vmul.f32 %v1740, %v1740
  %v1753 = vmul.f32 %v1741, %v1741
  %v1754 = vmul.f32 %v1742, %v1742
  %v1755 = vmul.f32 %v1743, %v1743
  %v1756 = vmul.f32 %v1744, %v1744
  %v1757 = vmul.f32 %v1745, %v1745
  %v1758 = vmul.f32 %v1746, %v1746
  %1759 = vadd.xlane.f32.xlu0 %v1747
  %v1760 = vpop.xlane.xlu0 %1759
  %1761 = vadd.xlane.f32.xlu0 %v1748
  %v1762 = vpop.xlane.xlu0 %1761
  %1763 = vadd.xlane.f32.xlu0 %v1749
  %v1764 = vpop.xlane.xlu0 %1763
  %1765 = vadd.xlane.f32.xlu0 %v1750
  %v1766 = vpop.xlane.xlu0 %1765
  %1767 = vadd.xlane.f32.xlu0 %v1751
  %v1768 = vpop.xlane.xlu0 %1767
  %1769 = vadd.xlane.f32.xlu0 %v1752
  %v1770 = vpop.xlane.xlu0 %1769
  %1771 = vadd.xlane.f32.xlu0 %v1753
  %v1772 = vpop.xlane.xlu0 %1771
  %1773 = vadd.xlane.f32.xlu0 %v1754
  %v1774 = vpop.xlane.xlu0 %1773
  %1775 = vadd.xlane.f32.xlu0 %v1755
  %v1776 = vpop.xlane.xlu0 %1775
  %1777 = vadd.xlane.f32.xlu0 %v1756
  %v1778 = vpop.xlane.xlu0 %1777
  %1779 = vadd.xlane.f32.xlu0 %v1757
  %v1780 = vpop.xlane.xlu0 %1779
  %1781 = vadd.xlane.f32.xlu0 %v1758
  %v1782 = vpop.xlane.xlu0 %1781
  %v1783 = vmul.f32 %v1760, %v1572
  %v1784 = vmul.f32 %v1762, %v1572
  %v1785 = vmul.f32 %v1764, %v1572
  %v1786 = vmul.f32 %v1766, %v1572
  %v1787 = vmul.f32 %v1768, %v1572
  %v1788 = vmul.f32 %v1770, %v1572
  %v1789 = vmul.f32 %v1772, %v1572
  %v1790 = vmul.f32 %v1774, %v1572
  %v1791 = vmul.f32 %v1776, %v1572
  %v1792 = vmul.f32 %v1778, %v1572
  %v1793 = vmul.f32 %v1780, %v1572
  %v1794 = vmul.f32 %v1782, %v1572
  %v1795 = vadd.f32 %v1783, 1e-05
  %v1796 = vadd.f32 %v1784, 1e-05
  %v1797 = vadd.f32 %v1785, 1e-05
  %v1798 = vadd.f32 %v1786, 1e-05
  %v1799 = vadd.f32 %v1787, 1e-05
  %v1800 = vadd.f32 %v1788, 1e-05
  %v1801 = vadd.f32 %v1789, 1e-05
  %v1802 = vadd.f32 %v1790, 1e-05
  %v1803 = vadd.f32 %v1791, 1e-05
  %v1804 = vadd.f32 %v1792, 1e-05
  %v1805 = vadd.f32 %v1793, 1e-05
  %v1806 = vadd.f32 %v1794, 1e-05
  %v1807 = vrsqrt.pop %v1795
  %v1808 = vrsqrt.pop %v1796
  %v1809 = vrsqrt.pop %v1797
  %v1810 = vrsqrt.pop %v1798
  %v1811 = vrsqrt.pop %v1799
  %v1812 = vrsqrt.pop %v1800
  %v1813 = vrsqrt.pop %v1801
  %v1814 = vrsqrt.pop %v1802
  %v1815 = vrsqrt.pop %v1803
  %v1816 = vrsqrt.pop %v1804
  %v1817 = vrsqrt.pop %v1805
  %v1818 = vrsqrt.pop %v1806
  %v1819 = vmul.f32 %v1735, %v1807
  %v1820 = vmul.f32 %v1736, %v1808
  %v1821 = vmul.f32 %v1737, %v1809
  %v1822 = vmul.f32 %v1738, %v1810
  %v1823 = vmul.f32 %v1739, %v1811
  %v1824 = vmul.f32 %v1740, %v1812
  %v1825 = vmul.f32 %v1741, %v1813
  %v1826 = vmul.f32 %v1742, %v1814
  %v1827 = vmul.f32 %v1743, %v1815
  %v1828 = vmul.f32 %v1744, %v1816
  %v1829 = vmul.f32 %v1745, %v1817
  %v1830 = vmul.f32 %v1746, %v1818
  %v1832 = vlaneseq
  %v1833 = vshrl.u32 %v1832, 7
  %v1834 = vsub.s32 0, %v1833
  %v1835 = vrot.slane %v212, %v1834
  %v1837 = vmul.f32 %v1819, %v1835
  %v1838 = vmul.f32 %v1820, %v1835
  %v1839 = vmul.f32 %v1821, %v1835
  %v1840 = vmul.f32 %v1822, %v1835
  %v1841 = vmul.f32 %v1823, %v1835
  %v1842 = vmul.f32 %v1824, %v1835
  %v1843 = vmul.f32 %v1825, %v1835
  %v1844 = vmul.f32 %v1826, %v1835
  %v1845 = vmul.f32 %v1827, %v1835
  %v1846 = vmul.f32 %v1828, %v1835
  %v1847 = vmul.f32 %v1829, %v1835
  %v1848 = vmul.f32 %v1830, %v1835
  %v1850 = vlaneseq
  %v1851 = vshrl.u32 %v1850, 7
  %v1852 = vsub.s32 0, %v1851
  %v1853 = vrot.slane %v213, %v1852
  %v1855 = vadd.f32 %v1837, %v1853
  %v1856 = vadd.f32 %v1838, %v1853
  %v1857 = vadd.f32 %v1839, %v1853
  %v1858 = vadd.f32 %v1840, %v1853
  %v1859 = vadd.f32 %v1841, %v1853
  %v1860 = vadd.f32 %v1842, %v1853
  %v1861 = vadd.f32 %v1843, %v1853
  %v1862 = vadd.f32 %v1844, %v1853
  %v1863 = vadd.f32 %v1845, %v1853
  %v1864 = vadd.f32 %v1846, %v1853
  %v1865 = vadd.f32 %v1847, %v1853
  %v1866 = vadd.f32 %v1848, %v1853
  %v1867 = vxor.u32 %v1855, 2147483648
  %v1868 = vxor.u32 %v1856, 2147483648
  %v1869 = vxor.u32 %v1857, 2147483648
  %v1870 = vxor.u32 %v1858, 2147483648
  %v1871 = vxor.u32 %v1859, 2147483648
  %v1872 = vxor.u32 %v1860, 2147483648
  %v1873 = vxor.u32 %v1861, 2147483648
  %v1874 = vxor.u32 %v1862, 2147483648
  %v1875 = vxor.u32 %v1863, 2147483648
  %v1876 = vxor.u32 %v1864, 2147483648
  %v1877 = vxor.u32 %v1865, 2147483648
  %v1878 = vxor.u32 %v1866, 2147483648
  %v1879 = vmul.f32 %v1867, 1.442695
  %v1880 = vpow.pop %v1879
  %v1881 = vmul.f32 %v1868, 1.442695
  %v1882 = vpow.pop %v1881
  %v1883 = vmul.f32 %v1869, 1.442695
  %v1884 = vpow.pop %v1883
  %v1885 = vmul.f32 %v1870, 1.442695
  %v1886 = vpow.pop %v1885
  %v1887 = vmul.f32 %v1871, 1.442695
  %v1888 = vpow.pop %v1887
  %v1889 = vmul.f32 %v1872, 1.442695
  %v1890 = vpow.pop %v1889
  %v1891 = vmul.f32 %v1873, 1.442695
  %v1892 = vpow.pop %v1891
  %v1893 = vmul.f32 %v1874, 1.442695
  %v1894 = vpow.pop %v1893
  %v1895 = vmul.f32 %v1875, 1.442695
  %v1896 = vpow.pop %v1895
  %v1897 = vmul.f32 %v1876, 1.442695
  %v1898 = vpow.pop %v1897
  %v1899 = vmul.f32 %v1877, 1.442695
  %v1900 = vpow.pop %v1899
  %v1901 = vmul.f32 %v1878, 1.442695
  %v1902 = vpow.pop %v1901
  %v1903 = vadd.f32 %v1880, 1.0
  %v1904 = vadd.f32 %v1882, 1.0
  %v1905 = vadd.f32 %v1884, 1.0
  %v1906 = vadd.f32 %v1886, 1.0
  %v1907 = vadd.f32 %v1888, 1.0
  %v1908 = vadd.f32 %v1890, 1.0
  %v1909 = vadd.f32 %v1892, 1.0
  %v1910 = vadd.f32 %v1894, 1.0
  %v1911 = vadd.f32 %v1896, 1.0
  %v1912 = vadd.f32 %v1898, 1.0
  %v1913 = vadd.f32 %v1900, 1.0
  %v1914 = vadd.f32 %v1902, 1.0
  %v1915 = vrcp.pop %v1903
  %v1916 = vmul.f32 1.0, %v1915
  %v1917 = vrcp.pop %v1904
  %v1918 = vmul.f32 1.0, %v1917
  %v1919 = vrcp.pop %v1905
  %v1920 = vmul.f32 1.0, %v1919
  %v1921 = vrcp.pop %v1906
  %v1922 = vmul.f32 1.0, %v1921
  %v1923 = vrcp.pop %v1907
  %v1924 = vmul.f32 1.0, %v1923
  %v1925 = vrcp.pop %v1908
  %v1926 = vmul.f32 1.0, %v1925
  %v1927 = vrcp.pop %v1909
  %v1928 = vmul.f32 1.0, %v1927
  %v1929 = vrcp.pop %v1910
  %v1930 = vmul.f32 1.0, %v1929
  %v1931 = vrcp.pop %v1911
  %v1932 = vmul.f32 1.0, %v1931
  %v1933 = vrcp.pop %v1912
  %v1934 = vmul.f32 1.0, %v1933
  %v1935 = vrcp.pop %v1913
  %v1936 = vmul.f32 1.0, %v1935
  %v1937 = vrcp.pop %v1914
  %v1938 = vmul.f32 1.0, %v1937
  %v1939 = vmul.f32 %v1855, %v1916
  %v1940 = vmul.f32 %v1856, %v1918
  %v1941 = vmul.f32 %v1857, %v1920
  %v1942 = vmul.f32 %v1858, %v1922
  %v1943 = vmul.f32 %v1859, %v1924
  %v1944 = vmul.f32 %v1860, %v1926
  %v1945 = vmul.f32 %v1861, %v1928
  %v1946 = vmul.f32 %v1862, %v1930
  %v1947 = vmul.f32 %v1863, %v1932
  %v1948 = vmul.f32 %v1864, %v1934
  %v1949 = vmul.f32 %v1865, %v1936
  %v1950 = vmul.f32 %v1866, %v1938
  %v1951 = vadd.f32 %v309, %v1939
  %v1952 = vadd.f32 %v310, %v1940
  %v1953 = vadd.f32 %v311, %v1941
  %v1954 = vadd.f32 %v312, %v1942
  %v1955 = vadd.f32 %v313, %v1943
  %v1956 = vadd.f32 %v314, %v1944
  %v1957 = vadd.f32 %v315, %v1945
  %v1958 = vadd.f32 %v316, %v1946
  %v1959 = vadd.f32 %v317, %v1947
  %v1960 = vadd.f32 %v318, %v1948
  %v1961 = vadd.f32 %v319, %v1949
  %v1962 = vadd.f32 %v320, %v1950
  %v1963 = vld [vmem:[%s7] sm:$0xff]
  %v1964 = vld [vmem:[%s7 + $0x8] sm:$0xff]
  %v1965 = vld [vmem:[%s7 + $0x10] sm:$0xff]
  %v1966 = vld [vmem:[%s7 + $0x18] sm:$0xff]
  %v1967 = vld [vmem:[%s7 + $0x20] sm:$0xff]
  %v1968 = vld [vmem:[%s7 + $0x28] sm:$0xff]
  %v1969 = vld [vmem:[%s9] sm:$0xff]
  %v1970 = vld [vmem:[%s9 + $0x8] sm:$0xff]
  %v1971 = vld [vmem:[%s9 + $0x10] sm:$0xff]
  %v1972 = vld [vmem:[%s9 + $0x18] sm:$0xff]
  %v1973 = vld [vmem:[%s9 + $0x20] sm:$0xff]
  %v1974 = vld [vmem:[%s9 + $0x28] sm:$0xff]
  %v1975 = vld [vmem:[%s11] sm:$0x1]
  %1976 = vset.pattern.permute.xlu0 0
  %1977 = vperm.xlu0 %1976, %v1963
  %v1978 = vpop.permute.xlu0 %1977
  %1979 = vset.pattern.permute.xlu0 0
  %1980 = vperm.xlu0 %1979, %v1964
  %v1981 = vpop.permute.xlu0 %1980
  %1982 = vset.pattern.permute.xlu0 0
  %1983 = vperm.xlu0 %1982, %v1965
  %v1984 = vpop.permute.xlu0 %1983
  %1985 = vset.pattern.permute.xlu0 0
  %1986 = vperm.xlu0 %1985, %v1966
  %v1987 = vpop.permute.xlu0 %1986
  %1988 = vset.pattern.permute.xlu0 0
  %1989 = vperm.xlu0 %1988, %v1967
  %v1990 = vpop.permute.xlu0 %1989
  %1991 = vset.pattern.permute.xlu0 0
  %1992 = vperm.xlu0 %1991, %v1968
  %v1993 = vpop.permute.xlu0 %1992
  %vm1994 = vcmp.eq.s32.totalorder %v1978, %v347
  %vm1995 = vcmp.eq.s32.totalorder %v1981, %v347
  %vm1996 = vcmp.eq.s32.totalorder %v1984, %v347
  %vm1997 = vcmp.eq.s32.totalorder %v1987, %v347
  %vm1998 = vcmp.eq.s32.totalorder %v1990, %v347
  %vm1999 = vcmp.eq.s32.totalorder %v1993, %v347
  %v2000 = vsel %vm1994, 1, 0
  %v2001 = vsel %vm1995, 1, 0
  %v2002 = vsel %vm1996, 1, 0
  %v2003 = vsel %vm1997, 1, 0
  %v2004 = vsel %vm1998, 1, 0
  %v2005 = vsel %vm1999, 1, 0
  %v2006 = vcvt.s32.f32 %v2000
  %v2007 = vcvt.s32.f32 %v2001
  %v2008 = vcvt.s32.f32 %v2002
  %v2009 = vcvt.s32.f32 %v2003
  %v2010 = vcvt.s32.f32 %v2004
  %v2011 = vcvt.s32.f32 %v2005
  %2012 = vset.pattern.permute.xlu0 0
  %2013 = vperm.xlu0 %2012, %v1969
  %v2014 = vpop.permute.xlu0 %2013
  %2015 = vset.pattern.permute.xlu0 0
  %2016 = vperm.xlu0 %2015, %v1970
  %v2017 = vpop.permute.xlu0 %2016
  %2018 = vset.pattern.permute.xlu0 0
  %2019 = vperm.xlu0 %2018, %v1971
  %v2020 = vpop.permute.xlu0 %2019
  %2021 = vset.pattern.permute.xlu0 0
  %2022 = vperm.xlu0 %2021, %v1972
  %v2023 = vpop.permute.xlu0 %2022
  %2024 = vset.pattern.permute.xlu0 0
  %2025 = vperm.xlu0 %2024, %v1973
  %v2026 = vpop.permute.xlu0 %2025
  %2027 = vset.pattern.permute.xlu0 0
  %2028 = vperm.xlu0 %2027, %v1974
  %v2029 = vpop.permute.xlu0 %2028
  %vm2030 = vcmp.eq.s32.totalorder %v2014, %v347
  %vm2031 = vcmp.eq.s32.totalorder %v2017, %v347
  %vm2032 = vcmp.eq.s32.totalorder %v2020, %v347
  %vm2033 = vcmp.eq.s32.totalorder %v2023, %v347
  %vm2034 = vcmp.eq.s32.totalorder %v2026, %v347
  %vm2035 = vcmp.eq.s32.totalorder %v2029, %v347
  %v2036 = vsel %vm2030, 1, 0
  %v2037 = vsel %vm2031, 1, 0
  %v2038 = vsel %vm2032, 1, 0
  %v2039 = vsel %vm2033, 1, 0
  %v2040 = vsel %vm2034, 1, 0
  %v2041 = vsel %vm2035, 1, 0
  %v2042 = vcvt.s32.f32 %v2036
  %v2043 = vcvt.s32.f32 %v2037
  %v2044 = vcvt.s32.f32 %v2038
  %v2045 = vcvt.s32.f32 %v2039
  %v2046 = vcvt.s32.f32 %v2040
  %v2047 = vcvt.s32.f32 %v2041
  %v2048 = vlaneseq
  %v2049 = vshrl.u32 %v2048, 7
  %v2050 = vsub.s32 0, %v2049
  %v2051 = vrot.slane %v1975, %v2050
  %vm2052 = vcmp.eq.s32.totalorder %v2051, %v493
  %vm2053 = vcmp.eq.s32.totalorder %v2051, %v494
  %v2054 = vsel %vm2052, 1, 0
  %v2055 = vsel %vm2053, 1, 0
  %v2056 = vcvt.s32.f32 %v2054
  %v2057 = vcvt.s32.f32 %v2055
  %vm2058 = vcmask 130048
  %v2060 = vsel %vm2058, %v2006, 0
  %v2063 = vsel %vm2058, %v2007, 0
  %v2066 = vsel %vm2058, %v2008, 0
  %v2069 = vsel %vm2058, %v2009, 0
  %v2072 = vsel %vm2058, %v2010, 0
  %v2075 = vsel %vm2058, %v2011, 0
  %2077 = vmatprep.subr.mxu0 0.0
  %2078 = vmatpush1.msra.mxu0 %v301
  %2079 = vmatprep.subr.mxu0 0.0
  %2080 = vmatpush1.msra.mxu0 %v302
  %2081 = vmatprep.subr.mxu0 0.0
  %2082 = vmatpush1.msra.mxu0 0.0
  %2083 = vmatprep.subr.mxu0 0.0
  %2084 = vmatpush1.msra.mxu0 0.0
  %2085 = vmatprep.subr.mxu0 0.0
  %2086 = vmatpush1.msra.mxu0 0.0
  %2087 = vmatprep.subr.mxu0 0.0
  %2088 = vmatpush1.msra.mxu0 0.0
  %2089 = vmatprep.subr.mxu0 0.0
  %2090 = vmatpush1.msra.mxu0 0.0
  %2091 = vmatprep.subr.mxu0 0.0
  %2092 = vmatpush1.msra.mxu0 0.0
  %2093 = vmatprep.subr.mxu0 0.0
  %2094 = vmatpush1.msra.mxu0 0.0
  %2095 = vmatprep.subr.mxu0 0.0
  %2096 = vmatpush1.msra.mxu0 0.0
  %2097 = vmatprep.subr.mxu0 0.0
  %2098 = vmatpush1.msra.mxu0 0.0
  %2099 = vmatprep.subr.mxu0 0.0
  %2100 = vmatpush1.msra.mxu0 0.0
  %2101 = vmatprep.subr.mxu0 0.0
  %2102 = vmatpush1.msra.mxu0 0.0
  %2103 = vmatprep.subr.mxu0 0.0
  %2104 = vmatpush1.msra.mxu0 0.0
  %2105 = vmatprep.subr.mxu0 0.0
  %2106 = vmatpush1.msra.mxu0 0.0
  %2107 = vmatprep.subr.mxu0 0.0
  %2108 = vmatpush1.msra.mxu0 0.0
  %2109 = vmatprep.subr.mxu0 0.0
  %2110 = vmatpush1.msra.mxu0 0.0
  %2111 = vmatprep.subr.mxu0 0.0
  %2112 = vmatpush1.msra.mxu0 0.0
  %2113 = vmatprep.subr.mxu0 0.0
  %2114 = vmatpush1.msra.mxu0 0.0
  %2115 = vmatprep.subr.mxu0 0.0
  %2116 = vmatpush1.msra.mxu0 0.0
  %2117 = vmatprep.subr.mxu0 0.0
  %2118 = vmatpush1.msra.mxu0 0.0
  %2119 = vmatprep.subr.mxu0 0.0
  %2120 = vmatpush1.msra.mxu0 0.0
  %2121 = vmatprep.subr.mxu0 0.0
  %2122 = vmatpush1.msra.mxu0 0.0
  %2123 = vmatprep.subr.mxu0 0.0
  %2124 = vmatpush1.msra.mxu0 0.0
  %2125 = vmatprep.subr.mxu0 0.0
  %2126 = vmatpush1.msra.mxu0 0.0
  %2127 = vmatprep.subr.mxu0 0.0
  %2128 = vmatpush1.msra.mxu0 0.0
  %2129 = vmatprep.subr.mxu0 0.0
  %2130 = vmatpush1.msra.mxu0 0.0
  %2131 = vmatprep.subr.mxu0 0.0
  %2132 = vmatpush1.msra.mxu0 0.0
  %2133 = vmatprep.subr.mxu0 0.0
  %2134 = vmatpush1.msra.mxu0 0.0
  %2135 = vmatprep.subr.mxu0 0.0
  %2136 = vmatpush1.msra.mxu0 0.0
  %2137 = vmatprep.subr.mxu0 0.0
  %2138 = vmatpush1.msra.mxu0 0.0
  %2139 = vmatprep.subr.mxu0 0.0
  %2140 = vmatpush1.msra.mxu0 0.0
  %2141 = vmatprep.mubr.f32.mxu0 0.0
  %2142 = vmatmul.mubr.f32.gmra.mrb[0].mxu0 %v2060
  %v2143 = vpop.f32.mrb[0].mxu0
  %v2144 = vadd.f32 0.0, %v2143
  %v2145 = vpop.f32.mrb[0].mxu0
  %2146 = vmatprep.mubr.f32.mxu0 0.0
  %2147 = vmatmul.mubr.f32.gmra.mrb[0].mxu0 %v2063
  %v2148 = vpop.f32.mrb[0].mxu0
  %v2149 = vadd.f32 0.0, %v2148
  %v2150 = vpop.f32.mrb[0].mxu0
  %2151 = vmatprep.mubr.f32.mxu0 0.0
  %2152 = vmatmul.mubr.f32.gmra.mrb[0].mxu0 %v2066
  %v2153 = vpop.f32.mrb[0].mxu0
  %v2154 = vadd.f32 0.0, %v2153
  %v2155 = vpop.f32.mrb[0].mxu0
  %2156 = vmatprep.mubr.f32.mxu0 0.0
  %2157 = vmatmul.mubr.f32.gmra.mrb[0].mxu0 %v2069
  %v2158 = vpop.f32.mrb[0].mxu0
  %v2159 = vadd.f32 0.0, %v2158
  %v2160 = vpop.f32.mrb[0].mxu0
  %2161 = vmatprep.mubr.f32.mxu0 0.0
  %2162 = vmatmul.mubr.f32.gmra.mrb[0].mxu0 %v2072
  %v2163 = vpop.f32.mrb[0].mxu0
  %v2164 = vadd.f32 0.0, %v2163
  %v2165 = vpop.f32.mrb[0].mxu0
  %2166 = vmatprep.mubr.f32.mxu0 0.0
  %2167 = vmatmul.mubr.f32.gmra.mrb[0].mxu0 %v2075
  %v2168 = vpop.f32.mrb[0].mxu0
  %v2169 = vadd.f32 0.0, %v2168
  %v2170 = vpop.f32.mrb[0].mxu0
  %2171 = vdwg.mxu0
  %v2173 = vsel %vm2058, %v2042, 0
  %v2176 = vsel %vm2058, %v2043, 0
  %v2179 = vsel %vm2058, %v2044, 0
  %v2182 = vsel %vm2058, %v2045, 0
  %v2185 = vsel %vm2058, %v2046, 0
  %v2188 = vsel %vm2058, %v2047, 0
  %2190 = vmatprep.subr.mxu0 0.0
  %2191 = vmatpush1.msra.mxu0 %v301
  %2192 = vmatprep.subr.mxu0 0.0
  %2193 = vmatpush1.msra.mxu0 %v302
  %2194 = vmatprep.subr.mxu0 0.0
  %2195 = vmatpush1.msra.mxu0 0.0
  %2196 = vmatprep.subr.mxu0 0.0
  %2197 = vmatpush1.msra.mxu0 0.0
  %2198 = vmatprep.subr.mxu0 0.0
  %2199 = vmatpush1.msra.mxu0 0.0
  %2200 = vmatprep.subr.mxu0 0.0
  %2201 = vmatpush1.msra.mxu0 0.0
  %2202 = vmatprep.subr.mxu0 0.0
  %2203 = vmatpush1.msra.mxu0 0.0
  %2204 = vmatprep.subr.mxu0 0.0
  %2205 = vmatpush1.msra.mxu0 0.0
  %2206 = vmatprep.subr.mxu0 0.0
  %2207 = vmatpush1.msra.mxu0 0.0
  %2208 = vmatprep.subr.mxu0 0.0
  %2209 = vmatpush1.msra.mxu0 0.0
  %2210 = vmatprep.subr.mxu0 0.0
  %2211 = vmatpush1.msra.mxu0 0.0
  %2212 = vmatprep.subr.mxu0 0.0
  %2213 = vmatpush1.msra.mxu0 0.0
  %2214 = vmatprep.subr.mxu0 0.0
  %2215 = vmatpush1.msra.mxu0 0.0
  %2216 = vmatprep.subr.mxu0 0.0
  %2217 = vmatpush1.msra.mxu0 0.0
  %2218 = vmatprep.subr.mxu0 0.0
  %2219 = vmatpush1.msra.mxu0 0.0
  %2220 = vmatprep.subr.mxu0 0.0
  %2221 = vmatpush1.msra.mxu0 0.0
  %2222 = vmatprep.subr.mxu0 0.0
  %2223 = vmatpush1.msra.mxu0 0.0
  %2224 = vmatprep.subr.mxu0 0.0
  %2225 = vmatpush1.msra.mxu0 0.0
  %2226 = vmatprep.subr.mxu0 0.0
  %2227 = vmatpush1.msra.mxu0 0.0
  %2228 = vmatprep.subr.mxu0 0.0
  %2229 = vmatpush1.msra.mxu0 0.0
  %2230 = vmatprep.subr.mxu0 0.0
  %2231 = vmatpush1.msra.mxu0 0.0
  %2232 = vmatprep.subr.mxu0 0.0
  %2233 = vmatpush1.msra.mxu0 0.0
  %2234 = vmatprep.subr.mxu0 0.0
  %2235 = vmatpush1.msra.mxu0 0.0
  %2236 = vmatprep.subr.mxu0 0.0
  %2237 = vmatpush1.msra.mxu0 0.0
  %2238 = vmatprep.subr.mxu0 0.0
  %2239 = vmatpush1.msra.mxu0 0.0
  %2240 = vmatprep.subr.mxu0 0.0
  %2241 = vmatpush1.msra.mxu0 0.0
  %2242 = vmatprep.subr.mxu0 0.0
  %2243 = vmatpush1.msra.mxu0 0.0
  %2244 = vmatprep.subr.mxu0 0.0
  %2245 = vmatpush1.msra.mxu0 0.0
  %2246 = vmatprep.subr.mxu0 0.0
  %2247 = vmatpush1.msra.mxu0 0.0
  %2248 = vmatprep.subr.mxu0 0.0
  %2249 = vmatpush1.msra.mxu0 0.0
  %2250 = vmatprep.subr.mxu0 0.0
  %2251 = vmatpush1.msra.mxu0 0.0
  %2252 = vmatprep.subr.mxu0 0.0
  %2253 = vmatpush1.msra.mxu0 0.0
  %2254 = vmatprep.mubr.f32.mxu0 0.0
  %2255 = vmatmul.mubr.f32.gmra.mrb[0].mxu0 %v2173
  %v2256 = vpop.f32.mrb[0].mxu0
  %v2257 = vadd.f32 0.0, %v2256
  %v2258 = vpop.f32.mrb[0].mxu0
  %2259 = vmatprep.mubr.f32.mxu0 0.0
  %2260 = vmatmul.mubr.f32.gmra.mrb[0].mxu0 %v2176
  %v2261 = vpop.f32.mrb[0].mxu0
  %v2262 = vadd.f32 0.0, %v2261
  %v2263 = vpop.f32.mrb[0].mxu0
  %2264 = vmatprep.mubr.f32.mxu0 0.0
  %2265 = vmatmul.mubr.f32.gmra.mrb[0].mxu0 %v2179
  %v2266 = vpop.f32.mrb[0].mxu0
  %v2267 = vadd.f32 0.0, %v2266
  %v2268 = vpop.f32.mrb[0].mxu0
  %2269 = vmatprep.mubr.f32.mxu0 0.0
  %2270 = vmatmul.mubr.f32.gmra.mrb[0].mxu0 %v2182
  %v2271 = vpop.f32.mrb[0].mxu0
  %v2272 = vadd.f32 0.0, %v2271
  %v2273 = vpop.f32.mrb[0].mxu0
  %2274 = vmatprep.mubr.f32.mxu0 0.0
  %2275 = vmatmul.mubr.f32.gmra.mrb[0].mxu0 %v2185
  %v2276 = vpop.f32.mrb[0].mxu0
  %v2277 = vadd.f32 0.0, %v2276
  %v2278 = vpop.f32.mrb[0].mxu0
  %2279 = vmatprep.mubr.f32.mxu0 0.0
  %2280 = vmatmul.mubr.f32.gmra.mrb[0].mxu0 %v2188
  %v2281 = vpop.f32.mrb[0].mxu0
  %v2282 = vadd.f32 0.0, %v2281
  %v2283 = vpop.f32.mrb[0].mxu0
  %2284 = vdwg.mxu0
  %v2286 = vlaneseq
  %v2287 = vshrl.u32 %v2286, 7
  %v2288 = vsub.s32 0, %v2287
  %v2289 = vrot.slane %v262, %v2288
  %2291 = vmatprep.subr.mxu0 0.0
  %2292 = vmatpush1.msra.mxu0 %v214
  %2293 = vmatprep.subr.mxu0 0.0
  %2294 = vmatpush1.msra.mxu0 %v215
  %2295 = vmatprep.subr.mxu0 0.0
  %2296 = vmatpush1.msra.mxu0 %v216
  %2297 = vmatprep.subr.mxu0 0.0
  %2298 = vmatpush1.msra.mxu0 %v217
  %2299 = vmatprep.subr.mxu0 0.0
  %2300 = vmatpush1.msra.mxu0 %v218
  %2301 = vmatprep.subr.mxu0 0.0
  %2302 = vmatpush1.msra.mxu0 %v219
  %2303 = vmatprep.subr.mxu0 0.0
  %2304 = vmatpush1.msra.mxu0 %v220
  %2305 = vmatprep.subr.mxu0 0.0
  %2306 = vmatpush1.msra.mxu0 %v221
  %2307 = vmatprep.subr.mxu0 0.0
  %2308 = vmatpush1.msra.mxu0 %v222
  %2309 = vmatprep.subr.mxu0 0.0
  %2310 = vmatpush1.msra.mxu0 %v223
  %2311 = vmatprep.subr.mxu0 0.0
  %2312 = vmatpush1.msra.mxu0 %v224
  %2313 = vmatprep.subr.mxu0 0.0
  %2314 = vmatpush1.msra.mxu0 %v225
  %2315 = vmatprep.subr.mxu0 0.0
  %2316 = vmatpush1.msra.mxu0 %v226
  %2317 = vmatprep.subr.mxu0 0.0
  %2318 = vmatpush1.msra.mxu0 %v227
  %2319 = vmatprep.subr.mxu0 0.0
  %2320 = vmatpush1.msra.mxu0 %v228
  %2321 = vmatprep.subr.mxu0 0.0
  %2322 = vmatpush1.msra.mxu0 %v229
  %2323 = vmatprep.subr.mxu0 0.0
  %2324 = vmatpush1.msra.mxu0 %v230
  %2325 = vmatprep.subr.mxu0 0.0
  %2326 = vmatpush1.msra.mxu0 %v231
  %2327 = vmatprep.subr.mxu0 0.0
  %2328 = vmatpush1.msra.mxu0 %v232
  %2329 = vmatprep.subr.mxu0 0.0
  %2330 = vmatpush1.msra.mxu0 %v233
  %2331 = vmatprep.subr.mxu0 0.0
  %2332 = vmatpush1.msra.mxu0 %v234
  %2333 = vmatprep.subr.mxu0 0.0
  %2334 = vmatpush1.msra.mxu0 %v235
  %2335 = vmatprep.subr.mxu0 0.0
  %2336 = vmatpush1.msra.mxu0 %v236
  %2337 = vmatprep.subr.mxu0 0.0
  %2338 = vmatpush1.msra.mxu0 %v237
  %2339 = vmatprep.subr.mxu0 0.0
  %2340 = vmatpush1.msra.mxu0 %v238
  %2341 = vmatprep.subr.mxu0 0.0
  %2342 = vmatpush1.msra.mxu0 %v239
  %2343 = vmatprep.subr.mxu0 0.0
  %2344 = vmatpush1.msra.mxu0 %v240
  %2345 = vmatprep.subr.mxu0 0.0
  %2346 = vmatpush1.msra.mxu0 %v241
  %2347 = vmatprep.subr.mxu0 0.0
  %2348 = vmatpush1.msra.mxu0 %v242
  %2349 = vmatprep.subr.mxu0 0.0
  %2350 = vmatpush1.msra.mxu0 %v243
  %2351 = vmatprep.subr.mxu0 0.0
  %2352 = vmatpush1.msra.mxu0 %v244
  %2353 = vmatprep.subr.mxu0 0.0
  %2354 = vmatpush1.msra.mxu0 %v245
  %2355 = vmatprep.mubr.f32.mxu0 %v2257
  %2356 = vmatmul.mubr.f32.gmra.mrb[0].mxu0 %v2144
  %v2357 = vpop.f32.mrb[0].mxu0
  %v2358 = vadd.f32 %v2289, %v2357
  %v2359 = vpop.f32.mrb[0].mxu0
  %2360 = vmatprep.mubr.f32.mxu0 %v2262
  %2361 = vmatmul.mubr.f32.gmra.mrb[0].mxu0 %v2149
  %v2362 = vpop.f32.mrb[0].mxu0
  %v2363 = vadd.f32 %v2289, %v2362
  %v2364 = vpop.f32.mrb[0].mxu0
  %2365 = vmatprep.mubr.f32.mxu0 %v2267
  %2366 = vmatmul.mubr.f32.gmra.mrb[0].mxu0 %v2154
  %v2367 = vpop.f32.mrb[0].mxu0
  %v2368 = vadd.f32 %v2289, %v2367
  %v2369 = vpop.f32.mrb[0].mxu0
  %2370 = vmatprep.mubr.f32.mxu0 %v2272
  %2371 = vmatmul.mubr.f32.gmra.mrb[0].mxu0 %v2159
  %v2372 = vpop.f32.mrb[0].mxu0
  %v2373 = vadd.f32 %v2289, %v2372
  %v2374 = vpop.f32.mrb[0].mxu0
  %2375 = vmatprep.mubr.f32.mxu0 %v2277
  %2376 = vmatmul.mubr.f32.gmra.mrb[0].mxu0 %v2164
  %v2377 = vpop.f32.mrb[0].mxu0
  %v2378 = vadd.f32 %v2289, %v2377
  %v2379 = vpop.f32.mrb[0].mxu0
  %2380 = vmatprep.mubr.f32.mxu0 %v2282
  %2381 = vmatmul.mubr.f32.gmra.mrb[0].mxu0 %v2169
  %v2382 = vpop.f32.mrb[0].mxu0
  %v2383 = vadd.f32 %v2289, %v2382
  %v2384 = vpop.f32.mrb[0].mxu0
  %2385 = vdwg.mxu0
  %2386 = vmatprep.subr.mxu0 0.0
  %2387 = vmatpush1.msra.mxu0 %v246
  %2388 = vmatprep.subr.mxu0 0.0
  %2389 = vmatpush1.msra.mxu0 %v247
  %2390 = vmatprep.subr.mxu0 0.0
  %2391 = vmatpush1.msra.mxu0 %v248
  %2392 = vmatprep.subr.mxu0 0.0
  %2393 = vmatpush1.msra.mxu0 %v249
  %2394 = vmatprep.subr.mxu0 0.0
  %2395 = vmatpush1.msra.mxu0 %v250
  %2396 = vmatprep.subr.mxu0 0.0
  %2397 = vmatpush1.msra.mxu0 %v251
  %2398 = vmatprep.subr.mxu0 0.0
  %2399 = vmatpush1.msra.mxu0 %v252
  %2400 = vmatprep.subr.mxu0 0.0
  %2401 = vmatpush1.msra.mxu0 %v253
  %2402 = vmatprep.subr.mxu0 0.0
  %2403 = vmatpush1.msra.mxu0 %v254
  %2404 = vmatprep.subr.mxu0 0.0
  %2405 = vmatpush1.msra.mxu0 %v255
  %2406 = vmatprep.subr.mxu0 0.0
  %2407 = vmatpush1.msra.mxu0 %v256
  %2408 = vmatprep.subr.mxu0 0.0
  %2409 = vmatpush1.msra.mxu0 %v257
  %2410 = vmatprep.subr.mxu0 0.0
  %2411 = vmatpush1.msra.mxu0 %v258
  %2412 = vmatprep.subr.mxu0 0.0
  %2413 = vmatpush1.msra.mxu0 %v259
  %2414 = vmatprep.subr.mxu0 0.0
  %2415 = vmatpush1.msra.mxu0 %v260
  %2416 = vmatprep.subr.mxu0 0.0
  %2417 = vmatpush1.msra.mxu0 %v261
  %2418 = vmatprep.subr.mxu0 0.0
  %2419 = vmatpush1.msra.mxu0 0.0
  %2420 = vmatprep.subr.mxu0 0.0
  %2421 = vmatpush1.msra.mxu0 0.0
  %2422 = vmatprep.subr.mxu0 0.0
  %2423 = vmatpush1.msra.mxu0 0.0
  %2424 = vmatprep.subr.mxu0 0.0
  %2425 = vmatpush1.msra.mxu0 0.0
  %2426 = vmatprep.subr.mxu0 0.0
  %2427 = vmatpush1.msra.mxu0 0.0
  %2428 = vmatprep.subr.mxu0 0.0
  %2429 = vmatpush1.msra.mxu0 0.0
  %2430 = vmatprep.subr.mxu0 0.0
  %2431 = vmatpush1.msra.mxu0 0.0
  %2432 = vmatprep.subr.mxu0 0.0
  %2433 = vmatpush1.msra.mxu0 0.0
  %2434 = vmatprep.subr.mxu0 0.0
  %2435 = vmatpush1.msra.mxu0 0.0
  %2436 = vmatprep.subr.mxu0 0.0
  %2437 = vmatpush1.msra.mxu0 0.0
  %2438 = vmatprep.subr.mxu0 0.0
  %2439 = vmatpush1.msra.mxu0 0.0
  %2440 = vmatprep.subr.mxu0 0.0
  %2441 = vmatpush1.msra.mxu0 0.0
  %2442 = vmatprep.subr.mxu0 0.0
  %2443 = vmatpush1.msra.mxu0 0.0
  %2444 = vmatprep.subr.mxu0 0.0
  %2445 = vmatpush1.msra.mxu0 0.0
  %2446 = vmatprep.subr.mxu0 0.0
  %2447 = vmatpush1.msra.mxu0 0.0
  %2448 = vmatprep.subr.mxu0 0.0
  %2449 = vmatpush1.msra.mxu0 0.0
  %2450 = vmatprep.mubr.f32.mxu0 0.0
  %2451 = vmatmul.mubr.f32.gmra.mrb[0].mxu0 %v1693
  %v2452 = vpop.f32.mrb[0].mxu0
  %v2453 = vadd.f32 %v2358, %v2452
  %v2454 = vpop.f32.mrb[0].mxu0
  %2455 = vmatprep.mubr.f32.mxu0 0.0
  %2456 = vmatmul.mubr.f32.gmra.mrb[0].mxu0 %v1694
  %v2457 = vpop.f32.mrb[0].mxu0
  %v2458 = vadd.f32 %v2363, %v2457
  %v2459 = vpop.f32.mrb[0].mxu0
  %2460 = vmatprep.mubr.f32.mxu0 0.0
  %2461 = vmatmul.mubr.f32.gmra.mrb[0].mxu0 %v1695
  %v2462 = vpop.f32.mrb[0].mxu0
  %v2463 = vadd.f32 %v2368, %v2462
  %v2464 = vpop.f32.mrb[0].mxu0
  %2465 = vmatprep.mubr.f32.mxu0 0.0
  %2466 = vmatmul.mubr.f32.gmra.mrb[0].mxu0 %v1696
  %v2467 = vpop.f32.mrb[0].mxu0
  %v2468 = vadd.f32 %v2373, %v2467
  %v2469 = vpop.f32.mrb[0].mxu0
  %2470 = vmatprep.mubr.f32.mxu0 0.0
  %2471 = vmatmul.mubr.f32.gmra.mrb[0].mxu0 %v1697
  %v2472 = vpop.f32.mrb[0].mxu0
  %v2473 = vadd.f32 %v2378, %v2472
  %v2474 = vpop.f32.mrb[0].mxu0
  %2475 = vmatprep.mubr.f32.mxu0 0.0
  %2476 = vmatmul.mubr.f32.gmra.mrb[0].mxu0 %v1698
  %v2477 = vpop.f32.mrb[0].mxu0
  %v2478 = vadd.f32 %v2383, %v2477
  %v2479 = vpop.f32.mrb[0].mxu0
  %2480 = vdwg.mxu0
  %v2481 = vxor.u32 %v2453, 2147483648
  %v2482 = vxor.u32 %v2458, 2147483648
  %v2483 = vxor.u32 %v2463, 2147483648
  %v2484 = vxor.u32 %v2468, 2147483648
  %v2485 = vxor.u32 %v2473, 2147483648
  %v2486 = vxor.u32 %v2478, 2147483648
  %v2487 = vmul.f32 %v2481, 1.442695
  %v2488 = vpow.pop %v2487
  %v2489 = vmul.f32 %v2482, 1.442695
  %v2490 = vpow.pop %v2489
  %v2491 = vmul.f32 %v2483, 1.442695
  %v2492 = vpow.pop %v2491
  %v2493 = vmul.f32 %v2484, 1.442695
  %v2494 = vpow.pop %v2493
  %v2495 = vmul.f32 %v2485, 1.442695
  %v2496 = vpow.pop %v2495
  %v2497 = vmul.f32 %v2486, 1.442695
  %v2498 = vpow.pop %v2497
  %v2499 = vadd.f32 %v2488, 1.0
  %v2500 = vadd.f32 %v2490, 1.0
  %v2501 = vadd.f32 %v2492, 1.0
  %v2502 = vadd.f32 %v2494, 1.0
  %v2503 = vadd.f32 %v2496, 1.0
  %v2504 = vadd.f32 %v2498, 1.0
  %v2505 = vrcp.pop %v2499
  %v2506 = vmul.f32 1.0, %v2505
  %v2507 = vrcp.pop %v2500
  %v2508 = vmul.f32 1.0, %v2507
  %v2509 = vrcp.pop %v2501
  %v2510 = vmul.f32 1.0, %v2509
  %v2511 = vrcp.pop %v2502
  %v2512 = vmul.f32 1.0, %v2511
  %v2513 = vrcp.pop %v2503
  %v2514 = vmul.f32 1.0, %v2513
  %v2515 = vrcp.pop %v2504
  %v2516 = vmul.f32 1.0, %v2515
  %v2518 = vlaneseq
  %v2519 = vshrl.u32 %v2518, 7
  %v2520 = vsub.s32 0, %v2519
  %v2521 = vrot.slane %v279, %v2520
  %2523 = vmatprep.subr.mxu0 0.0
  %2524 = vmatpush1.msra.mxu0 %v263
  %2525 = vmatprep.subr.mxu0 0.0
  %2526 = vmatpush1.msra.mxu0 %v264
  %2527 = vmatprep.subr.mxu0 0.0
  %2528 = vmatpush1.msra.mxu0 %v265
  %2529 = vmatprep.subr.mxu0 0.0
  %2530 = vmatpush1.msra.mxu0 %v266
  %2531 = vmatprep.subr.mxu0 0.0
  %2532 = vmatpush1.msra.mxu0 %v267
  %2533 = vmatprep.subr.mxu0 0.0
  %2534 = vmatpush1.msra.mxu0 %v268
  %2535 = vmatprep.subr.mxu0 0.0
  %2536 = vmatpush1.msra.mxu0 %v269
  %2537 = vmatprep.subr.mxu0 0.0
  %2538 = vmatpush1.msra.mxu0 %v270
  %2539 = vmatprep.subr.mxu0 0.0
  %2540 = vmatpush1.msra.mxu0 %v271
  %2541 = vmatprep.subr.mxu0 0.0
  %2542 = vmatpush1.msra.mxu0 %v272
  %2543 = vmatprep.subr.mxu0 0.0
  %2544 = vmatpush1.msra.mxu0 %v273
  %2545 = vmatprep.subr.mxu0 0.0
  %2546 = vmatpush1.msra.mxu0 %v274
  %2547 = vmatprep.subr.mxu0 0.0
  %2548 = vmatpush1.msra.mxu0 %v275
  %2549 = vmatprep.subr.mxu0 0.0
  %2550 = vmatpush1.msra.mxu0 %v276
  %2551 = vmatprep.subr.mxu0 0.0
  %2552 = vmatpush1.msra.mxu0 %v277
  %2553 = vmatprep.subr.mxu0 0.0
  %2554 = vmatpush1.msra.mxu0 %v278
  %2555 = vmatprep.subr.mxu0 0.0
  %2556 = vmatpush1.msra.mxu0 0.0
  %2557 = vmatprep.subr.mxu0 0.0
  %2558 = vmatpush1.msra.mxu0 0.0
  %2559 = vmatprep.subr.mxu0 0.0
  %2560 = vmatpush1.msra.mxu0 0.0
  %2561 = vmatprep.subr.mxu0 0.0
  %2562 = vmatpush1.msra.mxu0 0.0
  %2563 = vmatprep.subr.mxu0 0.0
  %2564 = vmatpush1.msra.mxu0 0.0
  %2565 = vmatprep.subr.mxu0 0.0
  %2566 = vmatpush1.msra.mxu0 0.0
  %2567 = vmatprep.subr.mxu0 0.0
  %2568 = vmatpush1.msra.mxu0 0.0
  %2569 = vmatprep.subr.mxu0 0.0
  %2570 = vmatpush1.msra.mxu0 0.0
  %2571 = vmatprep.subr.mxu0 0.0
  %2572 = vmatpush1.msra.mxu0 0.0
  %2573 = vmatprep.subr.mxu0 0.0
  %2574 = vmatpush1.msra.mxu0 0.0
  %2575 = vmatprep.subr.mxu0 0.0
  %2576 = vmatpush1.msra.mxu0 0.0
  %2577 = vmatprep.subr.mxu0 0.0
  %2578 = vmatpush1.msra.mxu0 0.0
  %2579 = vmatprep.subr.mxu0 0.0
  %2580 = vmatpush1.msra.mxu0 0.0
  %2581 = vmatprep.subr.mxu0 0.0
  %2582 = vmatpush1.msra.mxu0 0.0
  %2583 = vmatprep.subr.mxu0 0.0
  %2584 = vmatpush1.msra.mxu0 0.0
  %2585 = vmatprep.subr.mxu0 0.0
  %2586 = vmatpush1.msra.mxu0 0.0
  %2587 = vmatprep.mubr.f32.mxu0 0.0
  %2588 = vmatmul.mubr.f32.gmra.mrb[0].mxu0 %v2144
  %v2589 = vpop.f32.mrb[0].mxu0
  %v2590 = vadd.f32 %v2521, %v2589
  %v2591 = vpop.f32.mrb[0].mxu0
  %2592 = vmatprep.mubr.f32.mxu0 0.0
  %2593 = vmatmul.mubr.f32.gmra.mrb[0].mxu0 %v2149
  %v2594 = vpop.f32.mrb[0].mxu0
  %v2595 = vadd.f32 %v2521, %v2594
  %v2596 = vpop.f32.mrb[0].mxu0
  %2597 = vmatprep.mubr.f32.mxu0 0.0
  %2598 = vmatmul.mubr.f32.gmra.mrb[0].mxu0 %v2154
  %v2599 = vpop.f32.mrb[0].mxu0
  %v2600 = vadd.f32 %v2521, %v2599
  %v2601 = vpop.f32.mrb[0].mxu0
  %2602 = vmatprep.mubr.f32.mxu0 0.0
  %2603 = vmatmul.mubr.f32.gmra.mrb[0].mxu0 %v2159
  %v2604 = vpop.f32.mrb[0].mxu0
  %v2605 = vadd.f32 %v2521, %v2604
  %v2606 = vpop.f32.mrb[0].mxu0
  %2607 = vmatprep.mubr.f32.mxu0 0.0
  %2608 = vmatmul.mubr.f32.gmra.mrb[0].mxu0 %v2164
  %v2609 = vpop.f32.mrb[0].mxu0
  %v2610 = vadd.f32 %v2521, %v2609
  %v2611 = vpop.f32.mrb[0].mxu0
  %2612 = vmatprep.mubr.f32.mxu0 0.0
  %2613 = vmatmul.mubr.f32.gmra.mrb[0].mxu0 %v2169
  %v2614 = vpop.f32.mrb[0].mxu0
  %v2615 = vadd.f32 %v2521, %v2614
  %v2616 = vpop.f32.mrb[0].mxu0
  %2617 = vdwg.mxu0
  %v2618 = vmul.f32 %v2506, %v2590
  %v2619 = vmul.f32 %v2508, %v2595
  %v2620 = vmul.f32 %v2510, %v2600
  %v2621 = vmul.f32 %v2512, %v2605
  %v2622 = vmul.f32 %v2514, %v2610
  %v2623 = vmul.f32 %v2516, %v2615
  %v2625 = vsel %vm521, %v2056, 0
  %v2628 = vsel %vm521, %v2057, 0
  %2630 = vmatprep.subr.mxu0 %v2506
  %2631 = vmatpush1.msra.mxu0 %v2618
  %2632 = vmatprep.subr.mxu0 %v2508
  %2633 = vmatpush1.msra.mxu0 %v2619
  %2634 = vmatprep.subr.mxu0 %v2510
  %2635 = vmatpush1.msra.mxu0 %v2620
  %2636 = vmatprep.subr.mxu0 %v2512
  %2637 = vmatpush1.msra.mxu0 %v2621
  %2638 = vmatprep.subr.mxu0 %v2514
  %2639 = vmatpush1.msra.mxu0 %v2622
  %2640 = vmatprep.subr.mxu0 %v2516
  %2641 = vmatpush1.msra.mxu0 %v2623
  %2642 = vmatprep.subr.mxu0 0.0
  %2643 = vmatpush1.msra.mxu0 0.0
  %2644 = vmatprep.subr.mxu0 0.0
  %2645 = vmatpush1.msra.mxu0 0.0
  %2646 = vmatprep.subr.mxu0 0.0
  %2647 = vmatpush1.msra.mxu0 0.0
  %2648 = vmatprep.subr.mxu0 0.0
  %2649 = vmatpush1.msra.mxu0 0.0
  %2650 = vmatprep.subr.mxu0 0.0
  %2651 = vmatpush1.msra.mxu0 0.0
  %2652 = vmatprep.subr.mxu0 0.0
  %2653 = vmatpush1.msra.mxu0 0.0
  %2654 = vmatprep.subr.mxu0 0.0
  %2655 = vmatpush1.msra.mxu0 0.0
  %2656 = vmatprep.subr.mxu0 0.0
  %2657 = vmatpush1.msra.mxu0 0.0
  %2658 = vmatprep.subr.mxu0 0.0
  %2659 = vmatpush1.msra.mxu0 0.0
  %2660 = vmatprep.subr.mxu0 0.0
  %2661 = vmatpush1.msra.mxu0 0.0
  %2662 = vmatprep.subr.mxu0 0.0
  %2663 = vmatpush1.msra.mxu0 0.0
  %2664 = vmatprep.subr.mxu0 0.0
  %2665 = vmatpush1.msra.mxu0 0.0
  %2666 = vmatprep.subr.mxu0 0.0
  %2667 = vmatpush1.msra.mxu0 0.0
  %2668 = vmatprep.subr.mxu0 0.0
  %2669 = vmatpush1.msra.mxu0 0.0
  %2670 = vmatprep.subr.mxu0 0.0
  %2671 = vmatpush1.msra.mxu0 0.0
  %2672 = vmatprep.subr.mxu0 0.0
  %2673 = vmatpush1.msra.mxu0 0.0
  %2674 = vmatprep.subr.mxu0 0.0
  %2675 = vmatpush1.msra.mxu0 0.0
  %2676 = vmatprep.subr.mxu0 0.0
  %2677 = vmatpush1.msra.mxu0 0.0
  %2678 = vmatprep.subr.mxu0 0.0
  %2679 = vmatpush1.msra.mxu0 0.0
  %2680 = vmatprep.subr.mxu0 0.0
  %2681 = vmatpush1.msra.mxu0 0.0
  %2682 = vmatprep.subr.mxu0 0.0
  %2683 = vmatpush1.msra.mxu0 0.0
  %2684 = vmatprep.subr.mxu0 0.0
  %2685 = vmatpush1.msra.mxu0 0.0
  %2686 = vmatprep.subr.mxu0 0.0
  %2687 = vmatpush1.msra.mxu0 0.0
  %2688 = vmatprep.subr.mxu0 0.0
  %2689 = vmatpush1.msra.mxu0 0.0
  %2690 = vmatprep.subr.mxu0 0.0
  %2691 = vmatpush1.msra.mxu0 0.0
  %2692 = vmatprep.subr.mxu0 0.0
  %2693 = vmatpush1.msra.mxu0 0.0
  %2694 = vmatprep.mubr.f32.mxu0 0.0
  %2695 = vmatmul.mubr.f32.gmra.mrb[0].mxu0 %v2625
  %v2696 = vpop.f32.mrb[0].mxu0
  %v2697 = vadd.f32 0.0, %v2696
  %v2698 = vpop.f32.mrb[0].mxu0
  %v2699 = vadd.f32 0.0, %v2698
  %2700 = vmatprep.mubr.f32.mxu0 0.0
  %2701 = vmatmul.mubr.f32.gmra.mrb[0].mxu0 %v2628
  %v2702 = vpop.f32.mrb[0].mxu0
  %v2703 = vadd.f32 0.0, %v2702
  %v2704 = vpop.f32.mrb[0].mxu0
  %v2705 = vadd.f32 0.0, %v2704
  %2706 = vdwg.mxu0
  %v2707 = vadd.f32 %v2699, 1e-06
  %v2708 = vadd.f32 %v2705, 1e-06
  %v2709 = vrcp.pop %v2707
  %v2710 = vrcp.pop %v2708
  %v2711 = vmul.f32 %v2697, %v2709
  %v2712 = vmul.f32 %v2703, %v2710
  %v2714 = vlaneseq
  %v2715 = vshrl.u32 %v2714, 7
  %v2716 = vsub.s32 0, %v2715
  %v2717 = vrot.slane %v296, %v2716
  %2719 = vmatprep.subr.mxu0 0.0
  %2720 = vmatpush1.msra.mxu0 %v280
  %2721 = vmatprep.subr.mxu0 0.0
  %2722 = vmatpush1.msra.mxu0 %v281
  %2723 = vmatprep.subr.mxu0 0.0
  %2724 = vmatpush1.msra.mxu0 %v282
  %2725 = vmatprep.subr.mxu0 0.0
  %2726 = vmatpush1.msra.mxu0 %v283
  %2727 = vmatprep.subr.mxu0 0.0
  %2728 = vmatpush1.msra.mxu0 %v284
  %2729 = vmatprep.subr.mxu0 0.0
  %2730 = vmatpush1.msra.mxu0 %v285
  %2731 = vmatprep.subr.mxu0 0.0
  %2732 = vmatpush1.msra.mxu0 %v286
  %2733 = vmatprep.subr.mxu0 0.0
  %2734 = vmatpush1.msra.mxu0 %v287
  %2735 = vmatprep.subr.mxu0 0.0
  %2736 = vmatpush1.msra.mxu0 %v288
  %2737 = vmatprep.subr.mxu0 0.0
  %2738 = vmatpush1.msra.mxu0 %v289
  %2739 = vmatprep.subr.mxu0 0.0
  %2740 = vmatpush1.msra.mxu0 %v290
  %2741 = vmatprep.subr.mxu0 0.0
  %2742 = vmatpush1.msra.mxu0 %v291
  %2743 = vmatprep.subr.mxu0 0.0
  %2744 = vmatpush1.msra.mxu0 %v292
  %2745 = vmatprep.subr.mxu0 0.0
  %2746 = vmatpush1.msra.mxu0 %v293
  %2747 = vmatprep.subr.mxu0 0.0
  %2748 = vmatpush1.msra.mxu0 %v294
  %2749 = vmatprep.subr.mxu0 0.0
  %2750 = vmatpush1.msra.mxu0 %v295
  %2751 = vmatprep.subr.mxu0 0.0
  %2752 = vmatpush1.msra.mxu0 0.0
  %2753 = vmatprep.subr.mxu0 0.0
  %2754 = vmatpush1.msra.mxu0 0.0
  %2755 = vmatprep.subr.mxu0 0.0
  %2756 = vmatpush1.msra.mxu0 0.0
  %2757 = vmatprep.subr.mxu0 0.0
  %2758 = vmatpush1.msra.mxu0 0.0
  %2759 = vmatprep.subr.mxu0 0.0
  %2760 = vmatpush1.msra.mxu0 0.0
  %2761 = vmatprep.subr.mxu0 0.0
  %2762 = vmatpush1.msra.mxu0 0.0
  %2763 = vmatprep.subr.mxu0 0.0
  %2764 = vmatpush1.msra.mxu0 0.0
  %2765 = vmatprep.subr.mxu0 0.0
  %2766 = vmatpush1.msra.mxu0 0.0
  %2767 = vmatprep.subr.mxu0 0.0
  %2768 = vmatpush1.msra.mxu0 0.0
  %2769 = vmatprep.subr.mxu0 0.0
  %2770 = vmatpush1.msra.mxu0 0.0
  %2771 = vmatprep.subr.mxu0 0.0
  %2772 = vmatpush1.msra.mxu0 0.0
  %2773 = vmatprep.subr.mxu0 0.0
  %2774 = vmatpush1.msra.mxu0 0.0
  %2775 = vmatprep.subr.mxu0 0.0
  %2776 = vmatpush1.msra.mxu0 0.0
  %2777 = vmatprep.subr.mxu0 0.0
  %2778 = vmatpush1.msra.mxu0 0.0
  %2779 = vmatprep.subr.mxu0 0.0
  %2780 = vmatpush1.msra.mxu0 0.0
  %2781 = vmatprep.subr.mxu0 0.0
  %2782 = vmatpush1.msra.mxu0 0.0
  %2783 = vmatprep.mubr.f32.mxu0 0.0
  %2784 = vmatmul.mubr.f32.gmra.mrb[0].mxu0 %v301
  %v2785 = vpop.f32.mrb[0].mxu0
  %v2786 = vadd.f32 %v2717, %v2785
  %v2787 = vpop.f32.mrb[0].mxu0
  %2788 = vmatprep.mubr.f32.mxu0 0.0
  %2789 = vmatmul.mubr.f32.gmra.mrb[0].mxu0 %v302
  %v2790 = vpop.f32.mrb[0].mxu0
  %v2791 = vadd.f32 %v2717, %v2790
  %v2792 = vpop.f32.mrb[0].mxu0
  %2793 = vdwg.mxu0
  %v2794 = vadd.f32 %v2786, %v2711
  %v2795 = vadd.f32 %v2791, %v2712
  %2796 = vadd.xlane.f32.xlu0 %v2794
  %v2797 = vpop.xlane.xlu0 %2796
  %2798 = vadd.xlane.f32.xlu0 %v2795
  %v2799 = vpop.xlane.xlu0 %2798
  %v2800 = vmul.f32 %v2797, %v1572
  %v2801 = vmul.f32 %v2799, %v1572
  %v2802 = vsub.f32 %v2794, %v2800
  %v2803 = vsub.f32 %v2795, %v2801
  %v2804 = vmul.f32 %v2802, %v2802
  %v2805 = vmul.f32 %v2803, %v2803
  %2806 = vadd.xlane.f32.xlu0 %v2804
  %v2807 = vpop.xlane.xlu0 %2806
  %2808 = vadd.xlane.f32.xlu0 %v2805
  %v2809 = vpop.xlane.xlu0 %2808
  %v2810 = vmul.f32 %v2807, %v1572
  %v2811 = vmul.f32 %v2809, %v1572
  %v2812 = vadd.f32 %v2810, 1e-05
  %v2813 = vadd.f32 %v2811, 1e-05
  %v2814 = vrsqrt.pop %v2812
  %v2815 = vrsqrt.pop %v2813
  %v2816 = vmul.f32 %v2802, %v2814
  %v2817 = vmul.f32 %v2803, %v2815
  %v2819 = vlaneseq
  %v2820 = vshrl.u32 %v2819, 7
  %v2821 = vsub.s32 0, %v2820
  %v2822 = vrot.slane %v297, %v2821
  %v2824 = vmul.f32 %v2816, %v2822
  %v2825 = vmul.f32 %v2817, %v2822
  %v2827 = vlaneseq
  %v2828 = vshrl.u32 %v2827, 7
  %v2829 = vsub.s32 0, %v2828
  %v2830 = vrot.slane %v298, %v2829
  %v2832 = vadd.f32 %v2824, %v2830
  %v2833 = vadd.f32 %v2825, %v2830
  %v2834 = vxor.u32 %v2832, 2147483648
  %v2835 = vxor.u32 %v2833, 2147483648
  %v2836 = vmul.f32 %v2834, 1.442695
  %v2837 = vpow.pop %v2836
  %v2838 = vmul.f32 %v2835, 1.442695
  %v2839 = vpow.pop %v2838
  %v2840 = vadd.f32 %v2837, 1.0
  %v2841 = vadd.f32 %v2839, 1.0
  %v2842 = vrcp.pop %v2840
  %v2843 = vmul.f32 1.0, %v2842
  %v2844 = vrcp.pop %v2841
  %v2845 = vmul.f32 1.0, %v2844
  %v2846 = vmul.f32 %v2832, %v2843
  %v2847 = vmul.f32 %v2833, %v2845
  %v2848 = vadd.f32 %v301, %v2846
  %v2849 = vadd.f32 %v302, %v2847
  %2850 = vadd.xlane.f32.xlu0 %v2453
  %v2851 = vpop.xlane.xlu0 %2850
  %2852 = vadd.xlane.f32.xlu0 %v2458
  %v2853 = vpop.xlane.xlu0 %2852
  %2854 = vadd.xlane.f32.xlu0 %v2463
  %v2855 = vpop.xlane.xlu0 %2854
  %2856 = vadd.xlane.f32.xlu0 %v2468
  %v2857 = vpop.xlane.xlu0 %2856
  %2858 = vadd.xlane.f32.xlu0 %v2473
  %v2859 = vpop.xlane.xlu0 %2858
  %2860 = vadd.xlane.f32.xlu0 %v2478
  %v2861 = vpop.xlane.xlu0 %2860
  %v2862 = vmul.f32 %v2851, %v1572
  %v2863 = vmul.f32 %v2853, %v1572
  %v2864 = vmul.f32 %v2855, %v1572
  %v2865 = vmul.f32 %v2857, %v1572
  %v2866 = vmul.f32 %v2859, %v1572
  %v2867 = vmul.f32 %v2861, %v1572
  %v2868 = vsub.f32 %v2453, %v2862
  %v2869 = vsub.f32 %v2458, %v2863
  %v2870 = vsub.f32 %v2463, %v2864
  %v2871 = vsub.f32 %v2468, %v2865
  %v2872 = vsub.f32 %v2473, %v2866
  %v2873 = vsub.f32 %v2478, %v2867
  %v2874 = vmul.f32 %v2868, %v2868
  %v2875 = vmul.f32 %v2869, %v2869
  %v2876 = vmul.f32 %v2870, %v2870
  %v2877 = vmul.f32 %v2871, %v2871
  %v2878 = vmul.f32 %v2872, %v2872
  %v2879 = vmul.f32 %v2873, %v2873
  %2880 = vadd.xlane.f32.xlu0 %v2874
  %v2881 = vpop.xlane.xlu0 %2880
  %2882 = vadd.xlane.f32.xlu0 %v2875
  %v2883 = vpop.xlane.xlu0 %2882
  %2884 = vadd.xlane.f32.xlu0 %v2876
  %v2885 = vpop.xlane.xlu0 %2884
  %2886 = vadd.xlane.f32.xlu0 %v2877
  %v2887 = vpop.xlane.xlu0 %2886
  %2888 = vadd.xlane.f32.xlu0 %v2878
  %v2889 = vpop.xlane.xlu0 %2888
  %2890 = vadd.xlane.f32.xlu0 %v2879
  %v2891 = vpop.xlane.xlu0 %2890
  %v2892 = vmul.f32 %v2881, %v1572
  %v2893 = vmul.f32 %v2883, %v1572
  %v2894 = vmul.f32 %v2885, %v1572
  %v2895 = vmul.f32 %v2887, %v1572
  %v2896 = vmul.f32 %v2889, %v1572
  %v2897 = vmul.f32 %v2891, %v1572
  %v2898 = vadd.f32 %v2892, 1e-05
  %v2899 = vadd.f32 %v2893, 1e-05
  %v2900 = vadd.f32 %v2894, 1e-05
  %v2901 = vadd.f32 %v2895, 1e-05
  %v2902 = vadd.f32 %v2896, 1e-05
  %v2903 = vadd.f32 %v2897, 1e-05
  %v2904 = vrsqrt.pop %v2898
  %v2905 = vrsqrt.pop %v2899
  %v2906 = vrsqrt.pop %v2900
  %v2907 = vrsqrt.pop %v2901
  %v2908 = vrsqrt.pop %v2902
  %v2909 = vrsqrt.pop %v2903
  %v2910 = vmul.f32 %v2868, %v2904
  %v2911 = vmul.f32 %v2869, %v2905
  %v2912 = vmul.f32 %v2870, %v2906
  %v2913 = vmul.f32 %v2871, %v2907
  %v2914 = vmul.f32 %v2872, %v2908
  %v2915 = vmul.f32 %v2873, %v2909
  %v2917 = vlaneseq
  %v2918 = vshrl.u32 %v2917, 7
  %v2919 = vsub.s32 0, %v2918
  %v2920 = vrot.slane %v299, %v2919
  %v2922 = vmul.f32 %v2910, %v2920
  %v2923 = vmul.f32 %v2911, %v2920
  %v2924 = vmul.f32 %v2912, %v2920
  %v2925 = vmul.f32 %v2913, %v2920
  %v2926 = vmul.f32 %v2914, %v2920
  %v2927 = vmul.f32 %v2915, %v2920
  %v2929 = vlaneseq
  %v2930 = vshrl.u32 %v2929, 7
  %v2931 = vsub.s32 0, %v2930
  %v2932 = vrot.slane %v300, %v2931
  %v2934 = vadd.f32 %v2922, %v2932
  %v2935 = vadd.f32 %v2923, %v2932
  %v2936 = vadd.f32 %v2924, %v2932
  %v2937 = vadd.f32 %v2925, %v2932
  %v2938 = vadd.f32 %v2926, %v2932
  %v2939 = vadd.f32 %v2927, %v2932
  %v2940 = vxor.u32 %v2934, 2147483648
  %v2941 = vxor.u32 %v2935, 2147483648
  %v2942 = vxor.u32 %v2936, 2147483648
  %v2943 = vxor.u32 %v2937, 2147483648
  %v2944 = vxor.u32 %v2938, 2147483648
  %v2945 = vxor.u32 %v2939, 2147483648
  %v2946 = vmul.f32 %v2940, 1.442695
  %v2947 = vpow.pop %v2946
  %v2948 = vmul.f32 %v2941, 1.442695
  %v2949 = vpow.pop %v2948
  %v2950 = vmul.f32 %v2942, 1.442695
  %v2951 = vpow.pop %v2950
  %v2952 = vmul.f32 %v2943, 1.442695
  %v2953 = vpow.pop %v2952
  %v2954 = vmul.f32 %v2944, 1.442695
  %v2955 = vpow.pop %v2954
  %v2956 = vmul.f32 %v2945, 1.442695
  %v2957 = vpow.pop %v2956
  %v2958 = vadd.f32 %v2947, 1.0
  %v2959 = vadd.f32 %v2949, 1.0
  %v2960 = vadd.f32 %v2951, 1.0
  %v2961 = vadd.f32 %v2953, 1.0
  %v2962 = vadd.f32 %v2955, 1.0
  %v2963 = vadd.f32 %v2957, 1.0
  %v2964 = vrcp.pop %v2958
  %v2965 = vmul.f32 1.0, %v2964
  %v2966 = vrcp.pop %v2959
  %v2967 = vmul.f32 1.0, %v2966
  %v2968 = vrcp.pop %v2960
  %v2969 = vmul.f32 1.0, %v2968
  %v2970 = vrcp.pop %v2961
  %v2971 = vmul.f32 1.0, %v2970
  %v2972 = vrcp.pop %v2962
  %v2973 = vmul.f32 1.0, %v2972
  %v2974 = vrcp.pop %v2963
  %v2975 = vmul.f32 1.0, %v2974
  %v2976 = vmul.f32 %v2934, %v2965
  %v2977 = vmul.f32 %v2935, %v2967
  %v2978 = vmul.f32 %v2936, %v2969
  %v2979 = vmul.f32 %v2937, %v2971
  %v2980 = vmul.f32 %v2938, %v2973
  %v2981 = vmul.f32 %v2939, %v2975
  %v2982 = vadd.f32 %v1693, %v2976
  %v2983 = vadd.f32 %v1694, %v2977
  %v2984 = vadd.f32 %v1695, %v2978
  %v2985 = vadd.f32 %v1696, %v2979
  %v2986 = vadd.f32 %v1697, %v2980
  %v2987 = vadd.f32 %v1698, %v2981
  %2988 = vst [vmem:[%s59] sm:$0xff] %v2848
  %2989 = vst [vmem:[%s59 + $0x8] sm:$0xff] %v2849
  %2990 = vst [vmem:[%s61] sm:$0xff] %v2982
  %2991 = vst [vmem:[%s61 + $0x8] sm:$0xff] %v2983
  %2992 = vst [vmem:[%s61 + $0x10] sm:$0xff] %v2984
  %2993 = vst [vmem:[%s61 + $0x18] sm:$0xff] %v2985
  %2994 = vst [vmem:[%s61 + $0x20] sm:$0xff] %v2986
  %2995 = vst [vmem:[%s61 + $0x28] sm:$0xff] %v2987
  %2996 = vst [vmem:[%s63] sm:$0xff] %v1951
  %2997 = vst [vmem:[%s63 + $0x8] sm:$0xff] %v1952
  %2998 = vst [vmem:[%s63 + $0x10] sm:$0xff] %v1953
  %2999 = vst [vmem:[%s63 + $0x18] sm:$0xff] %v1954
  %3000 = vst [vmem:[%s63 + $0x20] sm:$0xff] %v1955
  %3001 = vst [vmem:[%s63 + $0x28] sm:$0xff] %v1956
  %3002 = vst [vmem:[%s63 + $0x30] sm:$0xff] %v1957
  %3003 = vst [vmem:[%s63 + $0x38] sm:$0xff] %v1958
  %3004 = vst [vmem:[%s63 + $0x40] sm:$0xff] %v1959
  %3005 = vst [vmem:[%s63 + $0x48] sm:$0xff] %v1960
  %3006 = vst [vmem:[%s63 + $0x50] sm:$0xff] %v1961
  %3007 = vst [vmem:[%s63 + $0x58] sm:$0xff] %v1962
  // Predicated region
  $region118: #{alignn_forward.6} parent=0 // pred_check
    _
  $region119: #{alignn_forward.6} parent=0 // pred_check_branch
    %3009 = sbr.rel (0) target = $region121
  $region120: #{alignn_forward.6} parent=0 // pred_region
    _
  $region121: #{alignn_forward.6} parent=0 // pred_fallthru
    _
  // Predicated region
  $region122: #{alignn_forward.6} parent=0 // pred_check
    _
  $region123: #{alignn_forward.6} parent=0 // pred_check_branch
    %3011 = sbr.rel (0) target = $region125
  $region124: #{alignn_forward.6} parent=0 // pred_region
    _
  $region125: #{alignn_forward.6} parent=0 // pred_fallthru
    _
  // Predicated region
  $region126: #{alignn_forward.6} parent=0 // pred_check
    _
  $region127: #{alignn_forward.6} parent=0 // pred_check_branch
    %3013 = sbr.rel (0) target = $region129
  $region128: #{alignn_forward.6} parent=0 // pred_region
    _
  $region129: #{alignn_forward.6} parent=0 // pred_fallthru
    _
  // Predicated region
  $region130: #{alignn_forward.6} parent=0 // pred_check
    _
  $region131: #{alignn_forward.6} parent=0 // pred_check_branch
    %3015 = sbr.rel (0) target = $region133
  $region132: #{alignn_forward.6} parent=0 // pred_region
    _
  $region133: #{alignn_forward.6} parent=0 // pred_fallthru
    _
  // Predicated region
  $region134: #{alignn_forward.6} parent=0 // pred_check
    _
  $region135: #{alignn_forward.6} parent=0 // pred_check_branch
    %3017 = sbr.rel (0) target = $region137
  $region136: #{alignn_forward.6} parent=0 // pred_region
    _
  $region137: #{alignn_forward.6} parent=0 // pred_fallthru
    _
  // Predicated region
  $region138: #{alignn_forward.6} parent=0 // pred_check
    _
  $region139: #{alignn_forward.6} parent=0 // pred_check_branch
    %3019 = sbr.rel (0) target = $region141
  $region140: #{alignn_forward.6} parent=0 // pred_region
    _
  $region141: #{alignn_forward.6} parent=0 // pred_fallthru
    _

// kernel: alignn_forward.5
$region0: #{alignn_forward.5}
  #allocation0 [shape = 'u32[]', space=smem, size = 0x4, offset = 0x4, fixed_abs, tag = 'smem constant byte address 0x4 - core index']
  #allocation1 [shape = 'u32[144,128]{1,0:T(1,128)}', space=vmem, size = 0x12000, scoped, tag = 'internal scratch']
  %s0 = inlined_call_operand.smem [shape: u32[32], index: -1, kind: input, shape index: {}]
  %s1 = sld [smem:[%s0]]
  %s2 = scalar_lea.smem %s0, 1
  %s3 = sld [smem:[%s2]]
  %s4 = scalar_lea.smem %s0, 2
  %s5 = sld [smem:[%s4]]
  %s6 = scalar_lea.smem %s0, 3
  %s7 = sld [smem:[%s6]]
  %s8 = scalar_lea.smem %s0, 4
  %s9 = sld [smem:[%s8]]
  %s10 = scalar_lea.smem %s0, 5
  %s11 = sld [smem:[%s10]]
  %s12 = scalar_lea.smem %s0, 6
  %s13 = sld [smem:[%s12]]
  %s14 = scalar_lea.smem %s0, 7
  %s15 = sld [smem:[%s14]]
  %s16 = scalar_lea.smem %s0, 8
  %s17 = sld [smem:[%s16]]
  %s18 = scalar_lea.smem %s0, 9
  %s19 = sld [smem:[%s18]]
  %s20 = scalar_lea.smem %s0, 10
  %s21 = sld [smem:[%s20]]
  %s22 = scalar_lea.smem %s0, 11
  %s23 = sld [smem:[%s22]]
  %s24 = scalar_lea.smem %s0, 12
  %s25 = sld [smem:[%s24]]
  %s26 = scalar_lea.smem %s0, 13
  %s27 = sld [smem:[%s26]]
  %s28 = scalar_lea.smem %s0, 14
  %s29 = sld [smem:[%s28]]
  %s30 = scalar_lea.smem %s0, 15
  %s31 = sld [smem:[%s30]]
  %s32 = scalar_lea.smem %s0, 16
  %s33 = sld [smem:[%s32]]
  %s34 = scalar_lea.smem %s0, 17
  %s35 = sld [smem:[%s34]]
  %s36 = scalar_lea.smem %s0, 18
  %s37 = sld [smem:[%s36]]
  %s38 = scalar_lea.smem %s0, 19
  %s39 = sld [smem:[%s38]]
  %s40 = scalar_lea.smem %s0, 20
  %s41 = sld [smem:[%s40]]
  %s42 = scalar_lea.smem %s0, 21
  %s43 = sld [smem:[%s42]]
  %s44 = scalar_lea.smem %s0, 22
  %s45 = sld [smem:[%s44]]
  %s46 = scalar_lea.smem %s0, 23
  %s47 = sld [smem:[%s46]]
  %s48 = scalar_lea.smem %s0, 24
  %s49 = sld [smem:[%s48]]
  %s50 = scalar_lea.smem %s0, 25
  %s51 = sld [smem:[%s50]]
  %s52 = scalar_lea.smem %s0, 26
  %s53 = sld [smem:[%s52]]
  %s54 = scalar_lea.smem %s0, 27
  %s55 = sld [smem:[%s54]]
  %s56 = scalar_lea.smem %s0, 28
  %s57 = sld [smem:[%s56]]
  %s58 = scalar_lea.smem %s0, 29
  %s59 = sld [smem:[%s58]]
  %s60 = scalar_lea.smem %s0, 30
  %s61 = sld [smem:[%s60]]
  %s62 = scalar_lea.smem %s0, 31
  %s63 = sld [smem:[%s62]]
  %64 = xla_tuple %s59, %s61, %s63
  %s65 = sld [smem:[#allocation0]]
  $region190: #{alignn_forward.5} parent=0
    _
  %s67 = ssub.s32 1, %s65
  %s68 = scalar_select 0, %s67, %s65
  $region1: #{alignn_forward.5} parent=0
    #allocation2 [shape = 'u8[512]{0}', space=vmem, size = 0x400, scoped, tag = 'input window, operand 10, single buffered']
    #allocation3 [shape = 's32[1]{0}', space=sflag, size = 0x4, scoped, tag = 'scoped memory for alignn_forward.5']
    #allocation4 [shape = 'u8[65536]{0}', space=vmem, size = 0x10000, scoped, tag = 'input window, operand 11, single buffered']
    #allocation5 [shape = 's32[1]{0}', space=sflag, size = 0x4, scoped, tag = 'scoped memory for alignn_forward.5']
    #allocation6 [shape = 'u8[512]{0}', space=vmem, size = 0x400, scoped, tag = 'input window, operand 12, single buffered']
    #allocation7 [shape = 'u8[65536]{0}', space=vmem, size = 0x10000, scoped, tag = 'input window, operand 13, single buffered']
    #allocation8 [shape = 's32[1]{0}', space=sflag, size = 0x4, scoped, tag = 'scoped memory for alignn_forward.5']
    #allocation9 [shape = 'u8[512]{0}', space=vmem, size = 0x400, scoped, tag = 'input window, operand 14, single buffered']
    #allocation10 [shape = 'u8[512]{0}', space=vmem, size = 0x400, scoped, tag = 'input window, operand 15, single buffered']
    #allocation11 [shape = 's32[1]{0}', space=sflag, size = 0x4, scoped, tag = 'scoped memory for alignn_forward.5']
    #allocation12 [shape = 'u8[512]{0}', space=vmem, size = 0x400, scoped, tag = 'input window, operand 16, single buffered']
    #allocation13 [shape = 'u8[512]{0}', space=vmem, size = 0x400, scoped, tag = 'input window, operand 17, single buffered']
    #allocation14 [shape = 's32[1]{0}', space=sflag, size = 0x4, scoped, tag = 'scoped memory for alignn_forward.5']
    #allocation15 [shape = 'u8[512]{0}', space=vmem, size = 0x400, scoped, tag = 'input window, operand 18, single buffered']
    #allocation16 [shape = 'u8[512]{0}', space=vmem, size = 0x400, scoped, tag = 'input window, operand 20, single buffered']
    #allocation17 [shape = 's32[1]{0}', space=sflag, size = 0x4, scoped, tag = 'scoped memory for alignn_forward.5']
    #allocation18 [shape = 'u8[65536]{0}', space=vmem, size = 0x10000, scoped, tag = 'input window, operand 21, single buffered']
    #allocation19 [shape = 'u8[65536]{0}', space=vmem, size = 0x10000, scoped, tag = 'input window, operand 23, single buffered']
    #allocation20 [shape = 's32[1]{0}', space=sflag, size = 0x4, scoped, tag = 'scoped memory for alignn_forward.5']
    %69 = vsyncpa [#allocation3], 0
    %70 = vsyncpa [#allocation5], 0
    %71 = vsyncpa [#allocation8], 0
    %72 = vsyncpa [#allocation11], 0
    %73 = vsyncpa [#allocation14], 0
    %74 = vsyncpa [#allocation17], 0
    %75 = vsyncpa [#allocation20], 0
    // Predicated region
    $region2: #{alignn_forward.5} parent=1 // pred_check
      _
    $region3: #{alignn_forward.5} parent=1 // pred_check_branch
      %77 = sbr.rel (0) target = $region5
    $region4: #{alignn_forward.5} parent=1 // pred_region
      _
    $region5: #{alignn_forward.5} parent=1 // pred_fallthru
      _
    // Predicated region
    $region6: #{alignn_forward.5} parent=1 // pred_check
      _
    $region7: #{alignn_forward.5} parent=1 // pred_check_branch
      %79 = sbr.rel (0) target = $region9
    $region8: #{alignn_forward.5} parent=1 // pred_region
      _
    $region9: #{alignn_forward.5} parent=1 // pred_fallthru
      _
    // Predicated region
    $region10: #{alignn_forward.5} parent=1 // pred_check
      _
    $region11: #{alignn_forward.5} parent=1 // pred_check_branch
      %81 = sbr.rel (0) target = $region13
    $region12: #{alignn_forward.5} parent=1 // pred_region
      _
    $region13: #{alignn_forward.5} parent=1 // pred_fallthru
      _
    // Predicated region
    $region14: #{alignn_forward.5} parent=1 // pred_check
      _
    $region15: #{alignn_forward.5} parent=1 // pred_check_branch
      %83 = sbr.rel (0) target = $region17
    $region16: #{alignn_forward.5} parent=1 // pred_region
      _
    $region17: #{alignn_forward.5} parent=1 // pred_fallthru
      _
    // Predicated region
    $region18: #{alignn_forward.5} parent=1 // pred_check
      _
    $region19: #{alignn_forward.5} parent=1 // pred_check_branch
      %85 = sbr.rel (0) target = $region21
    $region20: #{alignn_forward.5} parent=1 // pred_region
      _
    $region21: #{alignn_forward.5} parent=1 // pred_fallthru
      _
    // Predicated region
    $region22: #{alignn_forward.5} parent=1 // pred_check
      _
    $region23: #{alignn_forward.5} parent=1 // pred_check_branch
      %87 = sbr.rel (0) target = $region25
    $region24: #{alignn_forward.5} parent=1 // pred_region
      _
    $region25: #{alignn_forward.5} parent=1 // pred_fallthru
      _
    // Predicated region
    $region26: #{alignn_forward.5} parent=1 // pred_check
      _
    $region27: #{alignn_forward.5} parent=1 // pred_check_branch
      %89 = sbr.rel (0) target = $region29
    $region28: #{alignn_forward.5} parent=1 // pred_region
      _
    $region29: #{alignn_forward.5} parent=1 // pred_fallthru
      _
    // Predicated region
    $region30: #{alignn_forward.5} parent=1 // pred_check
      _
    $region31: #{alignn_forward.5} parent=1 // pred_check_branch
      %91 = sbr.rel (0) target = $region33
    $region32: #{alignn_forward.5} parent=1 // pred_region
      _
    $region33: #{alignn_forward.5} parent=1 // pred_fallthru
      _
    // Predicated region
    $region34: #{alignn_forward.5} parent=1 // pred_check
      _
    $region35: #{alignn_forward.5} parent=1 // pred_check_branch
      %93 = sbr.rel (0) target = $region37
    $region36: #{alignn_forward.5} parent=1 // pred_region
      _
    $region37: #{alignn_forward.5} parent=1 // pred_fallthru
      _
    // Predicated region
    $region38: #{alignn_forward.5} parent=1 // pred_check
      _
    $region39: #{alignn_forward.5} parent=1 // pred_check_branch
      %95 = sbr.rel (0) target = $region41
    $region40: #{alignn_forward.5} parent=1 // pred_region
      _
    $region41: #{alignn_forward.5} parent=1 // pred_fallthru
      _
    // Predicated region
    $region42: #{alignn_forward.5} parent=1 // pred_check
      _
    $region43: #{alignn_forward.5} parent=1 // pred_check_branch
      %97 = sbr.rel (0) target = $region45
    $region44: #{alignn_forward.5} parent=1 // pred_region
      %s99 = ssub.s32 16, 16
      %100 = vsyncadd [#allocation3], %s99
      %s102 = sshll.u32 [#allocation2], 4
      %s103 = int_to_ptr.vmem [resolvable:$true] %s102
      %105 = dma.hbm_to_vmem [thread:$0]  %s21, 16, %s103, [#allocation3]
    $region45: #{alignn_forward.5} parent=1 // pred_fallthru
      _
    // Predicated region
    $region46: #{alignn_forward.5} parent=1 // pred_check
      _
    $region47: #{alignn_forward.5} parent=1 // pred_check_branch
      %107 = sbr.rel (0) target = $region49
    $region48: #{alignn_forward.5} parent=1 // pred_region
      %s109 = ssub.s32 2048, 2048
      %110 = vsyncadd [#allocation5], %s109
      %s111 = sshll.u32 [#allocation4], 4
      %s112 = int_to_ptr.vmem [resolvable:$true] %s111
      %117 = dma.hbm_to_vmem [thread:$0]  %s23, 2048, %s112, [#allocation5], 128, 128, 8
    $region49: #{alignn_forward.5} parent=1 // pred_fallthru
      _
    // Predicated region
    $region50: #{alignn_forward.5} parent=1 // pred_check
      _
    $region51: #{alignn_forward.5} parent=1 // pred_check_branch
      %119 = sbr.rel (0) target = $region53
    $region52: #{alignn_forward.5} parent=1 // pred_region
      %s121 = ssub.s32 16, 16
      %122 = vsyncadd [#allocation5], %s121
      %s124 = sshll.u32 [#allocation6], 4
      %s125 = int_to_ptr.vmem [resolvable:$true] %s124
      %127 = dma.hbm_to_vmem [thread:$0]  %s25, 16, %s125, [#allocation5]
    $region53: #{alignn_forward.5} parent=1 // pred_fallthru
      _
    // Predicated region
    $region54: #{alignn_forward.5} parent=1 // pred_check
      _
    $region55: #{alignn_forward.5} parent=1 // pred_check_branch
      %129 = sbr.rel (0) target = $region57
    $region56: #{alignn_forward.5} parent=1 // pred_region
      %s131 = ssub.s32 2048, 2048
      %132 = vsyncadd [#allocation8], %s131
      %s133 = sshll.u32 [#allocation7], 4
      %s134 = int_to_ptr.vmem [resolvable:$true] %s133
      %139 = dma.hbm_to_vmem [thread:$0]  %s27, 2048, %s134, [#allocation8], 128, 128, 8
    $region57: #{alignn_forward.5} parent=1 // pred_fallthru
      _
    // Predicated region
    $region58: #{alignn_forward.5} parent=1 // pred_check
      _
    $region59: #{alignn_forward.5} parent=1 // pred_check_branch
      %141 = sbr.rel (0) target = $region61
    $region60: #{alignn_forward.5} parent=1 // pred_region
      %s143 = ssub.s32 16, 16
      %144 = vsyncadd [#allocation8], %s143
      %s146 = sshll.u32 [#allocation9], 4
      %s147 = int_to_ptr.vmem [resolvable:$true] %s146
      %149 = dma.hbm_to_vmem [thread:$0]  %s29, 16, %s147, [#allocation8]
    $region61: #{alignn_forward.5} parent=1 // pred_fallthru
      _
    // Predicated region
    $region62: #{alignn_forward.5} parent=1 // pred_check
      _
    $region63: #{alignn_forward.5} parent=1 // pred_check_branch
      %151 = sbr.rel (0) target = $region65
    $region64: #{alignn_forward.5} parent=1 // pred_region
      %s153 = ssub.s32 16, 16
      %154 = vsyncadd [#allocation11], %s153
      %s156 = sshll.u32 [#allocation10], 4
      %s157 = int_to_ptr.vmem [resolvable:$true] %s156
      %159 = dma.hbm_to_vmem [thread:$0]  %s31, 16, %s157, [#allocation11]
    $region65: #{alignn_forward.5} parent=1 // pred_fallthru
      _
    // Predicated region
    $region66: #{alignn_forward.5} parent=1 // pred_check
      _
    $region67: #{alignn_forward.5} parent=1 // pred_check_branch
      %161 = sbr.rel (0) target = $region69
    $region68: #{alignn_forward.5} parent=1 // pred_region
      %s163 = ssub.s32 16, 16
      %164 = vsyncadd [#allocation11], %s163
      %s166 = sshll.u32 [#allocation12], 4
      %s167 = int_to_ptr.vmem [resolvable:$true] %s166
      %169 = dma.hbm_to_vmem [thread:$0]  %s33, 16, %s167, [#allocation11]
    $region69: #{alignn_forward.5} parent=1 // pred_fallthru
      _
    // Predicated region
    $region70: #{alignn_forward.5} parent=1 // pred_check
      _
    $region71: #{alignn_forward.5} parent=1 // pred_check_branch
      %171 = sbr.rel (0) target = $region73
    $region72: #{alignn_forward.5} parent=1 // pred_region
      %s173 = ssub.s32 16, 16
      %174 = vsyncadd [#allocation14], %s173
      %s176 = sshll.u32 [#allocation13], 4
      %s177 = int_to_ptr.vmem [resolvable:$true] %s176
      %179 = dma.hbm_to_vmem [thread:$0]  %s35, 16, %s177, [#allocation14]
    $region73: #{alignn_forward.5} parent=1 // pred_fallthru
      _
    // Predicated region
    $region74: #{alignn_forward.5} parent=1 // pred_check
      _
    $region75: #{alignn_forward.5} parent=1 // pred_check_branch
      %181 = sbr.rel (0) target = $region77
    $region76: #{alignn_forward.5} parent=1 // pred_region
      %s183 = ssub.s32 16, 16
      %184 = vsyncadd [#allocation14], %s183
      %s186 = sshll.u32 [#allocation15], 4
      %s187 = int_to_ptr.vmem [resolvable:$true] %s186
      %189 = dma.hbm_to_vmem [thread:$0]  %s37, 16, %s187, [#allocation14]
    $region77: #{alignn_forward.5} parent=1 // pred_fallthru
      _
    // Predicated region
    $region78: #{alignn_forward.5} parent=1 // pred_check
      _
    $region79: #{alignn_forward.5} parent=1 // pred_check_branch
      %191 = sbr.rel (0) target = $region81
    $region80: #{alignn_forward.5} parent=1 // pred_region
      _
    $region81: #{alignn_forward.5} parent=1 // pred_fallthru
      _
    // Predicated region
    $region82: #{alignn_forward.5} parent=1 // pred_check
      _
    $region83: #{alignn_forward.5} parent=1 // pred_check_branch
      %193 = sbr.rel (0) target = $region85
    $region84: #{alignn_forward.5} parent=1 // pred_region
      %s195 = ssub.s32 16, 16
      %196 = vsyncadd [#allocation17], %s195
      %s198 = sshll.u32 [#allocation16], 4
      %s199 = int_to_ptr.vmem [resolvable:$true] %s198
      %201 = dma.hbm_to_vmem [thread:$0]  %s41, 16, %s199, [#allocation17]
    $region85: #{alignn_forward.5} parent=1 // pred_fallthru
      _
    // Predicated region
    $region86: #{alignn_forward.5} parent=1 // pred_check
      _
    $region87: #{alignn_forward.5} parent=1 // pred_check_branch
      %203 = sbr.rel (0) target = $region89
    $region88: #{alignn_forward.5} parent=1 // pred_region
      %s205 = ssub.s32 2048, 2048
      %206 = vsyncadd [#allocation17], %s205
      %s207 = sshll.u32 [#allocation18], 4
      %s208 = int_to_ptr.vmem [resolvable:$true] %s207
      %213 = dma.hbm_to_vmem [thread:$0]  %s43, 2048, %s208, [#allocation17], 128, 128, 8
    $region89: #{alignn_forward.5} parent=1 // pred_fallthru
      _
    // Predicated region
    $region90: #{alignn_forward.5} parent=1 // pred_check
      _
    $region91: #{alignn_forward.5} parent=1 // pred_check_branch
      %215 = sbr.rel (0) target = $region93
    $region92: #{alignn_forward.5} parent=1 // pred_region
      _
    $region93: #{alignn_forward.5} parent=1 // pred_fallthru
      _
    // Predicated region
    $region94: #{alignn_forward.5} parent=1 // pred_check
      _
    $region95: #{alignn_forward.5} parent=1 // pred_check_branch
      %217 = sbr.rel (0) target = $region97
    $region96: #{alignn_forward.5} parent=1 // pred_region
      %s219 = ssub.s32 2048, 2048
      %220 = vsyncadd [#allocation20], %s219
      %s221 = sshll.u32 [#allocation19], 4
      %s222 = int_to_ptr.vmem [resolvable:$true] %s221
      %227 = dma.hbm_to_vmem [thread:$0]  %s47, 2048, %s222, [#allocation20], 128, 128, 8
    $region97: #{alignn_forward.5} parent=1 // pred_fallthru
      _
    // Predicated region
    $region98: #{alignn_forward.5} parent=1 // pred_check
      _
    $region99: #{alignn_forward.5} parent=1 // pred_check_branch
      %229 = sbr.rel (0) target = $region101
    $region100: #{alignn_forward.5} parent=1 // pred_region
      _
    $region101: #{alignn_forward.5} parent=1 // pred_fallthru
      _
    // Predicated region
    $region102: #{alignn_forward.5} parent=1 // pred_check
      _
    $region103: #{alignn_forward.5} parent=1 // pred_check_branch
      %231 = sbr.rel (0) target = $region105
    $region104: #{alignn_forward.5} parent=1 // pred_region
      _
    $region105: #{alignn_forward.5} parent=1 // pred_fallthru
      _
    // Predicated region
    $region106: #{alignn_forward.5} parent=1 // pred_check
      _
    $region107: #{alignn_forward.5} parent=1 // pred_check_branch
      %233 = sbr.rel (0) target = $region109
    $region108: #{alignn_forward.5} parent=1 // pred_region
      _
    $region109: #{alignn_forward.5} parent=1 // pred_fallthru
      _
    // Predicated region
    $region110: #{alignn_forward.5} parent=1 // pred_check
      _
    $region111: #{alignn_forward.5} parent=1 // pred_check_branch
      %235 = sbr.rel (0) target = $region113
    $region112: #{alignn_forward.5} parent=1 // pred_region
      _
    $region113: #{alignn_forward.5} parent=1 // pred_fallthru
      _
    // Predicated region
    $region114: #{alignn_forward.5} parent=1 // pred_check
      _
    $region115: #{alignn_forward.5} parent=1 // pred_check_branch
      %237 = sbr.rel (0) target = $region117
    $region116: #{alignn_forward.5} parent=1 // pred_region
      _
    $region117: #{alignn_forward.5} parent=1 // pred_fallthru
      _
    // Predicated region
    $region118: #{alignn_forward.5} parent=1 // pred_check
      _
    $region119: #{alignn_forward.5} parent=1 // pred_check_branch
      %239 = sbr.rel (0) target = $region121
    $region120: #{alignn_forward.5} parent=1 // pred_region
      %240 = dma.done [#allocation3], 16
    $region121: #{alignn_forward.5} parent=1 // pred_fallthru
      _
    // Predicated region
    $region122: #{alignn_forward.5} parent=1 // pred_check
      _
    $region123: #{alignn_forward.5} parent=1 // pred_check_branch
      %242 = sbr.rel (0) target = $region125
    $region124: #{alignn_forward.5} parent=1 // pred_region
      %243 = dma.done [#allocation5], 2048
    $region125: #{alignn_forward.5} parent=1 // pred_fallthru
      _
    // Predicated region
    $region126: #{alignn_forward.5} parent=1 // pred_check
      _
    $region127: #{alignn_forward.5} parent=1 // pred_check_branch
      %245 = sbr.rel (0) target = $region129
    $region128: #{alignn_forward.5} parent=1 // pred_region
      %246 = dma.done [#allocation5], 16
    $region129: #{alignn_forward.5} parent=1 // pred_fallthru
      _
    // Predicated region
    $region130: #{alignn_forward.5} parent=1 // pred_check
      _
    $region131: #{alignn_forward.5} parent=1 // pred_check_branch
      %248 = sbr.rel (0) target = $region133
    $region132: #{alignn_forward.5} parent=1 // pred_region
      %249 = dma.done [#allocation8], 2048
    $region133: #{alignn_forward.5} parent=1 // pred_fallthru
      _
    // Predicated region
    $region134: #{alignn_forward.5} parent=1 // pred_check
      _
    $region135: #{alignn_forward.5} parent=1 // pred_check_branch
      %251 = sbr.rel (0) target = $region137
    $region136: #{alignn_forward.5} parent=1 // pred_region
      %252 = dma.done [#allocation8], 16
    $region137: #{alignn_forward.5} parent=1 // pred_fallthru
      _
    // Predicated region
    $region138: #{alignn_forward.5} parent=1 // pred_check
      _
    $region139: #{alignn_forward.5} parent=1 // pred_check_branch
      %254 = sbr.rel (0) target = $region141
    $region140: #{alignn_forward.5} parent=1 // pred_region
      %255 = dma.done [#allocation11], 16
    $region141: #{alignn_forward.5} parent=1 // pred_fallthru
      _
    // Predicated region
    $region142: #{alignn_forward.5} parent=1 // pred_check
      _
    $region143: #{alignn_forward.5} parent=1 // pred_check_branch
      %257 = sbr.rel (0) target = $region145
    $region144: #{alignn_forward.5} parent=1 // pred_region
      %258 = dma.done [#allocation11], 16
    $region145: #{alignn_forward.5} parent=1 // pred_fallthru
      _
    // Predicated region
    $region146: #{alignn_forward.5} parent=1 // pred_check
      _
    $region147: #{alignn_forward.5} parent=1 // pred_check_branch
      %260 = sbr.rel (0) target = $region149
    $region148: #{alignn_forward.5} parent=1 // pred_region
      %261 = dma.done [#allocation14], 16
    $region149: #{alignn_forward.5} parent=1 // pred_fallthru
      _
    // Predicated region
    $region150: #{alignn_forward.5} parent=1 // pred_check
      _
    $region151: #{alignn_forward.5} parent=1 // pred_check_branch
      %263 = sbr.rel (0) target = $region153
    $region152: #{alignn_forward.5} parent=1 // pred_region
      %264 = dma.done [#allocation14], 16
    $region153: #{alignn_forward.5} parent=1 // pred_fallthru
      _
    // Predicated region
    $region154: #{alignn_forward.5} parent=1 // pred_check
      _
    $region155: #{alignn_forward.5} parent=1 // pred_check_branch
      %266 = sbr.rel (0) target = $region157
    $region156: #{alignn_forward.5} parent=1 // pred_region
      %267 = dma.done [#allocation17], 16
    $region157: #{alignn_forward.5} parent=1 // pred_fallthru
      _
    // Predicated region
    $region158: #{alignn_forward.5} parent=1 // pred_check
      _
    $region159: #{alignn_forward.5} parent=1 // pred_check_branch
      %269 = sbr.rel (0) target = $region161
    $region160: #{alignn_forward.5} parent=1 // pred_region
      %270 = dma.done [#allocation17], 2048
    $region161: #{alignn_forward.5} parent=1 // pred_fallthru
      _
    // Predicated region
    $region162: #{alignn_forward.5} parent=1 // pred_check
      _
    $region163: #{alignn_forward.5} parent=1 // pred_check_branch
      %272 = sbr.rel (0) target = $region165
    $region164: #{alignn_forward.5} parent=1 // pred_region
      %273 = dma.done [#allocation20], 2048
    $region165: #{alignn_forward.5} parent=1 // pred_fallthru
      _
    %v274 = vld [vmem:[%s19] sm:$0xff]
    %v275 = vld [vmem:[%s19 + $0x8] sm:$0xff]
    %v276 = vld [vmem:[%s19 + $0x10] sm:$0xff]
    %v277 = vld [vmem:[%s19 + $0x18] sm:$0xff]
    %v278 = vld [vmem:[%s19 + $0x20] sm:$0xff]
    %v279 = vld [vmem:[%s19 + $0x28] sm:$0xff]
    %v280 = vld [vmem:[%s19 + $0x30] sm:$0xff]
    %v281 = vld [vmem:[%s19 + $0x38] sm:$0xff]
    %v282 = vld [vmem:[%s19 + $0x40] sm:$0xff]
    %v283 = vld [vmem:[%s19 + $0x48] sm:$0xff]
    %v284 = vld [vmem:[%s19 + $0x50] sm:$0xff]
    %v285 = vld [vmem:[%s19 + $0x58] sm:$0xff]
    %v286 = vld [vmem:[%s19 + $0x60] sm:$0xff]
    %v287 = vld [vmem:[%s19 + $0x68] sm:$0xff]
    %v288 = vld [vmem:[%s19 + $0x70] sm:$0xff]
    %v289 = vld [vmem:[%s19 + $0x78] sm:$0xff]
    %v290 = vld [vmem:[%s19 + $0x80] sm:$0xff]
    %v291 = vld [vmem:[%s19 + $0x88] sm:$0xff]
    %v292 = vld [vmem:[%s19 + $0x90] sm:$0xff]
    %v293 = vld [vmem:[%s19 + $0x98] sm:$0xff]
    %v294 = vld [vmem:[%s19 + $0xa0] sm:$0xff]
    %v295 = vld [vmem:[%s19 + $0xa8] sm:$0xff]
    %v296 = vld [vmem:[%s19 + $0xb0] sm:$0xff]
    %v297 = vld [vmem:[%s19 + $0xb8] sm:$0xff]
    %v298 = vld [vmem:[%s19 + $0xc0] sm:$0xff]
    %v299 = vld [vmem:[%s19 + $0xc8] sm:$0xff]
    %v300 = vld [vmem:[%s19 + $0xd0] sm:$0xff]
    %v301 = vld [vmem:[%s19 + $0xd8] sm:$0xff]
    %v302 = vld [vmem:[%s19 + $0xe0] sm:$0xff]
    %v303 = vld [vmem:[%s19 + $0xe8] sm:$0xff]
    %v304 = vld [vmem:[%s19 + $0xf0] sm:$0xff]
    %v305 = vld [vmem:[%s19 + $0xf8] sm:$0xff]
    %v306 = vld [vmem:[%s19 + $0x100] sm:$0xff]
    %v307 = vld [vmem:[%s19 + $0x108] sm:$0xff]
    %v308 = vld [vmem:[%s19 + $0x110] sm:$0xff]
    %v309 = vld [vmem:[%s19 + $0x118] sm:$0xff]
    %v310 = vld [vmem:[%s19 + $0x120] sm:$0xff]
    %v311 = vld [vmem:[%s19 + $0x128] sm:$0xff]
    %v312 = vld [vmem:[%s19 + $0x130] sm:$0xff]
    %v313 = vld [vmem:[%s19 + $0x138] sm:$0xff]
    %v314 = vld [vmem:[%s19 + $0x140] sm:$0xff]
    %v315 = vld [vmem:[%s19 + $0x148] sm:$0xff]
    %v316 = vld [vmem:[%s19 + $0x150] sm:$0xff]
    %v317 = vld [vmem:[%s19 + $0x158] sm:$0xff]
    %v318 = vld [vmem:[%s19 + $0x160] sm:$0xff]
    %v319 = vld [vmem:[%s19 + $0x168] sm:$0xff]
    %v320 = vld [vmem:[%s19 + $0x170] sm:$0xff]
    %v321 = vld [vmem:[%s19 + $0x178] sm:$0xff]
    %v322 = vld [vmem:[#allocation2] sm:$0x1]
    %v323 = vld [vmem:[#allocation4] sm:$0xff]
    %v324 = vld [vmem:[#allocation4 + $0x8] sm:$0xff]
    %v325 = vld [vmem:[#allocation4 + $0x10] sm:$0xff]
    %v326 = vld [vmem:[#allocation4 + $0x18] sm:$0xff]
    %v327 = vld [vmem:[#allocation4 + $0x20] sm:$0xff]
    %v328 = vld [vmem:[#allocation4 + $0x28] sm:$0xff]
    %v329 = vld [vmem:[#allocation4 + $0x30] sm:$0xff]
    %v330 = vld [vmem:[#allocation4 + $0x38] sm:$0xff]
    %v331 = vld [vmem:[#allocation4 + $0x40] sm:$0xff]
    %v332 = vld [vmem:[#allocation4 + $0x48] sm:$0xff]
    %v333 = vld [vmem:[#allocation4 + $0x50] sm:$0xff]
    %v334 = vld [vmem:[#allocation4 + $0x58] sm:$0xff]
    %v335 = vld [vmem:[#allocation4 + $0x60] sm:$0xff]
    %v336 = vld [vmem:[#allocation4 + $0x68] sm:$0xff]
    %v337 = vld [vmem:[#allocation4 + $0x70] sm:$0xff]
    %v338 = vld [vmem:[#allocation4 + $0x78] sm:$0xff]
    %v339 = vld [vmem:[#allocation6] sm:$0x1]
    %v340 = vld [vmem:[#allocation7] sm:$0xff]
    %v341 = vld [vmem:[#allocation7 + $0x8] sm:$0xff]
    %v342 = vld [vmem:[#allocation7 + $0x10] sm:$0xff]
    %v343 = vld [vmem:[#allocation7 + $0x18] sm:$0xff]
    %v344 = vld [vmem:[#allocation7 + $0x20] sm:$0xff]
    %v345 = vld [vmem:[#allocation7 + $0x28] sm:$0xff]
    %v346 = vld [vmem:[#allocation7 + $0x30] sm:$0xff]
    %v347 = vld [vmem:[#allocation7 + $0x38] sm:$0xff]
    %v348 = vld [vmem:[#allocation7 + $0x40] sm:$0xff]
    %v349 = vld [vmem:[#allocation7 + $0x48] sm:$0xff]
    %v350 = vld [vmem:[#allocation7 + $0x50] sm:$0xff]
    %v351 = vld [vmem:[#allocation7 + $0x58] sm:$0xff]
    %v352 = vld [vmem:[#allocation7 + $0x60] sm:$0xff]
    %v353 = vld [vmem:[#allocation7 + $0x68] sm:$0xff]
    %v354 = vld [vmem:[#allocation7 + $0x70] sm:$0xff]
    %v355 = vld [vmem:[#allocation7 + $0x78] sm:$0xff]
    %v356 = vld [vmem:[#allocation9] sm:$0x1]
    %v357 = vld [vmem:[#allocation10] sm:$0x1]
    %v358 = vld [vmem:[#allocation12] sm:$0x1]
    %v359 = vld [vmem:[#allocation13] sm:$0x1]
    %v360 = vld [vmem:[#allocation15] sm:$0x1]
    %v361 = vld [vmem:[%s39] sm:$0xff]
    %v362 = vld [vmem:[%s39 + $0x8] sm:$0xff]
    %v363 = vld [vmem:[%s39 + $0x10] sm:$0xff]
    %v364 = vld [vmem:[%s39 + $0x18] sm:$0xff]
    %v365 = vld [vmem:[%s39 + $0x20] sm:$0xff]
    %v366 = vld [vmem:[%s39 + $0x28] sm:$0xff]
    %v367 = vld [vmem:[%s39 + $0x30] sm:$0xff]
    %v368 = vld [vmem:[%s39 + $0x38] sm:$0xff]
    %v369 = vld [vmem:[%s39 + $0x40] sm:$0xff]
    %v370 = vld [vmem:[%s39 + $0x48] sm:$0xff]
    %v371 = vld [vmem:[%s39 + $0x50] sm:$0xff]
    %v372 = vld [vmem:[%s39 + $0x58] sm:$0xff]
    %v373 = vld [vmem:[%s39 + $0x60] sm:$0xff]
    %v374 = vld [vmem:[%s39 + $0x68] sm:$0xff]
    %v375 = vld [vmem:[%s39 + $0x70] sm:$0xff]
    %v376 = vld [vmem:[%s39 + $0x78] sm:$0xff]
    %v377 = vld [vmem:[%s39 + $0x80] sm:$0xff]
    %v378 = vld [vmem:[%s39 + $0x88] sm:$0xff]
    %v379 = vld [vmem:[%s39 + $0x90] sm:$0xff]
    %v380 = vld [vmem:[%s39 + $0x98] sm:$0xff]
    %v381 = vld [vmem:[%s39 + $0xa0] sm:$0xff]
    %v382 = vld [vmem:[%s39 + $0xa8] sm:$0xff]
    %v383 = vld [vmem:[%s39 + $0xb0] sm:$0xff]
    %v384 = vld [vmem:[%s39 + $0xb8] sm:$0xff]
    %v385 = vld [vmem:[%s39 + $0xc0] sm:$0xff]
    %v386 = vld [vmem:[%s39 + $0xc8] sm:$0xff]
    %v387 = vld [vmem:[%s39 + $0xd0] sm:$0xff]
    %v388 = vld [vmem:[%s39 + $0xd8] sm:$0xff]
    %v389 = vld [vmem:[%s39 + $0xe0] sm:$0xff]
    %v390 = vld [vmem:[%s39 + $0xe8] sm:$0xff]
    %v391 = vld [vmem:[%s39 + $0xf0] sm:$0xff]
    %v392 = vld [vmem:[%s39 + $0xf8] sm:$0xff]
    %v393 = vld [vmem:[%s39 + $0x100] sm:$0xff]
    %v394 = vld [vmem:[%s39 + $0x108] sm:$0xff]
    %v395 = vld [vmem:[%s39 + $0x110] sm:$0xff]
    %v396 = vld [vmem:[%s39 + $0x118] sm:$0xff]
    %v397 = vld [vmem:[%s39 + $0x120] sm:$0xff]
    %v398 = vld [vmem:[%s39 + $0x128] sm:$0xff]
    %v399 = vld [vmem:[%s39 + $0x130] sm:$0xff]
    %v400 = vld [vmem:[%s39 + $0x138] sm:$0xff]
    %v401 = vld [vmem:[%s39 + $0x140] sm:$0xff]
    %v402 = vld [vmem:[%s39 + $0x148] sm:$0xff]
    %v403 = vld [vmem:[%s39 + $0x150] sm:$0xff]
    %v404 = vld [vmem:[%s39 + $0x158] sm:$0xff]
    %v405 = vld [vmem:[%s39 + $0x160] sm:$0xff]
    %v406 = vld [vmem:[%s39 + $0x168] sm:$0xff]
    %v407 = vld [vmem:[%s39 + $0x170] sm:$0xff]
    %v408 = vld [vmem:[%s39 + $0x178] sm:$0xff]
    %v409 = vld [vmem:[#allocation16] sm:$0x1]
    %v410 = vld [vmem:[#allocation18] sm:$0xff]
    %v411 = vld [vmem:[#allocation18 + $0x8] sm:$0xff]
    %v412 = vld [vmem:[#allocation18 + $0x10] sm:$0xff]
    %v413 = vld [vmem:[#allocation18 + $0x18] sm:$0xff]
    %v414 = vld [vmem:[#allocation18 + $0x20] sm:$0xff]
    %v415 = vld [vmem:[#allocation18 + $0x28] sm:$0xff]
    %v416 = vld [vmem:[#allocation18 + $0x30] sm:$0xff]
    %v417 = vld [vmem:[#allocation18 + $0x38] sm:$0xff]
    %v418 = vld [vmem:[#allocation18 + $0x40] sm:$0xff]
    %v419 = vld [vmem:[#allocation18 + $0x48] sm:$0xff]
    %v420 = vld [vmem:[#allocation18 + $0x50] sm:$0xff]
    %v421 = vld [vmem:[#allocation18 + $0x58] sm:$0xff]
    %v422 = vld [vmem:[#allocation18 + $0x60] sm:$0xff]
    %v423 = vld [vmem:[#allocation18 + $0x68] sm:$0xff]
    %v424 = vld [vmem:[#allocation18 + $0x70] sm:$0xff]
    %v425 = vld [vmem:[#allocation18 + $0x78] sm:$0xff]
    %v426 = vld [vmem:[%s45] sm:$0x1]
    %v427 = vld [vmem:[#allocation19] sm:$0xff]
    %v428 = vld [vmem:[#allocation19 + $0x8] sm:$0xff]
    %v429 = vld [vmem:[#allocation19 + $0x10] sm:$0xff]
    %v430 = vld [vmem:[#allocation19 + $0x18] sm:$0xff]
    %v431 = vld [vmem:[#allocation19 + $0x20] sm:$0xff]
    %v432 = vld [vmem:[#allocation19 + $0x28] sm:$0xff]
    %v433 = vld [vmem:[#allocation19 + $0x30] sm:$0xff]
    %v434 = vld [vmem:[#allocation19 + $0x38] sm:$0xff]
    %v435 = vld [vmem:[#allocation19 + $0x40] sm:$0xff]
    %v436 = vld [vmem:[#allocation19 + $0x48] sm:$0xff]
    %v437 = vld [vmem:[#allocation19 + $0x50] sm:$0xff]
    %v438 = vld [vmem:[#allocation19 + $0x58] sm:$0xff]
    %v439 = vld [vmem:[#allocation19 + $0x60] sm:$0xff]
    %v440 = vld [vmem:[#allocation19 + $0x68] sm:$0xff]
    %v441 = vld [vmem:[#allocation19 + $0x70] sm:$0xff]
    %v442 = vld [vmem:[#allocation19 + $0x78] sm:$0xff]
    %v443 = vld [vmem:[%s49] sm:$0x1]
    %v444 = vld [vmem:[%s51] sm:$0x1]
    %v445 = vld [vmem:[%s53] sm:$0x1]
    %v446 = vld [vmem:[%s55] sm:$0x1]
    %v447 = vld [vmem:[%s57] sm:$0x1]
    %v448 = vld [vmem:[%s1] sm:$0xff]
    %v449 = vld [vmem:[%s1 + $0x8] sm:$0xff]
    %v450 = vld [vmem:[%s3] sm:$0xff]
    %v451 = vld [vmem:[%s3 + $0x8] sm:$0xff]
    %v452 = vld [vmem:[%s3 + $0x10] sm:$0xff]
    %v453 = vld [vmem:[%s3 + $0x18] sm:$0xff]
    %v454 = vld [vmem:[%s3 + $0x20] sm:$0xff]
    %v455 = vld [vmem:[%s3 + $0x28] sm:$0xff]
    %v456 = vld [vmem:[%s5] sm:$0xff]
    %v457 = vld [vmem:[%s5 + $0x8] sm:$0xff]
    %v458 = vld [vmem:[%s5 + $0x10] sm:$0xff]
    %v459 = vld [vmem:[%s5 + $0x18] sm:$0xff]
    %v460 = vld [vmem:[%s5 + $0x20] sm:$0xff]
    %v461 = vld [vmem:[%s5 + $0x28] sm:$0xff]
    %v462 = vld [vmem:[%s5 + $0x30] sm:$0xff]
    %v463 = vld [vmem:[%s5 + $0x38] sm:$0xff]
    %v464 = vld [vmem:[%s5 + $0x40] sm:$0xff]
    %v465 = vld [vmem:[%s5 + $0x48] sm:$0xff]
    %v466 = vld [vmem:[%s5 + $0x50] sm:$0xff]
    %v467 = vld [vmem:[%s5 + $0x58] sm:$0xff]
    %v468 = vld [vmem:[%s13] sm:$0xff]
    %v469 = vld [vmem:[%s13 + $0x8] sm:$0xff]
    %v470 = vld [vmem:[%s13 + $0x10] sm:$0xff]
    %v471 = vld [vmem:[%s13 + $0x18] sm:$0xff]
    %v472 = vld [vmem:[%s13 + $0x20] sm:$0xff]
    %v473 = vld [vmem:[%s13 + $0x28] sm:$0xff]
    %v474 = vld [vmem:[%s13 + $0x30] sm:$0xff]
    %v475 = vld [vmem:[%s13 + $0x38] sm:$0xff]
    %v476 = vld [vmem:[%s13 + $0x40] sm:$0xff]
    %v477 = vld [vmem:[%s13 + $0x48] sm:$0xff]
    %v478 = vld [vmem:[%s13 + $0x50] sm:$0xff]
    %v479 = vld [vmem:[%s13 + $0x58] sm:$0xff]
    %v480 = vld [vmem:[%s15] sm:$0xff]
    %v481 = vld [vmem:[%s15 + $0x8] sm:$0xff]
    %v482 = vld [vmem:[%s15 + $0x10] sm:$0xff]
    %v483 = vld [vmem:[%s15 + $0x18] sm:$0xff]
    %v484 = vld [vmem:[%s15 + $0x20] sm:$0xff]
    %v485 = vld [vmem:[%s15 + $0x28] sm:$0xff]
    %v486 = vld [vmem:[%s15 + $0x30] sm:$0xff]
    %v487 = vld [vmem:[%s15 + $0x38] sm:$0xff]
    %v488 = vld [vmem:[%s15 + $0x40] sm:$0xff]
    %v489 = vld [vmem:[%s15 + $0x48] sm:$0xff]
    %v490 = vld [vmem:[%s15 + $0x50] sm:$0xff]
    %v491 = vld [vmem:[%s15 + $0x58] sm:$0xff]
    %v492 = vld [vmem:[%s17] sm:$0x1]
    %v493 = vlaneseq
    %v494 = vand.u32 %v493, 127
    %495 = vset.pattern.permute.xlu0 0
    %496 = vperm.xlu0 %495, %v468
    %v497 = vpop.permute.xlu0 %496
    %498 = vset.pattern.permute.xlu0 0
    %499 = vperm.xlu0 %498, %v469
    %v500 = vpop.permute.xlu0 %499
    %501 = vset.pattern.permute.xlu0 0
    %502 = vperm.xlu0 %501, %v470
    %v503 = vpop.permute.xlu0 %502
    %504 = vset.pattern.permute.xlu0 0
    %505 = vperm.xlu0 %504, %v471
    %v506 = vpop.permute.xlu0 %505
    %507 = vset.pattern.permute.xlu0 0
    %508 = vperm.xlu0 %507, %v472
    %v509 = vpop.permute.xlu0 %508
    %510 = vset.pattern.permute.xlu0 0
    %511 = vperm.xlu0 %510, %v473
    %v512 = vpop.permute.xlu0 %511
    %513 = vset.pattern.permute.xlu0 0
    %514 = vperm.xlu0 %513, %v474
    %v515 = vpop.permute.xlu0 %514
    %516 = vset.pattern.permute.xlu0 0
    %517 = vperm.xlu0 %516, %v475
    %v518 = vpop.permute.xlu0 %517
    %519 = vset.pattern.permute.xlu0 0
    %520 = vperm.xlu0 %519, %v476
    %v521 = vpop.permute.xlu0 %520
    %522 = vset.pattern.permute.xlu0 0
    %523 = vperm.xlu0 %522, %v477
    %v524 = vpop.permute.xlu0 %523
    %525 = vset.pattern.permute.xlu0 0
    %526 = vperm.xlu0 %525, %v478
    %v527 = vpop.permute.xlu0 %526
    %528 = vset.pattern.permute.xlu0 0
    %529 = vperm.xlu0 %528, %v479
    %v530 = vpop.permute.xlu0 %529
    %vm531 = vcmp.eq.s32.totalorder %v497, %v494
    %vm532 = vcmp.eq.s32.totalorder %v500, %v494
    %vm533 = vcmp.eq.s32.totalorder %v503, %v494
    %vm534 = vcmp.eq.s32.totalorder %v506, %v494
    %vm535 = vcmp.eq.s32.totalorder %v509, %v494
    %vm536 = vcmp.eq.s32.totalorder %v512, %v494
    %vm537 = vcmp.eq.s32.totalorder %v515, %v494
    %vm538 = vcmp.eq.s32.totalorder %v518, %v494
    %vm539 = vcmp.eq.s32.totalorder %v521, %v494
    %vm540 = vcmp.eq.s32.totalorder %v524, %v494
    %vm541 = vcmp.eq.s32.totalorder %v527, %v494
    %vm542 = vcmp.eq.s32.totalorder %v530, %v494
    %v543 = vsel %vm531, 1, 0
    %v544 = vsel %vm532, 1, 0
    %v545 = vsel %vm533, 1, 0
    %v546 = vsel %vm534, 1, 0
    %v547 = vsel %vm535, 1, 0
    %v548 = vsel %vm536, 1, 0
    %v549 = vsel %vm537, 1, 0
    %v550 = vsel %vm538, 1, 0
    %v551 = vsel %vm539, 1, 0
    %v552 = vsel %vm540, 1, 0
    %v553 = vsel %vm541, 1, 0
    %v554 = vsel %vm542, 1, 0
    %v555 = vcvt.s32.f32 %v543
    %v556 = vcvt.s32.f32 %v544
    %v557 = vcvt.s32.f32 %v545
    %v558 = vcvt.s32.f32 %v546
    %v559 = vcvt.s32.f32 %v547
    %v560 = vcvt.s32.f32 %v548
    %v561 = vcvt.s32.f32 %v549
    %v562 = vcvt.s32.f32 %v550
    %v563 = vcvt.s32.f32 %v551
    %v564 = vcvt.s32.f32 %v552
    %v565 = vcvt.s32.f32 %v553
    %v566 = vcvt.s32.f32 %v554
    %567 = vset.pattern.permute.xlu0 0
    %568 = vperm.xlu0 %567, %v480
    %v569 = vpop.permute.xlu0 %568
    %570 = vset.pattern.permute.xlu0 0
    %571 = vperm.xlu0 %570, %v481
    %v572 = vpop.permute.xlu0 %571
    %573 = vset.pattern.permute.xlu0 0
    %574 = vperm.xlu0 %573, %v482
    %v575 = vpop.permute.xlu0 %574
    %576 = vset.pattern.permute.xlu0 0
    %577 = vperm.xlu0 %576, %v483
    %v578 = vpop.permute.xlu0 %577
    %579 = vset.pattern.permute.xlu0 0
    %580 = vperm.xlu0 %579, %v484
    %v581 = vpop.permute.xlu0 %580
    %582 = vset.pattern.permute.xlu0 0
    %583 = vperm.xlu0 %582, %v485
    %v584 = vpop.permute.xlu0 %583
    %585 = vset.pattern.permute.xlu0 0
    %586 = vperm.xlu0 %585, %v486
    %v587 = vpop.permute.xlu0 %586
    %588 = vset.pattern.permute.xlu0 0
    %589 = vperm.xlu0 %588, %v487
    %v590 = vpop.permute.xlu0 %589
    %591 = vset.pattern.permute.xlu0 0
    %592 = vperm.xlu0 %591, %v488
    %v593 = vpop.permute.xlu0 %592
    %594 = vset.pattern.permute.xlu0 0
    %595 = vperm.xlu0 %594, %v489
    %v596 = vpop.permute.xlu0 %595
    %597 = vset.pattern.permute.xlu0 0
    %598 = vperm.xlu0 %597, %v490
    %v599 = vpop.permute.xlu0 %598
    %600 = vset.pattern.permute.xlu0 0
    %601 = vperm.xlu0 %600, %v491
    %v602 = vpop.permute.xlu0 %601
    %vm603 = vcmp.eq.s32.totalorder %v569, %v494
    %vm604 = vcmp.eq.s32.totalorder %v572, %v494
    %vm605 = vcmp.eq.s32.totalorder %v575, %v494
    %vm606 = vcmp.eq.s32.totalorder %v578, %v494
    %vm607 = vcmp.eq.s32.totalorder %v581, %v494
    %vm608 = vcmp.eq.s32.totalorder %v584, %v494
    %vm609 = vcmp.eq.s32.totalorder %v587, %v494
    %vm610 = vcmp.eq.s32.totalorder %v590, %v494
    %vm611 = vcmp.eq.s32.totalorder %v593, %v494
    %vm612 = vcmp.eq.s32.totalorder %v596, %v494
    %vm613 = vcmp.eq.s32.totalorder %v599, %v494
    %vm614 = vcmp.eq.s32.totalorder %v602, %v494
    %v615 = vsel %vm603, 1, 0
    %v616 = vsel %vm604, 1, 0
    %v617 = vsel %vm605, 1, 0
    %v618 = vsel %vm606, 1, 0
    %v619 = vsel %vm607, 1, 0
    %v620 = vsel %vm608, 1, 0
    %v621 = vsel %vm609, 1, 0
    %v622 = vsel %vm610, 1, 0
    %v623 = vsel %vm611, 1, 0
    %v624 = vsel %vm612, 1, 0
    %v625 = vsel %vm613, 1, 0
    %v626 = vsel %vm614, 1, 0
    %v627 = vcvt.s32.f32 %v615
    %v628 = vcvt.s32.f32 %v616
    %v629 = vcvt.s32.f32 %v617
    %v630 = vcvt.s32.f32 %v618
    %v631 = vcvt.s32.f32 %v619
    %v632 = vcvt.s32.f32 %v620
    %v633 = vcvt.s32.f32 %v621
    %v634 = vcvt.s32.f32 %v622
    %v635 = vcvt.s32.f32 %v623
    %v636 = vcvt.s32.f32 %v624
    %v637 = vcvt.s32.f32 %v625
    %v638 = vcvt.s32.f32 %v626
    %v639 = vlaneseq
    %v640 = vshrl.u32 %v639, 7
    %v641 = vadd.s32 %v640, 8
    %v642 = vadd.s32 %v640, 16
    %v643 = vadd.s32 %v640, 24
    %v644 = vadd.s32 %v640, 32
    %v645 = vadd.s32 %v640, 40
    %v646 = vlaneseq
    %v647 = vshrl.u32 %v646, 7
    %v648 = vsub.s32 0, %v647
    %v649 = vrot.slane %v492, %v648
    %vm650 = vcmp.eq.s32.totalorder %v649, %v640
    %vm651 = vcmp.eq.s32.totalorder %v649, %v641
    %vm652 = vcmp.eq.s32.totalorder %v649, %v642
    %vm653 = vcmp.eq.s32.totalorder %v649, %v643
    %vm654 = vcmp.eq.s32.totalorder %v649, %v644
    %vm655 = vcmp.eq.s32.totalorder %v649, %v645
    %v656 = vsel %vm650, 1, 0
    %v657 = vsel %vm651, 1, 0
    %v658 = vsel %vm652, 1, 0
    %v659 = vsel %vm653, 1, 0
    %v660 = vsel %vm654, 1, 0
    %v661 = vsel %vm655, 1, 0
    %v662 = vcvt.s32.f32 %v656
    %v663 = vcvt.s32.f32 %v657
    %v664 = vcvt.s32.f32 %v658
    %v665 = vcvt.s32.f32 %v659
    %v666 = vcvt.s32.f32 %v660
    %v667 = vcvt.s32.f32 %v661
    %vm668 = vcmask 392192
    %v670 = vsel %vm668, %v555, 0
    %v673 = vsel %vm668, %v556, 0
    %v676 = vsel %vm668, %v557, 0
    %v679 = vsel %vm668, %v558, 0
    %v682 = vsel %vm668, %v559, 0
    %v685 = vsel %vm668, %v560, 0
    %v688 = vsel %vm668, %v561, 0
    %v691 = vsel %vm668, %v562, 0
    %v694 = vsel %vm668, %v563, 0
    %v697 = vsel %vm668, %v564, 0
    %v700 = vsel %vm668, %v565, 0
    %v703 = vsel %vm668, %v566, 0
    %705 = vmatprep.subr.mxu0 0.0
    %706 = vmatpush1.msra.mxu0 %v450
    %707 = vmatprep.subr.mxu0 0.0
    %708 = vmatpush1.msra.mxu0 %v451
    %709 = vmatprep.subr.mxu0 0.0
    %710 = vmatpush1.msra.mxu0 %v452
    %711 = vmatprep.subr.mxu0 0.0
    %712 = vmatpush1.msra.mxu0 %v453
    %713 = vmatprep.subr.mxu0 0.0
    %714 = vmatpush1.msra.mxu0 %v454
    %715 = vmatprep.subr.mxu0 0.0
    %716 = vmatpush1.msra.mxu0 %v455
    %717 = vmatprep.subr.mxu0 0.0
    %718 = vmatpush1.msra.mxu0 0.0
    %719 = vmatprep.subr.mxu0 0.0
    %720 = vmatpush1.msra.mxu0 0.0
    %721 = vmatprep.subr.mxu0 0.0
    %722 = vmatpush1.msra.mxu0 0.0
    %723 = vmatprep.subr.mxu0 0.0
    %724 = vmatpush1.msra.mxu0 0.0
    %725 = vmatprep.subr.mxu0 0.0
    %726 = vmatpush1.msra.mxu0 0.0
    %727 = vmatprep.subr.mxu0 0.0
    %728 = vmatpush1.msra.mxu0 0.0
    %729 = vmatprep.subr.mxu0 0.0
    %730 = vmatpush1.msra.mxu0 0.0
    %731 = vmatprep.subr.mxu0 0.0
    %732 = vmatpush1.msra.mxu0 0.0
    %733 = vmatprep.subr.mxu0 0.0
    %734 = vmatpush1.msra.mxu0 0.0
    %735 = vmatprep.subr.mxu0 0.0
    %736 = vmatpush1.msra.mxu0 0.0
    %737 = vmatprep.subr.mxu0 0.0
    %738 = vmatpush1.msra.mxu0 0.0
    %739 = vmatprep.subr.mxu0 0.0
    %740 = vmatpush1.msra.mxu0 0.0
    %741 = vmatprep.subr.mxu0 0.0
    %742 = vmatpush1.msra.mxu0 0.0
    %743 = vmatprep.subr.mxu0 0.0
    %744 = vmatpush1.msra.mxu0 0.0
    %745 = vmatprep.subr.mxu0 0.0
    %746 = vmatpush1.msra.mxu0 0.0
    %747 = vmatprep.subr.mxu0 0.0
    %748 = vmatpush1.msra.mxu0 0.0
    %749 = vmatprep.subr.mxu0 0.0
    %750 = vmatpush1.msra.mxu0 0.0
    %751 = vmatprep.subr.mxu0 0.0
    %752 = vmatpush1.msra.mxu0 0.0
    %753 = vmatprep.subr.mxu0 0.0
    %754 = vmatpush1.msra.mxu0 0.0
    %755 = vmatprep.subr.mxu0 0.0
    %756 = vmatpush1.msra.mxu0 0.0
    %757 = vmatprep.subr.mxu0 0.0
    %758 = vmatpush1.msra.mxu0 0.0
    %759 = vmatprep.subr.mxu0 0.0
    %760 = vmatpush1.msra.mxu0 0.0
    %761 = vmatprep.subr.mxu0 0.0
    %762 = vmatpush1.msra.mxu0 0.0
    %763 = vmatprep.subr.mxu0 0.0
    %764 = vmatpush1.msra.mxu0 0.0
    %765 = vmatprep.subr.mxu0 0.0
    %766 = vmatpush1.msra.mxu0 0.0
    %767 = vmatprep.subr.mxu0 0.0
    %768 = vmatpush1.msra.mxu0 0.0
    %769 = vmatprep.mubr.f32.mxu0 0.0
    %770 = vmatmul.mubr.f32.gmra.mrb[0].mxu0 %v670
    %v771 = vpop.f32.mrb[0].mxu0
    %v772 = vadd.f32 0.0, %v771
    %v773 = vpop.f32.mrb[0].mxu0
    %774 = vmatprep.mubr.f32.mxu0 0.0
    %775 = vmatmul.mubr.f32.gmra.mrb[0].mxu0 %v673
    %v776 = vpop.f32.mrb[0].mxu0
    %v777 = vadd.f32 0.0, %v776
    %v778 = vpop.f32.mrb[0].mxu0
    %779 = vmatprep.mubr.f32.mxu0 0.0
    %780 = vmatmul.mubr.f32.gmra.mrb[0].mxu0 %v676
    %v781 = vpop.f32.mrb[0].mxu0
    %v782 = vadd.f32 0.0, %v781
    %v783 = vpop.f32.mrb[0].mxu0
    %784 = vmatprep.mubr.f32.mxu0 0.0
    %785 = vmatmul.mubr.f32.gmra.mrb[0].mxu0 %v679
    %v786 = vpop.f32.mrb[0].mxu0
    %v787 = vadd.f32 0.0, %v786
    %v788 = vpop.f32.mrb[0].mxu0
    %789 = vmatprep.mubr.f32.mxu0 0.0
    %790 = vmatmul.mubr.f32.gmra.mrb[0].mxu0 %v682
    %v791 = vpop.f32.mrb[0].mxu0
    %v792 = vadd.f32 0.0, %v791
    %v793 = vpop.f32.mrb[0].mxu0
    %794 = vmatprep.mubr.f32.mxu0 0.0
    %795 = vmatmul.mubr.f32.gmra.mrb[0].mxu0 %v685
    %v796 = vpop.f32.mrb[0].mxu0
    %v797 = vadd.f32 0.0, %v796
    %v798 = vpop.f32.mrb[0].mxu0
    %799 = vmatprep.mubr.f32.mxu0 0.0
    %800 = vmatmul.mubr.f32.gmra.mrb[0].mxu0 %v688
    %v801 = vpop.f32.mrb[0].mxu0
    %v802 = vadd.f32 0.0, %v801
    %v803 = vpop.f32.mrb[0].mxu0
    %804 = vmatprep.mubr.f32.mxu0 0.0
    %805 = vmatmul.mubr.f32.gmra.mrb[0].mxu0 %v691
    %v806 = vpop.f32.mrb[0].mxu0
    %v807 = vadd.f32 0.0, %v806
    %v808 = vpop.f32.mrb[0].mxu0
    %809 = vmatprep.mubr.f32.mxu0 0.0
    %810 = vmatmul.mubr.f32.gmra.mrb[0].mxu0 %v694
    %v811 = vpop.f32.mrb[0].mxu0
    %v812 = vadd.f32 0.0, %v811
    %v813 = vpop.f32.mrb[0].mxu0
    %814 = vmatprep.mubr.f32.mxu0 0.0
    %815 = vmatmul.mubr.f32.gmra.mrb[0].mxu0 %v697
    %v816 = vpop.f32.mrb[0].mxu0
    %v817 = vadd.f32 0.0, %v816
    %v818 = vpop.f32.mrb[0].mxu0
    %819 = vmatprep.mubr.f32.mxu0 0.0
    %820 = vmatmul.mubr.f32.gmra.mrb[0].mxu0 %v700
    %v821 = vpop.f32.mrb[0].mxu0
    %v822 = vadd.f32 0.0, %v821
    %v823 = vpop.f32.mrb[0].mxu0
    %824 = vmatprep.mubr.f32.mxu0 0.0
    %825 = vmatmul.mubr.f32.gmra.mrb[0].mxu0 %v703
    %v826 = vpop.f32.mrb[0].mxu0
    %v827 = vadd.f32 0.0, %v826
    %v828 = vpop.f32.mrb[0].mxu0
    %829 = vdwg.mxu0
    %v831 = vsel %vm668, %v627, 0
    %v834 = vsel %vm668, %v628, 0
    %v837 = vsel %vm668, %v629, 0
    %v840 = vsel %vm668, %v630, 0
    %v843 = vsel %vm668, %v631, 0
    %v846 = vsel %vm668, %v632, 0
    %v849 = vsel %vm668, %v633, 0
    %v852 = vsel %vm668, %v634, 0
    %v855 = vsel %vm668, %v635, 0
    %v858 = vsel %vm668, %v636, 0
    %v861 = vsel %vm668, %v637, 0
    %v864 = vsel %vm668, %v638, 0
    %866 = vmatprep.subr.mxu0 0.0
    %867 = vmatpush1.msra.mxu0 %v450
    %868 = vmatprep.subr.mxu0 0.0
    %869 = vmatpush1.msra.mxu0 %v451
    %870 = vmatprep.subr.mxu0 0.0
    %871 = vmatpush1.msra.mxu0 %v452
    %872 = vmatprep.subr.mxu0 0.0
    %873 = vmatpush1.msra.mxu0 %v453
    %874 = vmatprep.subr.mxu0 0.0
    %875 = vmatpush1.msra.mxu0 %v454
    %876 = vmatprep.subr.mxu0 0.0
    %877 = vmatpush1.msra.mxu0 %v455
    %878 = vmatprep.subr.mxu0 0.0
    %879 = vmatpush1.msra.mxu0 0.0
    %880 = vmatprep.subr.mxu0 0.0
    %881 = vmatpush1.msra.mxu0 0.0
    %882 = vmatprep.subr.mxu0 0.0
    %883 = vmatpush1.msra.mxu0 0.0
    %884 = vmatprep.subr.mxu0 0.0
    %885 = vmatpush1.msra.mxu0 0.0
    %886 = vmatprep.subr.mxu0 0.0
    %887 = vmatpush1.msra.mxu0 0.0
    %888 = vmatprep.subr.mxu0 0.0
    %889 = vmatpush1.msra.mxu0 0.0
    %890 = vmatprep.subr.mxu0 0.0
    %891 = vmatpush1.msra.mxu0 0.0
    %892 = vmatprep.subr.mxu0 0.0
    %893 = vmatpush1.msra.mxu0 0.0
    %894 = vmatprep.subr.mxu0 0.0
    %895 = vmatpush1.msra.mxu0 0.0
    %896 = vmatprep.subr.mxu0 0.0
    %897 = vmatpush1.msra.mxu0 0.0
    %898 = vmatprep.subr.mxu0 0.0
    %899 = vmatpush1.msra.mxu0 0.0
    %900 = vmatprep.subr.mxu0 0.0
    %901 = vmatpush1.msra.mxu0 0.0
    %902 = vmatprep.subr.mxu0 0.0
    %903 = vmatpush1.msra.mxu0 0.0
    %904 = vmatprep.subr.mxu0 0.0
    %905 = vmatpush1.msra.mxu0 0.0
    %906 = vmatprep.subr.mxu0 0.0
    %907 = vmatpush1.msra.mxu0 0.0
    %908 = vmatprep.subr.mxu0 0.0
    %909 = vmatpush1.msra.mxu0 0.0
    %910 = vmatprep.subr.mxu0 0.0
    %911 = vmatpush1.msra.mxu0 0.0
    %912 = vmatprep.subr.mxu0 0.0
    %913 = vmatpush1.msra.mxu0 0.0
    %914 = vmatprep.subr.mxu0 0.0
    %915 = vmatpush1.msra.mxu0 0.0
    %916 = vmatprep.subr.mxu0 0.0
    %917 = vmatpush1.msra.mxu0 0.0
    %918 = vmatprep.subr.mxu0 0.0
    %919 = vmatpush1.msra.mxu0 0.0
    %920 = vmatprep.subr.mxu0 0.0
    %921 = vmatpush1.msra.mxu0 0.0
    %922 = vmatprep.subr.mxu0 0.0
    %923 = vmatpush1.msra.mxu0 0.0
    %924 = vmatprep.subr.mxu0 0.0
    %925 = vmatpush1.msra.mxu0 0.0
    %926 = vmatprep.subr.mxu0 0.0
    %927 = vmatpush1.msra.mxu0 0.0
    %928 = vmatprep.subr.mxu0 0.0
    %929 = vmatpush1.msra.mxu0 0.0
    %930 = vmatprep.mubr.f32.mxu0 0.0
    %931 = vmatmul.mubr.f32.gmra.mrb[0].mxu0 %v831
    %v932 = vpop.f32.mrb[0].mxu0
    %v933 = vadd.f32 0.0, %v932
    %v934 = vpop.f32.mrb[0].mxu0
    %935 = vmatprep.mubr.f32.mxu0 0.0
    %936 = vmatmul.mubr.f32.gmra.mrb[0].mxu0 %v834
    %v937 = vpop.f32.mrb[0].mxu0
    %v938 = vadd.f32 0.0, %v937
    %v939 = vpop.f32.mrb[0].mxu0
    %940 = vmatprep.mubr.f32.mxu0 0.0
    %941 = vmatmul.mubr.f32.gmra.mrb[0].mxu0 %v837
    %v942 = vpop.f32.mrb[0].mxu0
    %v943 = vadd.f32 0.0, %v942
    %v944 = vpop.f32.mrb[0].mxu0
    %945 = vmatprep.mubr.f32.mxu0 0.0
    %946 = vmatmul.mubr.f32.gmra.mrb[0].mxu0 %v840
    %v947 = vpop.f32.mrb[0].mxu0
    %v948 = vadd.f32 0.0, %v947
    %v949 = vpop.f32.mrb[0].mxu0
    %950 = vmatprep.mubr.f32.mxu0 0.0
    %951 = vmatmul.mubr.f32.gmra.mrb[0].mxu0 %v843
    %v952 = vpop.f32.mrb[0].mxu0
    %v953 = vadd.f32 0.0, %v952
    %v954 = vpop.f32.mrb[0].mxu0
    %955 = vmatprep.mubr.f32.mxu0 0.0
    %956 = vmatmul.mubr.f32.gmra.mrb[0].mxu0 %v846
    %v957 = vpop.f32.mrb[0].mxu0
    %v958 = vadd.f32 0.0, %v957
    %v959 = vpop.f32.mrb[0].mxu0
    %960 = vmatprep.mubr.f32.mxu0 0.0
    %961 = vmatmul.mubr.f32.gmra.mrb[0].mxu0 %v849
    %v962 = vpop.f32.mrb[0].mxu0
    %v963 = vadd.f32 0.0, %v962
    %v964 = vpop.f32.mrb[0].mxu0
    %965 = vmatprep.mubr.f32.mxu0 0.0
    %966 = vmatmul.mubr.f32.gmra.mrb[0].mxu0 %v852
    %v967 = vpop.f32.mrb[0].mxu0
    %v968 = vadd.f32 0.0, %v967
    %v969 = vpop.f32.mrb[0].mxu0
    %970 = vmatprep.mubr.f32.mxu0 0.0
    %971 = vmatmul.mubr.f32.gmra.mrb[0].mxu0 %v855
    %v972 = vpop.f32.mrb[0].mxu0
    %v973 = vadd.f32 0.0, %v972
    %v974 = vpop.f32.mrb[0].mxu0
    %975 = vmatprep.mubr.f32.mxu0 0.0
    %976 = vmatmul.mubr.f32.gmra.mrb[0].mxu0 %v858
    %v977 = vpop.f32.mrb[0].mxu0
    %v978 = vadd.f32 0.0, %v977
    %v979 = vpop.f32.mrb[0].mxu0
    %980 = vmatprep.mubr.f32.mxu0 0.0
    %981 = vmatmul.mubr.f32.gmra.mrb[0].mxu0 %v861
    %v982 = vpop.f32.mrb[0].mxu0
    %v983 = vadd.f32 0.0, %v982
    %v984 = vpop.f32.mrb[0].mxu0
    %985 = vmatprep.mubr.f32.mxu0 0.0
    %986 = vmatmul.mubr.f32.gmra.mrb[0].mxu0 %v864
    %v987 = vpop.f32.mrb[0].mxu0
    %v988 = vadd.f32 0.0, %v987
    %v989 = vpop.f32.mrb[0].mxu0
    %990 = vdwg.mxu0
    %v992 = vlaneseq
    %v993 = vshrl.u32 %v992, 7
    %v994 = vsub.s32 0, %v993
    %v995 = vrot.slane %v322, %v994
    %997 = vmatprep.subr.mxu0 0.0
    %998 = vmatpush1.msra.mxu0 %v274
    %999 = vmatprep.subr.mxu0 0.0
    %1000 = vmatpush1.msra.mxu0 %v275
    %1001 = vmatprep.subr.mxu0 0.0
    %1002 = vmatpush1.msra.mxu0 %v276
    %1003 = vmatprep.subr.mxu0 0.0
    %1004 = vmatpush1.msra.mxu0 %v277
    %1005 = vmatprep.subr.mxu0 0.0
    %1006 = vmatpush1.msra.mxu0 %v278
    %1007 = vmatprep.subr.mxu0 0.0
    %1008 = vmatpush1.msra.mxu0 %v279
    %1009 = vmatprep.subr.mxu0 0.0
    %1010 = vmatpush1.msra.mxu0 %v280
    %1011 = vmatprep.subr.mxu0 0.0
    %1012 = vmatpush1.msra.mxu0 %v281
    %1013 = vmatprep.subr.mxu0 0.0
    %1014 = vmatpush1.msra.mxu0 %v282
    %1015 = vmatprep.subr.mxu0 0.0
    %1016 = vmatpush1.msra.mxu0 %v283
    %1017 = vmatprep.subr.mxu0 0.0
    %1018 = vmatpush1.msra.mxu0 %v284
    %1019 = vmatprep.subr.mxu0 0.0
    %1020 = vmatpush1.msra.mxu0 %v285
    %1021 = vmatprep.subr.mxu0 0.0
    %1022 = vmatpush1.msra.mxu0 %v286
    %1023 = vmatprep.subr.mxu0 0.0
    %1024 = vmatpush1.msra.mxu0 %v287
    %1025 = vmatprep.subr.mxu0 0.0
    %1026 = vmatpush1.msra.mxu0 %v288
    %1027 = vmatprep.subr.mxu0 0.0
    %1028 = vmatpush1.msra.mxu0 %v289
    %1029 = vmatprep.subr.mxu0 0.0
    %1030 = vmatpush1.msra.mxu0 %v290
    %1031 = vmatprep.subr.mxu0 0.0
    %1032 = vmatpush1.msra.mxu0 %v291
    %1033 = vmatprep.subr.mxu0 0.0
    %1034 = vmatpush1.msra.mxu0 %v292
    %1035 = vmatprep.subr.mxu0 0.0
    %1036 = vmatpush1.msra.mxu0 %v293
    %1037 = vmatprep.subr.mxu0 0.0
    %1038 = vmatpush1.msra.mxu0 %v294
    %1039 = vmatprep.subr.mxu0 0.0
    %1040 = vmatpush1.msra.mxu0 %v295
    %1041 = vmatprep.subr.mxu0 0.0
    %1042 = vmatpush1.msra.mxu0 %v296
    %1043 = vmatprep.subr.mxu0 0.0
    %1044 = vmatpush1.msra.mxu0 %v297
    %1045 = vmatprep.subr.mxu0 0.0
    %1046 = vmatpush1.msra.mxu0 %v298
    %1047 = vmatprep.subr.mxu0 0.0
    %1048 = vmatpush1.msra.mxu0 %v299
    %1049 = vmatprep.subr.mxu0 0.0
    %1050 = vmatpush1.msra.mxu0 %v300
    %1051 = vmatprep.subr.mxu0 0.0
    %1052 = vmatpush1.msra.mxu0 %v301
    %1053 = vmatprep.subr.mxu0 0.0
    %1054 = vmatpush1.msra.mxu0 %v302
    %1055 = vmatprep.subr.mxu0 0.0
    %1056 = vmatpush1.msra.mxu0 %v303
    %1057 = vmatprep.subr.mxu0 0.0
    %1058 = vmatpush1.msra.mxu0 %v304
    %1059 = vmatprep.subr.mxu0 0.0
    %1060 = vmatpush1.msra.mxu0 %v305
    %1061 = vmatprep.mubr.f32.mxu0 %v933
    %1062 = vmatmul.mubr.f32.gmra.mrb[0].mxu0 %v772
    %v1063 = vpop.f32.mrb[0].mxu0
    %v1064 = vadd.f32 %v995, %v1063
    %v1065 = vpop.f32.mrb[0].mxu0
    %1066 = vmatprep.mubr.f32.mxu0 %v938
    %1067 = vmatmul.mubr.f32.gmra.mrb[0].mxu0 %v777
    %v1068 = vpop.f32.mrb[0].mxu0
    %v1069 = vadd.f32 %v995, %v1068
    %v1070 = vpop.f32.mrb[0].mxu0
    %1071 = vmatprep.mubr.f32.mxu0 %v943
    %1072 = vmatmul.mubr.f32.gmra.mrb[0].mxu0 %v782
    %v1073 = vpop.f32.mrb[0].mxu0
    %v1074 = vadd.f32 %v995, %v1073
    %v1075 = vpop.f32.mrb[0].mxu0
    %1076 = vmatprep.mubr.f32.mxu0 %v948
    %1077 = vmatmul.mubr.f32.gmra.mrb[0].mxu0 %v787
    %v1078 = vpop.f32.mrb[0].mxu0
    %v1079 = vadd.f32 %v995, %v1078
    %v1080 = vpop.f32.mrb[0].mxu0
    %1081 = vmatprep.mubr.f32.mxu0 %v953
    %1082 = vmatmul.mubr.f32.gmra.mrb[0].mxu0 %v792
    %v1083 = vpop.f32.mrb[0].mxu0
    %v1084 = vadd.f32 %v995, %v1083
    %v1085 = vpop.f32.mrb[0].mxu0
    %1086 = vmatprep.mubr.f32.mxu0 %v958
    %1087 = vmatmul.mubr.f32.gmra.mrb[0].mxu0 %v797
    %v1088 = vpop.f32.mrb[0].mxu0
    %v1089 = vadd.f32 %v995, %v1088
    %v1090 = vpop.f32.mrb[0].mxu0
    %1091 = vmatprep.mubr.f32.mxu0 %v963
    %1092 = vmatmul.mubr.f32.gmra.mrb[0].mxu0 %v802
    %v1093 = vpop.f32.mrb[0].mxu0
    %v1094 = vadd.f32 %v995, %v1093
    %v1095 = vpop.f32.mrb[0].mxu0
    %1096 = vmatprep.mubr.f32.mxu0 %v968
    %1097 = vmatmul.mubr.f32.gmra.mrb[0].mxu0 %v807
    %v1098 = vpop.f32.mrb[0].mxu0
    %v1099 = vadd.f32 %v995, %v1098
    %v1100 = vpop.f32.mrb[0].mxu0
    %1101 = vmatprep.mubr.f32.mxu0 %v973
    %1102 = vmatmul.mubr.f32.gmra.mrb[0].mxu0 %v812
    %v1103 = vpop.f32.mrb[0].mxu0
    %v1104 = vadd.f32 %v995, %v1103
    %v1105 = vpop.f32.mrb[0].mxu0
    %1106 = vmatprep.mubr.f32.mxu0 %v978
    %1107 = vmatmul.mubr.f32.gmra.mrb[0].mxu0 %v817
    %v1108 = vpop.f32.mrb[0].mxu0
    %v1109 = vadd.f32 %v995, %v1108
    %v1110 = vpop.f32.mrb[0].mxu0
    %1111 = vmatprep.mubr.f32.mxu0 %v983
    %1112 = vmatmul.mubr.f32.gmra.mrb[0].mxu0 %v822
    %v1113 = vpop.f32.mrb[0].mxu0
    %v1114 = vadd.f32 %v995, %v1113
    %v1115 = vpop.f32.mrb[0].mxu0
    %1116 = vmatprep.mubr.f32.mxu0 %v988
    %1117 = vmatmul.mubr.f32.gmra.mrb[0].mxu0 %v827
    %v1118 = vpop.f32.mrb[0].mxu0
    %v1119 = vadd.f32 %v995, %v1118
    %v1120 = vpop.f32.mrb[0].mxu0
    %1121 = vdwg.mxu0
    %1122 = vmatprep.subr.mxu0 0.0
    %1123 = vmatpush1.msra.mxu0 %v306
    %1124 = vmatprep.subr.mxu0 0.0
    %1125 = vmatpush1.msra.mxu0 %v307
    %1126 = vmatprep.subr.mxu0 0.0
    %1127 = vmatpush1.msra.mxu0 %v308
    %1128 = vmatprep.subr.mxu0 0.0
    %1129 = vmatpush1.msra.mxu0 %v309
    %1130 = vmatprep.subr.mxu0 0.0
    %1131 = vmatpush1.msra.mxu0 %v310
    %1132 = vmatprep.subr.mxu0 0.0
    %1133 = vmatpush1.msra.mxu0 %v311
    %1134 = vmatprep.subr.mxu0 0.0
    %1135 = vmatpush1.msra.mxu0 %v312
    %1136 = vmatprep.subr.mxu0 0.0
    %1137 = vmatpush1.msra.mxu0 %v313
    %1138 = vmatprep.subr.mxu0 0.0
    %1139 = vmatpush1.msra.mxu0 %v314
    %1140 = vmatprep.subr.mxu0 0.0
    %1141 = vmatpush1.msra.mxu0 %v315
    %1142 = vmatprep.subr.mxu0 0.0
    %1143 = vmatpush1.msra.mxu0 %v316
    %1144 = vmatprep.subr.mxu0 0.0
    %1145 = vmatpush1.msra.mxu0 %v317
    %1146 = vmatprep.subr.mxu0 0.0
    %1147 = vmatpush1.msra.mxu0 %v318
    %1148 = vmatprep.subr.mxu0 0.0
    %1149 = vmatpush1.msra.mxu0 %v319
    %1150 = vmatprep.subr.mxu0 0.0
    %1151 = vmatpush1.msra.mxu0 %v320
    %1152 = vmatprep.subr.mxu0 0.0
    %1153 = vmatpush1.msra.mxu0 %v321
    %1154 = vmatprep.subr.mxu0 0.0
    %1155 = vmatpush1.msra.mxu0 0.0
    %1156 = vmatprep.subr.mxu0 0.0
    %1157 = vmatpush1.msra.mxu0 0.0
    %1158 = vmatprep.subr.mxu0 0.0
    %1159 = vmatpush1.msra.mxu0 0.0
    %1160 = vmatprep.subr.mxu0 0.0
    %1161 = vmatpush1.msra.mxu0 0.0
    %1162 = vmatprep.subr.mxu0 0.0
    %1163 = vmatpush1.msra.mxu0 0.0
    %1164 = vmatprep.subr.mxu0 0.0
    %1165 = vmatpush1.msra.mxu0 0.0
    %1166 = vmatprep.subr.mxu0 0.0
    %1167 = vmatpush1.msra.mxu0 0.0
    %1168 = vmatprep.subr.mxu0 0.0
    %1169 = vmatpush1.msra.mxu0 0.0
    %1170 = vmatprep.subr.mxu0 0.0
    %1171 = vmatpush1.msra.mxu0 0.0
    %1172 = vmatprep.subr.mxu0 0.0
    %1173 = vmatpush1.msra.mxu0 0.0
    %1174 = vmatprep.subr.mxu0 0.0
    %1175 = vmatpush1.msra.mxu0 0.0
    %1176 = vmatprep.subr.mxu0 0.0
    %1177 = vmatpush1.msra.mxu0 0.0
    %1178 = vmatprep.subr.mxu0 0.0
    %1179 = vmatpush1.msra.mxu0 0.0
    %1180 = vmatprep.subr.mxu0 0.0
    %1181 = vmatpush1.msra.mxu0 0.0
    %1182 = vmatprep.subr.mxu0 0.0
    %1183 = vmatpush1.msra.mxu0 0.0
    %1184 = vmatprep.subr.mxu0 0.0
    %1185 = vmatpush1.msra.mxu0 0.0
    %1186 = vmatprep.mubr.f32.mxu0 0.0
    %1187 = vmatmul.mubr.f32.gmra.mrb[0].mxu0 %v456
    %v1188 = vpop.f32.mrb[0].mxu0
    %v1189 = vadd.f32 %v1064, %v1188
    %v1190 = vpop.f32.mrb[0].mxu0
    %1191 = vmatprep.mubr.f32.mxu0 0.0
    %1192 = vmatmul.mubr.f32.gmra.mrb[0].mxu0 %v457
    %v1193 = vpop.f32.mrb[0].mxu0
    %v1194 = vadd.f32 %v1069, %v1193
    %v1195 = vpop.f32.mrb[0].mxu0
    %1196 = vmatprep.mubr.f32.mxu0 0.0
    %1197 = vmatmul.mubr.f32.gmra.mrb[0].mxu0 %v458
    %v1198 = vpop.f32.mrb[0].mxu0
    %v1199 = vadd.f32 %v1074, %v1198
    %v1200 = vpop.f32.mrb[0].mxu0
    %1201 = vmatprep.mubr.f32.mxu0 0.0
    %1202 = vmatmul.mubr.f32.gmra.mrb[0].mxu0 %v459
    %v1203 = vpop.f32.mrb[0].mxu0
    %v1204 = vadd.f32 %v1079, %v1203
    %v1205 = vpop.f32.mrb[0].mxu0
    %1206 = vmatprep.mubr.f32.mxu0 0.0
    %1207 = vmatmul.mubr.f32.gmra.mrb[0].mxu0 %v460
    %v1208 = vpop.f32.mrb[0].mxu0
    %v1209 = vadd.f32 %v1084, %v1208
    %v1210 = vpop.f32.mrb[0].mxu0
    %1211 = vmatprep.mubr.f32.mxu0 0.0
    %1212 = vmatmul.mubr.f32.gmra.mrb[0].mxu0 %v461
    %v1213 = vpop.f32.mrb[0].mxu0
    %v1214 = vadd.f32 %v1089, %v1213
    %v1215 = vpop.f32.mrb[0].mxu0
    %1216 = vmatprep.mubr.f32.mxu0 0.0
    %1217 = vmatmul.mubr.f32.gmra.mrb[0].mxu0 %v462
    %v1218 = vpop.f32.mrb[0].mxu0
    %v1219 = vadd.f32 %v1094, %v1218
    %v1220 = vpop.f32.mrb[0].mxu0
    %1221 = vmatprep.mubr.f32.mxu0 0.0
    %1222 = vmatmul.mubr.f32.gmra.mrb[0].mxu0 %v463
    %v1223 = vpop.f32.mrb[0].mxu0
    %v1224 = vadd.f32 %v1099, %v1223
    %v1225 = vpop.f32.mrb[0].mxu0
    %1226 = vmatprep.mubr.f32.mxu0 0.0
    %1227 = vmatmul.mubr.f32.gmra.mrb[0].mxu0 %v464
    %v1228 = vpop.f32.mrb[0].mxu0
    %v1229 = vadd.f32 %v1104, %v1228
    %v1230 = vpop.f32.mrb[0].mxu0
    %1231 = vmatprep.mubr.f32.mxu0 0.0
    %1232 = vmatmul.mubr.f32.gmra.mrb[0].mxu0 %v465
    %v1233 = vpop.f32.mrb[0].mxu0
    %v1234 = vadd.f32 %v1109, %v1233
    %v1235 = vpop.f32.mrb[0].mxu0
    %1236 = vmatprep.mubr.f32.mxu0 0.0
    %1237 = vmatmul.mubr.f32.gmra.mrb[0].mxu0 %v466
    %v1238 = vpop.f32.mrb[0].mxu0
    %v1239 = vadd.f32 %v1114, %v1238
    %v1240 = vpop.f32.mrb[0].mxu0
    %1241 = vmatprep.mubr.f32.mxu0 0.0
    %1242 = vmatmul.mubr.f32.gmra.mrb[0].mxu0 %v467
    %v1243 = vpop.f32.mrb[0].mxu0
    %v1244 = vadd.f32 %v1119, %v1243
    %v1245 = vpop.f32.mrb[0].mxu0
    %1246 = vdwg.mxu0
    %v1247 = vxor.u32 %v1189, 2147483648
    %v1248 = vxor.u32 %v1194, 2147483648
    %v1249 = vxor.u32 %v1199, 2147483648
    %v1250 = vxor.u32 %v1204, 2147483648
    %v1251 = vxor.u32 %v1209, 2147483648
    %v1252 = vxor.u32 %v1214, 2147483648
    %v1253 = vxor.u32 %v1219, 2147483648
    %v1254 = vxor.u32 %v1224, 2147483648
    %v1255 = vxor.u32 %v1229, 2147483648
    %v1256 = vxor.u32 %v1234, 2147483648
    %v1257 = vxor.u32 %v1239, 2147483648
    %v1258 = vxor.u32 %v1244, 2147483648
    %v1259 = vmul.f32 %v1247, 1.442695
    %v1260 = vpow.pop %v1259
    %v1261 = vmul.f32 %v1248, 1.442695
    %v1262 = vpow.pop %v1261
    %v1263 = vmul.f32 %v1249, 1.442695
    %v1264 = vpow.pop %v1263
    %v1265 = vmul.f32 %v1250, 1.442695
    %v1266 = vpow.pop %v1265
    %v1267 = vmul.f32 %v1251, 1.442695
    %v1268 = vpow.pop %v1267
    %v1269 = vmul.f32 %v1252, 1.442695
    %v1270 = vpow.pop %v1269
    %v1271 = vmul.f32 %v1253, 1.442695
    %v1272 = vpow.pop %v1271
    %v1273 = vmul.f32 %v1254, 1.442695
    %v1274 = vpow.pop %v1273
    %v1275 = vmul.f32 %v1255, 1.442695
    %v1276 = vpow.pop %v1275
    %v1277 = vmul.f32 %v1256, 1.442695
    %v1278 = vpow.pop %v1277
    %v1279 = vmul.f32 %v1257, 1.442695
    %v1280 = vpow.pop %v1279
    %v1281 = vmul.f32 %v1258, 1.442695
    %v1282 = vpow.pop %v1281
    %v1283 = vadd.f32 %v1260, 1.0
    %v1284 = vadd.f32 %v1262, 1.0
    %v1285 = vadd.f32 %v1264, 1.0
    %v1286 = vadd.f32 %v1266, 1.0
    %v1287 = vadd.f32 %v1268, 1.0
    %v1288 = vadd.f32 %v1270, 1.0
    %v1289 = vadd.f32 %v1272, 1.0
    %v1290 = vadd.f32 %v1274, 1.0
    %v1291 = vadd.f32 %v1276, 1.0
    %v1292 = vadd.f32 %v1278, 1.0
    %v1293 = vadd.f32 %v1280, 1.0
    %v1294 = vadd.f32 %v1282, 1.0
    %v1295 = vrcp.pop %v1283
    %v1296 = vmul.f32 1.0, %v1295
    %v1297 = vrcp.pop %v1284
    %v1298 = vmul.f32 1.0, %v1297
    %v1299 = vrcp.pop %v1285
    %v1300 = vmul.f32 1.0, %v1299
    %v1301 = vrcp.pop %v1286
    %v1302 = vmul.f32 1.0, %v1301
    %v1303 = vrcp.pop %v1287
    %v1304 = vmul.f32 1.0, %v1303
    %v1305 = vrcp.pop %v1288
    %v1306 = vmul.f32 1.0, %v1305
    %v1307 = vrcp.pop %v1289
    %v1308 = vmul.f32 1.0, %v1307
    %v1309 = vrcp.pop %v1290
    %v1310 = vmul.f32 1.0, %v1309
    %v1311 = vrcp.pop %v1291
    %v1312 = vmul.f32 1.0, %v1311
    %v1313 = vrcp.pop %v1292
    %v1314 = vmul.f32 1.0, %v1313
    %v1315 = vrcp.pop %v1293
    %v1316 = vmul.f32 1.0, %v1315
    %v1317 = vrcp.pop %v1294
    %v1318 = vmul.f32 1.0, %v1317
    %v1320 = vlaneseq
    %v1321 = vshrl.u32 %v1320, 7
    %v1322 = vsub.s32 0, %v1321
    %v1323 = vrot.slane %v339, %v1322
    %1325 = vmatprep.subr.mxu0 0.0
    %1326 = vmatpush1.msra.mxu0 %v323
    %1327 = vmatprep.subr.mxu0 0.0
    %1328 = vmatpush1.msra.mxu0 %v324
    %1329 = vmatprep.subr.mxu0 0.0
    %1330 = vmatpush1.msra.mxu0 %v325
    %1331 = vmatprep.subr.mxu0 0.0
    %1332 = vmatpush1.msra.mxu0 %v326
    %1333 = vmatprep.subr.mxu0 0.0
    %1334 = vmatpush1.msra.mxu0 %v327
    %1335 = vmatprep.subr.mxu0 0.0
    %1336 = vmatpush1.msra.mxu0 %v328
    %1337 = vmatprep.subr.mxu0 0.0
    %1338 = vmatpush1.msra.mxu0 %v329
    %1339 = vmatprep.subr.mxu0 0.0
    %1340 = vmatpush1.msra.mxu0 %v330
    %1341 = vmatprep.subr.mxu0 0.0
    %1342 = vmatpush1.msra.mxu0 %v331
    %1343 = vmatprep.subr.mxu0 0.0
    %1344 = vmatpush1.msra.mxu0 %v332
    %1345 = vmatprep.subr.mxu0 0.0
    %1346 = vmatpush1.msra.mxu0 %v333
    %1347 = vmatprep.subr.mxu0 0.0
    %1348 = vmatpush1.msra.mxu0 %v334
    %1349 = vmatprep.subr.mxu0 0.0
    %1350 = vmatpush1.msra.mxu0 %v335
    %1351 = vmatprep.subr.mxu0 0.0
    %1352 = vmatpush1.msra.mxu0 %v336
    %1353 = vmatprep.subr.mxu0 0.0
    %1354 = vmatpush1.msra.mxu0 %v337
    %1355 = vmatprep.subr.mxu0 0.0
    %1356 = vmatpush1.msra.mxu0 %v338
    %1357 = vmatprep.subr.mxu0 0.0
    %1358 = vmatpush1.msra.mxu0 0.0
    %1359 = vmatprep.subr.mxu0 0.0
    %1360 = vmatpush1.msra.mxu0 0.0
    %1361 = vmatprep.subr.mxu0 0.0
    %1362 = vmatpush1.msra.mxu0 0.0
    %1363 = vmatprep.subr.mxu0 0.0
    %1364 = vmatpush1.msra.mxu0 0.0
    %1365 = vmatprep.subr.mxu0 0.0
    %1366 = vmatpush1.msra.mxu0 0.0
    %1367 = vmatprep.subr.mxu0 0.0
    %1368 = vmatpush1.msra.mxu0 0.0
    %1369 = vmatprep.subr.mxu0 0.0
    %1370 = vmatpush1.msra.mxu0 0.0
    %1371 = vmatprep.subr.mxu0 0.0
    %1372 = vmatpush1.msra.mxu0 0.0
    %1373 = vmatprep.subr.mxu0 0.0
    %1374 = vmatpush1.msra.mxu0 0.0
    %1375 = vmatprep.subr.mxu0 0.0
    %1376 = vmatpush1.msra.mxu0 0.0
    %1377 = vmatprep.subr.mxu0 0.0
    %1378 = vmatpush1.msra.mxu0 0.0
    %1379 = vmatprep.subr.mxu0 0.0
    %1380 = vmatpush1.msra.mxu0 0.0
    %1381 = vmatprep.subr.mxu0 0.0
    %1382 = vmatpush1.msra.mxu0 0.0
    %1383 = vmatprep.subr.mxu0 0.0
    %1384 = vmatpush1.msra.mxu0 0.0
    %1385 = vmatprep.subr.mxu0 0.0
    %1386 = vmatpush1.msra.mxu0 0.0
    %1387 = vmatprep.subr.mxu0 0.0
    %1388 = vmatpush1.msra.mxu0 0.0
    %1389 = vmatprep.mubr.f32.mxu0 0.0
    %1390 = vmatmul.mubr.f32.gmra.mrb[0].mxu0 %v772
    %v1391 = vpop.f32.mrb[0].mxu0
    %v1392 = vadd.f32 %v1323, %v1391
    %v1393 = vpop.f32.mrb[0].mxu0
    %1394 = vmatprep.mubr.f32.mxu0 0.0
    %1395 = vmatmul.mubr.f32.gmra.mrb[0].mxu0 %v777
    %v1396 = vpop.f32.mrb[0].mxu0
    %v1397 = vadd.f32 %v1323, %v1396
    %v1398 = vpop.f32.mrb[0].mxu0
    %1399 = vmatprep.mubr.f32.mxu0 0.0
    %1400 = vmatmul.mubr.f32.gmra.mrb[0].mxu0 %v782
    %v1401 = vpop.f32.mrb[0].mxu0
    %v1402 = vadd.f32 %v1323, %v1401
    %v1403 = vpop.f32.mrb[0].mxu0
    %1404 = vmatprep.mubr.f32.mxu0 0.0
    %1405 = vmatmul.mubr.f32.gmra.mrb[0].mxu0 %v787
    %v1406 = vpop.f32.mrb[0].mxu0
    %v1407 = vadd.f32 %v1323, %v1406
    %v1408 = vpop.f32.mrb[0].mxu0
    %1409 = vmatprep.mubr.f32.mxu0 0.0
    %1410 = vmatmul.mubr.f32.gmra.mrb[0].mxu0 %v792
    %v1411 = vpop.f32.mrb[0].mxu0
    %v1412 = vadd.f32 %v1323, %v1411
    %v1413 = vpop.f32.mrb[0].mxu0
    %1414 = vmatprep.mubr.f32.mxu0 0.0
    %1415 = vmatmul.mubr.f32.gmra.mrb[0].mxu0 %v797
    %v1416 = vpop.f32.mrb[0].mxu0
    %v1417 = vadd.f32 %v1323, %v1416
    %v1418 = vpop.f32.mrb[0].mxu0
    %1419 = vmatprep.mubr.f32.mxu0 0.0
    %1420 = vmatmul.mubr.f32.gmra.mrb[0].mxu0 %v802
    %v1421 = vpop.f32.mrb[0].mxu0
    %v1422 = vadd.f32 %v1323, %v1421
    %v1423 = vpop.f32.mrb[0].mxu0
    %1424 = vmatprep.mubr.f32.mxu0 0.0
    %1425 = vmatmul.mubr.f32.gmra.mrb[0].mxu0 %v807
    %v1426 = vpop.f32.mrb[0].mxu0
    %v1427 = vadd.f32 %v1323, %v1426
    %v1428 = vpop.f32.mrb[0].mxu0
    %1429 = vmatprep.mubr.f32.mxu0 0.0
    %1430 = vmatmul.mubr.f32.gmra.mrb[0].mxu0 %v812
    %v1431 = vpop.f32.mrb[0].mxu0
    %v1432 = vadd.f32 %v1323, %v1431
    %v1433 = vpop.f32.mrb[0].mxu0
    %1434 = vmatprep.mubr.f32.mxu0 0.0
    %1435 = vmatmul.mubr.f32.gmra.mrb[0].mxu0 %v817
    %v1436 = vpop.f32.mrb[0].mxu0
    %v1437 = vadd.f32 %v1323, %v1436
    %v1438 = vpop.f32.mrb[0].mxu0
    %1439 = vmatprep.mubr.f32.mxu0 0.0
    %1440 = vmatmul.mubr.f32.gmra.mrb[0].mxu0 %v822
    %v1441 = vpop.f32.mrb[0].mxu0
    %v1442 = vadd.f32 %v1323, %v1441
    %v1443 = vpop.f32.mrb[0].mxu0
    %1444 = vmatprep.mubr.f32.mxu0 0.0
    %1445 = vmatmul.mubr.f32.gmra.mrb[0].mxu0 %v827
    %v1446 = vpop.f32.mrb[0].mxu0
    %v1447 = vadd.f32 %v1323, %v1446
    %v1448 = vpop.f32.mrb[0].mxu0
    %1449 = vdwg.mxu0
    %v1450 = vmul.f32 %v1296, %v1392
    %v1451 = vmul.f32 %v1298, %v1397
    %v1452 = vmul.f32 %v1300, %v1402
    %v1453 = vmul.f32 %v1302, %v1407
    %v1454 = vmul.f32 %v1304, %v1412
    %v1455 = vmul.f32 %v1306, %v1417
    %v1456 = vmul.f32 %v1308, %v1422
    %v1457 = vmul.f32 %v1310, %v1427
    %v1458 = vmul.f32 %v1312, %v1432
    %v1459 = vmul.f32 %v1314, %v1437
    %v1460 = vmul.f32 %v1316, %v1442
    %v1461 = vmul.f32 %v1318, %v1447
    %vm1462 = vcmask 785408
    %v1464 = vsel %vm1462, %v662, 0
    %v1467 = vsel %vm1462, %v663, 0
    %v1470 = vsel %vm1462, %v664, 0
    %v1473 = vsel %vm1462, %v665, 0
    %v1476 = vsel %vm1462, %v666, 0
    %v1479 = vsel %vm1462, %v667, 0
    %1481 = vmatprep.subr.mxu0 %v1296
    %1482 = vmatpush1.msra.mxu0 %v1450
    %1483 = vmatprep.subr.mxu0 %v1298
    %1484 = vmatpush1.msra.mxu0 %v1451
    %1485 = vmatprep.subr.mxu0 %v1300
    %1486 = vmatpush1.msra.mxu0 %v1452
    %1487 = vmatprep.subr.mxu0 %v1302
    %1488 = vmatpush1.msra.mxu0 %v1453
    %1489 = vmatprep.subr.mxu0 %v1304
    %1490 = vmatpush1.msra.mxu0 %v1454
    %1491 = vmatprep.subr.mxu0 %v1306
    %1492 = vmatpush1.msra.mxu0 %v1455
    %1493 = vmatprep.subr.mxu0 %v1308
    %1494 = vmatpush1.msra.mxu0 %v1456
    %1495 = vmatprep.subr.mxu0 %v1310
    %1496 = vmatpush1.msra.mxu0 %v1457
    %1497 = vmatprep.subr.mxu0 %v1312
    %1498 = vmatpush1.msra.mxu0 %v1458
    %1499 = vmatprep.subr.mxu0 %v1314
    %1500 = vmatpush1.msra.mxu0 %v1459
    %1501 = vmatprep.subr.mxu0 %v1316
    %1502 = vmatpush1.msra.mxu0 %v1460
    %1503 = vmatprep.subr.mxu0 %v1318
    %1504 = vmatpush1.msra.mxu0 %v1461
    %1505 = vmatprep.subr.mxu0 0.0
    %1506 = vmatpush1.msra.mxu0 0.0
    %1507 = vmatprep.subr.mxu0 0.0
    %1508 = vmatpush1.msra.mxu0 0.0
    %1509 = vmatprep.subr.mxu0 0.0
    %1510 = vmatpush1.msra.mxu0 0.0
    %1511 = vmatprep.subr.mxu0 0.0
    %1512 = vmatpush1.msra.mxu0 0.0
    %1513 = vmatprep.subr.mxu0 0.0
    %1514 = vmatpush1.msra.mxu0 0.0
    %1515 = vmatprep.subr.mxu0 0.0
    %1516 = vmatpush1.msra.mxu0 0.0
    %1517 = vmatprep.subr.mxu0 0.0
    %1518 = vmatpush1.msra.mxu0 0.0
    %1519 = vmatprep.subr.mxu0 0.0
    %1520 = vmatpush1.msra.mxu0 0.0
    %1521 = vmatprep.subr.mxu0 0.0
    %1522 = vmatpush1.msra.mxu0 0.0
    %1523 = vmatprep.subr.mxu0 0.0
    %1524 = vmatpush1.msra.mxu0 0.0
    %1525 = vmatprep.subr.mxu0 0.0
    %1526 = vmatpush1.msra.mxu0 0.0
    %1527 = vmatprep.subr.mxu0 0.0
    %1528 = vmatpush1.msra.mxu0 0.0
    %1529 = vmatprep.subr.mxu0 0.0
    %1530 = vmatpush1.msra.mxu0 0.0
    %1531 = vmatprep.subr.mxu0 0.0
    %1532 = vmatpush1.msra.mxu0 0.0
    %1533 = vmatprep.subr.mxu0 0.0
    %1534 = vmatpush1.msra.mxu0 0.0
    %1535 = vmatprep.subr.mxu0 0.0
    %1536 = vmatpush1.msra.mxu0 0.0
    %1537 = vmatprep.subr.mxu0 0.0
    %1538 = vmatpush1.msra.mxu0 0.0
    %1539 = vmatprep.subr.mxu0 0.0
    %1540 = vmatpush1.msra.mxu0 0.0
    %1541 = vmatprep.subr.mxu0 0.0
    %1542 = vmatpush1.msra.mxu0 0.0
    %1543 = vmatprep.subr.mxu0 0.0
    %1544 = vmatpush1.msra.mxu0 0.0
    %1545 = vmatprep.mubr.f32.mxu0 0.0
    %1546 = vmatmul.mubr.f32.gmra.mrb[0].mxu0 %v1464
    %v1547 = vpop.f32.mrb[0].mxu0
    %v1548 = vadd.f32 0.0, %v1547
    %v1549 = vpop.f32.mrb[0].mxu0
    %v1550 = vadd.f32 0.0, %v1549
    %1551 = vmatprep.mubr.f32.mxu0 0.0
    %1552 = vmatmul.mubr.f32.gmra.mrb[0].mxu0 %v1467
    %v1553 = vpop.f32.mrb[0].mxu0
    %v1554 = vadd.f32 0.0, %v1553
    %v1555 = vpop.f32.mrb[0].mxu0
    %v1556 = vadd.f32 0.0, %v1555
    %1557 = vmatprep.mubr.f32.mxu0 0.0
    %1558 = vmatmul.mubr.f32.gmra.mrb[0].mxu0 %v1470
    %v1559 = vpop.f32.mrb[0].mxu0
    %v1560 = vadd.f32 0.0, %v1559
    %v1561 = vpop.f32.mrb[0].mxu0
    %v1562 = vadd.f32 0.0, %v1561
    %1563 = vmatprep.mubr.f32.mxu0 0.0
    %1564 = vmatmul.mubr.f32.gmra.mrb[0].mxu0 %v1473
    %v1565 = vpop.f32.mrb[0].mxu0
    %v1566 = vadd.f32 0.0, %v1565
    %v1567 = vpop.f32.mrb[0].mxu0
    %v1568 = vadd.f32 0.0, %v1567
    %1569 = vmatprep.mubr.f32.mxu0 0.0
    %1570 = vmatmul.mubr.f32.gmra.mrb[0].mxu0 %v1476
    %v1571 = vpop.f32.mrb[0].mxu0
    %v1572 = vadd.f32 0.0, %v1571
    %v1573 = vpop.f32.mrb[0].mxu0
    %v1574 = vadd.f32 0.0, %v1573
    %1575 = vmatprep.mubr.f32.mxu0 0.0
    %1576 = vmatmul.mubr.f32.gmra.mrb[0].mxu0 %v1479
    %v1577 = vpop.f32.mrb[0].mxu0
    %v1578 = vadd.f32 0.0, %v1577
    %v1579 = vpop.f32.mrb[0].mxu0
    %v1580 = vadd.f32 0.0, %v1579
    %1581 = vdwg.mxu0
    %v1582 = vadd.f32 %v1550, 1e-06
    %v1583 = vadd.f32 %v1556, 1e-06
    %v1584 = vadd.f32 %v1562, 1e-06
    %v1585 = vadd.f32 %v1568, 1e-06
    %v1586 = vadd.f32 %v1574, 1e-06
    %v1587 = vadd.f32 %v1580, 1e-06
    %v1588 = vrcp.pop %v1582
    %v1589 = vrcp.pop %v1583
    %v1590 = vrcp.pop %v1584
    %v1591 = vrcp.pop %v1585
    %v1592 = vrcp.pop %v1586
    %v1593 = vrcp.pop %v1587
    %v1594 = vmul.f32 %v1548, %v1588
    %v1595 = vmul.f32 %v1554, %v1589
    %v1596 = vmul.f32 %v1560, %v1590
    %v1597 = vmul.f32 %v1566, %v1591
    %v1598 = vmul.f32 %v1572, %v1592
    %v1599 = vmul.f32 %v1578, %v1593
    %v1601 = vlaneseq
    %v1602 = vshrl.u32 %v1601, 7
    %v1603 = vsub.s32 0, %v1602
    %v1604 = vrot.slane %v356, %v1603
    %1606 = vmatprep.subr.mxu0 0.0
    %1607 = vmatpush1.msra.mxu0 %v340
    %1608 = vmatprep.subr.mxu0 0.0
    %1609 = vmatpush1.msra.mxu0 %v341
    %1610 = vmatprep.subr.mxu0 0.0
    %1611 = vmatpush1.msra.mxu0 %v342
    %1612 = vmatprep.subr.mxu0 0.0
    %1613 = vmatpush1.msra.mxu0 %v343
    %1614 = vmatprep.subr.mxu0 0.0
    %1615 = vmatpush1.msra.mxu0 %v344
    %1616 = vmatprep.subr.mxu0 0.0
    %1617 = vmatpush1.msra.mxu0 %v345
    %1618 = vmatprep.subr.mxu0 0.0
    %1619 = vmatpush1.msra.mxu0 %v346
    %1620 = vmatprep.subr.mxu0 0.0
    %1621 = vmatpush1.msra.mxu0 %v347
    %1622 = vmatprep.subr.mxu0 0.0
    %1623 = vmatpush1.msra.mxu0 %v348
    %1624 = vmatprep.subr.mxu0 0.0
    %1625 = vmatpush1.msra.mxu0 %v349
    %1626 = vmatprep.subr.mxu0 0.0
    %1627 = vmatpush1.msra.mxu0 %v350
    %1628 = vmatprep.subr.mxu0 0.0
    %1629 = vmatpush1.msra.mxu0 %v351
    %1630 = vmatprep.subr.mxu0 0.0
    %1631 = vmatpush1.msra.mxu0 %v352
    %1632 = vmatprep.subr.mxu0 0.0
    %1633 = vmatpush1.msra.mxu0 %v353
    %1634 = vmatprep.subr.mxu0 0.0
    %1635 = vmatpush1.msra.mxu0 %v354
    %1636 = vmatprep.subr.mxu0 0.0
    %1637 = vmatpush1.msra.mxu0 %v355
    %1638 = vmatprep.subr.mxu0 0.0
    %1639 = vmatpush1.msra.mxu0 0.0
    %1640 = vmatprep.subr.mxu0 0.0
    %1641 = vmatpush1.msra.mxu0 0.0
    %1642 = vmatprep.subr.mxu0 0.0
    %1643 = vmatpush1.msra.mxu0 0.0
    %1644 = vmatprep.subr.mxu0 0.0
    %1645 = vmatpush1.msra.mxu0 0.0
    %1646 = vmatprep.subr.mxu0 0.0
    %1647 = vmatpush1.msra.mxu0 0.0
    %1648 = vmatprep.subr.mxu0 0.0
    %1649 = vmatpush1.msra.mxu0 0.0
    %1650 = vmatprep.subr.mxu0 0.0
    %1651 = vmatpush1.msra.mxu0 0.0
    %1652 = vmatprep.subr.mxu0 0.0
    %1653 = vmatpush1.msra.mxu0 0.0
    %1654 = vmatprep.subr.mxu0 0.0
    %1655 = vmatpush1.msra.mxu0 0.0
    %1656 = vmatprep.subr.mxu0 0.0
    %1657 = vmatpush1.msra.mxu0 0.0
    %1658 = vmatprep.subr.mxu0 0.0
    %1659 = vmatpush1.msra.mxu0 0.0
    %1660 = vmatprep.subr.mxu0 0.0
    %1661 = vmatpush1.msra.mxu0 0.0
    %1662 = vmatprep.subr.mxu0 0.0
    %1663 = vmatpush1.msra.mxu0 0.0
    %1664 = vmatprep.subr.mxu0 0.0
    %1665 = vmatpush1.msra.mxu0 0.0
    %1666 = vmatprep.subr.mxu0 0.0
    %1667 = vmatpush1.msra.mxu0 0.0
    %1668 = vmatprep.subr.mxu0 0.0
    %1669 = vmatpush1.msra.mxu0 0.0
    %1670 = vmatprep.mubr.f32.mxu0 0.0
    %1671 = vmatmul.mubr.f32.gmra.mrb[0].mxu0 %v450
    %v1672 = vpop.f32.mrb[0].mxu0
    %v1673 = vadd.f32 %v1604, %v1672
    %v1674 = vpop.f32.mrb[0].mxu0
    %1675 = vmatprep.mubr.f32.mxu0 0.0
    %1676 = vmatmul.mubr.f32.gmra.mrb[0].mxu0 %v451
    %v1677 = vpop.f32.mrb[0].mxu0
    %v1678 = vadd.f32 %v1604, %v1677
    %v1679 = vpop.f32.mrb[0].mxu0
    %1680 = vmatprep.mubr.f32.mxu0 0.0
    %1681 = vmatmul.mubr.f32.gmra.mrb[0].mxu0 %v452
    %v1682 = vpop.f32.mrb[0].mxu0
    %v1683 = vadd.f32 %v1604, %v1682
    %v1684 = vpop.f32.mrb[0].mxu0
    %1685 = vmatprep.mubr.f32.mxu0 0.0
    %1686 = vmatmul.mubr.f32.gmra.mrb[0].mxu0 %v453
    %v1687 = vpop.f32.mrb[0].mxu0
    %v1688 = vadd.f32 %v1604, %v1687
    %v1689 = vpop.f32.mrb[0].mxu0
    %1690 = vmatprep.mubr.f32.mxu0 0.0
    %1691 = vmatmul.mubr.f32.gmra.mrb[0].mxu0 %v454
    %v1692 = vpop.f32.mrb[0].mxu0
    %v1693 = vadd.f32 %v1604, %v1692
    %v1694 = vpop.f32.mrb[0].mxu0
    %1695 = vmatprep.mubr.f32.mxu0 0.0
    %1696 = vmatmul.mubr.f32.gmra.mrb[0].mxu0 %v455
    %v1697 = vpop.f32.mrb[0].mxu0
    %v1698 = vadd.f32 %v1604, %v1697
    %v1699 = vpop.f32.mrb[0].mxu0
    %1700 = vdwg.mxu0
    %v1701 = vadd.f32 %v1673, %v1594
    %v1702 = vadd.f32 %v1678, %v1595
    %v1703 = vadd.f32 %v1683, %v1596
    %v1704 = vadd.f32 %v1688, %v1597
    %v1705 = vadd.f32 %v1693, %v1598
    %v1706 = vadd.f32 %v1698, %v1599
    %1707 = vadd.xlane.f32.xlu0 %v1701
    %v1708 = vpop.xlane.xlu0 %1707
    %1709 = vadd.xlane.f32.xlu0 %v1702
    %v1710 = vpop.xlane.xlu0 %1709
    %1711 = vadd.xlane.f32.xlu0 %v1703
    %v1712 = vpop.xlane.xlu0 %1711
    %1713 = vadd.xlane.f32.xlu0 %v1704
    %v1714 = vpop.xlane.xlu0 %1713
    %1715 = vadd.xlane.f32.xlu0 %v1705
    %v1716 = vpop.xlane.xlu0 %1715
    %1717 = vadd.xlane.f32.xlu0 %v1706
    %v1718 = vpop.xlane.xlu0 %1717
    %v1719 = vrcp.pop 128.0
    %v1720 = vmul.f32 %v1708, %v1719
    %v1721 = vmul.f32 %v1710, %v1719
    %v1722 = vmul.f32 %v1712, %v1719
    %v1723 = vmul.f32 %v1714, %v1719
    %v1724 = vmul.f32 %v1716, %v1719
    %v1725 = vmul.f32 %v1718, %v1719
    %v1726 = vsub.f32 %v1701, %v1720
    %v1727 = vsub.f32 %v1702, %v1721
    %v1728 = vsub.f32 %v1703, %v1722
    %v1729 = vsub.f32 %v1704, %v1723
    %v1730 = vsub.f32 %v1705, %v1724
    %v1731 = vsub.f32 %v1706, %v1725
    %v1732 = vmul.f32 %v1726, %v1726
    %v1733 = vmul.f32 %v1727, %v1727
    %v1734 = vmul.f32 %v1728, %v1728
    %v1735 = vmul.f32 %v1729, %v1729
    %v1736 = vmul.f32 %v1730, %v1730
    %v1737 = vmul.f32 %v1731, %v1731
    %1738 = vadd.xlane.f32.xlu0 %v1732
    %v1739 = vpop.xlane.xlu0 %1738
    %1740 = vadd.xlane.f32.xlu0 %v1733
    %v1741 = vpop.xlane.xlu0 %1740
    %1742 = vadd.xlane.f32.xlu0 %v1734
    %v1743 = vpop.xlane.xlu0 %1742
    %1744 = vadd.xlane.f32.xlu0 %v1735
    %v1745 = vpop.xlane.xlu0 %1744
    %1746 = vadd.xlane.f32.xlu0 %v1736
    %v1747 = vpop.xlane.xlu0 %1746
    %1748 = vadd.xlane.f32.xlu0 %v1737
    %v1749 = vpop.xlane.xlu0 %1748
    %v1750 = vmul.f32 %v1739, %v1719
    %v1751 = vmul.f32 %v1741, %v1719
    %v1752 = vmul.f32 %v1743, %v1719
    %v1753 = vmul.f32 %v1745, %v1719
    %v1754 = vmul.f32 %v1747, %v1719
    %v1755 = vmul.f32 %v1749, %v1719
    %v1756 = vadd.f32 %v1750, 1e-05
    %v1757 = vadd.f32 %v1751, 1e-05
    %v1758 = vadd.f32 %v1752, 1e-05
    %v1759 = vadd.f32 %v1753, 1e-05
    %v1760 = vadd.f32 %v1754, 1e-05
    %v1761 = vadd.f32 %v1755, 1e-05
    %v1762 = vrsqrt.pop %v1756
    %v1763 = vrsqrt.pop %v1757
    %v1764 = vrsqrt.pop %v1758
    %v1765 = vrsqrt.pop %v1759
    %v1766 = vrsqrt.pop %v1760
    %v1767 = vrsqrt.pop %v1761
    %v1768 = vmul.f32 %v1726, %v1762
    %v1769 = vmul.f32 %v1727, %v1763
    %v1770 = vmul.f32 %v1728, %v1764
    %v1771 = vmul.f32 %v1729, %v1765
    %v1772 = vmul.f32 %v1730, %v1766
    %v1773 = vmul.f32 %v1731, %v1767
    %v1775 = vlaneseq
    %v1776 = vshrl.u32 %v1775, 7
    %v1777 = vsub.s32 0, %v1776
    %v1778 = vrot.slane %v357, %v1777
    %v1780 = vmul.f32 %v1768, %v1778
    %v1781 = vmul.f32 %v1769, %v1778
    %v1782 = vmul.f32 %v1770, %v1778
    %v1783 = vmul.f32 %v1771, %v1778
    %v1784 = vmul.f32 %v1772, %v1778
    %v1785 = vmul.f32 %v1773, %v1778
    %v1787 = vlaneseq
    %v1788 = vshrl.u32 %v1787, 7
    %v1789 = vsub.s32 0, %v1788
    %v1790 = vrot.slane %v358, %v1789
    %v1792 = vadd.f32 %v1780, %v1790
    %v1793 = vadd.f32 %v1781, %v1790
    %v1794 = vadd.f32 %v1782, %v1790
    %v1795 = vadd.f32 %v1783, %v1790
    %v1796 = vadd.f32 %v1784, %v1790
    %v1797 = vadd.f32 %v1785, %v1790
    %v1798 = vxor.u32 %v1792, 2147483648
    %v1799 = vxor.u32 %v1793, 2147483648
    %v1800 = vxor.u32 %v1794, 2147483648
    %v1801 = vxor.u32 %v1795, 2147483648
    %v1802 = vxor.u32 %v1796, 2147483648
    %v1803 = vxor.u32 %v1797, 2147483648
    %v1804 = vmul.f32 %v1798, 1.442695
    %v1805 = vpow.pop %v1804
    %v1806 = vmul.f32 %v1799, 1.442695
    %v1807 = vpow.pop %v1806
    %v1808 = vmul.f32 %v1800, 1.442695
    %v1809 = vpow.pop %v1808
    %v1810 = vmul.f32 %v1801, 1.442695
    %v1811 = vpow.pop %v1810
    %v1812 = vmul.f32 %v1802, 1.442695
    %v1813 = vpow.pop %v1812
    %v1814 = vmul.f32 %v1803, 1.442695
    %v1815 = vpow.pop %v1814
    %v1816 = vadd.f32 %v1805, 1.0
    %v1817 = vadd.f32 %v1807, 1.0
    %v1818 = vadd.f32 %v1809, 1.0
    %v1819 = vadd.f32 %v1811, 1.0
    %v1820 = vadd.f32 %v1813, 1.0
    %v1821 = vadd.f32 %v1815, 1.0
    %v1822 = vrcp.pop %v1816
    %v1823 = vmul.f32 1.0, %v1822
    %v1824 = vrcp.pop %v1817
    %v1825 = vmul.f32 1.0, %v1824
    %v1826 = vrcp.pop %v1818
    %v1827 = vmul.f32 1.0, %v1826
    %v1828 = vrcp.pop %v1819
    %v1829 = vmul.f32 1.0, %v1828
    %v1830 = vrcp.pop %v1820
    %v1831 = vmul.f32 1.0, %v1830
    %v1832 = vrcp.pop %v1821
    %v1833 = vmul.f32 1.0, %v1832
    %v1834 = vmul.f32 %v1792, %v1823
    %v1835 = vmul.f32 %v1793, %v1825
    %v1836 = vmul.f32 %v1794, %v1827
    %v1837 = vmul.f32 %v1795, %v1829
    %v1838 = vmul.f32 %v1796, %v1831
    %v1839 = vmul.f32 %v1797, %v1833
    %v1840 = vadd.f32 %v450, %v1834
    %v1841 = vadd.f32 %v451, %v1835
    %v1842 = vadd.f32 %v452, %v1836
    %v1843 = vadd.f32 %v453, %v1837
    %v1844 = vadd.f32 %v454, %v1838
    %v1845 = vadd.f32 %v455, %v1839
    %1846 = vadd.xlane.f32.xlu0 %v1189
    %v1847 = vpop.xlane.xlu0 %1846
    %1848 = vadd.xlane.f32.xlu0 %v1194
    %v1849 = vpop.xlane.xlu0 %1848
    %1850 = vadd.xlane.f32.xlu0 %v1199
    %v1851 = vpop.xlane.xlu0 %1850
    %1852 = vadd.xlane.f32.xlu0 %v1204
    %v1853 = vpop.xlane.xlu0 %1852
    %1854 = vadd.xlane.f32.xlu0 %v1209
    %v1855 = vpop.xlane.xlu0 %1854
    %1856 = vadd.xlane.f32.xlu0 %v1214
    %v1857 = vpop.xlane.xlu0 %1856
    %1858 = vadd.xlane.f32.xlu0 %v1219
    %v1859 = vpop.xlane.xlu0 %1858
    %1860 = vadd.xlane.f32.xlu0 %v1224
    %v1861 = vpop.xlane.xlu0 %1860
    %1862 = vadd.xlane.f32.xlu0 %v1229
    %v1863 = vpop.xlane.xlu0 %1862
    %1864 = vadd.xlane.f32.xlu0 %v1234
    %v1865 = vpop.xlane.xlu0 %1864
    %1866 = vadd.xlane.f32.xlu0 %v1239
    %v1867 = vpop.xlane.xlu0 %1866
    %1868 = vadd.xlane.f32.xlu0 %v1244
    %v1869 = vpop.xlane.xlu0 %1868
    %v1870 = vmul.f32 %v1847, %v1719
    %v1871 = vmul.f32 %v1849, %v1719
    %v1872 = vmul.f32 %v1851, %v1719
    %v1873 = vmul.f32 %v1853, %v1719
    %v1874 = vmul.f32 %v1855, %v1719
    %v1875 = vmul.f32 %v1857, %v1719
    %v1876 = vmul.f32 %v1859, %v1719
    %v1877 = vmul.f32 %v1861, %v1719
    %v1878 = vmul.f32 %v1863, %v1719
    %v1879 = vmul.f32 %v1865, %v1719
    %v1880 = vmul.f32 %v1867, %v1719
    %v1881 = vmul.f32 %v1869, %v1719
    %v1882 = vsub.f32 %v1189, %v1870
    %v1883 = vsub.f32 %v1194, %v1871
    %v1884 = vsub.f32 %v1199, %v1872
    %v1885 = vsub.f32 %v1204, %v1873
    %v1886 = vsub.f32 %v1209, %v1874
    %v1887 = vsub.f32 %v1214, %v1875
    %v1888 = vsub.f32 %v1219, %v1876
    %v1889 = vsub.f32 %v1224, %v1877
    %v1890 = vsub.f32 %v1229, %v1878
    %v1891 = vsub.f32 %v1234, %v1879
    %v1892 = vsub.f32 %v1239, %v1880
    %v1893 = vsub.f32 %v1244, %v1881
    %v1894 = vmul.f32 %v1882, %v1882
    %v1895 = vmul.f32 %v1883, %v1883
    %v1896 = vmul.f32 %v1884, %v1884
    %v1897 = vmul.f32 %v1885, %v1885
    %v1898 = vmul.f32 %v1886, %v1886
    %v1899 = vmul.f32 %v1887, %v1887
    %v1900 = vmul.f32 %v1888, %v1888
    %v1901 = vmul.f32 %v1889, %v1889
    %v1902 = vmul.f32 %v1890, %v1890
    %v1903 = vmul.f32 %v1891, %v1891
    %v1904 = vmul.f32 %v1892, %v1892
    %v1905 = vmul.f32 %v1893, %v1893
    %1906 = vadd.xlane.f32.xlu0 %v1894
    %v1907 = vpop.xlane.xlu0 %1906
    %1908 = vadd.xlane.f32.xlu0 %v1895
    %v1909 = vpop.xlane.xlu0 %1908
    %1910 = vadd.xlane.f32.xlu0 %v1896
    %v1911 = vpop.xlane.xlu0 %1910
    %1912 = vadd.xlane.f32.xlu0 %v1897
    %v1913 = vpop.xlane.xlu0 %1912
    %1914 = vadd.xlane.f32.xlu0 %v1898
    %v1915 = vpop.xlane.xlu0 %1914
    %1916 = vadd.xlane.f32.xlu0 %v1899
    %v1917 = vpop.xlane.xlu0 %1916
    %1918 = vadd.xlane.f32.xlu0 %v1900
    %v1919 = vpop.xlane.xlu0 %1918
    %1920 = vadd.xlane.f32.xlu0 %v1901
    %v1921 = vpop.xlane.xlu0 %1920
    %1922 = vadd.xlane.f32.xlu0 %v1902
    %v1923 = vpop.xlane.xlu0 %1922
    %1924 = vadd.xlane.f32.xlu0 %v1903
    %v1925 = vpop.xlane.xlu0 %1924
    %1926 = vadd.xlane.f32.xlu0 %v1904
    %v1927 = vpop.xlane.xlu0 %1926
    %1928 = vadd.xlane.f32.xlu0 %v1905
    %v1929 = vpop.xlane.xlu0 %1928
    %v1930 = vmul.f32 %v1907, %v1719
    %v1931 = vmul.f32 %v1909, %v1719
    %v1932 = vmul.f32 %v1911, %v1719
    %v1933 = vmul.f32 %v1913, %v1719
    %v1934 = vmul.f32 %v1915, %v1719
    %v1935 = vmul.f32 %v1917, %v1719
    %v1936 = vmul.f32 %v1919, %v1719
    %v1937 = vmul.f32 %v1921, %v1719
    %v1938 = vmul.f32 %v1923, %v1719
    %v1939 = vmul.f32 %v1925, %v1719
    %v1940 = vmul.f32 %v1927, %v1719
    %v1941 = vmul.f32 %v1929, %v1719
    %v1942 = vadd.f32 %v1930, 1e-05
    %v1943 = vadd.f32 %v1931, 1e-05
    %v1944 = vadd.f32 %v1932, 1e-05
    %v1945 = vadd.f32 %v1933, 1e-05
    %v1946 = vadd.f32 %v1934, 1e-05
    %v1947 = vadd.f32 %v1935, 1e-05
    %v1948 = vadd.f32 %v1936, 1e-05
    %v1949 = vadd.f32 %v1937, 1e-05
    %v1950 = vadd.f32 %v1938, 1e-05
    %v1951 = vadd.f32 %v1939, 1e-05
    %v1952 = vadd.f32 %v1940, 1e-05
    %v1953 = vadd.f32 %v1941, 1e-05
    %v1954 = vrsqrt.pop %v1942
    %v1955 = vrsqrt.pop %v1943
    %v1956 = vrsqrt.pop %v1944
    %v1957 = vrsqrt.pop %v1945
    %v1958 = vrsqrt.pop %v1946
    %v1959 = vrsqrt.pop %v1947
    %v1960 = vrsqrt.pop %v1948
    %v1961 = vrsqrt.pop %v1949
    %v1962 = vrsqrt.pop %v1950
    %v1963 = vrsqrt.pop %v1951
    %v1964 = vrsqrt.pop %v1952
    %v1965 = vrsqrt.pop %v1953
    %v1966 = vmul.f32 %v1882, %v1954
    %v1967 = vmul.f32 %v1883, %v1955
    %v1968 = vmul.f32 %v1884, %v1956
    %v1969 = vmul.f32 %v1885, %v1957
    %v1970 = vmul.f32 %v1886, %v1958
    %v1971 = vmul.f32 %v1887, %v1959
    %v1972 = vmul.f32 %v1888, %v1960
    %v1973 = vmul.f32 %v1889, %v1961
    %v1974 = vmul.f32 %v1890, %v1962
    %v1975 = vmul.f32 %v1891, %v1963
    %v1976 = vmul.f32 %v1892, %v1964
    %v1977 = vmul.f32 %v1893, %v1965
    %v1979 = vlaneseq
    %v1980 = vshrl.u32 %v1979, 7
    %v1981 = vsub.s32 0, %v1980
    %v1982 = vrot.slane %v359, %v1981
    %v1984 = vmul.f32 %v1966, %v1982
    %v1985 = vmul.f32 %v1967, %v1982
    %v1986 = vmul.f32 %v1968, %v1982
    %v1987 = vmul.f32 %v1969, %v1982
    %v1988 = vmul.f32 %v1970, %v1982
    %v1989 = vmul.f32 %v1971, %v1982
    %v1990 = vmul.f32 %v1972, %v1982
    %v1991 = vmul.f32 %v1973, %v1982
    %v1992 = vmul.f32 %v1974, %v1982
    %v1993 = vmul.f32 %v1975, %v1982
    %v1994 = vmul.f32 %v1976, %v1982
    %v1995 = vmul.f32 %v1977, %v1982
    %v1997 = vlaneseq
    %v1998 = vshrl.u32 %v1997, 7
    %v1999 = vsub.s32 0, %v1998
    %v2000 = vrot.slane %v360, %v1999
    %v2002 = vadd.f32 %v1984, %v2000
    %v2003 = vadd.f32 %v1985, %v2000
    %v2004 = vadd.f32 %v1986, %v2000
    %v2005 = vadd.f32 %v1987, %v2000
    %v2006 = vadd.f32 %v1988, %v2000
    %v2007 = vadd.f32 %v1989, %v2000
    %v2008 = vadd.f32 %v1990, %v2000
    %v2009 = vadd.f32 %v1991, %v2000
    %v2010 = vadd.f32 %v1992, %v2000
    %v2011 = vadd.f32 %v1993, %v2000
    %v2012 = vadd.f32 %v1994, %v2000
    %v2013 = vadd.f32 %v1995, %v2000
    %v2014 = vxor.u32 %v2002, 2147483648
    %v2015 = vxor.u32 %v2003, 2147483648
    %v2016 = vxor.u32 %v2004, 2147483648
    %v2017 = vxor.u32 %v2005, 2147483648
    %v2018 = vxor.u32 %v2006, 2147483648
    %v2019 = vxor.u32 %v2007, 2147483648
    %v2020 = vxor.u32 %v2008, 2147483648
    %v2021 = vxor.u32 %v2009, 2147483648
    %v2022 = vxor.u32 %v2010, 2147483648
    %v2023 = vxor.u32 %v2011, 2147483648
    %v2024 = vxor.u32 %v2012, 2147483648
    %v2025 = vxor.u32 %v2013, 2147483648
    %v2026 = vmul.f32 %v2014, 1.442695
    %v2027 = vpow.pop %v2026
    %v2028 = vmul.f32 %v2015, 1.442695
    %v2029 = vpow.pop %v2028
    %v2030 = vmul.f32 %v2016, 1.442695
    %v2031 = vpow.pop %v2030
    %v2032 = vmul.f32 %v2017, 1.442695
    %v2033 = vpow.pop %v2032
    %v2034 = vmul.f32 %v2018, 1.442695
    %v2035 = vpow.pop %v2034
    %v2036 = vmul.f32 %v2019, 1.442695
    %v2037 = vpow.pop %v2036
    %v2038 = vmul.f32 %v2020, 1.442695
    %v2039 = vpow.pop %v2038
    %v2040 = vmul.f32 %v2021, 1.442695
    %v2041 = vpow.pop %v2040
    %v2042 = vmul.f32 %v2022, 1.442695
    %v2043 = vpow.pop %v2042
    %v2044 = vmul.f32 %v2023, 1.442695
    %v2045 = vpow.pop %v2044
    %v2046 = vmul.f32 %v2024, 1.442695
    %v2047 = vpow.pop %v2046
    %v2048 = vmul.f32 %v2025, 1.442695
    %v2049 = vpow.pop %v2048
    %v2050 = vadd.f32 %v2027, 1.0
    %v2051 = vadd.f32 %v2029, 1.0
    %v2052 = vadd.f32 %v2031, 1.0
    %v2053 = vadd.f32 %v2033, 1.0
    %v2054 = vadd.f32 %v2035, 1.0
    %v2055 = vadd.f32 %v2037, 1.0
    %v2056 = vadd.f32 %v2039, 1.0
    %v2057 = vadd.f32 %v2041, 1.0
    %v2058 = vadd.f32 %v2043, 1.0
    %v2059 = vadd.f32 %v2045, 1.0
    %v2060 = vadd.f32 %v2047, 1.0
    %v2061 = vadd.f32 %v2049, 1.0
    %v2062 = vrcp.pop %v2050
    %v2063 = vmul.f32 1.0, %v2062
    %v2064 = vrcp.pop %v2051
    %v2065 = vmul.f32 1.0, %v2064
    %v2066 = vrcp.pop %v2052
    %v2067 = vmul.f32 1.0, %v2066
    %v2068 = vrcp.pop %v2053
    %v2069 = vmul.f32 1.0, %v2068
    %v2070 = vrcp.pop %v2054
    %v2071 = vmul.f32 1.0, %v2070
    %v2072 = vrcp.pop %v2055
    %v2073 = vmul.f32 1.0, %v2072
    %v2074 = vrcp.pop %v2056
    %v2075 = vmul.f32 1.0, %v2074
    %v2076 = vrcp.pop %v2057
    %v2077 = vmul.f32 1.0, %v2076
    %v2078 = vrcp.pop %v2058
    %v2079 = vmul.f32 1.0, %v2078
    %v2080 = vrcp.pop %v2059
    %v2081 = vmul.f32 1.0, %v2080
    %v2082 = vrcp.pop %v2060
    %v2083 = vmul.f32 1.0, %v2082
    %v2084 = vrcp.pop %v2061
    %v2085 = vmul.f32 1.0, %v2084
    %v2086 = vmul.f32 %v2002, %v2063
    %v2087 = vmul.f32 %v2003, %v2065
    %v2088 = vmul.f32 %v2004, %v2067
    %v2089 = vmul.f32 %v2005, %v2069
    %v2090 = vmul.f32 %v2006, %v2071
    %v2091 = vmul.f32 %v2007, %v2073
    %v2092 = vmul.f32 %v2008, %v2075
    %v2093 = vmul.f32 %v2009, %v2077
    %v2094 = vmul.f32 %v2010, %v2079
    %v2095 = vmul.f32 %v2011, %v2081
    %v2096 = vmul.f32 %v2012, %v2083
    %v2097 = vmul.f32 %v2013, %v2085
    %v2098 = vadd.f32 %v456, %v2086
    %v2099 = vadd.f32 %v457, %v2087
    %v2100 = vadd.f32 %v458, %v2088
    %v2101 = vadd.f32 %v459, %v2089
    %v2102 = vadd.f32 %v460, %v2090
    %v2103 = vadd.f32 %v461, %v2091
    %v2104 = vadd.f32 %v462, %v2092
    %v2105 = vadd.f32 %v463, %v2093
    %v2106 = vadd.f32 %v464, %v2094
    %v2107 = vadd.f32 %v465, %v2095
    %v2108 = vadd.f32 %v466, %v2096
    %v2109 = vadd.f32 %v467, %v2097
    %v2110 = vld [vmem:[%s7] sm:$0xff]
    %v2111 = vld [vmem:[%s7 + $0x8] sm:$0xff]
    %v2112 = vld [vmem:[%s7 + $0x10] sm:$0xff]
    %v2113 = vld [vmem:[%s7 + $0x18] sm:$0xff]
    %v2114 = vld [vmem:[%s7 + $0x20] sm:$0xff]
    %v2115 = vld [vmem:[%s7 + $0x28] sm:$0xff]
    %v2116 = vld [vmem:[%s9] sm:$0xff]
    %v2117 = vld [vmem:[%s9 + $0x8] sm:$0xff]
    %v2118 = vld [vmem:[%s9 + $0x10] sm:$0xff]
    %v2119 = vld [vmem:[%s9 + $0x18] sm:$0xff]
    %v2120 = vld [vmem:[%s9 + $0x20] sm:$0xff]
    %v2121 = vld [vmem:[%s9 + $0x28] sm:$0xff]
    %v2122 = vld [vmem:[%s11] sm:$0x1]
    %2123 = vset.pattern.permute.xlu0 0
    %2124 = vperm.xlu0 %2123, %v2110
    %v2125 = vpop.permute.xlu0 %2124
    %2126 = vset.pattern.permute.xlu0 0
    %2127 = vperm.xlu0 %2126, %v2111
    %v2128 = vpop.permute.xlu0 %2127
    %2129 = vset.pattern.permute.xlu0 0
    %2130 = vperm.xlu0 %2129, %v2112
    %v2131 = vpop.permute.xlu0 %2130
    %2132 = vset.pattern.permute.xlu0 0
    %2133 = vperm.xlu0 %2132, %v2113
    %v2134 = vpop.permute.xlu0 %2133
    %2135 = vset.pattern.permute.xlu0 0
    %2136 = vperm.xlu0 %2135, %v2114
    %v2137 = vpop.permute.xlu0 %2136
    %2138 = vset.pattern.permute.xlu0 0
    %2139 = vperm.xlu0 %2138, %v2115
    %v2140 = vpop.permute.xlu0 %2139
    %vm2141 = vcmp.eq.s32.totalorder %v2125, %v494
    %vm2142 = vcmp.eq.s32.totalorder %v2128, %v494
    %vm2143 = vcmp.eq.s32.totalorder %v2131, %v494
    %vm2144 = vcmp.eq.s32.totalorder %v2134, %v494
    %vm2145 = vcmp.eq.s32.totalorder %v2137, %v494
    %vm2146 = vcmp.eq.s32.totalorder %v2140, %v494
    %v2147 = vsel %vm2141, 1, 0
    %v2148 = vsel %vm2142, 1, 0
    %v2149 = vsel %vm2143, 1, 0
    %v2150 = vsel %vm2144, 1, 0
    %v2151 = vsel %vm2145, 1, 0
    %v2152 = vsel %vm2146, 1, 0
    %v2153 = vcvt.s32.f32 %v2147
    %v2154 = vcvt.s32.f32 %v2148
    %v2155 = vcvt.s32.f32 %v2149
    %v2156 = vcvt.s32.f32 %v2150
    %v2157 = vcvt.s32.f32 %v2151
    %v2158 = vcvt.s32.f32 %v2152
    %2159 = vset.pattern.permute.xlu0 0
    %2160 = vperm.xlu0 %2159, %v2116
    %v2161 = vpop.permute.xlu0 %2160
    %2162 = vset.pattern.permute.xlu0 0
    %2163 = vperm.xlu0 %2162, %v2117
    %v2164 = vpop.permute.xlu0 %2163
    %2165 = vset.pattern.permute.xlu0 0
    %2166 = vperm.xlu0 %2165, %v2118
    %v2167 = vpop.permute.xlu0 %2166
    %2168 = vset.pattern.permute.xlu0 0
    %2169 = vperm.xlu0 %2168, %v2119
    %v2170 = vpop.permute.xlu0 %2169
    %2171 = vset.pattern.permute.xlu0 0
    %2172 = vperm.xlu0 %2171, %v2120
    %v2173 = vpop.permute.xlu0 %2172
    %2174 = vset.pattern.permute.xlu0 0
    %2175 = vperm.xlu0 %2174, %v2121
    %v2176 = vpop.permute.xlu0 %2175
    %vm2177 = vcmp.eq.s32.totalorder %v2161, %v494
    %vm2178 = vcmp.eq.s32.totalorder %v2164, %v494
    %vm2179 = vcmp.eq.s32.totalorder %v2167, %v494
    %vm2180 = vcmp.eq.s32.totalorder %v2170, %v494
    %vm2181 = vcmp.eq.s32.totalorder %v2173, %v494
    %vm2182 = vcmp.eq.s32.totalorder %v2176, %v494
    %v2183 = vsel %vm2177, 1, 0
    %v2184 = vsel %vm2178, 1, 0
    %v2185 = vsel %vm2179, 1, 0
    %v2186 = vsel %vm2180, 1, 0
    %v2187 = vsel %vm2181, 1, 0
    %v2188 = vsel %vm2182, 1, 0
    %v2189 = vcvt.s32.f32 %v2183
    %v2190 = vcvt.s32.f32 %v2184
    %v2191 = vcvt.s32.f32 %v2185
    %v2192 = vcvt.s32.f32 %v2186
    %v2193 = vcvt.s32.f32 %v2187
    %v2194 = vcvt.s32.f32 %v2188
    %v2195 = vlaneseq
    %v2196 = vshrl.u32 %v2195, 7
    %v2197 = vsub.s32 0, %v2196
    %v2198 = vrot.slane %v2122, %v2197
    %vm2199 = vcmp.eq.s32.totalorder %v2198, %v640
    %vm2200 = vcmp.eq.s32.totalorder %v2198, %v641
    %v2201 = vsel %vm2199, 1, 0
    %v2202 = vsel %vm2200, 1, 0
    %v2203 = vcvt.s32.f32 %v2201
    %v2204 = vcvt.s32.f32 %v2202
    %vm2205 = vcmask 130048
    %v2207 = vsel %vm2205, %v2153, 0
    %v2210 = vsel %vm2205, %v2154, 0
    %v2213 = vsel %vm2205, %v2155, 0
    %v2216 = vsel %vm2205, %v2156, 0
    %v2219 = vsel %vm2205, %v2157, 0
    %v2222 = vsel %vm2205, %v2158, 0
    %2224 = vmatprep.subr.mxu0 0.0
    %2225 = vmatpush1.msra.mxu0 %v448
    %2226 = vmatprep.subr.mxu0 0.0
    %2227 = vmatpush1.msra.mxu0 %v449
    %2228 = vmatprep.subr.mxu0 0.0
    %2229 = vmatpush1.msra.mxu0 0.0
    %2230 = vmatprep.subr.mxu0 0.0
    %2231 = vmatpush1.msra.mxu0 0.0
    %2232 = vmatprep.subr.mxu0 0.0
    %2233 = vmatpush1.msra.mxu0 0.0
    %2234 = vmatprep.subr.mxu0 0.0
    %2235 = vmatpush1.msra.mxu0 0.0
    %2236 = vmatprep.subr.mxu0 0.0
    %2237 = vmatpush1.msra.mxu0 0.0
    %2238 = vmatprep.subr.mxu0 0.0
    %2239 = vmatpush1.msra.mxu0 0.0
    %2240 = vmatprep.subr.mxu0 0.0
    %2241 = vmatpush1.msra.mxu0 0.0
    %2242 = vmatprep.subr.mxu0 0.0
    %2243 = vmatpush1.msra.mxu0 0.0
    %2244 = vmatprep.subr.mxu0 0.0
    %2245 = vmatpush1.msra.mxu0 0.0
    %2246 = vmatprep.subr.mxu0 0.0
    %2247 = vmatpush1.msra.mxu0 0.0
    %2248 = vmatprep.subr.mxu0 0.0
    %2249 = vmatpush1.msra.mxu0 0.0
    %2250 = vmatprep.subr.mxu0 0.0
    %2251 = vmatpush1.msra.mxu0 0.0
    %2252 = vmatprep.subr.mxu0 0.0
    %2253 = vmatpush1.msra.mxu0 0.0
    %2254 = vmatprep.subr.mxu0 0.0
    %2255 = vmatpush1.msra.mxu0 0.0
    %2256 = vmatprep.subr.mxu0 0.0
    %2257 = vmatpush1.msra.mxu0 0.0
    %2258 = vmatprep.subr.mxu0 0.0
    %2259 = vmatpush1.msra.mxu0 0.0
    %2260 = vmatprep.subr.mxu0 0.0
    %2261 = vmatpush1.msra.mxu0 0.0
    %2262 = vmatprep.subr.mxu0 0.0
    %2263 = vmatpush1.msra.mxu0 0.0
    %2264 = vmatprep.subr.mxu0 0.0
    %2265 = vmatpush1.msra.mxu0 0.0
    %2266 = vmatprep.subr.mxu0 0.0
    %2267 = vmatpush1.msra.mxu0 0.0
    %2268 = vmatprep.subr.mxu0 0.0
    %2269 = vmatpush1.msra.mxu0 0.0
    %2270 = vmatprep.subr.mxu0 0.0
    %2271 = vmatpush1.msra.mxu0 0.0
    %2272 = vmatprep.subr.mxu0 0.0
    %2273 = vmatpush1.msra.mxu0 0.0
    %2274 = vmatprep.subr.mxu0 0.0
    %2275 = vmatpush1.msra.mxu0 0.0
    %2276 = vmatprep.subr.mxu0 0.0
    %2277 = vmatpush1.msra.mxu0 0.0
    %2278 = vmatprep.subr.mxu0 0.0
    %2279 = vmatpush1.msra.mxu0 0.0
    %2280 = vmatprep.subr.mxu0 0.0
    %2281 = vmatpush1.msra.mxu0 0.0
    %2282 = vmatprep.subr.mxu0 0.0
    %2283 = vmatpush1.msra.mxu0 0.0
    %2284 = vmatprep.subr.mxu0 0.0
    %2285 = vmatpush1.msra.mxu0 0.0
    %2286 = vmatprep.subr.mxu0 0.0
    %2287 = vmatpush1.msra.mxu0 0.0
    %2288 = vmatprep.mubr.f32.mxu0 0.0
    %2289 = vmatmul.mubr.f32.gmra.mrb[0].mxu0 %v2207
    %v2290 = vpop.f32.mrb[0].mxu0
    %v2291 = vadd.f32 0.0, %v2290
    %v2292 = vpop.f32.mrb[0].mxu0
    %2293 = vmatprep.mubr.f32.mxu0 0.0
    %2294 = vmatmul.mubr.f32.gmra.mrb[0].mxu0 %v2210
    %v2295 = vpop.f32.mrb[0].mxu0
    %v2296 = vadd.f32 0.0, %v2295
    %v2297 = vpop.f32.mrb[0].mxu0
    %2298 = vmatprep.mubr.f32.mxu0 0.0
    %2299 = vmatmul.mubr.f32.gmra.mrb[0].mxu0 %v2213
    %v2300 = vpop.f32.mrb[0].mxu0
    %v2301 = vadd.f32 0.0, %v2300
    %v2302 = vpop.f32.mrb[0].mxu0
    %2303 = vmatprep.mubr.f32.mxu0 0.0
    %2304 = vmatmul.mubr.f32.gmra.mrb[0].mxu0 %v2216
    %v2305 = vpop.f32.mrb[0].mxu0
    %v2306 = vadd.f32 0.0, %v2305
    %v2307 = vpop.f32.mrb[0].mxu0
    %2308 = vmatprep.mubr.f32.mxu0 0.0
    %2309 = vmatmul.mubr.f32.gmra.mrb[0].mxu0 %v2219
    %v2310 = vpop.f32.mrb[0].mxu0
    %v2311 = vadd.f32 0.0, %v2310
    %v2312 = vpop.f32.mrb[0].mxu0
    %2313 = vmatprep.mubr.f32.mxu0 0.0
    %2314 = vmatmul.mubr.f32.gmra.mrb[0].mxu0 %v2222
    %v2315 = vpop.f32.mrb[0].mxu0
    %v2316 = vadd.f32 0.0, %v2315
    %v2317 = vpop.f32.mrb[0].mxu0
    %2318 = vdwg.mxu0
    %v2320 = vsel %vm2205, %v2189, 0
    %v2323 = vsel %vm2205, %v2190, 0
    %v2326 = vsel %vm2205, %v2191, 0
    %v2329 = vsel %vm2205, %v2192, 0
    %v2332 = vsel %vm2205, %v2193, 0
    %v2335 = vsel %vm2205, %v2194, 0
    %2337 = vmatprep.subr.mxu0 0.0
    %2338 = vmatpush1.msra.mxu0 %v448
    %2339 = vmatprep.subr.mxu0 0.0
    %2340 = vmatpush1.msra.mxu0 %v449
    %2341 = vmatprep.subr.mxu0 0.0
    %2342 = vmatpush1.msra.mxu0 0.0
    %2343 = vmatprep.subr.mxu0 0.0
    %2344 = vmatpush1.msra.mxu0 0.0
    %2345 = vmatprep.subr.mxu0 0.0
    %2346 = vmatpush1.msra.mxu0 0.0
    %2347 = vmatprep.subr.mxu0 0.0
    %2348 = vmatpush1.msra.mxu0 0.0
    %2349 = vmatprep.subr.mxu0 0.0
    %2350 = vmatpush1.msra.mxu0 0.0
    %2351 = vmatprep.subr.mxu0 0.0
    %2352 = vmatpush1.msra.mxu0 0.0
    %2353 = vmatprep.subr.mxu0 0.0
    %2354 = vmatpush1.msra.mxu0 0.0
    %2355 = vmatprep.subr.mxu0 0.0
    %2356 = vmatpush1.msra.mxu0 0.0
    %2357 = vmatprep.subr.mxu0 0.0
    %2358 = vmatpush1.msra.mxu0 0.0
    %2359 = vmatprep.subr.mxu0 0.0
    %2360 = vmatpush1.msra.mxu0 0.0
    %2361 = vmatprep.subr.mxu0 0.0
    %2362 = vmatpush1.msra.mxu0 0.0
    %2363 = vmatprep.subr.mxu0 0.0
    %2364 = vmatpush1.msra.mxu0 0.0
    %2365 = vmatprep.subr.mxu0 0.0
    %2366 = vmatpush1.msra.mxu0 0.0
    %2367 = vmatprep.subr.mxu0 0.0
    %2368 = vmatpush1.msra.mxu0 0.0
    %2369 = vmatprep.subr.mxu0 0.0
    %2370 = vmatpush1.msra.mxu0 0.0
    %2371 = vmatprep.subr.mxu0 0.0
    %2372 = vmatpush1.msra.mxu0 0.0
    %2373 = vmatprep.subr.mxu0 0.0
    %2374 = vmatpush1.msra.mxu0 0.0
    %2375 = vmatprep.subr.mxu0 0.0
    %2376 = vmatpush1.msra.mxu0 0.0
    %2377 = vmatprep.subr.mxu0 0.0
    %2378 = vmatpush1.msra.mxu0 0.0
    %2379 = vmatprep.subr.mxu0 0.0
    %2380 = vmatpush1.msra.mxu0 0.0
    %2381 = vmatprep.subr.mxu0 0.0
    %2382 = vmatpush1.msra.mxu0 0.0
    %2383 = vmatprep.subr.mxu0 0.0
    %2384 = vmatpush1.msra.mxu0 0.0
    %2385 = vmatprep.subr.mxu0 0.0
    %2386 = vmatpush1.msra.mxu0 0.0
    %2387 = vmatprep.subr.mxu0 0.0
    %2388 = vmatpush1.msra.mxu0 0.0
    %2389 = vmatprep.subr.mxu0 0.0
    %2390 = vmatpush1.msra.mxu0 0.0
    %2391 = vmatprep.subr.mxu0 0.0
    %2392 = vmatpush1.msra.mxu0 0.0
    %2393 = vmatprep.subr.mxu0 0.0
    %2394 = vmatpush1.msra.mxu0 0.0
    %2395 = vmatprep.subr.mxu0 0.0
    %2396 = vmatpush1.msra.mxu0 0.0
    %2397 = vmatprep.subr.mxu0 0.0
    %2398 = vmatpush1.msra.mxu0 0.0
    %2399 = vmatprep.subr.mxu0 0.0
    %2400 = vmatpush1.msra.mxu0 0.0
    %2401 = vmatprep.mubr.f32.mxu0 0.0
    %2402 = vmatmul.mubr.f32.gmra.mrb[0].mxu0 %v2320
    %v2403 = vpop.f32.mrb[0].mxu0
    %v2404 = vadd.f32 0.0, %v2403
    %v2405 = vpop.f32.mrb[0].mxu0
    %2406 = vmatprep.mubr.f32.mxu0 0.0
    %2407 = vmatmul.mubr.f32.gmra.mrb[0].mxu0 %v2323
    %v2408 = vpop.f32.mrb[0].mxu0
    %v2409 = vadd.f32 0.0, %v2408
    %v2410 = vpop.f32.mrb[0].mxu0
    %2411 = vmatprep.mubr.f32.mxu0 0.0
    %2412 = vmatmul.mubr.f32.gmra.mrb[0].mxu0 %v2326
    %v2413 = vpop.f32.mrb[0].mxu0
    %v2414 = vadd.f32 0.0, %v2413
    %v2415 = vpop.f32.mrb[0].mxu0
    %2416 = vmatprep.mubr.f32.mxu0 0.0
    %2417 = vmatmul.mubr.f32.gmra.mrb[0].mxu0 %v2329
    %v2418 = vpop.f32.mrb[0].mxu0
    %v2419 = vadd.f32 0.0, %v2418
    %v2420 = vpop.f32.mrb[0].mxu0
    %2421 = vmatprep.mubr.f32.mxu0 0.0
    %2422 = vmatmul.mubr.f32.gmra.mrb[0].mxu0 %v2332
    %v2423 = vpop.f32.mrb[0].mxu0
    %v2424 = vadd.f32 0.0, %v2423
    %v2425 = vpop.f32.mrb[0].mxu0
    %2426 = vmatprep.mubr.f32.mxu0 0.0
    %2427 = vmatmul.mubr.f32.gmra.mrb[0].mxu0 %v2335
    %v2428 = vpop.f32.mrb[0].mxu0
    %v2429 = vadd.f32 0.0, %v2428
    %v2430 = vpop.f32.mrb[0].mxu0
    %2431 = vdwg.mxu0
    %v2433 = vlaneseq
    %v2434 = vshrl.u32 %v2433, 7
    %v2435 = vsub.s32 0, %v2434
    %v2436 = vrot.slane %v409, %v2435
    %2438 = vmatprep.subr.mxu0 0.0
    %2439 = vmatpush1.msra.mxu0 %v361
    %2440 = vmatprep.subr.mxu0 0.0
    %2441 = vmatpush1.msra.mxu0 %v362
    %2442 = vmatprep.subr.mxu0 0.0
    %2443 = vmatpush1.msra.mxu0 %v363
    %2444 = vmatprep.subr.mxu0 0.0
    %2445 = vmatpush1.msra.mxu0 %v364
    %2446 = vmatprep.subr.mxu0 0.0
    %2447 = vmatpush1.msra.mxu0 %v365
    %2448 = vmatprep.subr.mxu0 0.0
    %2449 = vmatpush1.msra.mxu0 %v366
    %2450 = vmatprep.subr.mxu0 0.0
    %2451 = vmatpush1.msra.mxu0 %v367
    %2452 = vmatprep.subr.mxu0 0.0
    %2453 = vmatpush1.msra.mxu0 %v368
    %2454 = vmatprep.subr.mxu0 0.0
    %2455 = vmatpush1.msra.mxu0 %v369
    %2456 = vmatprep.subr.mxu0 0.0
    %2457 = vmatpush1.msra.mxu0 %v370
    %2458 = vmatprep.subr.mxu0 0.0
    %2459 = vmatpush1.msra.mxu0 %v371
    %2460 = vmatprep.subr.mxu0 0.0
    %2461 = vmatpush1.msra.mxu0 %v372
    %2462 = vmatprep.subr.mxu0 0.0
    %2463 = vmatpush1.msra.mxu0 %v373
    %2464 = vmatprep.subr.mxu0 0.0
    %2465 = vmatpush1.msra.mxu0 %v374
    %2466 = vmatprep.subr.mxu0 0.0
    %2467 = vmatpush1.msra.mxu0 %v375
    %2468 = vmatprep.subr.mxu0 0.0
    %2469 = vmatpush1.msra.mxu0 %v376
    %2470 = vmatprep.subr.mxu0 0.0
    %2471 = vmatpush1.msra.mxu0 %v377
    %2472 = vmatprep.subr.mxu0 0.0
    %2473 = vmatpush1.msra.mxu0 %v378
    %2474 = vmatprep.subr.mxu0 0.0
    %2475 = vmatpush1.msra.mxu0 %v379
    %2476 = vmatprep.subr.mxu0 0.0
    %2477 = vmatpush1.msra.mxu0 %v380
    %2478 = vmatprep.subr.mxu0 0.0
    %2479 = vmatpush1.msra.mxu0 %v381
    %2480 = vmatprep.subr.mxu0 0.0
    %2481 = vmatpush1.msra.mxu0 %v382
    %2482 = vmatprep.subr.mxu0 0.0
    %2483 = vmatpush1.msra.mxu0 %v383
    %2484 = vmatprep.subr.mxu0 0.0
    %2485 = vmatpush1.msra.mxu0 %v384
    %2486 = vmatprep.subr.mxu0 0.0
    %2487 = vmatpush1.msra.mxu0 %v385
    %2488 = vmatprep.subr.mxu0 0.0
    %2489 = vmatpush1.msra.mxu0 %v386
    %2490 = vmatprep.subr.mxu0 0.0
    %2491 = vmatpush1.msra.mxu0 %v387
    %2492 = vmatprep.subr.mxu0 0.0
    %2493 = vmatpush1.msra.mxu0 %v388
    %2494 = vmatprep.subr.mxu0 0.0
    %2495 = vmatpush1.msra.mxu0 %v389
    %2496 = vmatprep.subr.mxu0 0.0
    %2497 = vmatpush1.msra.mxu0 %v390
    %2498 = vmatprep.subr.mxu0 0.0
    %2499 = vmatpush1.msra.mxu0 %v391
    %2500 = vmatprep.subr.mxu0 0.0
    %2501 = vmatpush1.msra.mxu0 %v392
    %2502 = vmatprep.mubr.f32.mxu0 %v2404
    %2503 = vmatmul.mubr.f32.gmra.mrb[0].mxu0 %v2291
    %v2504 = vpop.f32.mrb[0].mxu0
    %v2505 = vadd.f32 %v2436, %v2504
    %v2506 = vpop.f32.mrb[0].mxu0
    %2507 = vmatprep.mubr.f32.mxu0 %v2409
    %2508 = vmatmul.mubr.f32.gmra.mrb[0].mxu0 %v2296
    %v2509 = vpop.f32.mrb[0].mxu0
    %v2510 = vadd.f32 %v2436, %v2509
    %v2511 = vpop.f32.mrb[0].mxu0
    %2512 = vmatprep.mubr.f32.mxu0 %v2414
    %2513 = vmatmul.mubr.f32.gmra.mrb[0].mxu0 %v2301
    %v2514 = vpop.f32.mrb[0].mxu0
    %v2515 = vadd.f32 %v2436, %v2514
    %v2516 = vpop.f32.mrb[0].mxu0
    %2517 = vmatprep.mubr.f32.mxu0 %v2419
    %2518 = vmatmul.mubr.f32.gmra.mrb[0].mxu0 %v2306
    %v2519 = vpop.f32.mrb[0].mxu0
    %v2520 = vadd.f32 %v2436, %v2519
    %v2521 = vpop.f32.mrb[0].mxu0
    %2522 = vmatprep.mubr.f32.mxu0 %v2424
    %2523 = vmatmul.mubr.f32.gmra.mrb[0].mxu0 %v2311
    %v2524 = vpop.f32.mrb[0].mxu0
    %v2525 = vadd.f32 %v2436, %v2524
    %v2526 = vpop.f32.mrb[0].mxu0
    %2527 = vmatprep.mubr.f32.mxu0 %v2429
    %2528 = vmatmul.mubr.f32.gmra.mrb[0].mxu0 %v2316
    %v2529 = vpop.f32.mrb[0].mxu0
    %v2530 = vadd.f32 %v2436, %v2529
    %v2531 = vpop.f32.mrb[0].mxu0
    %2532 = vdwg.mxu0
    %2533 = vmatprep.subr.mxu0 0.0
    %2534 = vmatpush1.msra.mxu0 %v393
    %2535 = vmatprep.subr.mxu0 0.0
    %2536 = vmatpush1.msra.mxu0 %v394
    %2537 = vmatprep.subr.mxu0 0.0
    %2538 = vmatpush1.msra.mxu0 %v395
    %2539 = vmatprep.subr.mxu0 0.0
    %2540 = vmatpush1.msra.mxu0 %v396
    %2541 = vmatprep.subr.mxu0 0.0
    %2542 = vmatpush1.msra.mxu0 %v397
    %2543 = vmatprep.subr.mxu0 0.0
    %2544 = vmatpush1.msra.mxu0 %v398
    %2545 = vmatprep.subr.mxu0 0.0
    %2546 = vmatpush1.msra.mxu0 %v399
    %2547 = vmatprep.subr.mxu0 0.0
    %2548 = vmatpush1.msra.mxu0 %v400
    %2549 = vmatprep.subr.mxu0 0.0
    %2550 = vmatpush1.msra.mxu0 %v401
    %2551 = vmatprep.subr.mxu0 0.0
    %2552 = vmatpush1.msra.mxu0 %v402
    %2553 = vmatprep.subr.mxu0 0.0
    %2554 = vmatpush1.msra.mxu0 %v403
    %2555 = vmatprep.subr.mxu0 0.0
    %2556 = vmatpush1.msra.mxu0 %v404
    %2557 = vmatprep.subr.mxu0 0.0
    %2558 = vmatpush1.msra.mxu0 %v405
    %2559 = vmatprep.subr.mxu0 0.0
    %2560 = vmatpush1.msra.mxu0 %v406
    %2561 = vmatprep.subr.mxu0 0.0
    %2562 = vmatpush1.msra.mxu0 %v407
    %2563 = vmatprep.subr.mxu0 0.0
    %2564 = vmatpush1.msra.mxu0 %v408
    %2565 = vmatprep.subr.mxu0 0.0
    %2566 = vmatpush1.msra.mxu0 0.0
    %2567 = vmatprep.subr.mxu0 0.0
    %2568 = vmatpush1.msra.mxu0 0.0
    %2569 = vmatprep.subr.mxu0 0.0
    %2570 = vmatpush1.msra.mxu0 0.0
    %2571 = vmatprep.subr.mxu0 0.0
    %2572 = vmatpush1.msra.mxu0 0.0
    %2573 = vmatprep.subr.mxu0 0.0
    %2574 = vmatpush1.msra.mxu0 0.0
    %2575 = vmatprep.subr.mxu0 0.0
    %2576 = vmatpush1.msra.mxu0 0.0
    %2577 = vmatprep.subr.mxu0 0.0
    %2578 = vmatpush1.msra.mxu0 0.0
    %2579 = vmatprep.subr.mxu0 0.0
    %2580 = vmatpush1.msra.mxu0 0.0
    %2581 = vmatprep.subr.mxu0 0.0
    %2582 = vmatpush1.msra.mxu0 0.0
    %2583 = vmatprep.subr.mxu0 0.0
    %2584 = vmatpush1.msra.mxu0 0.0
    %2585 = vmatprep.subr.mxu0 0.0
    %2586 = vmatpush1.msra.mxu0 0.0
    %2587 = vmatprep.subr.mxu0 0.0
    %2588 = vmatpush1.msra.mxu0 0.0
    %2589 = vmatprep.subr.mxu0 0.0
    %2590 = vmatpush1.msra.mxu0 0.0
    %2591 = vmatprep.subr.mxu0 0.0
    %2592 = vmatpush1.msra.mxu0 0.0
    %2593 = vmatprep.subr.mxu0 0.0
    %2594 = vmatpush1.msra.mxu0 0.0
    %2595 = vmatprep.subr.mxu0 0.0
    %2596 = vmatpush1.msra.mxu0 0.0
    %2597 = vmatprep.mubr.f32.mxu0 0.0
    %2598 = vmatmul.mubr.f32.gmra.mrb[0].mxu0 %v1840
    %v2599 = vpop.f32.mrb[0].mxu0
    %v2600 = vadd.f32 %v2505, %v2599
    %v2601 = vpop.f32.mrb[0].mxu0
    %2602 = vmatprep.mubr.f32.mxu0 0.0
    %2603 = vmatmul.mubr.f32.gmra.mrb[0].mxu0 %v1841
    %v2604 = vpop.f32.mrb[0].mxu0
    %v2605 = vadd.f32 %v2510, %v2604
    %v2606 = vpop.f32.mrb[0].mxu0
    %2607 = vmatprep.mubr.f32.mxu0 0.0
    %2608 = vmatmul.mubr.f32.gmra.mrb[0].mxu0 %v1842
    %v2609 = vpop.f32.mrb[0].mxu0
    %v2610 = vadd.f32 %v2515, %v2609
    %v2611 = vpop.f32.mrb[0].mxu0
    %2612 = vmatprep.mubr.f32.mxu0 0.0
    %2613 = vmatmul.mubr.f32.gmra.mrb[0].mxu0 %v1843
    %v2614 = vpop.f32.mrb[0].mxu0
    %v2615 = vadd.f32 %v2520, %v2614
    %v2616 = vpop.f32.mrb[0].mxu0
    %2617 = vmatprep.mubr.f32.mxu0 0.0
    %2618 = vmatmul.mubr.f32.gmra.mrb[0].mxu0 %v1844
    %v2619 = vpop.f32.mrb[0].mxu0
    %v2620 = vadd.f32 %v2525, %v2619
    %v2621 = vpop.f32.mrb[0].mxu0
    %2622 = vmatprep.mubr.f32.mxu0 0.0
    %2623 = vmatmul.mubr.f32.gmra.mrb[0].mxu0 %v1845
    %v2624 = vpop.f32.mrb[0].mxu0
    %v2625 = vadd.f32 %v2530, %v2624
    %v2626 = vpop.f32.mrb[0].mxu0
    %2627 = vdwg.mxu0
    %v2628 = vxor.u32 %v2600, 2147483648
    %v2629 = vxor.u32 %v2605, 2147483648
    %v2630 = vxor.u32 %v2610, 2147483648
    %v2631 = vxor.u32 %v2615, 2147483648
    %v2632 = vxor.u32 %v2620, 2147483648
    %v2633 = vxor.u32 %v2625, 2147483648
    %v2634 = vmul.f32 %v2628, 1.442695
    %v2635 = vpow.pop %v2634
    %v2636 = vmul.f32 %v2629, 1.442695
    %v2637 = vpow.pop %v2636
    %v2638 = vmul.f32 %v2630, 1.442695
    %v2639 = vpow.pop %v2638
    %v2640 = vmul.f32 %v2631, 1.442695
    %v2641 = vpow.pop %v2640
    %v2642 = vmul.f32 %v2632, 1.442695
    %v2643 = vpow.pop %v2642
    %v2644 = vmul.f32 %v2633, 1.442695
    %v2645 = vpow.pop %v2644
    %v2646 = vadd.f32 %v2635, 1.0
    %v2647 = vadd.f32 %v2637, 1.0
    %v2648 = vadd.f32 %v2639, 1.0
    %v2649 = vadd.f32 %v2641, 1.0
    %v2650 = vadd.f32 %v2643, 1.0
    %v2651 = vadd.f32 %v2645, 1.0
    %v2652 = vrcp.pop %v2646
    %v2653 = vmul.f32 1.0, %v2652
    %v2654 = vrcp.pop %v2647
    %v2655 = vmul.f32 1.0, %v2654
    %v2656 = vrcp.pop %v2648
    %v2657 = vmul.f32 1.0, %v2656
    %v2658 = vrcp.pop %v2649
    %v2659 = vmul.f32 1.0, %v2658
    %v2660 = vrcp.pop %v2650
    %v2661 = vmul.f32 1.0, %v2660
    %v2662 = vrcp.pop %v2651
    %v2663 = vmul.f32 1.0, %v2662
    %v2665 = vlaneseq
    %v2666 = vshrl.u32 %v2665, 7
    %v2667 = vsub.s32 0, %v2666
    %v2668 = vrot.slane %v426, %v2667
    %2670 = vmatprep.subr.mxu0 0.0
    %2671 = vmatpush1.msra.mxu0 %v410
    %2672 = vmatprep.subr.mxu0 0.0
    %2673 = vmatpush1.msra.mxu0 %v411
    %2674 = vmatprep.subr.mxu0 0.0
    %2675 = vmatpush1.msra.mxu0 %v412
    %2676 = vmatprep.subr.mxu0 0.0
    %2677 = vmatpush1.msra.mxu0 %v413
    %2678 = vmatprep.subr.mxu0 0.0
    %2679 = vmatpush1.msra.mxu0 %v414
    %2680 = vmatprep.subr.mxu0 0.0
    %2681 = vmatpush1.msra.mxu0 %v415
    %2682 = vmatprep.subr.mxu0 0.0
    %2683 = vmatpush1.msra.mxu0 %v416
    %2684 = vmatprep.subr.mxu0 0.0
    %2685 = vmatpush1.msra.mxu0 %v417
    %2686 = vmatprep.subr.mxu0 0.0
    %2687 = vmatpush1.msra.mxu0 %v418
    %2688 = vmatprep.subr.mxu0 0.0
    %2689 = vmatpush1.msra.mxu0 %v419
    %2690 = vmatprep.subr.mxu0 0.0
    %2691 = vmatpush1.msra.mxu0 %v420
    %2692 = vmatprep.subr.mxu0 0.0
    %2693 = vmatpush1.msra.mxu0 %v421
    %2694 = vmatprep.subr.mxu0 0.0
    %2695 = vmatpush1.msra.mxu0 %v422
    %2696 = vmatprep.subr.mxu0 0.0
    %2697 = vmatpush1.msra.mxu0 %v423
    %2698 = vmatprep.subr.mxu0 0.0
    %2699 = vmatpush1.msra.mxu0 %v424
    %2700 = vmatprep.subr.mxu0 0.0
    %2701 = vmatpush1.msra.mxu0 %v425
    %2702 = vmatprep.subr.mxu0 0.0
    %2703 = vmatpush1.msra.mxu0 0.0
    %2704 = vmatprep.subr.mxu0 0.0
    %2705 = vmatpush1.msra.mxu0 0.0
    %2706 = vmatprep.subr.mxu0 0.0
    %2707 = vmatpush1.msra.mxu0 0.0
    %2708 = vmatprep.subr.mxu0 0.0
    %2709 = vmatpush1.msra.mxu0 0.0
    %2710 = vmatprep.subr.mxu0 0.0
    %2711 = vmatpush1.msra.mxu0 0.0
    %2712 = vmatprep.subr.mxu0 0.0
    %2713 = vmatpush1.msra.mxu0 0.0
    %2714 = vmatprep.subr.mxu0 0.0
    %2715 = vmatpush1.msra.mxu0 0.0
    %2716 = vmatprep.subr.mxu0 0.0
    %2717 = vmatpush1.msra.mxu0 0.0
    %2718 = vmatprep.subr.mxu0 0.0
    %2719 = vmatpush1.msra.mxu0 0.0
    %2720 = vmatprep.subr.mxu0 0.0
    %2721 = vmatpush1.msra.mxu0 0.0
    %2722 = vmatprep.subr.mxu0 0.0
    %2723 = vmatpush1.msra.mxu0 0.0
    %2724 = vmatprep.subr.mxu0 0.0
    %2725 = vmatpush1.msra.mxu0 0.0
    %2726 = vmatprep.subr.mxu0 0.0
    %2727 = vmatpush1.msra.mxu0 0.0
    %2728 = vmatprep.subr.mxu0 0.0
    %2729 = vmatpush1.msra.mxu0 0.0
    %2730 = vmatprep.subr.mxu0 0.0
    %2731 = vmatpush1.msra.mxu0 0.0
    %2732 = vmatprep.subr.mxu0 0.0
    %2733 = vmatpush1.msra.mxu0 0.0
    %2734 = vmatprep.mubr.f32.mxu0 0.0
    %2735 = vmatmul.mubr.f32.gmra.mrb[0].mxu0 %v2291
    %v2736 = vpop.f32.mrb[0].mxu0
    %v2737 = vadd.f32 %v2668, %v2736
    %v2738 = vpop.f32.mrb[0].mxu0
    %2739 = vmatprep.mubr.f32.mxu0 0.0
    %2740 = vmatmul.mubr.f32.gmra.mrb[0].mxu0 %v2296
    %v2741 = vpop.f32.mrb[0].mxu0
    %v2742 = vadd.f32 %v2668, %v2741
    %v2743 = vpop.f32.mrb[0].mxu0
    %2744 = vmatprep.mubr.f32.mxu0 0.0
    %2745 = vmatmul.mubr.f32.gmra.mrb[0].mxu0 %v2301
    %v2746 = vpop.f32.mrb[0].mxu0
    %v2747 = vadd.f32 %v2668, %v2746
    %v2748 = vpop.f32.mrb[0].mxu0
    %2749 = vmatprep.mubr.f32.mxu0 0.0
    %2750 = vmatmul.mubr.f32.gmra.mrb[0].mxu0 %v2306
    %v2751 = vpop.f32.mrb[0].mxu0
    %v2752 = vadd.f32 %v2668, %v2751
    %v2753 = vpop.f32.mrb[0].mxu0
    %2754 = vmatprep.mubr.f32.mxu0 0.0
    %2755 = vmatmul.mubr.f32.gmra.mrb[0].mxu0 %v2311
    %v2756 = vpop.f32.mrb[0].mxu0
    %v2757 = vadd.f32 %v2668, %v2756
    %v2758 = vpop.f32.mrb[0].mxu0
    %2759 = vmatprep.mubr.f32.mxu0 0.0
    %2760 = vmatmul.mubr.f32.gmra.mrb[0].mxu0 %v2316
    %v2761 = vpop.f32.mrb[0].mxu0
    %v2762 = vadd.f32 %v2668, %v2761
    %v2763 = vpop.f32.mrb[0].mxu0
    %2764 = vdwg.mxu0
    %v2765 = vmul.f32 %v2653, %v2737
    %v2766 = vmul.f32 %v2655, %v2742
    %v2767 = vmul.f32 %v2657, %v2747
    %v2768 = vmul.f32 %v2659, %v2752
    %v2769 = vmul.f32 %v2661, %v2757
    %v2770 = vmul.f32 %v2663, %v2762
    %v2772 = vsel %vm668, %v2203, 0
    %v2775 = vsel %vm668, %v2204, 0
    %2777 = vmatprep.subr.mxu0 %v2653
    %2778 = vmatpush1.msra.mxu0 %v2765
    %2779 = vmatprep.subr.mxu0 %v2655
    %2780 = vmatpush1.msra.mxu0 %v2766
    %2781 = vmatprep.subr.mxu0 %v2657
    %2782 = vmatpush1.msra.mxu0 %v2767
    %2783 = vmatprep.subr.mxu0 %v2659
    %2784 = vmatpush1.msra.mxu0 %v2768
    %2785 = vmatprep.subr.mxu0 %v2661
    %2786 = vmatpush1.msra.mxu0 %v2769
    %2787 = vmatprep.subr.mxu0 %v2663
    %2788 = vmatpush1.msra.mxu0 %v2770
    %2789 = vmatprep.subr.mxu0 0.0
    %2790 = vmatpush1.msra.mxu0 0.0
    %2791 = vmatprep.subr.mxu0 0.0
    %2792 = vmatpush1.msra.mxu0 0.0
    %2793 = vmatprep.subr.mxu0 0.0
    %2794 = vmatpush1.msra.mxu0 0.0
    %2795 = vmatprep.subr.mxu0 0.0
    %2796 = vmatpush1.msra.mxu0 0.0
    %2797 = vmatprep.subr.mxu0 0.0
    %2798 = vmatpush1.msra.mxu0 0.0
    %2799 = vmatprep.subr.mxu0 0.0
    %2800 = vmatpush1.msra.mxu0 0.0
    %2801 = vmatprep.subr.mxu0 0.0
    %2802 = vmatpush1.msra.mxu0 0.0
    %2803 = vmatprep.subr.mxu0 0.0
    %2804 = vmatpush1.msra.mxu0 0.0
    %2805 = vmatprep.subr.mxu0 0.0
    %2806 = vmatpush1.msra.mxu0 0.0
    %2807 = vmatprep.subr.mxu0 0.0
    %2808 = vmatpush1.msra.mxu0 0.0
    %2809 = vmatprep.subr.mxu0 0.0
    %2810 = vmatpush1.msra.mxu0 0.0
    %2811 = vmatprep.subr.mxu0 0.0
    %2812 = vmatpush1.msra.mxu0 0.0
    %2813 = vmatprep.subr.mxu0 0.0
    %2814 = vmatpush1.msra.mxu0 0.0
    %2815 = vmatprep.subr.mxu0 0.0
    %2816 = vmatpush1.msra.mxu0 0.0
    %2817 = vmatprep.subr.mxu0 0.0
    %2818 = vmatpush1.msra.mxu0 0.0
    %2819 = vmatprep.subr.mxu0 0.0
    %2820 = vmatpush1.msra.mxu0 0.0
    %2821 = vmatprep.subr.mxu0 0.0
    %2822 = vmatpush1.msra.mxu0 0.0
    %2823 = vmatprep.subr.mxu0 0.0
    %2824 = vmatpush1.msra.mxu0 0.0
    %2825 = vmatprep.subr.mxu0 0.0
    %2826 = vmatpush1.msra.mxu0 0.0
    %2827 = vmatprep.subr.mxu0 0.0
    %2828 = vmatpush1.msra.mxu0 0.0
    %2829 = vmatprep.subr.mxu0 0.0
    %2830 = vmatpush1.msra.mxu0 0.0
    %2831 = vmatprep.subr.mxu0 0.0
    %2832 = vmatpush1.msra.mxu0 0.0
    %2833 = vmatprep.subr.mxu0 0.0
    %2834 = vmatpush1.msra.mxu0 0.0
    %2835 = vmatprep.subr.mxu0 0.0
    %2836 = vmatpush1.msra.mxu0 0.0
    %2837 = vmatprep.subr.mxu0 0.0
    %2838 = vmatpush1.msra.mxu0 0.0
    %2839 = vmatprep.subr.mxu0 0.0
    %2840 = vmatpush1.msra.mxu0 0.0
    %2841 = vmatprep.mubr.f32.mxu0 0.0
    %2842 = vmatmul.mubr.f32.gmra.mrb[0].mxu0 %v2772
    %v2843 = vpop.f32.mrb[0].mxu0
    %v2844 = vadd.f32 0.0, %v2843
    %v2845 = vpop.f32.mrb[0].mxu0
    %v2846 = vadd.f32 0.0, %v2845
    %2847 = vmatprep.mubr.f32.mxu0 0.0
    %2848 = vmatmul.mubr.f32.gmra.mrb[0].mxu0 %v2775
    %v2849 = vpop.f32.mrb[0].mxu0
    %v2850 = vadd.f32 0.0, %v2849
    %v2851 = vpop.f32.mrb[0].mxu0
    %v2852 = vadd.f32 0.0, %v2851
    %2853 = vdwg.mxu0
    %v2854 = vadd.f32 %v2846, 1e-06
    %v2855 = vadd.f32 %v2852, 1e-06
    %v2856 = vrcp.pop %v2854
    %v2857 = vrcp.pop %v2855
    %v2858 = vmul.f32 %v2844, %v2856
    %v2859 = vmul.f32 %v2850, %v2857
    %v2861 = vlaneseq
    %v2862 = vshrl.u32 %v2861, 7
    %v2863 = vsub.s32 0, %v2862
    %v2864 = vrot.slane %v443, %v2863
    %2866 = vmatprep.subr.mxu0 0.0
    %2867 = vmatpush1.msra.mxu0 %v427
    %2868 = vmatprep.subr.mxu0 0.0
    %2869 = vmatpush1.msra.mxu0 %v428
    %2870 = vmatprep.subr.mxu0 0.0
    %2871 = vmatpush1.msra.mxu0 %v429
    %2872 = vmatprep.subr.mxu0 0.0
    %2873 = vmatpush1.msra.mxu0 %v430
    %2874 = vmatprep.subr.mxu0 0.0
    %2875 = vmatpush1.msra.mxu0 %v431
    %2876 = vmatprep.subr.mxu0 0.0
    %2877 = vmatpush1.msra.mxu0 %v432
    %2878 = vmatprep.subr.mxu0 0.0
    %2879 = vmatpush1.msra.mxu0 %v433
    %2880 = vmatprep.subr.mxu0 0.0
    %2881 = vmatpush1.msra.mxu0 %v434
    %2882 = vmatprep.subr.mxu0 0.0
    %2883 = vmatpush1.msra.mxu0 %v435
    %2884 = vmatprep.subr.mxu0 0.0
    %2885 = vmatpush1.msra.mxu0 %v436
    %2886 = vmatprep.subr.mxu0 0.0
    %2887 = vmatpush1.msra.mxu0 %v437
    %2888 = vmatprep.subr.mxu0 0.0
    %2889 = vmatpush1.msra.mxu0 %v438
    %2890 = vmatprep.subr.mxu0 0.0
    %2891 = vmatpush1.msra.mxu0 %v439
    %2892 = vmatprep.subr.mxu0 0.0
    %2893 = vmatpush1.msra.mxu0 %v440
    %2894 = vmatprep.subr.mxu0 0.0
    %2895 = vmatpush1.msra.mxu0 %v441
    %2896 = vmatprep.subr.mxu0 0.0
    %2897 = vmatpush1.msra.mxu0 %v442
    %2898 = vmatprep.subr.mxu0 0.0
    %2899 = vmatpush1.msra.mxu0 0.0
    %2900 = vmatprep.subr.mxu0 0.0
    %2901 = vmatpush1.msra.mxu0 0.0
    %2902 = vmatprep.subr.mxu0 0.0
    %2903 = vmatpush1.msra.mxu0 0.0
    %2904 = vmatprep.subr.mxu0 0.0
    %2905 = vmatpush1.msra.mxu0 0.0
    %2906 = vmatprep.subr.mxu0 0.0
    %2907 = vmatpush1.msra.mxu0 0.0
    %2908 = vmatprep.subr.mxu0 0.0
    %2909 = vmatpush1.msra.mxu0 0.0
    %2910 = vmatprep.subr.mxu0 0.0
    %2911 = vmatpush1.msra.mxu0 0.0
    %2912 = vmatprep.subr.mxu0 0.0
    %2913 = vmatpush1.msra.mxu0 0.0
    %2914 = vmatprep.subr.mxu0 0.0
    %2915 = vmatpush1.msra.mxu0 0.0
    %2916 = vmatprep.subr.mxu0 0.0
    %2917 = vmatpush1.msra.mxu0 0.0
    %2918 = vmatprep.subr.mxu0 0.0
    %2919 = vmatpush1.msra.mxu0 0.0
    %2920 = vmatprep.subr.mxu0 0.0
    %2921 = vmatpush1.msra.mxu0 0.0
    %2922 = vmatprep.subr.mxu0 0.0
    %2923 = vmatpush1.msra.mxu0 0.0
    %2924 = vmatprep.subr.mxu0 0.0
    %2925 = vmatpush1.msra.mxu0 0.0
    %2926 = vmatprep.subr.mxu0 0.0
    %2927 = vmatpush1.msra.mxu0 0.0
    %2928 = vmatprep.subr.mxu0 0.0
    %2929 = vmatpush1.msra.mxu0 0.0
    %2930 = vmatprep.mubr.f32.mxu0 0.0
    %2931 = vmatmul.mubr.f32.gmra.mrb[0].mxu0 %v448
    %v2932 = vpop.f32.mrb[0].mxu0
    %v2933 = vadd.f32 %v2864, %v2932
    %v2934 = vpop.f32.mrb[0].mxu0
    %2935 = vmatprep.mubr.f32.mxu0 0.0
    %2936 = vmatmul.mubr.f32.gmra.mrb[0].mxu0 %v449
    %v2937 = vpop.f32.mrb[0].mxu0
    %v2938 = vadd.f32 %v2864, %v2937
    %v2939 = vpop.f32.mrb[0].mxu0
    %2940 = vdwg.mxu0
    %v2941 = vadd.f32 %v2933, %v2858
    %v2942 = vadd.f32 %v2938, %v2859
    %2943 = vadd.xlane.f32.xlu0 %v2941
    %v2944 = vpop.xlane.xlu0 %2943
    %2945 = vadd.xlane.f32.xlu0 %v2942
    %v2946 = vpop.xlane.xlu0 %2945
    %v2947 = vmul.f32 %v2944, %v1719
    %v2948 = vmul.f32 %v2946, %v1719
    %v2949 = vsub.f32 %v2941, %v2947
    %v2950 = vsub.f32 %v2942, %v2948
    %v2951 = vmul.f32 %v2949, %v2949
    %v2952 = vmul.f32 %v2950, %v2950
    %2953 = vadd.xlane.f32.xlu0 %v2951
    %v2954 = vpop.xlane.xlu0 %2953
    %2955 = vadd.xlane.f32.xlu0 %v2952
    %v2956 = vpop.xlane.xlu0 %2955
    %v2957 = vmul.f32 %v2954, %v1719
    %v2958 = vmul.f32 %v2956, %v1719
    %v2959 = vadd.f32 %v2957, 1e-05
    %v2960 = vadd.f32 %v2958, 1e-05
    %v2961 = vrsqrt.pop %v2959
    %v2962 = vrsqrt.pop %v2960
    %v2963 = vmul.f32 %v2949, %v2961
    %v2964 = vmul.f32 %v2950, %v2962
    %v2966 = vlaneseq
    %v2967 = vshrl.u32 %v2966, 7
    %v2968 = vsub.s32 0, %v2967
    %v2969 = vrot.slane %v444, %v2968
    %v2971 = vmul.f32 %v2963, %v2969
    %v2972 = vmul.f32 %v2964, %v2969
    %v2974 = vlaneseq
    %v2975 = vshrl.u32 %v2974, 7
    %v2976 = vsub.s32 0, %v2975
    %v2977 = vrot.slane %v445, %v2976
    %v2979 = vadd.f32 %v2971, %v2977
    %v2980 = vadd.f32 %v2972, %v2977
    %v2981 = vxor.u32 %v2979, 2147483648
    %v2982 = vxor.u32 %v2980, 2147483648
    %v2983 = vmul.f32 %v2981, 1.442695
    %v2984 = vpow.pop %v2983
    %v2985 = vmul.f32 %v2982, 1.442695
    %v2986 = vpow.pop %v2985
    %v2987 = vadd.f32 %v2984, 1.0
    %v2988 = vadd.f32 %v2986, 1.0
    %v2989 = vrcp.pop %v2987
    %v2990 = vmul.f32 1.0, %v2989
    %v2991 = vrcp.pop %v2988
    %v2992 = vmul.f32 1.0, %v2991
    %v2993 = vmul.f32 %v2979, %v2990
    %v2994 = vmul.f32 %v2980, %v2992
    %v2995 = vadd.f32 %v448, %v2993
    %v2996 = vadd.f32 %v449, %v2994
    %2997 = vadd.xlane.f32.xlu0 %v2600
    %v2998 = vpop.xlane.xlu0 %2997
    %2999 = vadd.xlane.f32.xlu0 %v2605
    %v3000 = vpop.xlane.xlu0 %2999
    %3001 = vadd.xlane.f32.xlu0 %v2610
    %v3002 = vpop.xlane.xlu0 %3001
    %3003 = vadd.xlane.f32.xlu0 %v2615
    %v3004 = vpop.xlane.xlu0 %3003
    %3005 = vadd.xlane.f32.xlu0 %v2620
    %v3006 = vpop.xlane.xlu0 %3005
    %3007 = vadd.xlane.f32.xlu0 %v2625
    %v3008 = vpop.xlane.xlu0 %3007
    %v3009 = vmul.f32 %v2998, %v1719
    %v3010 = vmul.f32 %v3000, %v1719
    %v3011 = vmul.f32 %v3002, %v1719
    %v3012 = vmul.f32 %v3004, %v1719
    %v3013 = vmul.f32 %v3006, %v1719
    %v3014 = vmul.f32 %v3008, %v1719
    %v3015 = vsub.f32 %v2600, %v3009
    %v3016 = vsub.f32 %v2605, %v3010
    %v3017 = vsub.f32 %v2610, %v3011
    %v3018 = vsub.f32 %v2615, %v3012
    %v3019 = vsub.f32 %v2620, %v3013
    %v3020 = vsub.f32 %v2625, %v3014
    %v3021 = vmul.f32 %v3015, %v3015
    %v3022 = vmul.f32 %v3016, %v3016
    %v3023 = vmul.f32 %v3017, %v3017
    %v3024 = vmul.f32 %v3018, %v3018
    %v3025 = vmul.f32 %v3019, %v3019
    %v3026 = vmul.f32 %v3020, %v3020
    %3027 = vadd.xlane.f32.xlu0 %v3021
    %v3028 = vpop.xlane.xlu0 %3027
    %3029 = vadd.xlane.f32.xlu0 %v3022
    %v3030 = vpop.xlane.xlu0 %3029
    %3031 = vadd.xlane.f32.xlu0 %v3023
    %v3032 = vpop.xlane.xlu0 %3031
    %3033 = vadd.xlane.f32.xlu0 %v3024
    %v3034 = vpop.xlane.xlu0 %3033
    %3035 = vadd.xlane.f32.xlu0 %v3025
    %v3036 = vpop.xlane.xlu0 %3035
    %3037 = vadd.xlane.f32.xlu0 %v3026
    %v3038 = vpop.xlane.xlu0 %3037
    %v3039 = vmul.f32 %v3028, %v1719
    %v3040 = vmul.f32 %v3030, %v1719
    %v3041 = vmul.f32 %v3032, %v1719
    %v3042 = vmul.f32 %v3034, %v1719
    %v3043 = vmul.f32 %v3036, %v1719
    %v3044 = vmul.f32 %v3038, %v1719
    %v3045 = vadd.f32 %v3039, 1e-05
    %v3046 = vadd.f32 %v3040, 1e-05
    %v3047 = vadd.f32 %v3041, 1e-05
    %v3048 = vadd.f32 %v3042, 1e-05
    %v3049 = vadd.f32 %v3043, 1e-05
    %v3050 = vadd.f32 %v3044, 1e-05
    %v3051 = vrsqrt.pop %v3045
    %v3052 = vrsqrt.pop %v3046
    %v3053 = vrsqrt.pop %v3047
    %v3054 = vrsqrt.pop %v3048
    %v3055 = vrsqrt.pop %v3049
    %v3056 = vrsqrt.pop %v3050
    %v3057 = vmul.f32 %v3015, %v3051
    %v3058 = vmul.f32 %v3016, %v3052
    %v3059 = vmul.f32 %v3017, %v3053
    %v3060 = vmul.f32 %v3018, %v3054
    %v3061 = vmul.f32 %v3019, %v3055
    %v3062 = vmul.f32 %v3020, %v3056
    %v3064 = vlaneseq
    %v3065 = vshrl.u32 %v3064, 7
    %v3066 = vsub.s32 0, %v3065
    %v3067 = vrot.slane %v446, %v3066
    %v3069 = vmul.f32 %v3057, %v3067
    %v3070 = vmul.f32 %v3058, %v3067
    %v3071 = vmul.f32 %v3059, %v3067
    %v3072 = vmul.f32 %v3060, %v3067
    %v3073 = vmul.f32 %v3061, %v3067
    %v3074 = vmul.f32 %v3062, %v3067
    %v3076 = vlaneseq
    %v3077 = vshrl.u32 %v3076, 7
    %v3078 = vsub.s32 0, %v3077
    %v3079 = vrot.slane %v447, %v3078
    %v3081 = vadd.f32 %v3069, %v3079
    %v3082 = vadd.f32 %v3070, %v3079
    %v3083 = vadd.f32 %v3071, %v3079
    %v3084 = vadd.f32 %v3072, %v3079
    %v3085 = vadd.f32 %v3073, %v3079
    %v3086 = vadd.f32 %v3074, %v3079
    %v3087 = vxor.u32 %v3081, 2147483648
    %v3088 = vxor.u32 %v3082, 2147483648
    %v3089 = vxor.u32 %v3083, 2147483648
    %v3090 = vxor.u32 %v3084, 2147483648
    %v3091 = vxor.u32 %v3085, 2147483648
    %v3092 = vxor.u32 %v3086, 2147483648
    %v3093 = vmul.f32 %v3087, 1.442695
    %v3094 = vpow.pop %v3093
    %v3095 = vmul.f32 %v3088, 1.442695
    %v3096 = vpow.pop %v3095
    %v3097 = vmul.f32 %v3089, 1.442695
    %v3098 = vpow.pop %v3097
    %v3099 = vmul.f32 %v3090, 1.442695
    %v3100 = vpow.pop %v3099
    %v3101 = vmul.f32 %v3091, 1.442695
    %v3102 = vpow.pop %v3101
    %v3103 = vmul.f32 %v3092, 1.442695
    %v3104 = vpow.pop %v3103
    %v3105 = vadd.f32 %v3094, 1.0
    %v3106 = vadd.f32 %v3096, 1.0
    %v3107 = vadd.f32 %v3098, 1.0
    %v3108 = vadd.f32 %v3100, 1.0
    %v3109 = vadd.f32 %v3102, 1.0
    %v3110 = vadd.f32 %v3104, 1.0
    %v3111 = vrcp.pop %v3105
    %v3112 = vmul.f32 1.0, %v3111
    %v3113 = vrcp.pop %v3106
    %v3114 = vmul.f32 1.0, %v3113
    %v3115 = vrcp.pop %v3107
    %v3116 = vmul.f32 1.0, %v3115
    %v3117 = vrcp.pop %v3108
    %v3118 = vmul.f32 1.0, %v3117
    %v3119 = vrcp.pop %v3109
    %v3120 = vmul.f32 1.0, %v3119
    %v3121 = vrcp.pop %v3110
    %v3122 = vmul.f32 1.0, %v3121
    %v3123 = vmul.f32 %v3081, %v3112
    %v3124 = vmul.f32 %v3082, %v3114
    %v3125 = vmul.f32 %v3083, %v3116
    %v3126 = vmul.f32 %v3084, %v3118
    %v3127 = vmul.f32 %v3085, %v3120
    %v3128 = vmul.f32 %v3086, %v3122
    %v3129 = vadd.f32 %v1840, %v3123
    %v3130 = vadd.f32 %v1841, %v3124
    %v3131 = vadd.f32 %v1842, %v3125
    %v3132 = vadd.f32 %v1843, %v3126
    %v3133 = vadd.f32 %v1844, %v3127
    %v3134 = vadd.f32 %v1845, %v3128
    %3135 = vst [vmem:[%s59] sm:$0xff] %v2995
    %3136 = vst [vmem:[%s59 + $0x8] sm:$0xff] %v2996
    %3137 = vst [vmem:[%s61] sm:$0xff] %v3129
    %3138 = vst [vmem:[%s61 + $0x8] sm:$0xff] %v3130
    %3139 = vst [vmem:[%s61 + $0x10] sm:$0xff] %v3131
    %3140 = vst [vmem:[%s61 + $0x18] sm:$0xff] %v3132
    %3141 = vst [vmem:[%s61 + $0x20] sm:$0xff] %v3133
    %3142 = vst [vmem:[%s61 + $0x28] sm:$0xff] %v3134
    %3143 = vst [vmem:[%s63] sm:$0xff] %v2098
    %3144 = vst [vmem:[%s63 + $0x8] sm:$0xff] %v2099
    %3145 = vst [vmem:[%s63 + $0x10] sm:$0xff] %v2100
    %3146 = vst [vmem:[%s63 + $0x18] sm:$0xff] %v2101
    %3147 = vst [vmem:[%s63 + $0x20] sm:$0xff] %v2102
    %3148 = vst [vmem:[%s63 + $0x28] sm:$0xff] %v2103
    %3149 = vst [vmem:[%s63 + $0x30] sm:$0xff] %v2104
    %3150 = vst [vmem:[%s63 + $0x38] sm:$0xff] %v2105
    %3151 = vst [vmem:[%s63 + $0x40] sm:$0xff] %v2106
    %3152 = vst [vmem:[%s63 + $0x48] sm:$0xff] %v2107
    %3153 = vst [vmem:[%s63 + $0x50] sm:$0xff] %v2108
    %3154 = vst [vmem:[%s63 + $0x58] sm:$0xff] %v2109
    // Predicated region
    $region166: #{alignn_forward.5} parent=1 // pred_check
      _
    $region167: #{alignn_forward.5} parent=1 // pred_check_branch
      %3156 = sbr.rel (0) target = $region169
    $region168: #{alignn_forward.5} parent=1 // pred_region
      _
    $region169: #{alignn_forward.5} parent=1 // pred_fallthru
      _
    // Predicated region
    $region170: #{alignn_forward.5} parent=1 // pred_check
      _
    $region171: #{alignn_forward.5} parent=1 // pred_check_branch
      %3158 = sbr.rel (0) target = $region173
    $region172: #{alignn_forward.5} parent=1 // pred_region
      _
    $region173: #{alignn_forward.5} parent=1 // pred_fallthru
      _
    // Predicated region
    $region174: #{alignn_forward.5} parent=1 // pred_check
      _
    $region175: #{alignn_forward.5} parent=1 // pred_check_branch
      %3160 = sbr.rel (0) target = $region177
    $region176: #{alignn_forward.5} parent=1 // pred_region
      _
    $region177: #{alignn_forward.5} parent=1 // pred_fallthru
      _
    // Predicated region
    $region178: #{alignn_forward.5} parent=1 // pred_check
      _
    $region179: #{alignn_forward.5} parent=1 // pred_check_branch
      %3162 = sbr.rel (0) target = $region181
    $region180: #{alignn_forward.5} parent=1 // pred_region
      _
    $region181: #{alignn_forward.5} parent=1 // pred_fallthru
      _
    // Predicated region
    $region182: #{alignn_forward.5} parent=1 // pred_check
      _
    $region183: #{alignn_forward.5} parent=1 // pred_check_branch
      %3164 = sbr.rel (0) target = $region185
    $region184: #{alignn_forward.5} parent=1 // pred_region
      _
    $region185: #{alignn_forward.5} parent=1 // pred_fallthru
      _
    // Predicated region
    $region186: #{alignn_forward.5} parent=1 // pred_check
      _
    $region187: #{alignn_forward.5} parent=1 // pred_check_branch
      %3166 = sbr.rel (0) target = $region189
    $region188: #{alignn_forward.5} parent=1 // pred_region
      _
    $region189: #{alignn_forward.5} parent=1 // pred_fallthru
      _
    %3167 = vsyncpa [#allocation3], 1
    %3168 = vsyncpa [#allocation5], 1
    %3169 = vsyncpa [#allocation8], 1
    %3170 = vsyncpa [#allocation11], 1
    %3171 = vsyncpa [#allocation14], 1
    %3172 = vsyncpa [#allocation17], 1
    %3173 = vsyncpa [#allocation20], 1

</llo_original>
